<compile_context>
chip_gen: v7x
topology: tpu7x:2x2x1
jax: 0.10.0
libtpu: 0.0.40
codegen_flags: <defaults>
</compile_context>

<pallas_src>
import functools

import numpy as np

import jax
import jax.numpy as jnp
from jax.experimental import pallas as pl
from jax.experimental.pallas import tpu as pltpu

NUM_CLASSES = 3
NUM_ANCHORS = 3
N_DIP_OPS = 4          # identity, gamma, contrast, white-balance
D_BOX = 5 + NUM_CLASSES
LANE = 128

STRIDES = (8.0, 16.0, 32.0)
ANCHORS = (
    ((1.25, 1.625), (2.0, 3.75), (4.125, 2.875)),
    ((1.875, 3.8125), (3.875, 2.8125), (3.6875, 7.4375)),
    ((3.625, 2.8125), (4.875, 6.1875), (11.65625, 10.1875)),
)


# --------------------------- in-kernel building blocks -----------------------

def _conv_step(x, p_ref, w_ref, b_ref, plan):
    """One 3x3 'same' conv on a VMEM-resident activation.

    x: [Hin, Win*Cin] f32.  p_ref: [Hin+2, Hin] bf16 row-rearrangement matrix
    (zero padding + stride-2 even/odd deinterleave).  w_ref: [3, Win*Cin,
    Wo*Cout] bf16 banded weights (W taps/padding/stride folded in).
    """
    ho, offs, leaky = plan
    xb = x.astype(jnp.bfloat16)
    # Row rearrangement as one tiny MXU dot (exact: P is a 0/1 matrix).
    xa = jnp.dot(p_ref[...], xb, preferred_element_type=jnp.float32)
    n = w_ref.shape[-1]
    acc = jnp.zeros((ho, n), jnp.float32)
    for di in range(3):
        lhs = xa[offs[di]:offs[di] + ho, :].astype(jnp.bfloat16)
        acc = acc + jnp.dot(lhs, w_ref[di], preferred_element_type=jnp.float32)
    acc = acc + b_ref[...]
    if leaky:
        acc = jnp.where(acc > 0.0, acc, 0.1 * acc)
    return acc


def _gdip_fused_kernel(*refs, conv_plans):
    """Per-batch: encoder convs + 3x (gate GEMM -> softmax -> gated DIP fusion)."""
    n_conv = len(conv_plans)
    img_ref = refs[0]
    conv_refs = refs[1:1 + 3 * n_conv]
    wb_ref = refs[1 + 3 * n_conv]
    gate_refs = refs[2 + 3 * n_conv:2 + 3 * n_conv + 2 * 3]
    out_img_ref, gates_ref = refs[-2], refs[-1]

    x = img_ref[0]                              # [H, W*3] f32 (assumed in [0,1])
    feats = []
    h = x
    for ci, plan in enumerate(conv_plans):
        p_ref, w_ref, b_ref = conv_refs[3 * ci:3 * ci + 3]
        h = _conv_step(h, p_ref, w_ref, b_ref, plan)
        feats.append(h)

    out = x
    wb_map = wb_ref[...]                        # [1, W*3] per-channel WB scale
    gate_rows = []
    for li in range(3):
        f = feats[n_conv - 1 - li]              # deepest level first
        gw_ref, gb_ref = gate_refs[2 * li:2 * li + 2]
        # spatial GAP: mean over rows here, mean over W pre-folded into gw.
        pooled = jnp.mean(f, axis=0, keepdims=True)        # [1, Wo*C]
        logits = jnp.dot(pooled.astype(jnp.bfloat16), gw_ref[...],
                         preferred_element_type=jnp.float32) + gb_ref[...]
        m = jnp.max(logits, axis=-1, keepdims=True)
        e = jnp.exp(logits - m)
        sm = e / jnp.sum(e, axis=-1, keepdims=True)         # [1, LANE]
        gate_rows.append(sm)
        gamma = jnp.exp(0.6 * jnp.log(jnp.clip(out, 1e-4, 1.0)))
        contrast = jnp.clip(1.5 * (out - 0.5) + 0.5, 0.0, 1.0)
        wb = out * wb_map
        out = jnp.clip(sm[:, 0:1] * out + sm[:, 1:2] * gamma +
                       sm[:, 2:3] * contrast + sm[:, 3:4] * wb, 0.0, 1.0)
    out_img_ref[0] = out
    gate_rows.append(jnp.zeros((8 - 3, LANE), jnp.float32))
    gates_ref[0] = jnp.concatenate(gate_rows, axis=0)       # one full (8,128) store


def _yolo_fused_kernel(*refs, conv_plans, head_feat_idx):
    """Per-batch: backbone convs + 1x1 heads + fused YOLO decode epilogue."""
    n_conv = len(conv_plans)
    n_head = len(head_feat_idx)
    x_ref = refs[0]
    conv_refs = refs[1:1 + 3 * n_conv]
    head_refs = refs[1 + 3 * n_conv:1 + 3 * n_conv + 3 * n_head]
    out_refs = refs[1 + 3 * n_conv + 3 * n_head:]

    h = x_ref[0]                                # enhanced image [H, W*3] f32
    feats = []
    for ci, plan in enumerate(conv_plans):
        p_ref, w_ref, b_ref = conv_refs[3 * ci:3 * ci + 3]
        h = _conv_step(h, p_ref, w_ref, b_ref, plan)
        feats.append(h)

    for hi, fi in enumerate(head_feat_idx):
        f = feats[fi]                                        # [Hi, Wi*Cin]
        hw_ref, hb_ref, dec_ref = head_refs[3 * hi:3 * hi + 3]
        p = jnp.dot(f.astype(jnp.bfloat16), hw_ref[...],
                    preferred_element_type=jnp.float32) + hb_ref[...]
        out_refs[hi][0] = p                                  # raw head output
        add, mul = dec_ref[0], dec_ref[1]
        is_xy, is_wh = dec_ref[2], dec_ref[3]
        sig = jax.nn.sigmoid(p)
        xy = (sig + add) * mul
        wh = jnp.exp(jnp.where(is_wh > 0.0, p, 0.0)) * mul
        out_refs[n_head + hi][0] = jnp.where(is_xy > 0.0, xy,
                                             jnp.where(is_wh > 0.0, wh, sig))


# --------------------------- pallas_call wrappers ----------------------------

def _const_spec(arr):
    zeros = (0,) * arr.ndim
    return pl.BlockSpec(arr.shape, lambda b, _z=zeros: _z)


def _batch_spec(shape):
    rest = tuple(shape[1:])
    zeros = (0,) * len(rest)
    return pl.BlockSpec((1,) + rest, lambda b, _z=zeros: (b,) + _z)


def gdip_forward(img2d, arrs, static):
    B, H, WC = img2d.shape
    inputs, in_specs = [img2d], [_batch_spec(img2d.shape)]
    for ca in arrs['enc']:
        for k in ('P', 'W', 'b'):
            inputs.append(ca[k]); in_specs.append(_const_spec(ca[k]))
    inputs.append(arrs['wb']); in_specs.append(_const_spec(arrs['wb']))
    for ga in arrs['gates']:
        for k in ('gw', 'gb'):
            inputs.append(ga[k]); in_specs.append(_const_spec(ga[k]))
    out_shape = (jax.ShapeDtypeStruct((B, H, WC), jnp.float32),
                 jax.ShapeDtypeStruct((B, 8, LANE), jnp.float32))
    out_specs = (pl.BlockSpec((1, H, WC), lambda b: (b, 0, 0)),
                 pl.BlockSpec((1, 8, LANE), lambda b: (b, 0, 0)))
    kern = functools.partial(_gdip_fused_kernel,
                             conv_plans=static['enc_plans'])
    return pl.pallas_call(
        kern, out_shape=out_shape, grid=(B,),
        in_specs=in_specs, out_specs=out_specs,
        compiler_params=pltpu.CompilerParams(
            dimension_semantics=("parallel",)),
    )(*inputs)


def yolo_forward(img2d, arrs, static):
    B = img2d.shape[0]
    inputs, in_specs = [img2d], [_batch_spec(img2d.shape)]
    for ca in arrs['bb']:
        for k in ('P', 'W', 'b'):
            inputs.append(ca[k]); in_specs.append(_const_spec(ca[k]))
    for ha in arrs['heads']:
        for k in ('hw', 'hb', 'dec'):
            inputs.append(ha[k]); in_specs.append(_const_spec(ha[k]))
    out_shape, out_specs = [], []
    for _ in range(2):                                   # p outputs, then p_d
        for (hi_, wi_) in static['scale_hw']:
            n = wi_ * NUM_ANCHORS * D_BOX
            out_shape.append(jax.ShapeDtypeStruct((B, hi_, n), jnp.float32))
            out_specs.append(pl.BlockSpec((1, hi_, n), lambda b: (b, 0, 0)))
    kern = functools.partial(_yolo_fused_kernel,
                             conv_plans=static['bb_plans'],
                             head_feat_idx=static['head_feat_idx'])
    outs = pl.pallas_call(
        kern, out_shape=tuple(out_shape), grid=(B,),
        in_specs=in_specs, out_specs=tuple(out_specs),
        compiler_params=pltpu.CompilerParams(
            dimension_semantics=("parallel",)),
    )(*inputs)
    p, p_d = [], []
    for (hi_, wi_), pr, pdr in zip(static['scale_hw'], outs[:3], outs[3:]):
        p.append(pr.reshape(B, hi_, wi_, NUM_ANCHORS, D_BOX))
        p_d.append(pdr.reshape(B, hi_, wi_, NUM_ANCHORS, D_BOX))
    return tuple(p), tuple(p_d)


# --------------------------- parameter / plan construction -------------------

def _conv_plan(hin, win, cin, cout, s, leaky=True):
    ho = (hin - 1) // s + 1
    wo = (win - 1) // s + 1
    hp = hin + 2
    if s == 1:
        offs = (0, 1, 2)
    else:
        hpe = (hp + 1) // 2            # number of even padded rows
        offs = (0, hpe, 1)
    return dict(s=s, Hin=hin, Win=win, Cin=cin, Cout=cout, Ho=ho, Wo=wo,
                offs=offs, leaky=leaky)


def _conv_arrays(key, plan):
    cin, cout, s = plan['Cin'], plan['Cout'], plan['s']
    hin, win, wo = plan['Hin'], plan['Win'], plan['Wo']
    hp = hin + 2
    fan_in = cin * 9
    w = np.asarray(jax.random.normal(key, (3, 3, cin, cout), jnp.float32))
    w = w * (2.0 / fan_in) ** 0.5                              # HWIO
    bias = np.zeros((cout,), np.float32)

    # Row-rearrangement matrix: zero padding in H; for stride 2 also the
    # even/odd row deinterleave (even padded rows first, then odd rows).
    P = np.zeros((hp, hin), np.float32)
    order = (list(range(hp)) if s == 1
             else list(range(0, hp, 2)) + list(range(1, hp, 2)))
    for k_, r in enumerate(order):
        if 1 <= r <= hin:
            P[k_, r - 1] = 1.0

    # Banded weights: W taps, W padding and W stride folded in; one matrix per
    # kernel row di (the 9 taps collapse to 3 dots).
    W = np.zeros((3, win * cin, wo * cout), np.float32)
    for di in range(3):
        for dj in range(3):
            for xo in range(wo):
                xi = s * xo + dj - 1
                if 0 <= xi < win:
                    W[di, xi * cin:(xi + 1) * cin,
                      xo * cout:(xo + 1) * cout] = w[di, dj]
    return dict(P=jnp.asarray(P, jnp.bfloat16),
                W=jnp.asarray(W, jnp.bfloat16),
                b=jnp.asarray(np.tile(bias, wo)[None, :], jnp.float32))


def _gate_arrays(key, wo, c):
    lw = np.asarray(jax.random.normal(key, (c, N_DIP_OPS), jnp.float32))
    lw = lw * (1.0 / c) ** 0.5
    gw = np.zeros((wo * c, LANE), np.float32)
    for xo in range(wo):
        gw[xo * c:(xo + 1) * c, :N_DIP_OPS] = lw / wo   # fold W-mean into gw
    gb = np.full((1, LANE), -1e9, np.float32)           # f32 lane mask (exact)
    gb[0, :N_DIP_OPS] = 0.0
    return dict(gw=jnp.asarray(gw, jnp.bfloat16), gb=jnp.asarray(gb, jnp.float32))


def _head_arrays(key, hi, wi, cin, anchors, stride):
    nch = NUM_ANCHORS * D_BOX
    w = np.asarray(jax.random.normal(key, (cin, nch), jnp.float32)) * 0.05
    bias = np.zeros((nch,), np.float32)
    HW = np.zeros((wi * cin, wi * nch), np.float32)     # 1x1 conv, block-diag
    for xo in range(wi):
        HW[xo * cin:(xo + 1) * cin, xo * nch:(xo + 1) * nch] = w
    hb = np.tile(bias, wi)[None, :]

    # Decode tables in the head-output layout [Hi, Wi*A*D]: add, mul, masks.
    n = wi * nch
    add = np.zeros((hi, n), np.float32)
    mul = np.ones((hi, n), np.float32)
    is_xy = np.zeros((hi, n), np.float32)
    is_wh = np.zeros((hi, n), np.float32)
    for y in range(hi):
        for xo in range(wi):
            for a in range(NUM_ANCHORS):
                c0 = xo * nch + a * D_BOX
                add[y, c0 + 0] = xo
                add[y, c0 + 1] = y
                mul[y, c0 + 0] = stride
                mul[y, c0 + 1] = stride
                mul[y, c0 + 2] = anchors[a][0] * stride
                mul[y, c0 + 3] = anchors[a][1] * stride
                is_xy[y, c0 + 0] = 1.0
                is_xy[y, c0 + 1] = 1.0
                is_wh[y, c0 + 2] = 1.0
                is_wh[y, c0 + 3] = 1.0
    dec = jnp.asarray(np.stack([add, mul, is_xy, is_wh], axis=0))
    return dict(hw=jnp.asarray(HW, jnp.bfloat16),
                hb=jnp.asarray(hb, jnp.float32), dec=dec)


def build_model(seed=42, H=32, W=32):
    keys = jax.random.split(jax.random.PRNGKey(seed), 16)
    arrs = dict(enc=[], gates=[], bb=[], heads=[])
    static = {}

    # MultiLevelGDIP encoder: 3 -> 8 -> 16 -> 32, each stride 2, LeakyReLU(0.1)
    enc_plans, h_, w_ = [], H, W
    for i, (cin, cout) in enumerate([(3, 8), (8, 16), (16, 32)]):
        plan = _conv_plan(h_, w_, cin, cout, s=2, leaky=True)
        arrs['enc'].append(_conv_arrays(keys[i], plan))
        enc_plans.append(plan)
        h_, w_ = plan['Ho'], plan['Wo']
    static['enc_plans'] = tuple((p['Ho'], p['offs'], p['leaky'])
                                for p in enc_plans)

    # Per-level gate heads, reversed=True -> deepest level first (32, 16, 8 ch)
    for li in range(3):
        plan = enc_plans[2 - li]
        arrs['gates'].append(_gate_arrays(keys[3 + li], plan['Wo'],
                                          plan['Cout']))

    # White-balance per-channel scale in the [H, W*3] image layout.
    wb_scale = np.array([0.9, 1.0, 1.1], np.float32)
    arrs['wb'] = jnp.asarray(np.tile(wb_scale, W)[None, :])

    # Tiny Yolov3 backbone: 3->8->16->32->64->96->128 (conv0 stride 1, rest 2)
    bb_defs = [(3, 8, 1), (8, 16, 2), (16, 32, 2),
               (32, 64, 2), (64, 96, 2), (96, 128, 2)]
    bb_plans, h_, w_ = [], H, W
    for i, (cin, cout, s) in enumerate(bb_defs):
        plan = _conv_plan(h_, w_, cin, cout, s=s, leaky=True)
        arrs['bb'].append(_conv_arrays(keys[6 + i], plan))
        bb_plans.append(plan)
        h_, w_ = plan['Ho'], plan['Wo']
    static['bb_plans'] = tuple((p['Ho'], p['offs'], p['leaky'])
                               for p in bb_plans)

    # Detection heads + fused decode tables on backbone feats 3, 4, 5.
    head_feat_idx = (3, 4, 5)
    scale_hw = []
    for hi_, (fi, anchors, stride) in enumerate(zip(head_feat_idx, ANCHORS,
                                                    STRIDES)):
        plan = bb_plans[fi]
        scale_hw.append((plan['Ho'], plan['Wo']))
        arrs['heads'].append(_head_arrays(keys[12 + hi_], plan['Ho'],
                                          plan['Wo'], plan['Cout'],
                                          anchors, stride))
    static['head_feat_idx'] = head_feat_idx
    static['scale_hw'] = tuple(scale_hw)
    return arrs, static


# --------------------------- model forward -----------------------------------

def yolov3_multi_gdip_forward(x_nchw, arrs, *, static):
    B, C, H, W = x_nchw.shape
    x2d = jnp.transpose(x_nchw, (0, 2, 3, 1)).reshape(B, H, W * C)
    x2d = x2d.astype(jnp.float32)
    out_img, gates_raw = gdip_forward(x2d, arrs, static)     # fused kernel A
    gates = tuple(gates_raw[:, lvl, :N_DIP_OPS] for lvl in range(3))
    p, p_d = yolo_forward(out_img, arrs, static)             # fused kernel B
    out_x = jnp.transpose(out_img.reshape(B, H, W, C), (0, 3, 1, 2))
    return out_x, gates, p, p_d


# --------------------------- main ---------------------------------------------

if __name__ == "__main__":
    B, H, W = 2, 32, 32
    arrs, static = build_model(seed=42, H=H, W=W)
    x = jax.random.uniform(jax.random.PRNGKey(0), (B, 3, H, W),
                           dtype=jnp.float32)
    fwd = jax.jit(functools.partial(yolov3_multi_gdip_forward, static=static))
    out_x, gates, p, p_d = jax.block_until_ready(fwd(x, arrs))
    assert out_x.shape == (B, 3, H, W)
    assert len(gates) == 3 and gates[0].shape == (B, N_DIP_OPS)
    assert p[0].shape == (B, 4, 4, 3, 8) and p_d[0].shape == (B, 4, 4, 3, 8)
    assert p[1].shape == (B, 2, 2, 3, 8) and p_d[1].shape == (B, 2, 2, 3, 8)
    assert p[2].shape == (B, 1, 1, 3, 8) and p_d[2].shape == (B, 1, 1, 3, 8)
    print("KERNEL_OK")
</pallas_src>

<mosaic_0001>
module attributes {stable_mosaic.version = 11 : i64} {
  func.func @_gdip_fused_kernel(%arg0: i32, %arg1: memref<1x32x96xf32, #tpu.memory_space<vmem>>, %arg2: memref<34x32xbf16, #tpu.memory_space<vmem>>, %arg3: memref<3x96x128xbf16, #tpu.memory_space<vmem>>, %arg4: memref<1x128xf32, #tpu.memory_space<vmem>>, %arg5: memref<18x16xbf16, #tpu.memory_space<vmem>>, %arg6: memref<3x128x128xbf16, #tpu.memory_space<vmem>>, %arg7: memref<1x128xf32, #tpu.memory_space<vmem>>, %arg8: memref<10x8xbf16, #tpu.memory_space<vmem>>, %arg9: memref<3x128x128xbf16, #tpu.memory_space<vmem>>, %arg10: memref<1x128xf32, #tpu.memory_space<vmem>>, %arg11: memref<1x96xf32, #tpu.memory_space<vmem>>, %arg12: memref<128x128xbf16, #tpu.memory_space<vmem>>, %arg13: memref<1x128xf32, #tpu.memory_space<vmem>>, %arg14: memref<128x128xbf16, #tpu.memory_space<vmem>>, %arg15: memref<1x128xf32, #tpu.memory_space<vmem>>, %arg16: memref<128x128xbf16, #tpu.memory_space<vmem>>, %arg17: memref<1x128xf32, #tpu.memory_space<vmem>>, %arg18: memref<1x32x96xf32, #tpu.memory_space<vmem>>, %arg19: memref<1x8x128xf32, #tpu.memory_space<vmem>>) attributes {dimension_semantics = [#tpu.dimension_semantics<parallel>], iteration_bounds = array<i64: 2>, scalar_prefetch = 0 : i64, scratch_operands = 0 : i64, tpu.core_type = #tpu.core_type<tc>, window_params = [{transform_indices = @transform_0, window_bounds = array<i64: 1, 32, 96>}, {pipeline_mode = #tpu.pipeline_mode<synchronous>, transform_indices = @transform_1, window_bounds = array<i64: 34, 32>}, {pipeline_mode = #tpu.pipeline_mode<synchronous>, transform_indices = @transform_2, window_bounds = array<i64: 3, 96, 128>}, {pipeline_mode = #tpu.pipeline_mode<synchronous>, transform_indices = @transform_3, window_bounds = array<i64: 1, 128>}, {pipeline_mode = #tpu.pipeline_mode<synchronous>, transform_indices = @transform_4, window_bounds = array<i64: 18, 16>}, {pipeline_mode = #tpu.pipeline_mode<synchronous>, transform_indices = @transform_5, window_bounds = array<i64: 3, 128, 128>}, {pipeline_mode = #tpu.pipeline_mode<synchronous>, transform_indices = @transform_6, window_bounds = array<i64: 1, 128>}, {pipeline_mode = #tpu.pipeline_mode<synchronous>, transform_indices = @transform_7, window_bounds = array<i64: 10, 8>}, {pipeline_mode = #tpu.pipeline_mode<synchronous>, transform_indices = @transform_8, window_bounds = array<i64: 3, 128, 128>}, {pipeline_mode = #tpu.pipeline_mode<synchronous>, transform_indices = @transform_9, window_bounds = array<i64: 1, 128>}, {pipeline_mode = #tpu.pipeline_mode<synchronous>, transform_indices = @transform_10, window_bounds = array<i64: 1, 96>}, {pipeline_mode = #tpu.pipeline_mode<synchronous>, transform_indices = @transform_11, window_bounds = array<i64: 128, 128>}, {pipeline_mode = #tpu.pipeline_mode<synchronous>, transform_indices = @transform_12, window_bounds = array<i64: 1, 128>}, {pipeline_mode = #tpu.pipeline_mode<synchronous>, transform_indices = @transform_13, window_bounds = array<i64: 128, 128>}, {pipeline_mode = #tpu.pipeline_mode<synchronous>, transform_indices = @transform_14, window_bounds = array<i64: 1, 128>}, {pipeline_mode = #tpu.pipeline_mode<synchronous>, transform_indices = @transform_15, window_bounds = array<i64: 128, 128>}, {pipeline_mode = #tpu.pipeline_mode<synchronous>, transform_indices = @transform_16, window_bounds = array<i64: 1, 128>}, {transform_indices = @transform_17, window_bounds = array<i64: 1, 32, 96>}, {transform_indices = @transform_18, window_bounds = array<i64: 1, 8, 128>}]} {
    %c0 = arith.constant 0 : index
    %c0_0 = arith.constant 0 : index
    %c0_1 = arith.constant 0 : index
    %0 = vector.load %arg1[%c0, %c0_0, %c0_1] : memref<1x32x96xf32, #tpu.memory_space<vmem>>, vector<1x32x96xf32>
    %1 = vector.shape_cast %0 : vector<1x32x96xf32> to vector<32x96xf32>
    %2 = arith.truncf %1 : vector<32x96xf32> to vector<32x96xbf16>
    %c0_2 = arith.constant 0 : index
    %c0_3 = arith.constant 0 : index
    %3 = vector.load %arg2[%c0_2, %c0_3] : memref<34x32xbf16, #tpu.memory_space<vmem>>, vector<34x32xbf16>
    %cst = arith.constant dense<0.000000e+00> : vector<34x96xf32>
    %4 = tpu.matmul %3, %2, %cst {dimension_numbers = #tpu.dot_dimension_numbers<[1], [0], [0], [1], [0, 0, 1, 1], [], []>} : vector<34x32xbf16>, vector<32x96xbf16>, vector<34x96xf32> -> vector<34x96xf32>
    %cst_4 = arith.constant 0.000000e+00 : f32
    %5 = vector.broadcast %cst_4 : f32 to vector<16x128xf32>
    %6 = vector.extract_strided_slice %4 {offsets = [0, 0], sizes = [16, 96], strides = [1, 1]} : vector<34x96xf32> to vector<16x96xf32>
    %7 = arith.truncf %6 : vector<16x96xf32> to vector<16x96xbf16>
    %c0_5 = arith.constant 0 : index
    %c0_6 = arith.constant 0 : index
    %c0_7 = arith.constant 0 : index
    %8 = vector.load %arg3[%c0_5, %c0_6, %c0_7] : memref<3x96x128xbf16, #tpu.memory_space<vmem>>, vector<1x96x128xbf16>
    %9 = vector.shape_cast %8 : vector<1x96x128xbf16> to vector<96x128xbf16>
    %cst_8 = arith.constant dense<0.000000e+00> : vector<16x128xf32>
    %10 = tpu.matmul %7, %9, %cst_8 {dimension_numbers = #tpu.dot_dimension_numbers<[1], [0], [0], [1], [0, 0, 1, 1], [], []>} : vector<16x96xbf16>, vector<96x128xbf16>, vector<16x128xf32> -> vector<16x128xf32>
    %11 = arith.addf %5, %10 : vector<16x128xf32>
    %12 = vector.extract_strided_slice %4 {offsets = [17, 0], sizes = [16, 96], strides = [1, 1]} : vector<34x96xf32> to vector<16x96xf32>
    %13 = arith.truncf %12 : vector<16x96xf32> to vector<16x96xbf16>
    %c1 = arith.constant 1 : index
    %c0_9 = arith.constant 0 : index
    %c0_10 = arith.constant 0 : index
    %14 = vector.load %arg3[%c1, %c0_9, %c0_10] : memref<3x96x128xbf16, #tpu.memory_space<vmem>>, vector<1x96x128xbf16>
    %15 = vector.shape_cast %14 : vector<1x96x128xbf16> to vector<96x128xbf16>
    %cst_11 = arith.constant dense<0.000000e+00> : vector<16x128xf32>
    %16 = tpu.matmul %13, %15, %cst_11 {dimension_numbers = #tpu.dot_dimension_numbers<[1], [0], [0], [1], [0, 0, 1, 1], [], []>} : vector<16x96xbf16>, vector<96x128xbf16>, vector<16x128xf32> -> vector<16x128xf32>
    %17 = arith.addf %11, %16 : vector<16x128xf32>
    %18 = vector.extract_strided_slice %4 {offsets = [1, 0], sizes = [16, 96], strides = [1, 1]} : vector<34x96xf32> to vector<16x96xf32>
    %19 = arith.truncf %18 : vector<16x96xf32> to vector<16x96xbf16>
    %c2 = arith.constant 2 : index
    %c0_12 = arith.constant 0 : index
    %c0_13 = arith.constant 0 : index
    %20 = vector.load %arg3[%c2, %c0_12, %c0_13] : memref<3x96x128xbf16, #tpu.memory_space<vmem>>, vector<1x96x128xbf16>
    %21 = vector.shape_cast %20 : vector<1x96x128xbf16> to vector<96x128xbf16>
    %cst_14 = arith.constant dense<0.000000e+00> : vector<16x128xf32>
    %22 = tpu.matmul %19, %21, %cst_14 {dimension_numbers = #tpu.dot_dimension_numbers<[1], [0], [0], [1], [0, 0, 1, 1], [], []>} : vector<16x96xbf16>, vector<96x128xbf16>, vector<16x128xf32> -> vector<16x128xf32>
    %23 = arith.addf %17, %22 : vector<16x128xf32>
    %c0_15 = arith.constant 0 : index
    %c0_16 = arith.constant 0 : index
    %24 = vector.load %arg4[%c0_15, %c0_16] : memref<1x128xf32, #tpu.memory_space<vmem>>, vector<1x128xf32>
    %25 = vector.broadcast %24 : vector<1x128xf32> to vector<16x128xf32>
    %26 = arith.addf %23, %25 : vector<16x128xf32>
    %cst_17 = arith.constant 0.000000e+00 : f32
    %27 = vector.broadcast %cst_17 : f32 to vector<16x128xf32>
    %28 = arith.cmpf ogt, %26, %27 : vector<16x128xf32>
    %cst_18 = arith.constant 1.000000e-01 : f32
    %29 = vector.broadcast %cst_18 : f32 to vector<16x128xf32>
    %30 = arith.mulf %29, %26 : vector<16x128xf32>
    %31 = arith.select %28, %26, %30 : vector<16x128xi1>, vector<16x128xf32>
    %32 = arith.truncf %31 : vector<16x128xf32> to vector<16x128xbf16>
    %c0_19 = arith.constant 0 : index
    %c0_20 = arith.constant 0 : index
    %33 = vector.load %arg5[%c0_19, %c0_20] : memref<18x16xbf16, #tpu.memory_space<vmem>>, vector<18x16xbf16>
    %cst_21 = arith.constant dense<0.000000e+00> : vector<18x128xf32>
    %34 = tpu.matmul %33, %32, %cst_21 {dimension_numbers = #tpu.dot_dimension_numbers<[1], [0], [0], [1], [0, 0, 1, 1], [], []>} : vector<18x16xbf16>, vector<16x128xbf16>, vector<18x128xf32> -> vector<18x128xf32>
    %cst_22 = arith.constant 0.000000e+00 : f32
    %35 = vector.broadcast %cst_22 : f32 to vector<8x128xf32>
    %36 = vector.extract_strided_slice %34 {offsets = [0, 0], sizes = [8, 128], strides = [1, 1]} : vector<18x128xf32> to vector<8x128xf32>
    %37 = arith.truncf %36 : vector<8x128xf32> to vector<8x128xbf16>
    %c0_23 = arith.constant 0 : index
    %c0_24 = arith.constant 0 : index
    %c0_25 = arith.constant 0 : index
    %38 = vector.load %arg6[%c0_23, %c0_24, %c0_25] : memref<3x128x128xbf16, #tpu.memory_space<vmem>>, vector<1x128x128xbf16>
    %39 = vector.shape_cast %38 : vector<1x128x128xbf16> to vector<128x128xbf16>
    %cst_26 = arith.constant dense<0.000000e+00> : vector<8x128xf32>
    %40 = tpu.matmul %37, %39, %cst_26 {dimension_numbers = #tpu.dot_dimension_numbers<[1], [0], [0], [1], [0, 0, 1, 1], [], []>} : vector<8x128xbf16>, vector<128x128xbf16>, vector<8x128xf32> -> vector<8x128xf32>
    %41 = arith.addf %35, %40 : vector<8x128xf32>
    %42 = vector.extract_strided_slice %34 {offsets = [9, 0], sizes = [8, 128], strides = [1, 1]} : vector<18x128xf32> to vector<8x128xf32>
    %43 = arith.truncf %42 : vector<8x128xf32> to vector<8x128xbf16>
    %c1_27 = arith.constant 1 : index
    %c0_28 = arith.constant 0 : index
    %c0_29 = arith.constant 0 : index
    %44 = vector.load %arg6[%c1_27, %c0_28, %c0_29] : memref<3x128x128xbf16, #tpu.memory_space<vmem>>, vector<1x128x128xbf16>
    %45 = vector.shape_cast %44 : vector<1x128x128xbf16> to vector<128x128xbf16>
    %cst_30 = arith.constant dense<0.000000e+00> : vector<8x128xf32>
    %46 = tpu.matmul %43, %45, %cst_30 {dimension_numbers = #tpu.dot_dimension_numbers<[1], [0], [0], [1], [0, 0, 1, 1], [], []>} : vector<8x128xbf16>, vector<128x128xbf16>, vector<8x128xf32> -> vector<8x128xf32>
    %47 = arith.addf %41, %46 : vector<8x128xf32>
    %48 = vector.extract_strided_slice %34 {offsets = [1, 0], sizes = [8, 128], strides = [1, 1]} : vector<18x128xf32> to vector<8x128xf32>
    %49 = arith.truncf %48 : vector<8x128xf32> to vector<8x128xbf16>
    %c2_31 = arith.constant 2 : index
    %c0_32 = arith.constant 0 : index
    %c0_33 = arith.constant 0 : index
    %50 = vector.load %arg6[%c2_31, %c0_32, %c0_33] : memref<3x128x128xbf16, #tpu.memory_space<vmem>>, vector<1x128x128xbf16>
    %51 = vector.shape_cast %50 : vector<1x128x128xbf16> to vector<128x128xbf16>
    %cst_34 = arith.constant dense<0.000000e+00> : vector<8x128xf32>
    %52 = tpu.matmul %49, %51, %cst_34 {dimension_numbers = #tpu.dot_dimension_numbers<[1], [0], [0], [1], [0, 0, 1, 1], [], []>} : vector<8x128xbf16>, vector<128x128xbf16>, vector<8x128xf32> -> vector<8x128xf32>
    %53 = arith.addf %47, %52 : vector<8x128xf32>
    %c0_35 = arith.constant 0 : index
    %c0_36 = arith.constant 0 : index
    %54 = vector.load %arg7[%c0_35, %c0_36] : memref<1x128xf32, #tpu.memory_space<vmem>>, vector<1x128xf32>
    %55 = vector.broadcast %54 : vector<1x128xf32> to vector<8x128xf32>
    %56 = arith.addf %53, %55 : vector<8x128xf32>
    %cst_37 = arith.constant 0.000000e+00 : f32
    %57 = vector.broadcast %cst_37 : f32 to vector<8x128xf32>
    %58 = arith.cmpf ogt, %56, %57 : vector<8x128xf32>
    %cst_38 = arith.constant 1.000000e-01 : f32
    %59 = vector.broadcast %cst_38 : f32 to vector<8x128xf32>
    %60 = arith.mulf %59, %56 : vector<8x128xf32>
    %61 = arith.select %58, %56, %60 : vector<8x128xi1>, vector<8x128xf32>
    %62 = arith.truncf %61 : vector<8x128xf32> to vector<8x128xbf16>
    %c0_39 = arith.constant 0 : index
    %c0_40 = arith.constant 0 : index
    %63 = vector.load %arg8[%c0_39, %c0_40] : memref<10x8xbf16, #tpu.memory_space<vmem>>, vector<10x8xbf16>
    %cst_41 = arith.constant dense<0.000000e+00> : vector<10x128xf32>
    %64 = tpu.matmul %63, %62, %cst_41 {dimension_numbers = #tpu.dot_dimension_numbers<[1], [0], [0], [1], [0, 0, 1, 1], [], []>} : vector<10x8xbf16>, vector<8x128xbf16>, vector<10x128xf32> -> vector<10x128xf32>
    %cst_42 = arith.constant 0.000000e+00 : f32
    %65 = vector.broadcast %cst_42 : f32 to vector<4x128xf32>
    %66 = vector.extract_strided_slice %64 {offsets = [0, 0], sizes = [4, 128], strides = [1, 1]} : vector<10x128xf32> to vector<4x128xf32>
    %67 = arith.truncf %66 : vector<4x128xf32> to vector<4x128xbf16>
    %c0_43 = arith.constant 0 : index
    %c0_44 = arith.constant 0 : index
    %c0_45 = arith.constant 0 : index
    %68 = vector.load %arg9[%c0_43, %c0_44, %c0_45] : memref<3x128x128xbf16, #tpu.memory_space<vmem>>, vector<1x128x128xbf16>
    %69 = vector.shape_cast %68 : vector<1x128x128xbf16> to vector<128x128xbf16>
    %cst_46 = arith.constant dense<0.000000e+00> : vector<4x128xf32>
    %70 = tpu.matmul %67, %69, %cst_46 {dimension_numbers = #tpu.dot_dimension_numbers<[1], [0], [0], [1], [0, 0, 1, 1], [], []>} : vector<4x128xbf16>, vector<128x128xbf16>, vector<4x128xf32> -> vector<4x128xf32>
    %71 = arith.addf %65, %70 : vector<4x128xf32>
    %72 = vector.extract_strided_slice %64 {offsets = [5, 0], sizes = [4, 128], strides = [1, 1]} : vector<10x128xf32> to vector<4x128xf32>
    %73 = arith.truncf %72 : vector<4x128xf32> to vector<4x128xbf16>
    %c1_47 = arith.constant 1 : index
    %c0_48 = arith.constant 0 : index
    %c0_49 = arith.constant 0 : index
    %74 = vector.load %arg9[%c1_47, %c0_48, %c0_49] : memref<3x128x128xbf16, #tpu.memory_space<vmem>>, vector<1x128x128xbf16>
    %75 = vector.shape_cast %74 : vector<1x128x128xbf16> to vector<128x128xbf16>
    %cst_50 = arith.constant dense<0.000000e+00> : vector<4x128xf32>
    %76 = tpu.matmul %73, %75, %cst_50 {dimension_numbers = #tpu.dot_dimension_numbers<[1], [0], [0], [1], [0, 0, 1, 1], [], []>} : vector<4x128xbf16>, vector<128x128xbf16>, vector<4x128xf32> -> vector<4x128xf32>
    %77 = arith.addf %71, %76 : vector<4x128xf32>
    %78 = vector.extract_strided_slice %64 {offsets = [1, 0], sizes = [4, 128], strides = [1, 1]} : vector<10x128xf32> to vector<4x128xf32>
    %79 = arith.truncf %78 : vector<4x128xf32> to vector<4x128xbf16>
    %c2_51 = arith.constant 2 : index
    %c0_52 = arith.constant 0 : index
    %c0_53 = arith.constant 0 : index
    %80 = vector.load %arg9[%c2_51, %c0_52, %c0_53] : memref<3x128x128xbf16, #tpu.memory_space<vmem>>, vector<1x128x128xbf16>
    %81 = vector.shape_cast %80 : vector<1x128x128xbf16> to vector<128x128xbf16>
    %cst_54 = arith.constant dense<0.000000e+00> : vector<4x128xf32>
    %82 = tpu.matmul %79, %81, %cst_54 {dimension_numbers = #tpu.dot_dimension_numbers<[1], [0], [0], [1], [0, 0, 1, 1], [], []>} : vector<4x128xbf16>, vector<128x128xbf16>, vector<4x128xf32> -> vector<4x128xf32>
    %83 = arith.addf %77, %82 : vector<4x128xf32>
    %c0_55 = arith.constant 0 : index
    %c0_56 = arith.constant 0 : index
    %84 = vector.load %arg10[%c0_55, %c0_56] : memref<1x128xf32, #tpu.memory_space<vmem>>, vector<1x128xf32>
    %85 = vector.broadcast %84 : vector<1x128xf32> to vector<4x128xf32>
    %86 = arith.addf %83, %85 : vector<4x128xf32>
    %cst_57 = arith.constant 0.000000e+00 : f32
    %87 = vector.broadcast %cst_57 : f32 to vector<4x128xf32>
    %88 = arith.cmpf ogt, %86, %87 : vector<4x128xf32>
    %cst_58 = arith.constant 1.000000e-01 : f32
    %89 = vector.broadcast %cst_58 : f32 to vector<4x128xf32>
    %90 = arith.mulf %89, %86 : vector<4x128xf32>
    %91 = arith.select %88, %86, %90 : vector<4x128xi1>, vector<4x128xf32>
    %c0_59 = arith.constant 0 : index
    %c0_60 = arith.constant 0 : index
    %92 = vector.load %arg11[%c0_59, %c0_60] : memref<1x96xf32, #tpu.memory_space<vmem>>, vector<1x96xf32>
    %cst_61 = arith.constant dense<0.000000e+00> : vector<128xf32>
    %93 = vector.multi_reduction <add>, %91, %cst_61 [0] : vector<4x128xf32> to vector<128xf32>
    %94 = vector.shape_cast %93 : vector<128xf32> to vector<1x128xf32>
    %cst_62 = arith.constant 4.000000e+00 : f32
    %95 = vector.broadcast %cst_62 : f32 to vector<1x128xf32>
    %96 = arith.divf %94, %95 : vector<1x128xf32>
    %97 = arith.truncf %96 : vector<1x128xf32> to vector<1x128xbf16>
    %c0_63 = arith.constant 0 : index
    %c0_64 = arith.constant 0 : index
    %98 = vector.load %arg12[%c0_63, %c0_64] : memref<128x128xbf16, #tpu.memory_space<vmem>>, vector<128x128xbf16>
    %cst_65 = arith.constant dense<0.000000e+00> : vector<1x128xf32>
    %99 = tpu.matmul %97, %98, %cst_65 {dimension_numbers = #tpu.dot_dimension_numbers<[1], [0], [0], [1], [0, 0, 1, 1], [], []>} : vector<1x128xbf16>, vector<128x128xbf16>, vector<1x128xf32> -> vector<1x128xf32>
    %c0_66 = arith.constant 0 : index
    %c0_67 = arith.constant 0 : index
    %100 = vector.load %arg13[%c0_66, %c0_67] : memref<1x128xf32, #tpu.memory_space<vmem>>, vector<1x128xf32>
    %101 = arith.addf %99, %100 : vector<1x128xf32>
    %cst_68 = arith.constant dense<0xFF800000> : vector<1xf32>
    %102 = vector.multi_reduction <maximumf>, %101, %cst_68 [1] : vector<1x128xf32> to vector<1xf32>
    %103 = vector.shape_cast %102 : vector<1xf32> to vector<1x1xf32>
    %104 = vector.broadcast %103 : vector<1x1xf32> to vector<1x128xf32>
    %105 = arith.subf %101, %104 : vector<1x128xf32>
    %106 = math.exp %105 : vector<1x128xf32>
    %cst_69 = arith.constant dense<0.000000e+00> : vector<1xf32>
    %107 = vector.multi_reduction <add>, %106, %cst_69 [1] : vector<1x128xf32> to vector<1xf32>
    %108 = vector.shape_cast %107 : vector<1xf32> to vector<1x1xf32>
    %109 = vector.broadcast %108 : vector<1x1xf32> to vector<1x128xf32>
    %110 = arith.divf %106, %109 : vector<1x128xf32>
    %cst_70 = arith.constant 9.99999974E-5 : f32
    %cst_71 = arith.constant 1.000000e+00 : f32
    %111 = vector.broadcast %cst_70 : f32 to vector<32x96xf32>
    %112 = arith.maximumf %111, %1 : vector<32x96xf32>
    %113 = vector.broadcast %cst_71 : f32 to vector<32x96xf32>
    %114 = arith.minimumf %113, %112 : vector<32x96xf32>
    %115 = math.log %114 : vector<32x96xf32>
    %cst_72 = arith.constant 6.000000e-01 : f32
    %116 = vector.broadcast %cst_72 : f32 to vector<32x96xf32>
    %117 = arith.mulf %116, %115 : vector<32x96xf32>
    %118 = math.exp %117 : vector<32x96xf32>
    %cst_73 = arith.constant 5.000000e-01 : f32
    %119 = vector.broadcast %cst_73 : f32 to vector<32x96xf32>
    %120 = arith.subf %1, %119 : vector<32x96xf32>
    %cst_74 = arith.constant 1.500000e+00 : f32
    %121 = vector.broadcast %cst_74 : f32 to vector<32x96xf32>
    %122 = arith.mulf %121, %120 : vector<32x96xf32>
    %cst_75 = arith.constant 5.000000e-01 : f32
    %123 = vector.broadcast %cst_75 : f32 to vector<32x96xf32>
    %124 = arith.addf %122, %123 : vector<32x96xf32>
    %cst_76 = arith.constant 0.000000e+00 : f32
    %cst_77 = arith.constant 1.000000e+00 : f32
    %125 = vector.broadcast %cst_76 : f32 to vector<32x96xf32>
    %126 = arith.maximumf %125, %124 : vector<32x96xf32>
    %127 = vector.broadcast %cst_77 : f32 to vector<32x96xf32>
    %128 = arith.minimumf %127, %126 : vector<32x96xf32>
    %129 = vector.broadcast %92 : vector<1x96xf32> to vector<32x96xf32>
    %130 = arith.mulf %1, %129 : vector<32x96xf32>
    %131 = vector.extract_strided_slice %110 {offsets = [0, 0], sizes = [1, 1], strides = [1, 1]} : vector<1x128xf32> to vector<1x1xf32>
    %132 = vector.broadcast %131 : vector<1x1xf32> to vector<32x96xf32>
    %133 = arith.mulf %132, %1 : vector<32x96xf32>
    %134 = vector.extract_strided_slice %110 {offsets = [0, 1], sizes = [1, 1], strides = [1, 1]} : vector<1x128xf32> to vector<1x1xf32>
    %135 = vector.broadcast %134 : vector<1x1xf32> to vector<32x96xf32>
    %136 = arith.mulf %135, %118 : vector<32x96xf32>
    %137 = arith.addf %133, %136 : vector<32x96xf32>
    %138 = vector.extract_strided_slice %110 {offsets = [0, 2], sizes = [1, 1], strides = [1, 1]} : vector<1x128xf32> to vector<1x1xf32>
    %139 = vector.broadcast %138 : vector<1x1xf32> to vector<32x96xf32>
    %140 = arith.mulf %139, %128 : vector<32x96xf32>
    %141 = arith.addf %137, %140 : vector<32x96xf32>
    %142 = vector.extract_strided_slice %110 {offsets = [0, 3], sizes = [1, 1], strides = [1, 1]} : vector<1x128xf32> to vector<1x1xf32>
    %143 = vector.broadcast %142 : vector<1x1xf32> to vector<32x96xf32>
    %144 = arith.mulf %143, %130 : vector<32x96xf32>
    %145 = arith.addf %141, %144 : vector<32x96xf32>
    %cst_78 = arith.constant 0.000000e+00 : f32
    %cst_79 = arith.constant 1.000000e+00 : f32
    %146 = vector.broadcast %cst_78 : f32 to vector<32x96xf32>
    %147 = arith.maximumf %146, %145 : vector<32x96xf32>
    %148 = vector.broadcast %cst_79 : f32 to vector<32x96xf32>
    %149 = arith.minimumf %148, %147 : vector<32x96xf32>
    %cst_80 = arith.constant dense<0.000000e+00> : vector<128xf32>
    %150 = vector.multi_reduction <add>, %61, %cst_80 [0] : vector<8x128xf32> to vector<128xf32>
    %151 = vector.shape_cast %150 : vector<128xf32> to vector<1x128xf32>
    %cst_81 = arith.constant 8.000000e+00 : f32
    %152 = vector.broadcast %cst_81 : f32 to vector<1x128xf32>
    %153 = arith.divf %151, %152 : vector<1x128xf32>
    %154 = arith.truncf %153 : vector<1x128xf32> to vector<1x128xbf16>
    %c0_82 = arith.constant 0 : index
    %c0_83 = arith.constant 0 : index
    %155 = vector.load %arg14[%c0_82, %c0_83] : memref<128x128xbf16, #tpu.memory_space<vmem>>, vector<128x128xbf16>
    %cst_84 = arith.constant dense<0.000000e+00> : vector<1x128xf32>
    %156 = tpu.matmul %154, %155, %cst_84 {dimension_numbers = #tpu.dot_dimension_numbers<[1], [0], [0], [1], [0, 0, 1, 1], [], []>} : vector<1x128xbf16>, vector<128x128xbf16>, vector<1x128xf32> -> vector<1x128xf32>
    %c0_85 = arith.constant 0 : index
    %c0_86 = arith.constant 0 : index
    %157 = vector.load %arg15[%c0_85, %c0_86] : memref<1x128xf32, #tpu.memory_space<vmem>>, vector<1x128xf32>
    %158 = arith.addf %156, %157 : vector<1x128xf32>
    %cst_87 = arith.constant dense<0xFF800000> : vector<1xf32>
    %159 = vector.multi_reduction <maximumf>, %158, %cst_87 [1] : vector<1x128xf32> to vector<1xf32>
    %160 = vector.shape_cast %159 : vector<1xf32> to vector<1x1xf32>
    %161 = vector.broadcast %160 : vector<1x1xf32> to vector<1x128xf32>
    %162 = arith.subf %158, %161 : vector<1x128xf32>
    %163 = math.exp %162 : vector<1x128xf32>
    %cst_88 = arith.constant dense<0.000000e+00> : vector<1xf32>
    %164 = vector.multi_reduction <add>, %163, %cst_88 [1] : vector<1x128xf32> to vector<1xf32>
    %165 = vector.shape_cast %164 : vector<1xf32> to vector<1x1xf32>
    %166 = vector.broadcast %165 : vector<1x1xf32> to vector<1x128xf32>
    %167 = arith.divf %163, %166 : vector<1x128xf32>
    %cst_89 = arith.constant 9.99999974E-5 : f32
    %cst_90 = arith.constant 1.000000e+00 : f32
    %168 = vector.broadcast %cst_89 : f32 to vector<32x96xf32>
    %169 = arith.maximumf %168, %149 : vector<32x96xf32>
    %170 = vector.broadcast %cst_90 : f32 to vector<32x96xf32>
    %171 = arith.minimumf %170, %169 : vector<32x96xf32>
    %172 = math.log %171 : vector<32x96xf32>
    %cst_91 = arith.constant 6.000000e-01 : f32
    %173 = vector.broadcast %cst_91 : f32 to vector<32x96xf32>
    %174 = arith.mulf %173, %172 : vector<32x96xf32>
    %175 = math.exp %174 : vector<32x96xf32>
    %cst_92 = arith.constant 5.000000e-01 : f32
    %176 = vector.broadcast %cst_92 : f32 to vector<32x96xf32>
    %177 = arith.subf %149, %176 : vector<32x96xf32>
    %cst_93 = arith.constant 1.500000e+00 : f32
    %178 = vector.broadcast %cst_93 : f32 to vector<32x96xf32>
    %179 = arith.mulf %178, %177 : vector<32x96xf32>
    %cst_94 = arith.constant 5.000000e-01 : f32
    %180 = vector.broadcast %cst_94 : f32 to vector<32x96xf32>
    %181 = arith.addf %179, %180 : vector<32x96xf32>
    %cst_95 = arith.constant 0.000000e+00 : f32
    %cst_96 = arith.constant 1.000000e+00 : f32
    %182 = vector.broadcast %cst_95 : f32 to vector<32x96xf32>
    %183 = arith.maximumf %182, %181 : vector<32x96xf32>
    %184 = vector.broadcast %cst_96 : f32 to vector<32x96xf32>
    %185 = arith.minimumf %184, %183 : vector<32x96xf32>
    %186 = vector.broadcast %92 : vector<1x96xf32> to vector<32x96xf32>
    %187 = arith.mulf %149, %186 : vector<32x96xf32>
    %188 = vector.extract_strided_slice %167 {offsets = [0, 0], sizes = [1, 1], strides = [1, 1]} : vector<1x128xf32> to vector<1x1xf32>
    %189 = vector.broadcast %188 : vector<1x1xf32> to vector<32x96xf32>
    %190 = arith.mulf %189, %149 : vector<32x96xf32>
    %191 = vector.extract_strided_slice %167 {offsets = [0, 1], sizes = [1, 1], strides = [1, 1]} : vector<1x128xf32> to vector<1x1xf32>
    %192 = vector.broadcast %191 : vector<1x1xf32> to vector<32x96xf32>
    %193 = arith.mulf %192, %175 : vector<32x96xf32>
    %194 = arith.addf %190, %193 : vector<32x96xf32>
    %195 = vector.extract_strided_slice %167 {offsets = [0, 2], sizes = [1, 1], strides = [1, 1]} : vector<1x128xf32> to vector<1x1xf32>
    %196 = vector.broadcast %195 : vector<1x1xf32> to vector<32x96xf32>
    %197 = arith.mulf %196, %185 : vector<32x96xf32>
    %198 = arith.addf %194, %197 : vector<32x96xf32>
    %199 = vector.extract_strided_slice %167 {offsets = [0, 3], sizes = [1, 1], strides = [1, 1]} : vector<1x128xf32> to vector<1x1xf32>
    %200 = vector.broadcast %199 : vector<1x1xf32> to vector<32x96xf32>
    %201 = arith.mulf %200, %187 : vector<32x96xf32>
    %202 = arith.addf %198, %201 : vector<32x96xf32>
    %cst_97 = arith.constant 0.000000e+00 : f32
    %cst_98 = arith.constant 1.000000e+00 : f32
    %203 = vector.broadcast %cst_97 : f32 to vector<32x96xf32>
    %204 = arith.maximumf %203, %202 : vector<32x96xf32>
    %205 = vector.broadcast %cst_98 : f32 to vector<32x96xf32>
    %206 = arith.minimumf %205, %204 : vector<32x96xf32>
    %cst_99 = arith.constant dense<0.000000e+00> : vector<128xf32>
    %207 = vector.multi_reduction <add>, %31, %cst_99 [0] : vector<16x128xf32> to vector<128xf32>
    %208 = vector.shape_cast %207 : vector<128xf32> to vector<1x128xf32>
    %cst_100 = arith.constant 1.600000e+01 : f32
    %209 = vector.broadcast %cst_100 : f32 to vector<1x128xf32>
    %210 = arith.divf %208, %209 : vector<1x128xf32>
    %211 = arith.truncf %210 : vector<1x128xf32> to vector<1x128xbf16>
    %c0_101 = arith.constant 0 : index
    %c0_102 = arith.constant 0 : index
    %212 = vector.load %arg16[%c0_101, %c0_102] : memref<128x128xbf16, #tpu.memory_space<vmem>>, vector<128x128xbf16>
    %cst_103 = arith.constant dense<0.000000e+00> : vector<1x128xf32>
    %213 = tpu.matmul %211, %212, %cst_103 {dimension_numbers = #tpu.dot_dimension_numbers<[1], [0], [0], [1], [0, 0, 1, 1], [], []>} : vector<1x128xbf16>, vector<128x128xbf16>, vector<1x128xf32> -> vector<1x128xf32>
    %c0_104 = arith.constant 0 : index
    %c0_105 = arith.constant 0 : index
    %214 = vector.load %arg17[%c0_104, %c0_105] : memref<1x128xf32, #tpu.memory_space<vmem>>, vector<1x128xf32>
    %215 = arith.addf %213, %214 : vector<1x128xf32>
    %cst_106 = arith.constant dense<0xFF800000> : vector<1xf32>
    %216 = vector.multi_reduction <maximumf>, %215, %cst_106 [1] : vector<1x128xf32> to vector<1xf32>
    %217 = vector.shape_cast %216 : vector<1xf32> to vector<1x1xf32>
    %218 = vector.broadcast %217 : vector<1x1xf32> to vector<1x128xf32>
    %219 = arith.subf %215, %218 : vector<1x128xf32>
    %220 = math.exp %219 : vector<1x128xf32>
    %cst_107 = arith.constant dense<0.000000e+00> : vector<1xf32>
    %221 = vector.multi_reduction <add>, %220, %cst_107 [1] : vector<1x128xf32> to vector<1xf32>
    %222 = vector.shape_cast %221 : vector<1xf32> to vector<1x1xf32>
    %223 = vector.broadcast %222 : vector<1x1xf32> to vector<1x128xf32>
    %224 = arith.divf %220, %223 : vector<1x128xf32>
    %cst_108 = arith.constant 9.99999974E-5 : f32
    %cst_109 = arith.constant 1.000000e+00 : f32
    %225 = vector.broadcast %cst_108 : f32 to vector<32x96xf32>
    %226 = arith.maximumf %225, %206 : vector<32x96xf32>
    %227 = vector.broadcast %cst_109 : f32 to vector<32x96xf32>
    %228 = arith.minimumf %227, %226 : vector<32x96xf32>
    %229 = math.log %228 : vector<32x96xf32>
    %cst_110 = arith.constant 6.000000e-01 : f32
    %230 = vector.broadcast %cst_110 : f32 to vector<32x96xf32>
    %231 = arith.mulf %230, %229 : vector<32x96xf32>
    %232 = math.exp %231 : vector<32x96xf32>
    %cst_111 = arith.constant 5.000000e-01 : f32
    %233 = vector.broadcast %cst_111 : f32 to vector<32x96xf32>
    %234 = arith.subf %206, %233 : vector<32x96xf32>
    %cst_112 = arith.constant 1.500000e+00 : f32
    %235 = vector.broadcast %cst_112 : f32 to vector<32x96xf32>
    %236 = arith.mulf %235, %234 : vector<32x96xf32>
    %cst_113 = arith.constant 5.000000e-01 : f32
    %237 = vector.broadcast %cst_113 : f32 to vector<32x96xf32>
    %238 = arith.addf %236, %237 : vector<32x96xf32>
    %cst_114 = arith.constant 0.000000e+00 : f32
    %cst_115 = arith.constant 1.000000e+00 : f32
    %239 = vector.broadcast %cst_114 : f32 to vector<32x96xf32>
    %240 = arith.maximumf %239, %238 : vector<32x96xf32>
    %241 = vector.broadcast %cst_115 : f32 to vector<32x96xf32>
    %242 = arith.minimumf %241, %240 : vector<32x96xf32>
    %243 = vector.broadcast %92 : vector<1x96xf32> to vector<32x96xf32>
    %244 = arith.mulf %206, %243 : vector<32x96xf32>
    %245 = vector.extract_strided_slice %224 {offsets = [0, 0], sizes = [1, 1], strides = [1, 1]} : vector<1x128xf32> to vector<1x1xf32>
    %246 = vector.broadcast %245 : vector<1x1xf32> to vector<32x96xf32>
    %247 = arith.mulf %246, %206 : vector<32x96xf32>
    %248 = vector.extract_strided_slice %224 {offsets = [0, 1], sizes = [1, 1], strides = [1, 1]} : vector<1x128xf32> to vector<1x1xf32>
    %249 = vector.broadcast %248 : vector<1x1xf32> to vector<32x96xf32>
    %250 = arith.mulf %249, %232 : vector<32x96xf32>
    %251 = arith.addf %247, %250 : vector<32x96xf32>
    %252 = vector.extract_strided_slice %224 {offsets = [0, 2], sizes = [1, 1], strides = [1, 1]} : vector<1x128xf32> to vector<1x1xf32>
    %253 = vector.broadcast %252 : vector<1x1xf32> to vector<32x96xf32>
    %254 = arith.mulf %253, %242 : vector<32x96xf32>
    %255 = arith.addf %251, %254 : vector<32x96xf32>
    %256 = vector.extract_strided_slice %224 {offsets = [0, 3], sizes = [1, 1], strides = [1, 1]} : vector<1x128xf32> to vector<1x1xf32>
    %257 = vector.broadcast %256 : vector<1x1xf32> to vector<32x96xf32>
    %258 = arith.mulf %257, %244 : vector<32x96xf32>
    %259 = arith.addf %255, %258 : vector<32x96xf32>
    %cst_116 = arith.constant 0.000000e+00 : f32
    %cst_117 = arith.constant 1.000000e+00 : f32
    %260 = vector.broadcast %cst_116 : f32 to vector<32x96xf32>
    %261 = arith.maximumf %260, %259 : vector<32x96xf32>
    %262 = vector.broadcast %cst_117 : f32 to vector<32x96xf32>
    %263 = arith.minimumf %262, %261 : vector<32x96xf32>
    %c0_118 = arith.constant 0 : index
    %c0_119 = arith.constant 0 : index
    %c0_120 = arith.constant 0 : index
    %264 = vector.load %arg18[%c0_118, %c0_119, %c0_120] : memref<1x32x96xf32, #tpu.memory_space<vmem>>, vector<1x32x96xf32>
    %265 = vector.shape_cast %264 : vector<1x32x96xf32> to vector<32x96xf32>
    %266 = vector.shape_cast %263 : vector<32x96xf32> to vector<1x32x96xf32>
    tpu.vector_store %arg18[%c0_118, %c0_119, %c0_120], %266 {strides = array<i32>} : memref<1x32x96xf32, #tpu.memory_space<vmem>>, vector<1x32x96xf32>,
    %cst_121 = arith.constant 0.000000e+00 : f32
    %267 = vector.broadcast %cst_121 : f32 to vector<5x128xf32>
    %268 = tpu.concatenate %110, %167, %224, %267 in 0 : vector<1x128xf32>, vector<1x128xf32>, vector<1x128xf32>, vector<5x128xf32> -> vector<8x128xf32>
    %c0_122 = arith.constant 0 : index
    %c0_123 = arith.constant 0 : index
    %c0_124 = arith.constant 0 : index
    %269 = vector.load %arg19[%c0_122, %c0_123, %c0_124] : memref<1x8x128xf32, #tpu.memory_space<vmem>>, vector<1x8x128xf32>
    %270 = vector.shape_cast %269 : vector<1x8x128xf32> to vector<8x128xf32>
    %271 = vector.shape_cast %268 : vector<8x128xf32> to vector<1x8x128xf32>
    tpu.vector_store %arg19[%c0_122, %c0_123, %c0_124], %271 {strides = array<i32>} : memref<1x8x128xf32, #tpu.memory_space<vmem>>, vector<1x8x128xf32>,
    return
  }
  func.func @transform_0(%arg0: i32) -> (i32, i32, i32) {
    %c0_i32 = arith.constant 0 : i32
    %c0_i32_0 = arith.constant 0 : i32
    %c0_i32_1 = arith.constant 0 : i32
    return %arg0, %c0_i32, %c0_i32_0 : i32, i32, i32
  }
  func.func @transform_1(%arg0: i32) -> (i32, i32) {
    %c0_i32 = arith.constant 0 : i32
    %c0_i32_0 = arith.constant 0 : i32
    %c0_i32_1 = arith.constant 0 : i32
    return %c0_i32, %c0_i32_0 : i32, i32
  }
  func.func @transform_2(%arg0: i32) -> (i32, i32, i32) {
    %c0_i32 = arith.constant 0 : i32
    %c0_i32_0 = arith.constant 0 : i32
    %c0_i32_1 = arith.constant 0 : i32
    %c0_i32_2 = arith.constant 0 : i32
    return %c0_i32, %c0_i32_0, %c0_i32_1 : i32, i32, i32
  }
  func.func @transform_3(%arg0: i32) -> (i32, i32) {
    %c0_i32 = arith.constant 0 : i32
    %c0_i32_0 = arith.constant 0 : i32
    %c0_i32_1 = arith.constant 0 : i32
    return %c0_i32, %c0_i32_0 : i32, i32
  }
  func.func @transform_4(%arg0: i32) -> (i32, i32) {
    %c0_i32 = arith.constant 0 : i32
    %c0_i32_0 = arith.constant 0 : i32
    %c0_i32_1 = arith.constant 0 : i32
    return %c0_i32, %c0_i32_0 : i32, i32
  }
  func.func @transform_5(%arg0: i32) -> (i32, i32, i32) {
    %c0_i32 = arith.constant 0 : i32
    %c0_i32_0 = arith.constant 0 : i32
    %c0_i32_1 = arith.constant 0 : i32
    %c0_i32_2 = arith.constant 0 : i32
    return %c0_i32, %c0_i32_0, %c0_i32_1 : i32, i32, i32
  }
  func.func @transform_6(%arg0: i32) -> (i32, i32) {
    %c0_i32 = arith.constant 0 : i32
    %c0_i32_0 = arith.constant 0 : i32
    %c0_i32_1 = arith.constant 0 : i32
    return %c0_i32, %c0_i32_0 : i32, i32
  }
  func.func @transform_7(%arg0: i32) -> (i32, i32) {
    %c0_i32 = arith.constant 0 : i32
    %c0_i32_0 = arith.constant 0 : i32
    %c0_i32_1 = arith.constant 0 : i32
    return %c0_i32, %c0_i32_0 : i32, i32
  }
  func.func @transform_8(%arg0: i32) -> (i32, i32, i32) {
    %c0_i32 = arith.constant 0 : i32
    %c0_i32_0 = arith.constant 0 : i32
    %c0_i32_1 = arith.constant 0 : i32
    %c0_i32_2 = arith.constant 0 : i32
    return %c0_i32, %c0_i32_0, %c0_i32_1 : i32, i32, i32
  }
  func.func @transform_9(%arg0: i32) -> (i32, i32) {
    %c0_i32 = arith.constant 0 : i32
    %c0_i32_0 = arith.constant 0 : i32
    %c0_i32_1 = arith.constant 0 : i32
    return %c0_i32, %c0_i32_0 : i32, i32
  }
  func.func @transform_10(%arg0: i32) -> (i32, i32) {
    %c0_i32 = arith.constant 0 : i32
    %c0_i32_0 = arith.constant 0 : i32
    %c0_i32_1 = arith.constant 0 : i32
    return %c0_i32, %c0_i32_0 : i32, i32
  }
  func.func @transform_11(%arg0: i32) -> (i32, i32) {
    %c0_i32 = arith.constant 0 : i32
    %c0_i32_0 = arith.constant 0 : i32
    %c0_i32_1 = arith.constant 0 : i32
    return %c0_i32, %c0_i32_0 : i32, i32
  }
  func.func @transform_12(%arg0: i32) -> (i32, i32) {
    %c0_i32 = arith.constant 0 : i32
    %c0_i32_0 = arith.constant 0 : i32
    %c0_i32_1 = arith.constant 0 : i32
    return %c0_i32, %c0_i32_0 : i32, i32
  }
  func.func @transform_13(%arg0: i32) -> (i32, i32) {
    %c0_i32 = arith.constant 0 : i32
    %c0_i32_0 = arith.constant 0 : i32
    %c0_i32_1 = arith.constant 0 : i32
    return %c0_i32, %c0_i32_0 : i32, i32
  }
  func.func @transform_14(%arg0: i32) -> (i32, i32) {
    %c0_i32 = arith.constant 0 : i32
    %c0_i32_0 = arith.constant 0 : i32
    %c0_i32_1 = arith.constant 0 : i32
    return %c0_i32, %c0_i32_0 : i32, i32
  }
  func.func @transform_15(%arg0: i32) -> (i32, i32) {
    %c0_i32 = arith.constant 0 : i32
    %c0_i32_0 = arith.constant 0 : i32
    %c0_i32_1 = arith.constant 0 : i32
    return %c0_i32, %c0_i32_0 : i32, i32
  }
  func.func @transform_16(%arg0: i32) -> (i32, i32) {
    %c0_i32 = arith.constant 0 : i32
    %c0_i32_0 = arith.constant 0 : i32
    %c0_i32_1 = arith.constant 0 : i32
    return %c0_i32, %c0_i32_0 : i32, i32
  }
  func.func @transform_17(%arg0: i32) -> (i32, i32, i32) {
    %c0_i32 = arith.constant 0 : i32
    %c0_i32_0 = arith.constant 0 : i32
    %c0_i32_1 = arith.constant 0 : i32
    return %arg0, %c0_i32, %c0_i32_0 : i32, i32, i32
  }
  func.func @transform_18(%arg0: i32) -> (i32, i32, i32) {
    %c0_i32 = arith.constant 0 : i32
    %c0_i32_0 = arith.constant 0 : i32
    %c0_i32_1 = arith.constant 0 : i32
    return %arg0, %c0_i32, %c0_i32_0 : i32, i32, i32
  }
}

module attributes {stable_mosaic.version = 11 : i64} {
  func.func @_yolo_fused_kernel(%arg0: i32, %arg1: memref<1x32x96xf32, #tpu.memory_space<vmem>>, %arg2: memref<34x32xbf16, #tpu.memory_space<vmem>>, %arg3: memref<3x96x256xbf16, #tpu.memory_space<vmem>>, %arg4: memref<1x256xf32, #tpu.memory_space<vmem>>, %arg5: memref<34x32xbf16, #tpu.memory_space<vmem>>, %arg6: memref<3x256x256xbf16, #tpu.memory_space<vmem>>, %arg7: memref<1x256xf32, #tpu.memory_space<vmem>>, %arg8: memref<18x16xbf16, #tpu.memory_space<vmem>>, %arg9: memref<3x256x256xbf16, #tpu.memory_space<vmem>>, %arg10: memref<1x256xf32, #tpu.memory_space<vmem>>, %arg11: memref<10x8xbf16, #tpu.memory_space<vmem>>, %arg12: memref<3x256x256xbf16, #tpu.memory_space<vmem>>, %arg13: memref<1x256xf32, #tpu.memory_space<vmem>>, %arg14: memref<6x4xbf16, #tpu.memory_space<vmem>>, %arg15: memref<3x256x192xbf16, #tpu.memory_space<vmem>>, %arg16: memref<1x192xf32, #tpu.memory_space<vmem>>, %arg17: memref<4x2xbf16, #tpu.memory_space<vmem>>, %arg18: memref<3x192x128xbf16, #tpu.memory_space<vmem>>, %arg19: memref<1x128xf32, #tpu.memory_space<vmem>>, %arg20: memref<256x96xbf16, #tpu.memory_space<vmem>>, %arg21: memref<1x96xf32, #tpu.memory_space<vmem>>, %arg22: memref<4x4x96xf32, #tpu.memory_space<vmem>>, %arg23: memref<192x48xbf16, #tpu.memory_space<vmem>>, %arg24: memref<1x48xf32, #tpu.memory_space<vmem>>, %arg25: memref<4x2x48xf32, #tpu.memory_space<vmem>>, %arg26: memref<128x24xbf16, #tpu.memory_space<vmem>>, %arg27: memref<1x24xf32, #tpu.memory_space<vmem>>, %arg28: memref<4x1x24xf32, #tpu.memory_space<vmem>>, %arg29: memref<1x4x96xf32, #tpu.memory_space<vmem>>, %arg30: memref<1x2x48xf32, #tpu.memory_space<vmem>>, %arg31: memref<1x1x24xf32, #tpu.memory_space<vmem>>, %arg32: memref<1x4x96xf32, #tpu.memory_space<vmem>>, %arg33: memref<1x2x48xf32, #tpu.memory_space<vmem>>, %arg34: memref<1x1x24xf32, #tpu.memory_space<vmem>>) attributes {dimension_semantics = [#tpu.dimension_semantics<parallel>], iteration_bounds = array<i64: 2>, scalar_prefetch = 0 : i64, scratch_operands = 0 : i64, tpu.core_type = #tpu.core_type<tc>, window_params = [{transform_indices = @transform_0, window_bounds = array<i64: 1, 32, 96>}, {pipeline_mode = #tpu.pipeline_mode<synchronous>, transform_indices = @transform_1, window_bounds = array<i64: 34, 32>}, {pipeline_mode = #tpu.pipeline_mode<synchronous>, transform_indices = @transform_2, window_bounds = array<i64: 3, 96, 256>}, {pipeline_mode = #tpu.pipeline_mode<synchronous>, transform_indices = @transform_3, window_bounds = array<i64: 1, 256>}, {pipeline_mode = #tpu.pipeline_mode<synchronous>, transform_indices = @transform_4, window_bounds = array<i64: 34, 32>}, {pipeline_mode = #tpu.pipeline_mode<synchronous>, transform_indices = @transform_5, window_bounds = array<i64: 3, 256, 256>}, {pipeline_mode = #tpu.pipeline_mode<synchronous>, transform_indices = @transform_6, window_bounds = array<i64: 1, 256>}, {pipeline_mode = #tpu.pipeline_mode<synchronous>, transform_indices = @transform_7, window_bounds = array<i64: 18, 16>}, {pipeline_mode = #tpu.pipeline_mode<synchronous>, transform_indices = @transform_8, window_bounds = array<i64: 3, 256, 256>}, {pipeline_mode = #tpu.pipeline_mode<synchronous>, transform_indices = @transform_9, window_bounds = array<i64: 1, 256>}, {pipeline_mode = #tpu.pipeline_mode<synchronous>, transform_indices = @transform_10, window_bounds = array<i64: 10, 8>}, {pipeline_mode = #tpu.pipeline_mode<synchronous>, transform_indices = @transform_11, window_bounds = array<i64: 3, 256, 256>}, {pipeline_mode = #tpu.pipeline_mode<synchronous>, transform_indices = @transform_12, window_bounds = array<i64: 1, 256>}, {pipeline_mode = #tpu.pipeline_mode<synchronous>, transform_indices = @transform_13, window_bounds = array<i64: 6, 4>}, {pipeline_mode = #tpu.pipeline_mode<synchronous>, transform_indices = @transform_14, window_bounds = array<i64: 3, 256, 192>}, {pipeline_mode = #tpu.pipeline_mode<synchronous>, transform_indices = @transform_15, window_bounds = array<i64: 1, 192>}, {pipeline_mode = #tpu.pipeline_mode<synchronous>, transform_indices = @transform_16, window_bounds = array<i64: 4, 2>}, {pipeline_mode = #tpu.pipeline_mode<synchronous>, transform_indices = @transform_17, window_bounds = array<i64: 3, 192, 128>}, {pipeline_mode = #tpu.pipeline_mode<synchronous>, transform_indices = @transform_18, window_bounds = array<i64: 1, 128>}, {pipeline_mode = #tpu.pipeline_mode<synchronous>, transform_indices = @transform_19, window_bounds = array<i64: 256, 96>}, {pipeline_mode = #tpu.pipeline_mode<synchronous>, transform_indices = @transform_20, window_bounds = array<i64: 1, 96>}, {pipeline_mode = #tpu.pipeline_mode<synchronous>, transform_indices = @transform_21, window_bounds = array<i64: 4, 4, 96>}, {pipeline_mode = #tpu.pipeline_mode<synchronous>, transform_indices = @transform_22, window_bounds = array<i64: 192, 48>}, {pipeline_mode = #tpu.pipeline_mode<synchronous>, transform_indices = @transform_23, window_bounds = array<i64: 1, 48>}, {pipeline_mode = #tpu.pipeline_mode<synchronous>, transform_indices = @transform_24, window_bounds = array<i64: 4, 2, 48>}, {pipeline_mode = #tpu.pipeline_mode<synchronous>, transform_indices = @transform_25, window_bounds = array<i64: 128, 24>}, {pipeline_mode = #tpu.pipeline_mode<synchronous>, transform_indices = @transform_26, window_bounds = array<i64: 1, 24>}, {pipeline_mode = #tpu.pipeline_mode<synchronous>, transform_indices = @transform_27, window_bounds = array<i64: 4, 1, 24>}, {transform_indices = @transform_28, window_bounds = array<i64: 1, 4, 96>}, {transform_indices = @transform_29, window_bounds = array<i64: 1, 2, 48>}, {transform_indices = @transform_30, window_bounds = array<i64: 1, 1, 24>}, {transform_indices = @transform_31, window_bounds = array<i64: 1, 4, 96>}, {transform_indices = @transform_32, window_bounds = array<i64: 1, 2, 48>}, {transform_indices = @transform_33, window_bounds = array<i64: 1, 1, 24>}]} {
    %c0 = arith.constant 0 : index
    %c0_0 = arith.constant 0 : index
    %c0_1 = arith.constant 0 : index
    %0 = vector.load %arg1[%c0, %c0_0, %c0_1] : memref<1x32x96xf32, #tpu.memory_space<vmem>>, vector<1x32x96xf32>
    %1 = vector.shape_cast %0 : vector<1x32x96xf32> to vector<32x96xf32>
    %2 = arith.truncf %1 : vector<32x96xf32> to vector<32x96xbf16>
    %c0_2 = arith.constant 0 : index
    %c0_3 = arith.constant 0 : index
    %3 = vector.load %arg2[%c0_2, %c0_3] : memref<34x32xbf16, #tpu.memory_space<vmem>>, vector<34x32xbf16>
    %cst = arith.constant dense<0.000000e+00> : vector<34x96xf32>
    %4 = tpu.matmul %3, %2, %cst {dimension_numbers = #tpu.dot_dimension_numbers<[1], [0], [0], [1], [0, 0, 1, 1], [], []>} : vector<34x32xbf16>, vector<32x96xbf16>, vector<34x96xf32> -> vector<34x96xf32>
    %cst_4 = arith.constant 0.000000e+00 : f32
    %5 = vector.broadcast %cst_4 : f32 to vector<32x256xf32>
    %6 = vector.extract_strided_slice %4 {offsets = [0, 0], sizes = [32, 96], strides = [1, 1]} : vector<34x96xf32> to vector<32x96xf32>
    %7 = arith.truncf %6 : vector<32x96xf32> to vector<32x96xbf16>
    %c0_5 = arith.constant 0 : index
    %c0_6 = arith.constant 0 : index
    %c0_7 = arith.constant 0 : index
    %8 = vector.load %arg3[%c0_5, %c0_6, %c0_7] : memref<3x96x256xbf16, #tpu.memory_space<vmem>>, vector<1x96x256xbf16>
    %9 = vector.shape_cast %8 : vector<1x96x256xbf16> to vector<96x256xbf16>
    %cst_8 = arith.constant dense<0.000000e+00> : vector<32x256xf32>
    %10 = tpu.matmul %7, %9, %cst_8 {dimension_numbers = #tpu.dot_dimension_numbers<[1], [0], [0], [1], [0, 0, 1, 1], [], []>} : vector<32x96xbf16>, vector<96x256xbf16>, vector<32x256xf32> -> vector<32x256xf32>
    %11 = arith.addf %5, %10 : vector<32x256xf32>
    %12 = vector.extract_strided_slice %4 {offsets = [1, 0], sizes = [32, 96], strides = [1, 1]} : vector<34x96xf32> to vector<32x96xf32>
    %13 = arith.truncf %12 : vector<32x96xf32> to vector<32x96xbf16>
    %c1 = arith.constant 1 : index
    %c0_9 = arith.constant 0 : index
    %c0_10 = arith.constant 0 : index
    %14 = vector.load %arg3[%c1, %c0_9, %c0_10] : memref<3x96x256xbf16, #tpu.memory_space<vmem>>, vector<1x96x256xbf16>
    %15 = vector.shape_cast %14 : vector<1x96x256xbf16> to vector<96x256xbf16>
    %cst_11 = arith.constant dense<0.000000e+00> : vector<32x256xf32>
    %16 = tpu.matmul %13, %15, %cst_11 {dimension_numbers = #tpu.dot_dimension_numbers<[1], [0], [0], [1], [0, 0, 1, 1], [], []>} : vector<32x96xbf16>, vector<96x256xbf16>, vector<32x256xf32> -> vector<32x256xf32>
    %17 = arith.addf %11, %16 : vector<32x256xf32>
    %18 = vector.extract_strided_slice %4 {offsets = [2, 0], sizes = [32, 96], strides = [1, 1]} : vector<34x96xf32> to vector<32x96xf32>
    %19 = arith.truncf %18 : vector<32x96xf32> to vector<32x96xbf16>
    %c2 = arith.constant 2 : index
    %c0_12 = arith.constant 0 : index
    %c0_13 = arith.constant 0 : index
    %20 = vector.load %arg3[%c2, %c0_12, %c0_13] : memref<3x96x256xbf16, #tpu.memory_space<vmem>>, vector<1x96x256xbf16>
    %21 = vector.shape_cast %20 : vector<1x96x256xbf16> to vector<96x256xbf16>
    %cst_14 = arith.constant dense<0.000000e+00> : vector<32x256xf32>
    %22 = tpu.matmul %19, %21, %cst_14 {dimension_numbers = #tpu.dot_dimension_numbers<[1], [0], [0], [1], [0, 0, 1, 1], [], []>} : vector<32x96xbf16>, vector<96x256xbf16>, vector<32x256xf32> -> vector<32x256xf32>
    %23 = arith.addf %17, %22 : vector<32x256xf32>
    %c0_15 = arith.constant 0 : index
    %c0_16 = arith.constant 0 : index
    %24 = vector.load %arg4[%c0_15, %c0_16] : memref<1x256xf32, #tpu.memory_space<vmem>>, vector<1x256xf32>
    %25 = vector.broadcast %24 : vector<1x256xf32> to vector<32x256xf32>
    %26 = arith.addf %23, %25 : vector<32x256xf32>
    %cst_17 = arith.constant 0.000000e+00 : f32
    %27 = vector.broadcast %cst_17 : f32 to vector<32x256xf32>
    %28 = arith.cmpf ogt, %26, %27 : vector<32x256xf32>
    %cst_18 = arith.constant 1.000000e-01 : f32
    %29 = vector.broadcast %cst_18 : f32 to vector<32x256xf32>
    %30 = arith.mulf %29, %26 : vector<32x256xf32>
    %31 = arith.select %28, %26, %30 : vector<32x256xi1>, vector<32x256xf32>
    %32 = arith.truncf %31 : vector<32x256xf32> to vector<32x256xbf16>
    %c0_19 = arith.constant 0 : index
    %c0_20 = arith.constant 0 : index
    %33 = vector.load %arg5[%c0_19, %c0_20] : memref<34x32xbf16, #tpu.memory_space<vmem>>, vector<34x32xbf16>
    %cst_21 = arith.constant dense<0.000000e+00> : vector<34x256xf32>
    %34 = tpu.matmul %33, %32, %cst_21 {dimension_numbers = #tpu.dot_dimension_numbers<[1], [0], [0], [1], [0, 0, 1, 1], [], []>} : vector<34x32xbf16>, vector<32x256xbf16>, vector<34x256xf32> -> vector<34x256xf32>
    %cst_22 = arith.constant 0.000000e+00 : f32
    %35 = vector.broadcast %cst_22 : f32 to vector<16x256xf32>
    %36 = vector.extract_strided_slice %34 {offsets = [0, 0], sizes = [16, 256], strides = [1, 1]} : vector<34x256xf32> to vector<16x256xf32>
    %37 = arith.truncf %36 : vector<16x256xf32> to vector<16x256xbf16>
    %c0_23 = arith.constant 0 : index
    %c0_24 = arith.constant 0 : index
    %c0_25 = arith.constant 0 : index
    %38 = vector.load %arg6[%c0_23, %c0_24, %c0_25] : memref<3x256x256xbf16, #tpu.memory_space<vmem>>, vector<1x256x256xbf16>
    %39 = vector.shape_cast %38 : vector<1x256x256xbf16> to vector<256x256xbf16>
    %cst_26 = arith.constant dense<0.000000e+00> : vector<16x256xf32>
    %40 = tpu.matmul %37, %39, %cst_26 {dimension_numbers = #tpu.dot_dimension_numbers<[1], [0], [0], [1], [0, 0, 1, 1], [], []>} : vector<16x256xbf16>, vector<256x256xbf16>, vector<16x256xf32> -> vector<16x256xf32>
    %41 = arith.addf %35, %40 : vector<16x256xf32>
    %42 = vector.extract_strided_slice %34 {offsets = [17, 0], sizes = [16, 256], strides = [1, 1]} : vector<34x256xf32> to vector<16x256xf32>
    %43 = arith.truncf %42 : vector<16x256xf32> to vector<16x256xbf16>
    %c1_27 = arith.constant 1 : index
    %c0_28 = arith.constant 0 : index
    %c0_29 = arith.constant 0 : index
    %44 = vector.load %arg6[%c1_27, %c0_28, %c0_29] : memref<3x256x256xbf16, #tpu.memory_space<vmem>>, vector<1x256x256xbf16>
    %45 = vector.shape_cast %44 : vector<1x256x256xbf16> to vector<256x256xbf16>
    %cst_30 = arith.constant dense<0.000000e+00> : vector<16x256xf32>
    %46 = tpu.matmul %43, %45, %cst_30 {dimension_numbers = #tpu.dot_dimension_numbers<[1], [0], [0], [1], [0, 0, 1, 1], [], []>} : vector<16x256xbf16>, vector<256x256xbf16>, vector<16x256xf32> -> vector<16x256xf32>
    %47 = arith.addf %41, %46 : vector<16x256xf32>
    %48 = vector.extract_strided_slice %34 {offsets = [1, 0], sizes = [16, 256], strides = [1, 1]} : vector<34x256xf32> to vector<16x256xf32>
    %49 = arith.truncf %48 : vector<16x256xf32> to vector<16x256xbf16>
    %c2_31 = arith.constant 2 : index
    %c0_32 = arith.constant 0 : index
    %c0_33 = arith.constant 0 : index
    %50 = vector.load %arg6[%c2_31, %c0_32, %c0_33] : memref<3x256x256xbf16, #tpu.memory_space<vmem>>, vector<1x256x256xbf16>
    %51 = vector.shape_cast %50 : vector<1x256x256xbf16> to vector<256x256xbf16>
    %cst_34 = arith.constant dense<0.000000e+00> : vector<16x256xf32>
    %52 = tpu.matmul %49, %51, %cst_34 {dimension_numbers = #tpu.dot_dimension_numbers<[1], [0], [0], [1], [0, 0, 1, 1], [], []>} : vector<16x256xbf16>, vector<256x256xbf16>, vector<16x256xf32> -> vector<16x256xf32>
    %53 = arith.addf %47, %52 : vector<16x256xf32>
    %c0_35 = arith.constant 0 : index
    %c0_36 = arith.constant 0 : index
    %54 = vector.load %arg7[%c0_35, %c0_36] : memref<1x256xf32, #tpu.memory_space<vmem>>, vector<1x256xf32>
    %55 = vector.broadcast %54 : vector<1x256xf32> to vector<16x256xf32>
    %56 = arith.addf %53, %55 : vector<16x256xf32>
    %cst_37 = arith.constant 0.000000e+00 : f32
    %57 = vector.broadcast %cst_37 : f32 to vector<16x256xf32>
    %58 = arith.cmpf ogt, %56, %57 : vector<16x256xf32>
    %cst_38 = arith.constant 1.000000e-01 : f32
    %59 = vector.broadcast %cst_38 : f32 to vector<16x256xf32>
    %60 = arith.mulf %59, %56 : vector<16x256xf32>
    %61 = arith.select %58, %56, %60 : vector<16x256xi1>, vector<16x256xf32>
    %62 = arith.truncf %61 : vector<16x256xf32> to vector<16x256xbf16>
    %c0_39 = arith.constant 0 : index
    %c0_40 = arith.constant 0 : index
    %63 = vector.load %arg8[%c0_39, %c0_40] : memref<18x16xbf16, #tpu.memory_space<vmem>>, vector<18x16xbf16>
    %cst_41 = arith.constant dense<0.000000e+00> : vector<18x256xf32>
    %64 = tpu.matmul %63, %62, %cst_41 {dimension_numbers = #tpu.dot_dimension_numbers<[1], [0], [0], [1], [0, 0, 1, 1], [], []>} : vector<18x16xbf16>, vector<16x256xbf16>, vector<18x256xf32> -> vector<18x256xf32>
    %cst_42 = arith.constant 0.000000e+00 : f32
    %65 = vector.broadcast %cst_42 : f32 to vector<8x256xf32>
    %66 = vector.extract_strided_slice %64 {offsets = [0, 0], sizes = [8, 256], strides = [1, 1]} : vector<18x256xf32> to vector<8x256xf32>
    %67 = arith.truncf %66 : vector<8x256xf32> to vector<8x256xbf16>
    %c0_43 = arith.constant 0 : index
    %c0_44 = arith.constant 0 : index
    %c0_45 = arith.constant 0 : index
    %68 = vector.load %arg9[%c0_43, %c0_44, %c0_45] : memref<3x256x256xbf16, #tpu.memory_space<vmem>>, vector<1x256x256xbf16>
    %69 = vector.shape_cast %68 : vector<1x256x256xbf16> to vector<256x256xbf16>
    %cst_46 = arith.constant dense<0.000000e+00> : vector<8x256xf32>
    %70 = tpu.matmul %67, %69, %cst_46 {dimension_numbers = #tpu.dot_dimension_numbers<[1], [0], [0], [1], [0, 0, 1, 1], [], []>} : vector<8x256xbf16>, vector<256x256xbf16>, vector<8x256xf32> -> vector<8x256xf32>
    %71 = arith.addf %65, %70 : vector<8x256xf32>
    %72 = vector.extract_strided_slice %64 {offsets = [9, 0], sizes = [8, 256], strides = [1, 1]} : vector<18x256xf32> to vector<8x256xf32>
    %73 = arith.truncf %72 : vector<8x256xf32> to vector<8x256xbf16>
    %c1_47 = arith.constant 1 : index
    %c0_48 = arith.constant 0 : index
    %c0_49 = arith.constant 0 : index
    %74 = vector.load %arg9[%c1_47, %c0_48, %c0_49] : memref<3x256x256xbf16, #tpu.memory_space<vmem>>, vector<1x256x256xbf16>
    %75 = vector.shape_cast %74 : vector<1x256x256xbf16> to vector<256x256xbf16>
    %cst_50 = arith.constant dense<0.000000e+00> : vector<8x256xf32>
    %76 = tpu.matmul %73, %75, %cst_50 {dimension_numbers = #tpu.dot_dimension_numbers<[1], [0], [0], [1], [0, 0, 1, 1], [], []>} : vector<8x256xbf16>, vector<256x256xbf16>, vector<8x256xf32> -> vector<8x256xf32>
    %77 = arith.addf %71, %76 : vector<8x256xf32>
    %78 = vector.extract_strided_slice %64 {offsets = [1, 0], sizes = [8, 256], strides = [1, 1]} : vector<18x256xf32> to vector<8x256xf32>
    %79 = arith.truncf %78 : vector<8x256xf32> to vector<8x256xbf16>
    %c2_51 = arith.constant 2 : index
    %c0_52 = arith.constant 0 : index
    %c0_53 = arith.constant 0 : index
    %80 = vector.load %arg9[%c2_51, %c0_52, %c0_53] : memref<3x256x256xbf16, #tpu.memory_space<vmem>>, vector<1x256x256xbf16>
    %81 = vector.shape_cast %80 : vector<1x256x256xbf16> to vector<256x256xbf16>
    %cst_54 = arith.constant dense<0.000000e+00> : vector<8x256xf32>
    %82 = tpu.matmul %79, %81, %cst_54 {dimension_numbers = #tpu.dot_dimension_numbers<[1], [0], [0], [1], [0, 0, 1, 1], [], []>} : vector<8x256xbf16>, vector<256x256xbf16>, vector<8x256xf32> -> vector<8x256xf32>
    %83 = arith.addf %77, %82 : vector<8x256xf32>
    %c0_55 = arith.constant 0 : index
    %c0_56 = arith.constant 0 : index
    %84 = vector.load %arg10[%c0_55, %c0_56] : memref<1x256xf32, #tpu.memory_space<vmem>>, vector<1x256xf32>
    %85 = vector.broadcast %84 : vector<1x256xf32> to vector<8x256xf32>
    %86 = arith.addf %83, %85 : vector<8x256xf32>
    %cst_57 = arith.constant 0.000000e+00 : f32
    %87 = vector.broadcast %cst_57 : f32 to vector<8x256xf32>
    %88 = arith.cmpf ogt, %86, %87 : vector<8x256xf32>
    %cst_58 = arith.constant 1.000000e-01 : f32
    %89 = vector.broadcast %cst_58 : f32 to vector<8x256xf32>
    %90 = arith.mulf %89, %86 : vector<8x256xf32>
    %91 = arith.select %88, %86, %90 : vector<8x256xi1>, vector<8x256xf32>
    %92 = arith.truncf %91 : vector<8x256xf32> to vector<8x256xbf16>
    %c0_59 = arith.constant 0 : index
    %c0_60 = arith.constant 0 : index
    %93 = vector.load %arg11[%c0_59, %c0_60] : memref<10x8xbf16, #tpu.memory_space<vmem>>, vector<10x8xbf16>
    %cst_61 = arith.constant dense<0.000000e+00> : vector<10x256xf32>
    %94 = tpu.matmul %93, %92, %cst_61 {dimension_numbers = #tpu.dot_dimension_numbers<[1], [0], [0], [1], [0, 0, 1, 1], [], []>} : vector<10x8xbf16>, vector<8x256xbf16>, vector<10x256xf32> -> vector<10x256xf32>
    %cst_62 = arith.constant 0.000000e+00 : f32
    %95 = vector.broadcast %cst_62 : f32 to vector<4x256xf32>
    %96 = vector.extract_strided_slice %94 {offsets = [0, 0], sizes = [4, 256], strides = [1, 1]} : vector<10x256xf32> to vector<4x256xf32>
    %97 = arith.truncf %96 : vector<4x256xf32> to vector<4x256xbf16>
    %c0_63 = arith.constant 0 : index
    %c0_64 = arith.constant 0 : index
    %c0_65 = arith.constant 0 : index
    %98 = vector.load %arg12[%c0_63, %c0_64, %c0_65] : memref<3x256x256xbf16, #tpu.memory_space<vmem>>, vector<1x256x256xbf16>
    %99 = vector.shape_cast %98 : vector<1x256x256xbf16> to vector<256x256xbf16>
    %cst_66 = arith.constant dense<0.000000e+00> : vector<4x256xf32>
    %100 = tpu.matmul %97, %99, %cst_66 {dimension_numbers = #tpu.dot_dimension_numbers<[1], [0], [0], [1], [0, 0, 1, 1], [], []>} : vector<4x256xbf16>, vector<256x256xbf16>, vector<4x256xf32> -> vector<4x256xf32>
    %101 = arith.addf %95, %100 : vector<4x256xf32>
    %102 = vector.extract_strided_slice %94 {offsets = [5, 0], sizes = [4, 256], strides = [1, 1]} : vector<10x256xf32> to vector<4x256xf32>
    %103 = arith.truncf %102 : vector<4x256xf32> to vector<4x256xbf16>
    %c1_67 = arith.constant 1 : index
    %c0_68 = arith.constant 0 : index
    %c0_69 = arith.constant 0 : index
    %104 = vector.load %arg12[%c1_67, %c0_68, %c0_69] : memref<3x256x256xbf16, #tpu.memory_space<vmem>>, vector<1x256x256xbf16>
    %105 = vector.shape_cast %104 : vector<1x256x256xbf16> to vector<256x256xbf16>
    %cst_70 = arith.constant dense<0.000000e+00> : vector<4x256xf32>
    %106 = tpu.matmul %103, %105, %cst_70 {dimension_numbers = #tpu.dot_dimension_numbers<[1], [0], [0], [1], [0, 0, 1, 1], [], []>} : vector<4x256xbf16>, vector<256x256xbf16>, vector<4x256xf32> -> vector<4x256xf32>
    %107 = arith.addf %101, %106 : vector<4x256xf32>
    %108 = vector.extract_strided_slice %94 {offsets = [1, 0], sizes = [4, 256], strides = [1, 1]} : vector<10x256xf32> to vector<4x256xf32>
    %109 = arith.truncf %108 : vector<4x256xf32> to vector<4x256xbf16>
    %c2_71 = arith.constant 2 : index
    %c0_72 = arith.constant 0 : index
    %c0_73 = arith.constant 0 : index
    %110 = vector.load %arg12[%c2_71, %c0_72, %c0_73] : memref<3x256x256xbf16, #tpu.memory_space<vmem>>, vector<1x256x256xbf16>
    %111 = vector.shape_cast %110 : vector<1x256x256xbf16> to vector<256x256xbf16>
    %cst_74 = arith.constant dense<0.000000e+00> : vector<4x256xf32>
    %112 = tpu.matmul %109, %111, %cst_74 {dimension_numbers = #tpu.dot_dimension_numbers<[1], [0], [0], [1], [0, 0, 1, 1], [], []>} : vector<4x256xbf16>, vector<256x256xbf16>, vector<4x256xf32> -> vector<4x256xf32>
    %113 = arith.addf %107, %112 : vector<4x256xf32>
    %c0_75 = arith.constant 0 : index
    %c0_76 = arith.constant 0 : index
    %114 = vector.load %arg13[%c0_75, %c0_76] : memref<1x256xf32, #tpu.memory_space<vmem>>, vector<1x256xf32>
    %115 = vector.broadcast %114 : vector<1x256xf32> to vector<4x256xf32>
    %116 = arith.addf %113, %115 : vector<4x256xf32>
    %cst_77 = arith.constant 0.000000e+00 : f32
    %117 = vector.broadcast %cst_77 : f32 to vector<4x256xf32>
    %118 = arith.cmpf ogt, %116, %117 : vector<4x256xf32>
    %cst_78 = arith.constant 1.000000e-01 : f32
    %119 = vector.broadcast %cst_78 : f32 to vector<4x256xf32>
    %120 = arith.mulf %119, %116 : vector<4x256xf32>
    %121 = arith.select %118, %116, %120 : vector<4x256xi1>, vector<4x256xf32>
    %122 = arith.truncf %121 : vector<4x256xf32> to vector<4x256xbf16>
    %c0_79 = arith.constant 0 : index
    %c0_80 = arith.constant 0 : index
    %123 = vector.load %arg14[%c0_79, %c0_80] : memref<6x4xbf16, #tpu.memory_space<vmem>>, vector<6x4xbf16>
    %cst_81 = arith.constant dense<0.000000e+00> : vector<6x256xf32>
    %124 = tpu.matmul %123, %122, %cst_81 {dimension_numbers = #tpu.dot_dimension_numbers<[1], [0], [0], [1], [0, 0, 1, 1], [], []>} : vector<6x4xbf16>, vector<4x256xbf16>, vector<6x256xf32> -> vector<6x256xf32>
    %cst_82 = arith.constant 0.000000e+00 : f32
    %125 = vector.broadcast %cst_82 : f32 to vector<2x192xf32>
    %126 = vector.extract_strided_slice %124 {offsets = [0, 0], sizes = [2, 256], strides = [1, 1]} : vector<6x256xf32> to vector<2x256xf32>
    %127 = arith.truncf %126 : vector<2x256xf32> to vector<2x256xbf16>
    %c0_83 = arith.constant 0 : index
    %c0_84 = arith.constant 0 : index
    %c0_85 = arith.constant 0 : index
    %128 = vector.load %arg15[%c0_83, %c0_84, %c0_85] : memref<3x256x192xbf16, #tpu.memory_space<vmem>>, vector<1x256x192xbf16>
    %129 = vector.shape_cast %128 : vector<1x256x192xbf16> to vector<256x192xbf16>
    %cst_86 = arith.constant dense<0.000000e+00> : vector<2x192xf32>
    %130 = tpu.matmul %127, %129, %cst_86 {dimension_numbers = #tpu.dot_dimension_numbers<[1], [0], [0], [1], [0, 0, 1, 1], [], []>} : vector<2x256xbf16>, vector<256x192xbf16>, vector<2x192xf32> -> vector<2x192xf32>
    %131 = arith.addf %125, %130 : vector<2x192xf32>
    %132 = vector.extract_strided_slice %124 {offsets = [3, 0], sizes = [2, 256], strides = [1, 1]} : vector<6x256xf32> to vector<2x256xf32>
    %133 = arith.truncf %132 : vector<2x256xf32> to vector<2x256xbf16>
    %c1_87 = arith.constant 1 : index
    %c0_88 = arith.constant 0 : index
    %c0_89 = arith.constant 0 : index
    %134 = vector.load %arg15[%c1_87, %c0_88, %c0_89] : memref<3x256x192xbf16, #tpu.memory_space<vmem>>, vector<1x256x192xbf16>
    %135 = vector.shape_cast %134 : vector<1x256x192xbf16> to vector<256x192xbf16>
    %cst_90 = arith.constant dense<0.000000e+00> : vector<2x192xf32>
    %136 = tpu.matmul %133, %135, %cst_90 {dimension_numbers = #tpu.dot_dimension_numbers<[1], [0], [0], [1], [0, 0, 1, 1], [], []>} : vector<2x256xbf16>, vector<256x192xbf16>, vector<2x192xf32> -> vector<2x192xf32>
    %137 = arith.addf %131, %136 : vector<2x192xf32>
    %138 = vector.extract_strided_slice %124 {offsets = [1, 0], sizes = [2, 256], strides = [1, 1]} : vector<6x256xf32> to vector<2x256xf32>
    %139 = arith.truncf %138 : vector<2x256xf32> to vector<2x256xbf16>
    %c2_91 = arith.constant 2 : index
    %c0_92 = arith.constant 0 : index
    %c0_93 = arith.constant 0 : index
    %140 = vector.load %arg15[%c2_91, %c0_92, %c0_93] : memref<3x256x192xbf16, #tpu.memory_space<vmem>>, vector<1x256x192xbf16>
    %141 = vector.shape_cast %140 : vector<1x256x192xbf16> to vector<256x192xbf16>
    %cst_94 = arith.constant dense<0.000000e+00> : vector<2x192xf32>
    %142 = tpu.matmul %139, %141, %cst_94 {dimension_numbers = #tpu.dot_dimension_numbers<[1], [0], [0], [1], [0, 0, 1, 1], [], []>} : vector<2x256xbf16>, vector<256x192xbf16>, vector<2x192xf32> -> vector<2x192xf32>
    %143 = arith.addf %137, %142 : vector<2x192xf32>
    %c0_95 = arith.constant 0 : index
    %c0_96 = arith.constant 0 : index
    %144 = vector.load %arg16[%c0_95, %c0_96] : memref<1x192xf32, #tpu.memory_space<vmem>>, vector<1x192xf32>
    %145 = vector.broadcast %144 : vector<1x192xf32> to vector<2x192xf32>
    %146 = arith.addf %143, %145 : vector<2x192xf32>
    %cst_97 = arith.constant 0.000000e+00 : f32
    %147 = vector.broadcast %cst_97 : f32 to vector<2x192xf32>
    %148 = arith.cmpf ogt, %146, %147 : vector<2x192xf32>
    %cst_98 = arith.constant 1.000000e-01 : f32
    %149 = vector.broadcast %cst_98 : f32 to vector<2x192xf32>
    %150 = arith.mulf %149, %146 : vector<2x192xf32>
    %151 = arith.select %148, %146, %150 : vector<2x192xi1>, vector<2x192xf32>
    %152 = arith.truncf %151 : vector<2x192xf32> to vector<2x192xbf16>
    %c0_99 = arith.constant 0 : index
    %c0_100 = arith.constant 0 : index
    %153 = vector.load %arg17[%c0_99, %c0_100] : memref<4x2xbf16, #tpu.memory_space<vmem>>, vector<4x2xbf16>
    %cst_101 = arith.constant dense<0.000000e+00> : vector<4x192xf32>
    %154 = tpu.matmul %153, %152, %cst_101 {dimension_numbers = #tpu.dot_dimension_numbers<[1], [0], [0], [1], [0, 0, 1, 1], [], []>} : vector<4x2xbf16>, vector<2x192xbf16>, vector<4x192xf32> -> vector<4x192xf32>
    %cst_102 = arith.constant 0.000000e+00 : f32
    %155 = vector.broadcast %cst_102 : f32 to vector<1x128xf32>
    %156 = vector.extract_strided_slice %154 {offsets = [0, 0], sizes = [1, 192], strides = [1, 1]} : vector<4x192xf32> to vector<1x192xf32>
    %157 = arith.truncf %156 : vector<1x192xf32> to vector<1x192xbf16>
    %c0_103 = arith.constant 0 : index
    %c0_104 = arith.constant 0 : index
    %c0_105 = arith.constant 0 : index
    %158 = vector.load %arg18[%c0_103, %c0_104, %c0_105] : memref<3x192x128xbf16, #tpu.memory_space<vmem>>, vector<1x192x128xbf16>
    %159 = vector.shape_cast %158 : vector<1x192x128xbf16> to vector<192x128xbf16>
    %cst_106 = arith.constant dense<0.000000e+00> : vector<1x128xf32>
    %160 = tpu.matmul %157, %159, %cst_106 {dimension_numbers = #tpu.dot_dimension_numbers<[1], [0], [0], [1], [0, 0, 1, 1], [], []>} : vector<1x192xbf16>, vector<192x128xbf16>, vector<1x128xf32> -> vector<1x128xf32>
    %161 = arith.addf %155, %160 : vector<1x128xf32>
    %162 = vector.extract_strided_slice %154 {offsets = [2, 0], sizes = [1, 192], strides = [1, 1]} : vector<4x192xf32> to vector<1x192xf32>
    %163 = arith.truncf %162 : vector<1x192xf32> to vector<1x192xbf16>
    %c1_107 = arith.constant 1 : index
    %c0_108 = arith.constant 0 : index
    %c0_109 = arith.constant 0 : index
    %164 = vector.load %arg18[%c1_107, %c0_108, %c0_109] : memref<3x192x128xbf16, #tpu.memory_space<vmem>>, vector<1x192x128xbf16>
    %165 = vector.shape_cast %164 : vector<1x192x128xbf16> to vector<192x128xbf16>
    %cst_110 = arith.constant dense<0.000000e+00> : vector<1x128xf32>
    %166 = tpu.matmul %163, %165, %cst_110 {dimension_numbers = #tpu.dot_dimension_numbers<[1], [0], [0], [1], [0, 0, 1, 1], [], []>} : vector<1x192xbf16>, vector<192x128xbf16>, vector<1x128xf32> -> vector<1x128xf32>
    %167 = arith.addf %161, %166 : vector<1x128xf32>
    %168 = vector.extract_strided_slice %154 {offsets = [1, 0], sizes = [1, 192], strides = [1, 1]} : vector<4x192xf32> to vector<1x192xf32>
    %169 = arith.truncf %168 : vector<1x192xf32> to vector<1x192xbf16>
    %c2_111 = arith.constant 2 : index
    %c0_112 = arith.constant 0 : index
    %c0_113 = arith.constant 0 : index
    %170 = vector.load %arg18[%c2_111, %c0_112, %c0_113] : memref<3x192x128xbf16, #tpu.memory_space<vmem>>, vector<1x192x128xbf16>
    %171 = vector.shape_cast %170 : vector<1x192x128xbf16> to vector<192x128xbf16>
    %cst_114 = arith.constant dense<0.000000e+00> : vector<1x128xf32>
    %172 = tpu.matmul %169, %171, %cst_114 {dimension_numbers = #tpu.dot_dimension_numbers<[1], [0], [0], [1], [0, 0, 1, 1], [], []>} : vector<1x192xbf16>, vector<192x128xbf16>, vector<1x128xf32> -> vector<1x128xf32>
    %173 = arith.addf %167, %172 : vector<1x128xf32>
    %c0_115 = arith.constant 0 : index
    %c0_116 = arith.constant 0 : index
    %174 = vector.load %arg19[%c0_115, %c0_116] : memref<1x128xf32, #tpu.memory_space<vmem>>, vector<1x128xf32>
    %175 = arith.addf %173, %174 : vector<1x128xf32>
    %cst_117 = arith.constant 0.000000e+00 : f32
    %176 = vector.broadcast %cst_117 : f32 to vector<1x128xf32>
    %177 = arith.cmpf ogt, %175, %176 : vector<1x128xf32>
    %cst_118 = arith.constant 1.000000e-01 : f32
    %178 = vector.broadcast %cst_118 : f32 to vector<1x128xf32>
    %179 = arith.mulf %178, %175 : vector<1x128xf32>
    %180 = arith.select %177, %175, %179 : vector<1x128xi1>, vector<1x128xf32>
    %181 = arith.truncf %121 : vector<4x256xf32> to vector<4x256xbf16>
    %c0_119 = arith.constant 0 : index
    %c0_120 = arith.constant 0 : index
    %182 = vector.load %arg20[%c0_119, %c0_120] : memref<256x96xbf16, #tpu.memory_space<vmem>>, vector<256x96xbf16>
    %cst_121 = arith.constant dense<0.000000e+00> : vector<4x96xf32>
    %183 = tpu.matmul %181, %182, %cst_121 {dimension_numbers = #tpu.dot_dimension_numbers<[1], [0], [0], [1], [0, 0, 1, 1], [], []>} : vector<4x256xbf16>, vector<256x96xbf16>, vector<4x96xf32> -> vector<4x96xf32>
    %c0_122 = arith.constant 0 : index
    %c0_123 = arith.constant 0 : index
    %184 = vector.load %arg21[%c0_122, %c0_123] : memref<1x96xf32, #tpu.memory_space<vmem>>, vector<1x96xf32>
    %185 = vector.broadcast %184 : vector<1x96xf32> to vector<4x96xf32>
    %186 = arith.addf %183, %185 : vector<4x96xf32>
    %c0_124 = arith.constant 0 : index
    %c0_125 = arith.constant 0 : index
    %c0_126 = arith.constant 0 : index
    %187 = vector.load %arg29[%c0_124, %c0_125, %c0_126] : memref<1x4x96xf32, #tpu.memory_space<vmem>>, vector<1x4x96xf32>
    %188 = vector.shape_cast %187 : vector<1x4x96xf32> to vector<4x96xf32>
    %189 = vector.shape_cast %186 : vector<4x96xf32> to vector<1x4x96xf32>
    tpu.vector_store %arg29[%c0_124, %c0_125, %c0_126], %189 {strides = array<i32>} : memref<1x4x96xf32, #tpu.memory_space<vmem>>, vector<1x4x96xf32>,
    %c0_127 = arith.constant 0 : index
    %c0_128 = arith.constant 0 : index
    %c0_129 = arith.constant 0 : index
    %190 = vector.load %arg22[%c0_127, %c0_128, %c0_129] : memref<4x4x96xf32, #tpu.memory_space<vmem>>, vector<1x4x96xf32>
    %191 = vector.shape_cast %190 : vector<1x4x96xf32> to vector<4x96xf32>
    %c1_130 = arith.constant 1 : index
    %c0_131 = arith.constant 0 : index
    %c0_132 = arith.constant 0 : index
    %192 = vector.load %arg22[%c1_130, %c0_131, %c0_132] : memref<4x4x96xf32, #tpu.memory_space<vmem>>, vector<1x4x96xf32>
    %193 = vector.shape_cast %192 : vector<1x4x96xf32> to vector<4x96xf32>
    %c2_133 = arith.constant 2 : index
    %c0_134 = arith.constant 0 : index
    %c0_135 = arith.constant 0 : index
    %194 = vector.load %arg22[%c2_133, %c0_134, %c0_135] : memref<4x4x96xf32, #tpu.memory_space<vmem>>, vector<1x4x96xf32>
    %195 = vector.shape_cast %194 : vector<1x4x96xf32> to vector<4x96xf32>
    %c3 = arith.constant 3 : index
    %c0_136 = arith.constant 0 : index
    %c0_137 = arith.constant 0 : index
    %196 = vector.load %arg22[%c3, %c0_136, %c0_137] : memref<4x4x96xf32, #tpu.memory_space<vmem>>, vector<1x4x96xf32>
    %197 = vector.shape_cast %196 : vector<1x4x96xf32> to vector<4x96xf32>
    %198 = arith.negf %186 : vector<4x96xf32>
    %199 = math.exp %198 : vector<4x96xf32>
    %cst_138 = arith.constant 1.000000e+00 : f32
    %200 = vector.broadcast %cst_138 : f32 to vector<4x96xf32>
    %201 = arith.addf %200, %199 : vector<4x96xf32>
    %202 = arith.divf %200, %201 : vector<4x96xf32>
    %203 = arith.addf %202, %191 : vector<4x96xf32>
    %204 = arith.mulf %203, %193 : vector<4x96xf32>
    %cst_139 = arith.constant 0.000000e+00 : f32
    %205 = vector.broadcast %cst_139 : f32 to vector<4x96xf32>
    %206 = arith.cmpf ogt, %197, %205 : vector<4x96xf32>
    %cst_140 = arith.constant 0.000000e+00 : f32
    %207 = vector.broadcast %cst_140 : f32 to vector<4x96xf32>
    %208 = arith.select %206, %186, %207 : vector<4x96xi1>, vector<4x96xf32>
    %209 = math.exp %208 : vector<4x96xf32>
    %210 = arith.mulf %209, %193 : vector<4x96xf32>
    %cst_141 = arith.constant 0.000000e+00 : f32
    %211 = vector.broadcast %cst_141 : f32 to vector<4x96xf32>
    %212 = arith.cmpf ogt, %195, %211 : vector<4x96xf32>
    %cst_142 = arith.constant 0.000000e+00 : f32
    %213 = vector.broadcast %cst_142 : f32 to vector<4x96xf32>
    %214 = arith.cmpf ogt, %197, %213 : vector<4x96xf32>
    %215 = arith.select %214, %210, %202 : vector<4x96xi1>, vector<4x96xf32>
    %216 = arith.select %212, %204, %215 : vector<4x96xi1>, vector<4x96xf32>
    %c0_143 = arith.constant 0 : index
    %c0_144 = arith.constant 0 : index
    %c0_145 = arith.constant 0 : index
    %217 = vector.load %arg32[%c0_143, %c0_144, %c0_145] : memref<1x4x96xf32, #tpu.memory_space<vmem>>, vector<1x4x96xf32>
    %218 = vector.shape_cast %217 : vector<1x4x96xf32> to vector<4x96xf32>
    %219 = vector.shape_cast %216 : vector<4x96xf32> to vector<1x4x96xf32>
    tpu.vector_store %arg32[%c0_143, %c0_144, %c0_145], %219 {strides = array<i32>} : memref<1x4x96xf32, #tpu.memory_space<vmem>>, vector<1x4x96xf32>,
    %220 = arith.truncf %151 : vector<2x192xf32> to vector<2x192xbf16>
    %c0_146 = arith.constant 0 : index
    %c0_147 = arith.constant 0 : index
    %221 = vector.load %arg23[%c0_146, %c0_147] : memref<192x48xbf16, #tpu.memory_space<vmem>>, vector<192x48xbf16>
    %cst_148 = arith.constant dense<0.000000e+00> : vector<2x48xf32>
    %222 = tpu.matmul %220, %221, %cst_148 {dimension_numbers = #tpu.dot_dimension_numbers<[1], [0], [0], [1], [0, 0, 1, 1], [], []>} : vector<2x192xbf16>, vector<192x48xbf16>, vector<2x48xf32> -> vector<2x48xf32>
    %c0_149 = arith.constant 0 : index
    %c0_150 = arith.constant 0 : index
    %223 = vector.load %arg24[%c0_149, %c0_150] : memref<1x48xf32, #tpu.memory_space<vmem>>, vector<1x48xf32>
    %224 = vector.broadcast %223 : vector<1x48xf32> to vector<2x48xf32>
    %225 = arith.addf %222, %224 : vector<2x48xf32>
    %c0_151 = arith.constant 0 : index
    %c0_152 = arith.constant 0 : index
    %c0_153 = arith.constant 0 : index
    %226 = vector.load %arg30[%c0_151, %c0_152, %c0_153] : memref<1x2x48xf32, #tpu.memory_space<vmem>>, vector<1x2x48xf32>
    %227 = vector.shape_cast %226 : vector<1x2x48xf32> to vector<2x48xf32>
    %228 = vector.shape_cast %225 : vector<2x48xf32> to vector<1x2x48xf32>
    tpu.vector_store %arg30[%c0_151, %c0_152, %c0_153], %228 {strides = array<i32>} : memref<1x2x48xf32, #tpu.memory_space<vmem>>, vector<1x2x48xf32>,
    %c0_154 = arith.constant 0 : index
    %c0_155 = arith.constant 0 : index
    %c0_156 = arith.constant 0 : index
    %229 = vector.load %arg25[%c0_154, %c0_155, %c0_156] : memref<4x2x48xf32, #tpu.memory_space<vmem>>, vector<1x2x48xf32>
    %230 = vector.shape_cast %229 : vector<1x2x48xf32> to vector<2x48xf32>
    %c1_157 = arith.constant 1 : index
    %c0_158 = arith.constant 0 : index
    %c0_159 = arith.constant 0 : index
    %231 = vector.load %arg25[%c1_157, %c0_158, %c0_159] : memref<4x2x48xf32, #tpu.memory_space<vmem>>, vector<1x2x48xf32>
    %232 = vector.shape_cast %231 : vector<1x2x48xf32> to vector<2x48xf32>
    %c2_160 = arith.constant 2 : index
    %c0_161 = arith.constant 0 : index
    %c0_162 = arith.constant 0 : index
    %233 = vector.load %arg25[%c2_160, %c0_161, %c0_162] : memref<4x2x48xf32, #tpu.memory_space<vmem>>, vector<1x2x48xf32>
    %234 = vector.shape_cast %233 : vector<1x2x48xf32> to vector<2x48xf32>
    %c3_163 = arith.constant 3 : index
    %c0_164 = arith.constant 0 : index
    %c0_165 = arith.constant 0 : index
    %235 = vector.load %arg25[%c3_163, %c0_164, %c0_165] : memref<4x2x48xf32, #tpu.memory_space<vmem>>, vector<1x2x48xf32>
    %236 = vector.shape_cast %235 : vector<1x2x48xf32> to vector<2x48xf32>
    %237 = arith.negf %225 : vector<2x48xf32>
    %238 = math.exp %237 : vector<2x48xf32>
    %cst_166 = arith.constant 1.000000e+00 : f32
    %239 = vector.broadcast %cst_166 : f32 to vector<2x48xf32>
    %240 = arith.addf %239, %238 : vector<2x48xf32>
    %241 = arith.divf %239, %240 : vector<2x48xf32>
    %242 = arith.addf %241, %230 : vector<2x48xf32>
    %243 = arith.mulf %242, %232 : vector<2x48xf32>
    %cst_167 = arith.constant 0.000000e+00 : f32
    %244 = vector.broadcast %cst_167 : f32 to vector<2x48xf32>
    %245 = arith.cmpf ogt, %236, %244 : vector<2x48xf32>
    %cst_168 = arith.constant 0.000000e+00 : f32
    %246 = vector.broadcast %cst_168 : f32 to vector<2x48xf32>
    %247 = arith.select %245, %225, %246 : vector<2x48xi1>, vector<2x48xf32>
    %248 = math.exp %247 : vector<2x48xf32>
    %249 = arith.mulf %248, %232 : vector<2x48xf32>
    %cst_169 = arith.constant 0.000000e+00 : f32
    %250 = vector.broadcast %cst_169 : f32 to vector<2x48xf32>
    %251 = arith.cmpf ogt, %234, %250 : vector<2x48xf32>
    %cst_170 = arith.constant 0.000000e+00 : f32
    %252 = vector.broadcast %cst_170 : f32 to vector<2x48xf32>
    %253 = arith.cmpf ogt, %236, %252 : vector<2x48xf32>
    %254 = arith.select %253, %249, %241 : vector<2x48xi1>, vector<2x48xf32>
    %255 = arith.select %251, %243, %254 : vector<2x48xi1>, vector<2x48xf32>
    %c0_171 = arith.constant 0 : index
    %c0_172 = arith.constant 0 : index
    %c0_173 = arith.constant 0 : index
    %256 = vector.load %arg33[%c0_171, %c0_172, %c0_173] : memref<1x2x48xf32, #tpu.memory_space<vmem>>, vector<1x2x48xf32>
    %257 = vector.shape_cast %256 : vector<1x2x48xf32> to vector<2x48xf32>
    %258 = vector.shape_cast %255 : vector<2x48xf32> to vector<1x2x48xf32>
    tpu.vector_store %arg33[%c0_171, %c0_172, %c0_173], %258 {strides = array<i32>} : memref<1x2x48xf32, #tpu.memory_space<vmem>>, vector<1x2x48xf32>,
    %259 = arith.truncf %180 : vector<1x128xf32> to vector<1x128xbf16>
    %c0_174 = arith.constant 0 : index
    %c0_175 = arith.constant 0 : index
    %260 = vector.load %arg26[%c0_174, %c0_175] : memref<128x24xbf16, #tpu.memory_space<vmem>>, vector<128x24xbf16>
    %cst_176 = arith.constant dense<0.000000e+00> : vector<1x24xf32>
    %261 = tpu.matmul %259, %260, %cst_176 {dimension_numbers = #tpu.dot_dimension_numbers<[1], [0], [0], [1], [0, 0, 1, 1], [], []>} : vector<1x128xbf16>, vector<128x24xbf16>, vector<1x24xf32> -> vector<1x24xf32>
    %c0_177 = arith.constant 0 : index
    %c0_178 = arith.constant 0 : index
    %262 = vector.load %arg27[%c0_177, %c0_178] : memref<1x24xf32, #tpu.memory_space<vmem>>, vector<1x24xf32>
    %263 = arith.addf %261, %262 : vector<1x24xf32>
    %c0_179 = arith.constant 0 : index
    %c0_180 = arith.constant 0 : index
    %c0_181 = arith.constant 0 : index
    %264 = vector.load %arg31[%c0_179, %c0_180, %c0_181] : memref<1x1x24xf32, #tpu.memory_space<vmem>>, vector<1x1x24xf32>
    %265 = vector.shape_cast %264 : vector<1x1x24xf32> to vector<1x24xf32>
    %266 = vector.shape_cast %263 : vector<1x24xf32> to vector<1x1x24xf32>
    tpu.vector_store %arg31[%c0_179, %c0_180, %c0_181], %266 {strides = array<i32>} : memref<1x1x24xf32, #tpu.memory_space<vmem>>, vector<1x1x24xf32>,
    %c0_182 = arith.constant 0 : index
    %c0_183 = arith.constant 0 : index
    %c0_184 = arith.constant 0 : index
    %267 = vector.load %arg28[%c0_182, %c0_183, %c0_184] : memref<4x1x24xf32, #tpu.memory_space<vmem>>, vector<1x1x24xf32>
    %268 = vector.shape_cast %267 : vector<1x1x24xf32> to vector<1x24xf32>
    %c1_185 = arith.constant 1 : index
    %c0_186 = arith.constant 0 : index
    %c0_187 = arith.constant 0 : index
    %269 = vector.load %arg28[%c1_185, %c0_186, %c0_187] : memref<4x1x24xf32, #tpu.memory_space<vmem>>, vector<1x1x24xf32>
    %270 = vector.shape_cast %269 : vector<1x1x24xf32> to vector<1x24xf32>
    %c2_188 = arith.constant 2 : index
    %c0_189 = arith.constant 0 : index
    %c0_190 = arith.constant 0 : index
    %271 = vector.load %arg28[%c2_188, %c0_189, %c0_190] : memref<4x1x24xf32, #tpu.memory_space<vmem>>, vector<1x1x24xf32>
    %272 = vector.shape_cast %271 : vector<1x1x24xf32> to vector<1x24xf32>
    %c3_191 = arith.constant 3 : index
    %c0_192 = arith.constant 0 : index
    %c0_193 = arith.constant 0 : index
    %273 = vector.load %arg28[%c3_191, %c0_192, %c0_193] : memref<4x1x24xf32, #tpu.memory_space<vmem>>, vector<1x1x24xf32>
    %274 = vector.shape_cast %273 : vector<1x1x24xf32> to vector<1x24xf32>
    %275 = arith.negf %263 : vector<1x24xf32>
    %276 = math.exp %275 : vector<1x24xf32>
    %cst_194 = arith.constant 1.000000e+00 : f32
    %277 = vector.broadcast %cst_194 : f32 to vector<1x24xf32>
    %278 = arith.addf %277, %276 : vector<1x24xf32>
    %279 = arith.divf %277, %278 : vector<1x24xf32>
    %280 = arith.addf %279, %268 : vector<1x24xf32>
    %281 = arith.mulf %280, %270 : vector<1x24xf32>
    %cst_195 = arith.constant 0.000000e+00 : f32
    %282 = vector.broadcast %cst_195 : f32 to vector<1x24xf32>
    %283 = arith.cmpf ogt, %274, %282 : vector<1x24xf32>
    %cst_196 = arith.constant 0.000000e+00 : f32
    %284 = vector.broadcast %cst_196 : f32 to vector<1x24xf32>
    %285 = arith.select %283, %263, %284 : vector<1x24xi1>, vector<1x24xf32>
    %286 = math.exp %285 : vector<1x24xf32>
    %287 = arith.mulf %286, %270 : vector<1x24xf32>
    %cst_197 = arith.constant 0.000000e+00 : f32
    %288 = vector.broadcast %cst_197 : f32 to vector<1x24xf32>
    %289 = arith.cmpf ogt, %272, %288 : vector<1x24xf32>
    %cst_198 = arith.constant 0.000000e+00 : f32
    %290 = vector.broadcast %cst_198 : f32 to vector<1x24xf32>
    %291 = arith.cmpf ogt, %274, %290 : vector<1x24xf32>
    %292 = arith.select %291, %287, %279 : vector<1x24xi1>, vector<1x24xf32>
    %293 = arith.select %289, %281, %292 : vector<1x24xi1>, vector<1x24xf32>
    %c0_199 = arith.constant 0 : index
    %c0_200 = arith.constant 0 : index
    %c0_201 = arith.constant 0 : index
    %294 = vector.load %arg34[%c0_199, %c0_200, %c0_201] : memref<1x1x24xf32, #tpu.memory_space<vmem>>, vector<1x1x24xf32>
    %295 = vector.shape_cast %294 : vector<1x1x24xf32> to vector<1x24xf32>
    %296 = vector.shape_cast %293 : vector<1x24xf32> to vector<1x1x24xf32>
    tpu.vector_store %arg34[%c0_199, %c0_200, %c0_201], %296 {strides = array<i32>} : memref<1x1x24xf32, #tpu.memory_space<vmem>>, vector<1x1x24xf32>,
    return
  }
  func.func @transform_0(%arg0: i32) -> (i32, i32, i32) {
    %c0_i32 = arith.constant 0 : i32
    %c0_i32_0 = arith.constant 0 : i32
    %c0_i32_1 = arith.constant 0 : i32
    return %arg0, %c0_i32, %c0_i32_0 : i32, i32, i32
  }
  func.func @transform_1(%arg0: i32) -> (i32, i32) {
    %c0_i32 = arith.constant 0 : i32
    %c0_i32_0 = arith.constant 0 : i32
    %c0_i32_1 = arith.constant 0 : i32
    return %c0_i32, %c0_i32_0 : i32, i32
  }
  func.func @transform_2(%arg0: i32) -> (i32, i32, i32) {
    %c0_i32 = arith.constant 0 : i32
    %c0_i32_0 = arith.constant 0 : i32
    %c0_i32_1 = arith.constant 0 : i32
    %c0_i32_2 = arith.constant 0 : i32
    return %c0_i32, %c0_i32_0, %c0_i32_1 : i32, i32, i32
  }
  func.func @transform_3(%arg0: i32) -> (i32, i32) {
    %c0_i32 = arith.constant 0 : i32
    %c0_i32_0 = arith.constant 0 : i32
    %c0_i32_1 = arith.constant 0 : i32
    return %c0_i32, %c0_i32_0 : i32, i32
  }
  func.func @transform_4(%arg0: i32) -> (i32, i32) {
    %c0_i32 = arith.constant 0 : i32
    %c0_i32_0 = arith.constant 0 : i32
    %c0_i32_1 = arith.constant 0 : i32
    return %c0_i32, %c0_i32_0 : i32, i32
  }
  func.func @transform_5(%arg0: i32) -> (i32, i32, i32) {
    %c0_i32 = arith.constant 0 : i32
    %c0_i32_0 = arith.constant 0 : i32
    %c0_i32_1 = arith.constant 0 : i32
    %c0_i32_2 = arith.constant 0 : i32
    return %c0_i32, %c0_i32_0, %c0_i32_1 : i32, i32, i32
  }
  func.func @transform_6(%arg0: i32) -> (i32, i32) {
    %c0_i32 = arith.constant 0 : i32
    %c0_i32_0 = arith.constant 0 : i32
    %c0_i32_1 = arith.constant 0 : i32
    return %c0_i32, %c0_i32_0 : i32, i32
  }
  func.func @transform_7(%arg0: i32) -> (i32, i32) {
    %c0_i32 = arith.constant 0 : i32
    %c0_i32_0 = arith.constant 0 : i32
    %c0_i32_1 = arith.constant 0 : i32
    return %c0_i32, %c0_i32_0 : i32, i32
  }
  func.func @transform_8(%arg0: i32) -> (i32, i32, i32) {
    %c0_i32 = arith.constant 0 : i32
    %c0_i32_0 = arith.constant 0 : i32
    %c0_i32_1 = arith.constant 0 : i32
    %c0_i32_2 = arith.constant 0 : i32
    return %c0_i32, %c0_i32_0, %c0_i32_1 : i32, i32, i32
  }
  func.func @transform_9(%arg0: i32) -> (i32, i32) {
    %c0_i32 = arith.constant 0 : i32
    %c0_i32_0 = arith.constant 0 : i32
    %c0_i32_1 = arith.constant 0 : i32
    return %c0_i32, %c0_i32_0 : i32, i32
  }
  func.func @transform_10(%arg0: i32) -> (i32, i32) {
    %c0_i32 = arith.constant 0 : i32
    %c0_i32_0 = arith.constant 0 : i32
    %c0_i32_1 = arith.constant 0 : i32
    return %c0_i32, %c0_i32_0 : i32, i32
  }
  func.func @transform_11(%arg0: i32) -> (i32, i32, i32) {
    %c0_i32 = arith.constant 0 : i32
    %c0_i32_0 = arith.constant 0 : i32
    %c0_i32_1 = arith.constant 0 : i32
    %c0_i32_2 = arith.constant 0 : i32
    return %c0_i32, %c0_i32_0, %c0_i32_1 : i32, i32, i32
  }
  func.func @transform_12(%arg0: i32) -> (i32, i32) {
    %c0_i32 = arith.constant 0 : i32
    %c0_i32_0 = arith.constant 0 : i32
    %c0_i32_1 = arith.constant 0 : i32
    return %c0_i32, %c0_i32_0 : i32, i32
  }
  func.func @transform_13(%arg0: i32) -> (i32, i32) {
    %c0_i32 = arith.constant 0 : i32
    %c0_i32_0 = arith.constant 0 : i32
    %c0_i32_1 = arith.constant 0 : i32
    return %c0_i32, %c0_i32_0 : i32, i32
  }
  func.func @transform_14(%arg0: i32) -> (i32, i32, i32) {
    %c0_i32 = arith.constant 0 : i32
    %c0_i32_0 = arith.constant 0 : i32
    %c0_i32_1 = arith.constant 0 : i32
    %c0_i32_2 = arith.constant 0 : i32
    return %c0_i32, %c0_i32_0, %c0_i32_1 : i32, i32, i32
  }
  func.func @transform_15(%arg0: i32) -> (i32, i32) {
    %c0_i32 = arith.constant 0 : i32
    %c0_i32_0 = arith.constant 0 : i32
    %c0_i32_1 = arith.constant 0 : i32
    return %c0_i32, %c0_i32_0 : i32, i32
  }
  func.func @transform_16(%arg0: i32) -> (i32, i32) {
    %c0_i32 = arith.constant 0 : i32
    %c0_i32_0 = arith.constant 0 : i32
    %c0_i32_1 = arith.constant 0 : i32
    return %c0_i32, %c0_i32_0 : i32, i32
  }
  func.func @transform_17(%arg0: i32) -> (i32, i32, i32) {
    %c0_i32 = arith.constant 0 : i32
    %c0_i32_0 = arith.constant 0 : i32
    %c0_i32_1 = arith.constant 0 : i32
    %c0_i32_2 = arith.constant 0 : i32
    return %c0_i32, %c0_i32_0, %c0_i32_1 : i32, i32, i32
  }
  func.func @transform_18(%arg0: i32) -> (i32, i32) {
    %c0_i32 = arith.constant 0 : i32
    %c0_i32_0 = arith.constant 0 : i32
    %c0_i32_1 = arith.constant 0 : i32
    return %c0_i32, %c0_i32_0 : i32, i32
  }
  func.func @transform_19(%arg0: i32) -> (i32, i32) {
    %c0_i32 = arith.constant 0 : i32
    %c0_i32_0 = arith.constant 0 : i32
    %c0_i32_1 = arith.constant 0 : i32
    return %c0_i32, %c0_i32_0 : i32, i32
  }
  func.func @transform_20(%arg0: i32) -> (i32, i32) {
    %c0_i32 = arith.constant 0 : i32
    %c0_i32_0 = arith.constant 0 : i32
    %c0_i32_1 = arith.constant 0 : i32
    return %c0_i32, %c0_i32_0 : i32, i32
  }
  func.func @transform_21(%arg0: i32) -> (i32, i32, i32) {
    %c0_i32 = arith.constant 0 : i32
    %c0_i32_0 = arith.constant 0 : i32
    %c0_i32_1 = arith.constant 0 : i32
    %c0_i32_2 = arith.constant 0 : i32
    return %c0_i32, %c0_i32_0, %c0_i32_1 : i32, i32, i32
  }
  func.func @transform_22(%arg0: i32) -> (i32, i32) {
    %c0_i32 = arith.constant 0 : i32
    %c0_i32_0 = arith.constant 0 : i32
    %c0_i32_1 = arith.constant 0 : i32
    return %c0_i32, %c0_i32_0 : i32, i32
  }
  func.func @transform_23(%arg0: i32) -> (i32, i32) {
    %c0_i32 = arith.constant 0 : i32
    %c0_i32_0 = arith.constant 0 : i32
    %c0_i32_1 = arith.constant 0 : i32
    return %c0_i32, %c0_i32_0 : i32, i32
  }
  func.func @transform_24(%arg0: i32) -> (i32, i32, i32) {
    %c0_i32 = arith.constant 0 : i32
    %c0_i32_0 = arith.constant 0 : i32
    %c0_i32_1 = arith.constant 0 : i32
    %c0_i32_2 = arith.constant 0 : i32
    return %c0_i32, %c0_i32_0, %c0_i32_1 : i32, i32, i32
  }
  func.func @transform_25(%arg0: i32) -> (i32, i32) {
    %c0_i32 = arith.constant 0 : i32
    %c0_i32_0 = arith.constant 0 : i32
    %c0_i32_1 = arith.constant 0 : i32
    return %c0_i32, %c0_i32_0 : i32, i32
  }
  func.func @transform_26(%arg0: i32) -> (i32, i32) {
    %c0_i32 = arith.constant 0 : i32
    %c0_i32_0 = arith.constant 0 : i32
    %c0_i32_1 = arith.constant 0 : i32
    return %c0_i32, %c0_i32_0 : i32, i32
  }
  func.func @transform_27(%arg0: i32) -> (i32, i32, i32) {
    %c0_i32 = arith.constant 0 : i32
    %c0_i32_0 = arith.constant 0 : i32
    %c0_i32_1 = arith.constant 0 : i32
    %c0_i32_2 = arith.constant 0 : i32
    return %c0_i32, %c0_i32_0, %c0_i32_1 : i32, i32, i32
  }
  func.func @transform_28(%arg0: i32) -> (i32, i32, i32) {
    %c0_i32 = arith.constant 0 : i32
    %c0_i32_0 = arith.constant 0 : i32
    %c0_i32_1 = arith.constant 0 : i32
    return %arg0, %c0_i32, %c0_i32_0 : i32, i32, i32
  }
  func.func @transform_29(%arg0: i32) -> (i32, i32, i32) {
    %c0_i32 = arith.constant 0 : i32
    %c0_i32_0 = arith.constant 0 : i32
    %c0_i32_1 = arith.constant 0 : i32
    return %arg0, %c0_i32, %c0_i32_0 : i32, i32, i32
  }
  func.func @transform_30(%arg0: i32) -> (i32, i32, i32) {
    %c0_i32 = arith.constant 0 : i32
    %c0_i32_0 = arith.constant 0 : i32
    %c0_i32_1 = arith.constant 0 : i32
    return %arg0, %c0_i32, %c0_i32_0 : i32, i32, i32
  }
  func.func @transform_31(%arg0: i32) -> (i32, i32, i32) {
    %c0_i32 = arith.constant 0 : i32
    %c0_i32_0 = arith.constant 0 : i32
    %c0_i32_1 = arith.constant 0 : i32
    return %arg0, %c0_i32, %c0_i32_0 : i32, i32, i32
  }
  func.func @transform_32(%arg0: i32) -> (i32, i32, i32) {
    %c0_i32 = arith.constant 0 : i32
    %c0_i32_0 = arith.constant 0 : i32
    %c0_i32_1 = arith.constant 0 : i32
    return %arg0, %c0_i32, %c0_i32_0 : i32, i32, i32
  }
  func.func @transform_33(%arg0: i32) -> (i32, i32, i32) {
    %c0_i32 = arith.constant 0 : i32
    %c0_i32_0 = arith.constant 0 : i32
    %c0_i32_1 = arith.constant 0 : i32
    return %arg0, %c0_i32, %c0_i32_0 : i32, i32, i32
  }
}

</mosaic_0001>

<llo_original>
// kernel: yolov3_multi_gdip_forward.2
$region0: #{yolov3_multi_gdip_forward.2}
  #allocation0 [shape = 'u32[]', space=smem, size = 0x4, offset = 0x4, fixed_abs, tag = 'smem constant byte address 0x4 - core index']
  #allocation1 [shape = 'u32[144,128]{1,0:T(1,128)}', space=vmem, size = 0x12000, scoped, tag = 'internal scratch']
  %s0 = inlined_call_operand.vmem [shape: f32[2,32,96], index: 0, kind: input, shape index: {}]
  %s1 = inlined_call_operand.vmem [shape: bf16[34,32], index: 1, kind: input, shape index: {}]
  %s2 = inlined_call_operand.hbm [shape: bf16[3,96,128], index: 2, kind: input, shape index: {}]
  %s3 = inlined_call_operand.vmem [shape: f32[1,128], index: 3, kind: input, shape index: {}]
  %s4 = inlined_call_operand.vmem [shape: bf16[18,16], index: 4, kind: input, shape index: {}]
  %s5 = inlined_call_operand.vmem [shape: bf16[3,128,128], index: 5, kind: input, shape index: {}]
  %s6 = inlined_call_operand.vmem [shape: f32[1,128], index: 6, kind: input, shape index: {}]
  %s7 = inlined_call_operand.vmem [shape: bf16[10,8], index: 7, kind: input, shape index: {}]
  %s8 = inlined_call_operand.vmem [shape: bf16[3,128,128], index: 8, kind: input, shape index: {}]
  %s9 = inlined_call_operand.hbm [shape: f32[1,128], index: 9, kind: input, shape index: {}]
  %s10 = inlined_call_operand.hbm [shape: f32[1,96], index: 10, kind: input, shape index: {}]
  %s11 = inlined_call_operand.hbm [shape: bf16[128,128], index: 11, kind: input, shape index: {}]
  %s12 = inlined_call_operand.hbm [shape: f32[1,128], index: 12, kind: input, shape index: {}]
  %s13 = inlined_call_operand.hbm [shape: bf16[128,128], index: 13, kind: input, shape index: {}]
  %s14 = inlined_call_operand.hbm [shape: f32[1,128], index: 14, kind: input, shape index: {}]
  %s15 = inlined_call_operand.hbm [shape: bf16[128,128], index: 15, kind: input, shape index: {}]
  %s16 = inlined_call_operand.hbm [shape: f32[1,128], index: 16, kind: input, shape index: {}]
  %s17 = inlined_call_operand.vmem [shape: f32[2,32,96], index: 17, kind: output, shape index: {0}]
  %s18 = inlined_call_operand.vmem [shape: f32[2,8,128], index: 18, kind: output, shape index: {1}]
  %19 = xla_tuple %s17, %s18
  %s20 = sld [smem:[#allocation0]]
  $region145: #{yolov3_multi_gdip_forward.2} parent=0
    _
  %s22 = ssub.s32 1, %s20
  %s23 = scalar_select 0, %s22, %s20
  $region1: #{yolov3_multi_gdip_forward.2} parent=0
    #allocation2 [shape = 'u8[73728]{0}', space=vmem, size = 0x12000, scoped, tag = 'input window, operand 2, single buffered']
    #allocation3 [shape = 's32[2]{0}', space=sflag, size = 0x8, scoped, tag = 'scoped memory for yolov3_multi_gdip_forward.2']
    #allocation4 [shape = 'u8[512]{0}', space=vmem, size = 0x400, scoped, tag = 'input window, operand 9, single buffered']
    #allocation5 [shape = 's32[1]{0}', space=sflag, size = 0x4, scoped, tag = 'scoped memory for yolov3_multi_gdip_forward.2']
    #allocation6 [shape = 'u8[512]{0}', space=vmem, size = 0x400, scoped, tag = 'input window, operand 10, single buffered']
    #allocation7 [shape = 'u8[32768]{0}', space=vmem, size = 0x8000, scoped, tag = 'input window, operand 11, single buffered']
    #allocation8 [shape = 's32[1]{0}', space=sflag, size = 0x4, scoped, tag = 'scoped memory for yolov3_multi_gdip_forward.2']
    #allocation9 [shape = 'u8[512]{0}', space=vmem, size = 0x400, scoped, tag = 'input window, operand 12, single buffered']
    #allocation10 [shape = 'u8[32768]{0}', space=vmem, size = 0x8000, scoped, tag = 'input window, operand 13, single buffered']
    #allocation11 [shape = 's32[1]{0}', space=sflag, size = 0x4, scoped, tag = 'scoped memory for yolov3_multi_gdip_forward.2']
    #allocation12 [shape = 'u8[512]{0}', space=vmem, size = 0x400, scoped, tag = 'input window, operand 14, single buffered']
    #allocation13 [shape = 'u8[32768]{0}', space=vmem, size = 0x8000, scoped, tag = 'input window, operand 15, single buffered']
    #allocation14 [shape = 's32[1]{0}', space=sflag, size = 0x4, scoped, tag = 'scoped memory for yolov3_multi_gdip_forward.2']
    #allocation15 [shape = 'u8[512]{0}', space=vmem, size = 0x400, scoped, tag = 'input window, operand 16, single buffered']
    %24 = vsyncpa [#allocation3], 0
    %25 = vsyncpa [#allocation5], 0
    %26 = vsyncpa [#allocation8], 0
    %27 = vsyncpa [#allocation11], 0
    %28 = vsyncpa [#allocation14], 0
    loop: start=0, step=1, limit=4
    $region2: #{yolov3_multi_gdip_forward.2} parent=1 // loop_pre_header
      _
    $region3: #{yolov3_multi_gdip_forward.2} parent=1 // loop_header
      %s30 = sphi 0, %s34
      %p31 = scmp.ge.s32.totalorder %s30, 4
      %s40 = sphi 0, %s42
      %s43 = sphi 0, %s40
      %s44 = sphi 0, %s43
      %s60 = sphi 0, %s44
      %s64 = sphi 0, %s64
      %s66 = sphi 0, %s64
      %s67 = sphi 0, %s66
      %s81 = sphi 0, %s67
      %s85 = sphi 0, %s85
      %s87 = sphi 0, %s85
      %s88 = sphi 0, %s87
      %s102 = sphi 0, %s88
      %s106 = sphi 0, %s106
      %s108 = sphi 0, %s106
      %s109 = sphi 0, %s108
      %s123 = sphi 0, %s109
      %s127 = sphi 0, %s127
      %s129 = sphi 0, %s127
      %s130 = sphi 0, %s129
      %s144 = sphi 0, %s130
      %s148 = sphi 0, %s148
      %s150 = sphi 0, %s148
      %s151 = sphi 0, %s150
      %s165 = sphi 0, %s151
      %s169 = sphi 0, %s169
      %s171 = sphi 0, %s169
      %s172 = sphi 0, %s171
      %s186 = sphi 0, %s172
      %s190 = sphi 0, %s190
      %s192 = sphi 0, %s190
      %s193 = sphi 0, %s192
      %s207 = sphi 0, %s193
      %s211 = sphi 0, %s211
      %s213 = sphi 0, %s211
      %s214 = sphi 0, %s213
      %s228 = sphi 0, %s214
      %s232 = sphi 0, %s232
      %s234 = sphi 0, %s232
      %s235 = sphi 0, %s234
      %s249 = sphi 0, %s235
      %s253 = sphi 0, %s253
      %s255 = sphi 0, %s253
      %s256 = sphi 0, %s255
      %s270 = sphi 0, %s256
      %s274 = sphi 0, %s274
      %s276 = sphi 0, %s274
      %s277 = sphi 0, %s276
      %s291 = sphi 0, %s277
      %s295 = sphi 0, %s295
      %s297 = sphi 0, %s295
      %s298 = sphi 0, %s297
      %s312 = sphi 0, %s298
      %s316 = sphi 0, %s316
      %s318 = sphi 0, %s316
      %s319 = sphi 0, %s318
      %s333 = sphi 0, %s319
      %s337 = sphi 0, %s337
      %s339 = sphi 0, %s337
      %s340 = sphi 0, %s339
      %s354 = sphi 0, %s340
      %s358 = sphi 0, %s358
      %s360 = sphi 0, %s358
      %s361 = sphi 0, %s360
      %s375 = sphi 0, %s361
      %s379 = sphi 0, %s379
      %s381 = sphi 0, %s379
      %s382 = sphi 0, %s381
      %s396 = sphi 0, %s382
      %s402 = sphi 0, %s404
      %s405 = sphi 0, %s402
      %s406 = sphi 0, %s405
      %s422 = sphi 0, %s406
      %s428 = sphi 0, %s430
      %s431 = sphi 0, %s428
      %s432 = sphi 0, %s431
      %s448 = sphi 0, %s432
    $region4: #{yolov3_multi_gdip_forward.2} parent=1 // loop_header_branch
      %33 = sbr.rel (%p31) target = $region8
    $region5: #{yolov3_multi_gdip_forward.2} parent=1 // loop_body
      %s35 = ssub.s32 %s30, 1
      %s36 = ssub.s32 %s30, 2
      %s37 = sadd.s32 %s30, 1
      %s38 = ssub.s32 %s30, %s37
      %p39 = scmp.eq.s32.totalorder %s38, 0
      %s41 = sadd.s32 %s40, 1
      %s42 = scalar_select %p39, %s40, %s41
      %p45 = pneg %p39
      %p46 = scmp.eq.s32.totalorder %s30, 1
      %p47 = por %p45, %p46
      %p48 = scmp.ne.s32.totalorder %s40, %s43
      %p49 = scmp.eq.s32.totalorder %s30, 0
      %p50 = por %p48, %p49
      %p51 = scmp.ne.s32.totalorder %s40, %s43
      %p52 = scmp.eq.s32.totalorder %s35, 1
      %p53 = por %p51, %p52
      %p54 = scmp.ne.s32.totalorder %s43, %s44
      %p55 = scmp.eq.s32.totalorder %s35, 0
      %p56 = por %p54, %p55
      %p57 = scmp.ne.s32.totalorder %s43, %s44
      %p58 = scmp.eq.s32.totalorder %s36, 1
      %p59 = por %p57, %p58
      %p61 = scmp.ne.s32.totalorder %s44, %s60
      %p62 = scmp.eq.s32.totalorder %s36, 0
      %p63 = por %p61, %p62
      %s65 = sadd.s32 %s64, 1
      %p68 = scmp.eq.s32.totalorder %s30, 1
      %p69 = scmp.ne.s32.totalorder %s64, %s66
      %p70 = scmp.eq.s32.totalorder %s30, 0
      %p71 = por %p69, %p70
      %p72 = scmp.ne.s32.totalorder %s64, %s66
      %p73 = scmp.eq.s32.totalorder %s35, 1
      %p74 = por %p72, %p73
      %p75 = scmp.ne.s32.totalorder %s66, %s67
      %p76 = scmp.eq.s32.totalorder %s35, 0
      %p77 = por %p75, %p76
      %p78 = scmp.ne.s32.totalorder %s66, %s67
      %p79 = scmp.eq.s32.totalorder %s36, 1
      %p80 = por %p78, %p79
      %p82 = scmp.ne.s32.totalorder %s67, %s81
      %p83 = scmp.eq.s32.totalorder %s36, 0
      %p84 = por %p82, %p83
      %s86 = sadd.s32 %s85, 1
      %p89 = scmp.eq.s32.totalorder %s30, 1
      %p90 = scmp.ne.s32.totalorder %s85, %s87
      %p91 = scmp.eq.s32.totalorder %s30, 0
      %p92 = por %p90, %p91
      %p93 = scmp.ne.s32.totalorder %s85, %s87
      %p94 = scmp.eq.s32.totalorder %s35, 1
      %p95 = por %p93, %p94
      %p96 = scmp.ne.s32.totalorder %s87, %s88
      %p97 = scmp.eq.s32.totalorder %s35, 0
      %p98 = por %p96, %p97
      %p99 = scmp.ne.s32.totalorder %s87, %s88
      %p100 = scmp.eq.s32.totalorder %s36, 1
      %p101 = por %p99, %p100
      %p103 = scmp.ne.s32.totalorder %s88, %s102
      %p104 = scmp.eq.s32.totalorder %s36, 0
      %p105 = por %p103, %p104
      %s107 = sadd.s32 %s106, 1
      %p110 = scmp.eq.s32.totalorder %s30, 1
      %p111 = scmp.ne.s32.totalorder %s106, %s108
      %p112 = scmp.eq.s32.totalorder %s30, 0
      %p113 = por %p111, %p112
      %p114 = scmp.ne.s32.totalorder %s106, %s108
      %p115 = scmp.eq.s32.totalorder %s35, 1
      %p116 = por %p114, %p115
      %p117 = scmp.ne.s32.totalorder %s108, %s109
      %p118 = scmp.eq.s32.totalorder %s35, 0
      %p119 = por %p117, %p118
      %p120 = scmp.ne.s32.totalorder %s108, %s109
      %p121 = scmp.eq.s32.totalorder %s36, 1
      %p122 = por %p120, %p121
      %p124 = scmp.ne.s32.totalorder %s109, %s123
      %p125 = scmp.eq.s32.totalorder %s36, 0
      %p126 = por %p124, %p125
      %s128 = sadd.s32 %s127, 1
      %p131 = scmp.eq.s32.totalorder %s30, 1
      %p132 = scmp.ne.s32.totalorder %s127, %s129
      %p133 = scmp.eq.s32.totalorder %s30, 0
      %p134 = por %p132, %p133
      %p135 = scmp.ne.s32.totalorder %s127, %s129
      %p136 = scmp.eq.s32.totalorder %s35, 1
      %p137 = por %p135, %p136
      %p138 = scmp.ne.s32.totalorder %s129, %s130
      %p139 = scmp.eq.s32.totalorder %s35, 0
      %p140 = por %p138, %p139
      %p141 = scmp.ne.s32.totalorder %s129, %s130
      %p142 = scmp.eq.s32.totalorder %s36, 1
      %p143 = por %p141, %p142
      %p145 = scmp.ne.s32.totalorder %s130, %s144
      %p146 = scmp.eq.s32.totalorder %s36, 0
      %p147 = por %p145, %p146
      %s149 = sadd.s32 %s148, 1
      %p152 = scmp.eq.s32.totalorder %s30, 1
      %p153 = scmp.ne.s32.totalorder %s148, %s150
      %p154 = scmp.eq.s32.totalorder %s30, 0
      %p155 = por %p153, %p154
      %p156 = scmp.ne.s32.totalorder %s148, %s150
      %p157 = scmp.eq.s32.totalorder %s35, 1
      %p158 = por %p156, %p157
      %p159 = scmp.ne.s32.totalorder %s150, %s151
      %p160 = scmp.eq.s32.totalorder %s35, 0
      %p161 = por %p159, %p160
      %p162 = scmp.ne.s32.totalorder %s150, %s151
      %p163 = scmp.eq.s32.totalorder %s36, 1
      %p164 = por %p162, %p163
      %p166 = scmp.ne.s32.totalorder %s151, %s165
      %p167 = scmp.eq.s32.totalorder %s36, 0
      %p168 = por %p166, %p167
      %s170 = sadd.s32 %s169, 1
      %p173 = scmp.eq.s32.totalorder %s30, 1
      %p174 = scmp.ne.s32.totalorder %s169, %s171
      %p175 = scmp.eq.s32.totalorder %s30, 0
      %p176 = por %p174, %p175
      %p177 = scmp.ne.s32.totalorder %s169, %s171
      %p178 = scmp.eq.s32.totalorder %s35, 1
      %p179 = por %p177, %p178
      %p180 = scmp.ne.s32.totalorder %s171, %s172
      %p181 = scmp.eq.s32.totalorder %s35, 0
      %p182 = por %p180, %p181
      %p183 = scmp.ne.s32.totalorder %s171, %s172
      %p184 = scmp.eq.s32.totalorder %s36, 1
      %p185 = por %p183, %p184
      %p187 = scmp.ne.s32.totalorder %s172, %s186
      %p188 = scmp.eq.s32.totalorder %s36, 0
      %p189 = por %p187, %p188
      %s191 = sadd.s32 %s190, 1
      %p194 = scmp.eq.s32.totalorder %s30, 1
      %p195 = scmp.ne.s32.totalorder %s190, %s192
      %p196 = scmp.eq.s32.totalorder %s30, 0
      %p197 = por %p195, %p196
      %p198 = scmp.ne.s32.totalorder %s190, %s192
      %p199 = scmp.eq.s32.totalorder %s35, 1
      %p200 = por %p198, %p199
      %p201 = scmp.ne.s32.totalorder %s192, %s193
      %p202 = scmp.eq.s32.totalorder %s35, 0
      %p203 = por %p201, %p202
      %p204 = scmp.ne.s32.totalorder %s192, %s193
      %p205 = scmp.eq.s32.totalorder %s36, 1
      %p206 = por %p204, %p205
      %p208 = scmp.ne.s32.totalorder %s193, %s207
      %p209 = scmp.eq.s32.totalorder %s36, 0
      %p210 = por %p208, %p209
      %s212 = sadd.s32 %s211, 1
      %p215 = scmp.eq.s32.totalorder %s30, 1
      %p216 = scmp.ne.s32.totalorder %s211, %s213
      %p217 = scmp.eq.s32.totalorder %s30, 0
      %p218 = por %p216, %p217
      %p219 = scmp.ne.s32.totalorder %s211, %s213
      %p220 = scmp.eq.s32.totalorder %s35, 1
      %p221 = por %p219, %p220
      %p222 = scmp.ne.s32.totalorder %s213, %s214
      %p223 = scmp.eq.s32.totalorder %s35, 0
      %p224 = por %p222, %p223
      %p225 = scmp.ne.s32.totalorder %s213, %s214
      %p226 = scmp.eq.s32.totalorder %s36, 1
      %p227 = por %p225, %p226
      %p229 = scmp.ne.s32.totalorder %s214, %s228
      %p230 = scmp.eq.s32.totalorder %s36, 0
      %p231 = por %p229, %p230
      %s233 = sadd.s32 %s232, 1
      %p236 = scmp.eq.s32.totalorder %s30, 1
      %p237 = scmp.ne.s32.totalorder %s232, %s234
      %p238 = scmp.eq.s32.totalorder %s30, 0
      %p239 = por %p237, %p238
      %p240 = scmp.ne.s32.totalorder %s232, %s234
      %p241 = scmp.eq.s32.totalorder %s35, 1
      %p242 = por %p240, %p241
      %p243 = scmp.ne.s32.totalorder %s234, %s235
      %p244 = scmp.eq.s32.totalorder %s35, 0
      %p245 = por %p243, %p244
      %p246 = scmp.ne.s32.totalorder %s234, %s235
      %p247 = scmp.eq.s32.totalorder %s36, 1
      %p248 = por %p246, %p247
      %p250 = scmp.ne.s32.totalorder %s235, %s249
      %p251 = scmp.eq.s32.totalorder %s36, 0
      %p252 = por %p250, %p251
      %s254 = sadd.s32 %s253, 1
      %p257 = scmp.eq.s32.totalorder %s30, 1
      %p258 = scmp.ne.s32.totalorder %s253, %s255
      %p259 = scmp.eq.s32.totalorder %s30, 0
      %p260 = por %p258, %p259
      %p261 = scmp.ne.s32.totalorder %s253, %s255
      %p262 = scmp.eq.s32.totalorder %s35, 1
      %p263 = por %p261, %p262
      %p264 = scmp.ne.s32.totalorder %s255, %s256
      %p265 = scmp.eq.s32.totalorder %s35, 0
      %p266 = por %p264, %p265
      %p267 = scmp.ne.s32.totalorder %s255, %s256
      %p268 = scmp.eq.s32.totalorder %s36, 1
      %p269 = por %p267, %p268
      %p271 = scmp.ne.s32.totalorder %s256, %s270
      %p272 = scmp.eq.s32.totalorder %s36, 0
      %p273 = por %p271, %p272
      %s275 = sadd.s32 %s274, 1
      %p278 = scmp.eq.s32.totalorder %s30, 1
      %p279 = scmp.ne.s32.totalorder %s274, %s276
      %p280 = scmp.eq.s32.totalorder %s30, 0
      %p281 = por %p279, %p280
      %p282 = scmp.ne.s32.totalorder %s274, %s276
      %p283 = scmp.eq.s32.totalorder %s35, 1
      %p284 = por %p282, %p283
      %p285 = scmp.ne.s32.totalorder %s276, %s277
      %p286 = scmp.eq.s32.totalorder %s35, 0
      %p287 = por %p285, %p286
      %p288 = scmp.ne.s32.totalorder %s276, %s277
      %p289 = scmp.eq.s32.totalorder %s36, 1
      %p290 = por %p288, %p289
      %p292 = scmp.ne.s32.totalorder %s277, %s291
      %p293 = scmp.eq.s32.totalorder %s36, 0
      %p294 = por %p292, %p293
      %s296 = sadd.s32 %s295, 1
      %p299 = scmp.eq.s32.totalorder %s30, 1
      %p300 = scmp.ne.s32.totalorder %s295, %s297
      %p301 = scmp.eq.s32.totalorder %s30, 0
      %p302 = por %p300, %p301
      %p303 = scmp.ne.s32.totalorder %s295, %s297
      %p304 = scmp.eq.s32.totalorder %s35, 1
      %p305 = por %p303, %p304
      %p306 = scmp.ne.s32.totalorder %s297, %s298
      %p307 = scmp.eq.s32.totalorder %s35, 0
      %p308 = por %p306, %p307
      %p309 = scmp.ne.s32.totalorder %s297, %s298
      %p310 = scmp.eq.s32.totalorder %s36, 1
      %p311 = por %p309, %p310
      %p313 = scmp.ne.s32.totalorder %s298, %s312
      %p314 = scmp.eq.s32.totalorder %s36, 0
      %p315 = por %p313, %p314
      %s317 = sadd.s32 %s316, 1
      %p320 = scmp.eq.s32.totalorder %s30, 1
      %p321 = scmp.ne.s32.totalorder %s316, %s318
      %p322 = scmp.eq.s32.totalorder %s30, 0
      %p323 = por %p321, %p322
      %p324 = scmp.ne.s32.totalorder %s316, %s318
      %p325 = scmp.eq.s32.totalorder %s35, 1
      %p326 = por %p324, %p325
      %p327 = scmp.ne.s32.totalorder %s318, %s319
      %p328 = scmp.eq.s32.totalorder %s35, 0
      %p329 = por %p327, %p328
      %p330 = scmp.ne.s32.totalorder %s318, %s319
      %p331 = scmp.eq.s32.totalorder %s36, 1
      %p332 = por %p330, %p331
      %p334 = scmp.ne.s32.totalorder %s319, %s333
      %p335 = scmp.eq.s32.totalorder %s36, 0
      %p336 = por %p334, %p335
      %s338 = sadd.s32 %s337, 1
      %p341 = scmp.eq.s32.totalorder %s30, 1
      %p342 = scmp.ne.s32.totalorder %s337, %s339
      %p343 = scmp.eq.s32.totalorder %s30, 0
      %p344 = por %p342, %p343
      %p345 = scmp.ne.s32.totalorder %s337, %s339
      %p346 = scmp.eq.s32.totalorder %s35, 1
      %p347 = por %p345, %p346
      %p348 = scmp.ne.s32.totalorder %s339, %s340
      %p349 = scmp.eq.s32.totalorder %s35, 0
      %p350 = por %p348, %p349
      %p351 = scmp.ne.s32.totalorder %s339, %s340
      %p352 = scmp.eq.s32.totalorder %s36, 1
      %p353 = por %p351, %p352
      %p355 = scmp.ne.s32.totalorder %s340, %s354
      %p356 = scmp.eq.s32.totalorder %s36, 0
      %p357 = por %p355, %p356
      %s359 = sadd.s32 %s358, 1
      %p362 = scmp.eq.s32.totalorder %s30, 1
      %p363 = scmp.ne.s32.totalorder %s358, %s360
      %p364 = scmp.eq.s32.totalorder %s30, 0
      %p365 = por %p363, %p364
      %p366 = scmp.ne.s32.totalorder %s358, %s360
      %p367 = scmp.eq.s32.totalorder %s35, 1
      %p368 = por %p366, %p367
      %p369 = scmp.ne.s32.totalorder %s360, %s361
      %p370 = scmp.eq.s32.totalorder %s35, 0
      %p371 = por %p369, %p370
      %p372 = scmp.ne.s32.totalorder %s360, %s361
      %p373 = scmp.eq.s32.totalorder %s36, 1
      %p374 = por %p372, %p373
      %p376 = scmp.ne.s32.totalorder %s361, %s375
      %p377 = scmp.eq.s32.totalorder %s36, 0
      %p378 = por %p376, %p377
      %s380 = sadd.s32 %s379, 1
      %p383 = scmp.eq.s32.totalorder %s30, 1
      %p384 = scmp.ne.s32.totalorder %s379, %s381
      %p385 = scmp.eq.s32.totalorder %s30, 0
      %p386 = por %p384, %p385
      %p387 = scmp.ne.s32.totalorder %s379, %s381
      %p388 = scmp.eq.s32.totalorder %s35, 1
      %p389 = por %p387, %p388
      %p390 = scmp.ne.s32.totalorder %s381, %s382
      %p391 = scmp.eq.s32.totalorder %s35, 0
      %p392 = por %p390, %p391
      %p393 = scmp.ne.s32.totalorder %s381, %s382
      %p394 = scmp.eq.s32.totalorder %s36, 1
      %p395 = por %p393, %p394
      %p397 = scmp.ne.s32.totalorder %s382, %s396
      %p398 = scmp.eq.s32.totalorder %s36, 0
      %p399 = por %p397, %p398
      %s400 = ssub.s32 %s30, %s37
      %p401 = scmp.eq.s32.totalorder %s400, 0
      %s403 = sadd.s32 %s402, 1
      %s404 = scalar_select %p401, %s402, %s403
      %p407 = pneg %p401
      %p408 = scmp.eq.s32.totalorder %s30, 1
      %p409 = por %p407, %p408
      %p410 = scmp.ne.s32.totalorder %s402, %s405
      %p411 = scmp.eq.s32.totalorder %s30, 0
      %p412 = por %p410, %p411
      %p413 = scmp.ne.s32.totalorder %s402, %s405
      %p414 = scmp.eq.s32.totalorder %s35, 1
      %p415 = por %p413, %p414
      %p416 = scmp.ne.s32.totalorder %s405, %s406
      %p417 = scmp.eq.s32.totalorder %s35, 0
      %p418 = por %p416, %p417
      %p419 = scmp.ne.s32.totalorder %s405, %s406
      %p420 = scmp.eq.s32.totalorder %s36, 1
      %p421 = por %p419, %p420
      %p423 = scmp.ne.s32.totalorder %s406, %s422
      %p424 = scmp.eq.s32.totalorder %s36, 0
      %p425 = por %p423, %p424
      %s426 = ssub.s32 %s30, %s37
      %p427 = scmp.eq.s32.totalorder %s426, 0
      %s429 = sadd.s32 %s428, 1
      %s430 = scalar_select %p427, %s428, %s429
      %p433 = pneg %p427
      %p434 = scmp.eq.s32.totalorder %s30, 1
      %p435 = por %p433, %p434
      %p436 = scmp.ne.s32.totalorder %s428, %s431
      %p437 = scmp.eq.s32.totalorder %s30, 0
      %p438 = por %p436, %p437
      %p439 = scmp.ne.s32.totalorder %s428, %s431
      %p440 = scmp.eq.s32.totalorder %s35, 1
      %p441 = por %p439, %p440
      %p442 = scmp.ne.s32.totalorder %s431, %s432
      %p443 = scmp.eq.s32.totalorder %s35, 0
      %p444 = por %p442, %p443
      %p445 = scmp.ne.s32.totalorder %s431, %s432
      %p446 = scmp.eq.s32.totalorder %s36, 1
      %p447 = por %p445, %p446
      %p449 = scmp.ne.s32.totalorder %s432, %s448
      %p450 = scmp.eq.s32.totalorder %s36, 0
      %p451 = por %p449, %p450
      %p452 = scmp.le.s32.totalorder 1, %s30
      %p453 = scmp.lt.s32.totalorder %s30, 3
      %p454 = pnand %p452, %p453
      %p455 = pneg %p454
      // Predicated region
      $region9: #{yolov3_multi_gdip_forward.2} parent=5 // pred_check
        _
      $region10: #{yolov3_multi_gdip_forward.2} parent=5 // pred_check_branch
        %457 = sbr.rel (%p454) target = $region12
      $region11: #{yolov3_multi_gdip_forward.2} parent=5 // pred_region
        %s458 = ssub.s32 %s30, 1
        // Predicated region
        $region13: #{yolov3_multi_gdip_forward.2} parent=11 // pred_check
          %p459 = pneg %p77
        $region14: #{yolov3_multi_gdip_forward.2} parent=11 // pred_check_branch
          %461 = sbr.rel (%p459) target = $region16
        $region15: #{yolov3_multi_gdip_forward.2} parent=11 // pred_region
          _
        $region16: #{yolov3_multi_gdip_forward.2} parent=11 // pred_fallthru
          _
        // Predicated region
        $region17: #{yolov3_multi_gdip_forward.2} parent=11 // pred_check
          %p462 = pneg %p98
        $region18: #{yolov3_multi_gdip_forward.2} parent=11 // pred_check_branch
          %464 = sbr.rel (%p462) target = $region20
        $region19: #{yolov3_multi_gdip_forward.2} parent=11 // pred_region
          %s466 = ssub.s32 2304, 2304
          %467 = vsyncadd [#allocation3], %s466
          %s468 = sshll.u32 [#allocation2], 4
          %s469 = int_to_ptr.vmem [resolvable:$true] %s468
          %474 = dma.hbm_to_vmem [thread:$0]  %s2, 2304, %s469, [#allocation3], 64, 64, 4
        $region20: #{yolov3_multi_gdip_forward.2} parent=11 // pred_fallthru
          _
        // Predicated region
        $region21: #{yolov3_multi_gdip_forward.2} parent=11 // pred_check
          %p475 = pneg %p119
        $region22: #{yolov3_multi_gdip_forward.2} parent=11 // pred_check_branch
          %477 = sbr.rel (%p475) target = $region24
        $region23: #{yolov3_multi_gdip_forward.2} parent=11 // pred_region
          _
        $region24: #{yolov3_multi_gdip_forward.2} parent=11 // pred_fallthru
          _
        // Predicated region
        $region25: #{yolov3_multi_gdip_forward.2} parent=11 // pred_check
          %p478 = pneg %p140
        $region26: #{yolov3_multi_gdip_forward.2} parent=11 // pred_check_branch
          %480 = sbr.rel (%p478) target = $region28
        $region27: #{yolov3_multi_gdip_forward.2} parent=11 // pred_region
          _
        $region28: #{yolov3_multi_gdip_forward.2} parent=11 // pred_fallthru
          _
        // Predicated region
        $region29: #{yolov3_multi_gdip_forward.2} parent=11 // pred_check
          %p481 = pneg %p161
        $region30: #{yolov3_multi_gdip_forward.2} parent=11 // pred_check_branch
          %483 = sbr.rel (%p481) target = $region32
        $region31: #{yolov3_multi_gdip_forward.2} parent=11 // pred_region
          _
        $region32: #{yolov3_multi_gdip_forward.2} parent=11 // pred_fallthru
          _
        // Predicated region
        $region33: #{yolov3_multi_gdip_forward.2} parent=11 // pred_check
          %p484 = pneg %p182
        $region34: #{yolov3_multi_gdip_forward.2} parent=11 // pred_check_branch
          %486 = sbr.rel (%p484) target = $region36
        $region35: #{yolov3_multi_gdip_forward.2} parent=11 // pred_region
          _
        $region36: #{yolov3_multi_gdip_forward.2} parent=11 // pred_fallthru
          _
        // Predicated region
        $region37: #{yolov3_multi_gdip_forward.2} parent=11 // pred_check
          %p487 = pneg %p203
        $region38: #{yolov3_multi_gdip_forward.2} parent=11 // pred_check_branch
          %489 = sbr.rel (%p487) target = $region40
        $region39: #{yolov3_multi_gdip_forward.2} parent=11 // pred_region
          _
        $region40: #{yolov3_multi_gdip_forward.2} parent=11 // pred_fallthru
          _
        // Predicated region
        $region41: #{yolov3_multi_gdip_forward.2} parent=11 // pred_check
          %p490 = pneg %p224
        $region42: #{yolov3_multi_gdip_forward.2} parent=11 // pred_check_branch
          %492 = sbr.rel (%p490) target = $region44
        $region43: #{yolov3_multi_gdip_forward.2} parent=11 // pred_region
          _
        $region44: #{yolov3_multi_gdip_forward.2} parent=11 // pred_fallthru
          _
        // Predicated region
        $region45: #{yolov3_multi_gdip_forward.2} parent=11 // pred_check
          %p493 = pneg %p245
        $region46: #{yolov3_multi_gdip_forward.2} parent=11 // pred_check_branch
          %495 = sbr.rel (%p493) target = $region48
        $region47: #{yolov3_multi_gdip_forward.2} parent=11 // pred_region
          %s497 = ssub.s32 16, 16
          %498 = vsyncadd [#allocation5], %s497
          %s500 = sshll.u32 [#allocation4], 4
          %s501 = int_to_ptr.vmem [resolvable:$true] %s500
          %503 = dma.hbm_to_vmem [thread:$0]  %s9, 16, %s501, [#allocation5]
        $region48: #{yolov3_multi_gdip_forward.2} parent=11 // pred_fallthru
          _
        // Predicated region
        $region49: #{yolov3_multi_gdip_forward.2} parent=11 // pred_check
          %p504 = pneg %p266
        $region50: #{yolov3_multi_gdip_forward.2} parent=11 // pred_check_branch
          %506 = sbr.rel (%p504) target = $region52
        $region51: #{yolov3_multi_gdip_forward.2} parent=11 // pred_region
          %s508 = ssub.s32 16, 16
          %509 = vsyncadd [#allocation5], %s508
          %s511 = sshll.u32 [#allocation6], 4
          %s512 = int_to_ptr.vmem [resolvable:$true] %s511
          %514 = dma.hbm_to_vmem [thread:$0]  %s10, 16, %s512, [#allocation5]
        $region52: #{yolov3_multi_gdip_forward.2} parent=11 // pred_fallthru
          _
        // Predicated region
        $region53: #{yolov3_multi_gdip_forward.2} parent=11 // pred_check
          %p515 = pneg %p287
        $region54: #{yolov3_multi_gdip_forward.2} parent=11 // pred_check_branch
          %517 = sbr.rel (%p515) target = $region56
        $region55: #{yolov3_multi_gdip_forward.2} parent=11 // pred_region
          %s519 = ssub.s32 1024, 1024
          %520 = vsyncadd [#allocation8], %s519
          %s521 = sshll.u32 [#allocation7], 4
          %s522 = int_to_ptr.vmem [resolvable:$true] %s521
          %527 = dma.hbm_to_vmem [thread:$0]  %s11, 1024, %s522, [#allocation8], 64, 64, 4
        $region56: #{yolov3_multi_gdip_forward.2} parent=11 // pred_fallthru
          _
        // Predicated region
        $region57: #{yolov3_multi_gdip_forward.2} parent=11 // pred_check
          %p528 = pneg %p308
        $region58: #{yolov3_multi_gdip_forward.2} parent=11 // pred_check_branch
          %530 = sbr.rel (%p528) target = $region60
        $region59: #{yolov3_multi_gdip_forward.2} parent=11 // pred_region
          %s532 = ssub.s32 16, 16
          %533 = vsyncadd [#allocation8], %s532
          %s535 = sshll.u32 [#allocation9], 4
          %s536 = int_to_ptr.vmem [resolvable:$true] %s535
          %538 = dma.hbm_to_vmem [thread:$0]  %s12, 16, %s536, [#allocation8]
        $region60: #{yolov3_multi_gdip_forward.2} parent=11 // pred_fallthru
          _
        // Predicated region
        $region61: #{yolov3_multi_gdip_forward.2} parent=11 // pred_check
          %p539 = pneg %p329
        $region62: #{yolov3_multi_gdip_forward.2} parent=11 // pred_check_branch
          %541 = sbr.rel (%p539) target = $region64
        $region63: #{yolov3_multi_gdip_forward.2} parent=11 // pred_region
          %s543 = ssub.s32 1024, 1024
          %544 = vsyncadd [#allocation11], %s543
          %s545 = sshll.u32 [#allocation10], 4
          %s546 = int_to_ptr.vmem [resolvable:$true] %s545
          %551 = dma.hbm_to_vmem [thread:$0]  %s13, 1024, %s546, [#allocation11], 64, 64, 4
        $region64: #{yolov3_multi_gdip_forward.2} parent=11 // pred_fallthru
          _
        // Predicated region
        $region65: #{yolov3_multi_gdip_forward.2} parent=11 // pred_check
          %p552 = pneg %p350
        $region66: #{yolov3_multi_gdip_forward.2} parent=11 // pred_check_branch
          %554 = sbr.rel (%p552) target = $region68
        $region67: #{yolov3_multi_gdip_forward.2} parent=11 // pred_region
          %s556 = ssub.s32 16, 16
          %557 = vsyncadd [#allocation11], %s556
          %s559 = sshll.u32 [#allocation12], 4
          %s560 = int_to_ptr.vmem [resolvable:$true] %s559
          %562 = dma.hbm_to_vmem [thread:$0]  %s14, 16, %s560, [#allocation11]
        $region68: #{yolov3_multi_gdip_forward.2} parent=11 // pred_fallthru
          _
        // Predicated region
        $region69: #{yolov3_multi_gdip_forward.2} parent=11 // pred_check
          %p563 = pneg %p371
        $region70: #{yolov3_multi_gdip_forward.2} parent=11 // pred_check_branch
          %565 = sbr.rel (%p563) target = $region72
        $region71: #{yolov3_multi_gdip_forward.2} parent=11 // pred_region
          %s567 = ssub.s32 1024, 1024
          %568 = vsyncadd [#allocation14], %s567
          %s569 = sshll.u32 [#allocation13], 4
          %s570 = int_to_ptr.vmem [resolvable:$true] %s569
          %575 = dma.hbm_to_vmem [thread:$0]  %s15, 1024, %s570, [#allocation14], 64, 64, 4
        $region72: #{yolov3_multi_gdip_forward.2} parent=11 // pred_fallthru
          _
        // Predicated region
        $region73: #{yolov3_multi_gdip_forward.2} parent=11 // pred_check
          %p576 = pneg %p392
        $region74: #{yolov3_multi_gdip_forward.2} parent=11 // pred_check_branch
          %578 = sbr.rel (%p576) target = $region76
        $region75: #{yolov3_multi_gdip_forward.2} parent=11 // pred_region
          %s580 = ssub.s32 16, 16
          %581 = vsyncadd [#allocation14], %s580
          %s583 = sshll.u32 [#allocation15], 4
          %s584 = int_to_ptr.vmem [resolvable:$true] %s583
          %586 = dma.hbm_to_vmem [thread:$0]  %s16, 16, %s584, [#allocation14]
        $region76: #{yolov3_multi_gdip_forward.2} parent=11 // pred_fallthru
          _
      $region12: #{yolov3_multi_gdip_forward.2} parent=5 // pred_fallthru
        _
      %p587 = scmp.lt.s32.totalorder %s30, 2
      // Predicated region
      $region77: #{yolov3_multi_gdip_forward.2} parent=5 // pred_check
        %p588 = pneg %p587
      $region78: #{yolov3_multi_gdip_forward.2} parent=5 // pred_check_branch
        %590 = sbr.rel (%p588) target = $region80
      $region79: #{yolov3_multi_gdip_forward.2} parent=5 // pred_region
        // Predicated region
        $region81: #{yolov3_multi_gdip_forward.2} parent=79 // pred_check
          %p591 = pneg %p50
        $region82: #{yolov3_multi_gdip_forward.2} parent=79 // pred_check_branch
          %593 = sbr.rel (%p591) target = $region84
        $region83: #{yolov3_multi_gdip_forward.2} parent=79 // pred_region
          %p594 = scmp.lt.s32.totalorder %s30, 1
          %s595 = scalar_select %p594, %s30, 1
          %s596 = smul.addr %s595, 4
          %s597 = smul.addr %s596, 8
          %s598 = scalar_lea.vmem %s0, %s597
        $region84: #{yolov3_multi_gdip_forward.2} parent=79 // pred_fallthru
          _
      $region80: #{yolov3_multi_gdip_forward.2} parent=5 // pred_fallthru
        _
      %p599 = scmp.le.s32.totalorder 1, %s30
      %p600 = scmp.lt.s32.totalorder %s30, 3
      %p601 = pnand %p599, %p600
      %p602 = pneg %p601
      // Predicated region
      $region85: #{yolov3_multi_gdip_forward.2} parent=5 // pred_check
        _
      $region86: #{yolov3_multi_gdip_forward.2} parent=5 // pred_check_branch
        %604 = sbr.rel (%p601) target = $region88
      $region87: #{yolov3_multi_gdip_forward.2} parent=5 // pred_region
        %s605 = ssub.s32 %s30, 1
        // Predicated region
        $region89: #{yolov3_multi_gdip_forward.2} parent=87 // pred_check
          %p606 = pneg %p98
        $region90: #{yolov3_multi_gdip_forward.2} parent=87 // pred_check_branch
          %608 = sbr.rel (%p606) target = $region92
        $region91: #{yolov3_multi_gdip_forward.2} parent=87 // pred_region
          %609 = dma.done [#allocation3], 2304
        $region92: #{yolov3_multi_gdip_forward.2} parent=87 // pred_fallthru
          _
        // Predicated region
        $region93: #{yolov3_multi_gdip_forward.2} parent=87 // pred_check
          %p610 = pneg %p245
        $region94: #{yolov3_multi_gdip_forward.2} parent=87 // pred_check_branch
          %612 = sbr.rel (%p610) target = $region96
        $region95: #{yolov3_multi_gdip_forward.2} parent=87 // pred_region
          %613 = dma.done [#allocation5], 16
        $region96: #{yolov3_multi_gdip_forward.2} parent=87 // pred_fallthru
          _
        // Predicated region
        $region97: #{yolov3_multi_gdip_forward.2} parent=87 // pred_check
          %p614 = pneg %p266
        $region98: #{yolov3_multi_gdip_forward.2} parent=87 // pred_check_branch
          %616 = sbr.rel (%p614) target = $region100
        $region99: #{yolov3_multi_gdip_forward.2} parent=87 // pred_region
          %617 = dma.done [#allocation5], 16
        $region100: #{yolov3_multi_gdip_forward.2} parent=87 // pred_fallthru
          _
        // Predicated region
        $region101: #{yolov3_multi_gdip_forward.2} parent=87 // pred_check
          %p618 = pneg %p287
        $region102: #{yolov3_multi_gdip_forward.2} parent=87 // pred_check_branch
          %620 = sbr.rel (%p618) target = $region104
        $region103: #{yolov3_multi_gdip_forward.2} parent=87 // pred_region
          %621 = dma.done [#allocation8], 1024
        $region104: #{yolov3_multi_gdip_forward.2} parent=87 // pred_fallthru
          _
        // Predicated region
        $region105: #{yolov3_multi_gdip_forward.2} parent=87 // pred_check
          %p622 = pneg %p308
        $region106: #{yolov3_multi_gdip_forward.2} parent=87 // pred_check_branch
          %624 = sbr.rel (%p622) target = $region108
        $region107: #{yolov3_multi_gdip_forward.2} parent=87 // pred_region
          %625 = dma.done [#allocation8], 16
        $region108: #{yolov3_multi_gdip_forward.2} parent=87 // pred_fallthru
          _
        // Predicated region
        $region109: #{yolov3_multi_gdip_forward.2} parent=87 // pred_check
          %p626 = pneg %p329
        $region110: #{yolov3_multi_gdip_forward.2} parent=87 // pred_check_branch
          %628 = sbr.rel (%p626) target = $region112
        $region111: #{yolov3_multi_gdip_forward.2} parent=87 // pred_region
          %629 = dma.done [#allocation11], 1024
        $region112: #{yolov3_multi_gdip_forward.2} parent=87 // pred_fallthru
          _
        // Predicated region
        $region113: #{yolov3_multi_gdip_forward.2} parent=87 // pred_check
          %p630 = pneg %p350
        $region114: #{yolov3_multi_gdip_forward.2} parent=87 // pred_check_branch
          %632 = sbr.rel (%p630) target = $region116
        $region115: #{yolov3_multi_gdip_forward.2} parent=87 // pred_region
          %633 = dma.done [#allocation11], 16
        $region116: #{yolov3_multi_gdip_forward.2} parent=87 // pred_fallthru
          _
        // Predicated region
        $region117: #{yolov3_multi_gdip_forward.2} parent=87 // pred_check
          %p634 = pneg %p371
        $region118: #{yolov3_multi_gdip_forward.2} parent=87 // pred_check_branch
          %636 = sbr.rel (%p634) target = $region120
        $region119: #{yolov3_multi_gdip_forward.2} parent=87 // pred_region
          %637 = dma.done [#allocation14], 1024
        $region120: #{yolov3_multi_gdip_forward.2} parent=87 // pred_fallthru
          _
        // Predicated region
        $region121: #{yolov3_multi_gdip_forward.2} parent=87 // pred_check
          %p638 = pneg %p392
        $region122: #{yolov3_multi_gdip_forward.2} parent=87 // pred_check_branch
          %640 = sbr.rel (%p638) target = $region124
        $region123: #{yolov3_multi_gdip_forward.2} parent=87 // pred_region
          %641 = dma.done [#allocation14], 16
        $region124: #{yolov3_multi_gdip_forward.2} parent=87 // pred_fallthru
          _
        %p642 = scmp.lt.s32.totalorder %s35, 1
        %s643 = scalar_select %p642, %s35, 1
        %s644 = smul.addr %s643, 4
        %s645 = smul.addr %s644, 8
        %s646 = scalar_lea.vmem %s0, %s645
        %p647 = pneg %p56
        %p648 = pneg %p53
        %p649 = pneg %p77
        %p650 = pneg %p74
        %p651 = pneg %p98
        %p652 = pneg %p95
        %p653 = pneg %p119
        %p654 = pneg %p116
        %p655 = pneg %p140
        %p656 = pneg %p137
        %p657 = pneg %p161
        %p658 = pneg %p158
        %p659 = pneg %p182
        %p660 = pneg %p179
        %p661 = pneg %p203
        %p662 = pneg %p200
        %p663 = pneg %p224
        %p664 = pneg %p221
        %p665 = pneg %p245
        %p666 = pneg %p242
        %p667 = pneg %p266
        %p668 = pneg %p263
        %p669 = pneg %p287
        %p670 = pneg %p284
        %p671 = pneg %p308
        %p672 = pneg %p305
        %p673 = pneg %p329
        %p674 = pneg %p326
        %p675 = pneg %p350
        %p676 = pneg %p347
        %p677 = pneg %p371
        %p678 = pneg %p368
        %p679 = pneg %p392
        %p680 = pneg %p389
        %p681 = pneg %p418
        %p682 = pneg %p415
        %p683 = scmp.lt.s32.totalorder %s35, 1
        %s684 = scalar_select %p683, %s35, 1
        %s685 = smul.addr %s684, 4
        %s686 = smul.addr %s685, 8
        %s687 = scalar_lea.vmem %s17, %s686
        %p688 = pneg %p444
        %p689 = pneg %p441
        %p690 = scmp.lt.s32.totalorder %s35, 1
        %s691 = scalar_select %p690, %s35, 1
        %s692 = smul.addr %s691, 8
        %s693 = scalar_lea.vmem %s18, %s692
        %p694 = scmp.lt.s32.totalorder %s35, 1
        %s695 = scalar_select %p694, %s35, 1
        %s696 = smul.addr %s695, 4
        %s697 = smul.addr %s696, 8
        %s698 = scalar_lea.vmem %s0, %s697
        %p699 = scmp.lt.s32.totalorder %s35, 1
        %s700 = scalar_select %p699, %s35, 1
        %s701 = smul.addr %s700, 4
        %s702 = smul.addr %s701, 8
        %s703 = scalar_lea.vmem %s17, %s702
        %p704 = scmp.lt.s32.totalorder %s35, 1
        %s705 = scalar_select %p704, %s35, 1
        %s706 = smul.addr %s705, 8
        %s707 = scalar_lea.vmem %s18, %s706
        %v709 = vld [vmem:[%s698] sm:$0xff]
        %v710 = vld [vmem:[%s698 + $0x8] sm:$0xff]
        %v711 = vld [vmem:[%s698 + $0x10] sm:$0xff]
        %v712 = vld [vmem:[%s698 + $0x18] sm:$0xff]
        %v713 = vpack.c.bf16 %v710, %v709
        %v714 = vpack.c.bf16 %v712, %v711
        %v715 = vld [vmem:[%s1] sm:$0xf]
        %v716 = vld [vmem:[%s1 + $0x4] sm:$0xf]
        %v717 = vld [vmem:[%s1 + $0x8] sm:$0xf]
        %v718 = vld [vmem:[%s1 + $0xc] sm:$0xf]
        %v719 = vld [vmem:[%s1 + $0x10] sm:$0x1]
        %v725 = vunpack.c.l.b16 %v715
        %v726 = vunpack.c.l.b16 %v716
        %v727 = vunpack.c.l.b16 %v717
        %v728 = vunpack.c.l.b16 %v718
        %v729 = vunpack.c.l.b16 %v719
        %v730 = vpack.c.b16 %v726, %v725
        %v731 = vpack.c.b16 %v728, %v727
        %v732 = vpack.c.b16 %v729, %v729
        %vm733 = vcmask 261120
        %v735 = vsel %vm733, %v730, 0
        %v738 = vsel %vm733, %v731, 0
        %v741 = vsel %vm733, %v732, 0
        %743 = vmatprep.subr.bf16.mxu0 0
        %744 = vmatpush1.bf16.msra.mxu0 %v713
        %745 = vmatprep.subr.bf16.mxu0 0
        %746 = vmatpush1.bf16.msra.mxu0 %v714
        %747 = vmatprep.subr.bf16.mxu0 0
        %748 = vmatpush1.bf16.msra.mxu0 0
        %749 = vmatprep.subr.bf16.mxu0 0
        %750 = vmatpush1.bf16.msra.mxu0 0
        %751 = vmatprep.subr.bf16.mxu0 0
        %752 = vmatpush1.bf16.msra.mxu0 0
        %753 = vmatprep.subr.bf16.mxu0 0
        %754 = vmatpush1.bf16.msra.mxu0 0
        %755 = vmatprep.subr.bf16.mxu0 0
        %756 = vmatpush1.bf16.msra.mxu0 0
        %757 = vmatprep.subr.bf16.mxu0 0
        %758 = vmatpush1.bf16.msra.mxu0 0
        %759 = vmatprep.subr.bf16.mxu0 0
        %760 = vmatpush1.bf16.msra.mxu0 0
        %761 = vmatprep.subr.bf16.mxu0 0
        %762 = vmatpush1.bf16.msra.mxu0 0
        %763 = vmatprep.subr.bf16.mxu0 0
        %764 = vmatpush1.bf16.msra.mxu0 0
        %765 = vmatprep.subr.bf16.mxu0 0
        %766 = vmatpush1.bf16.msra.mxu0 0
        %767 = vmatprep.subr.bf16.mxu0 0
        %768 = vmatpush1.bf16.msra.mxu0 0
        %769 = vmatprep.subr.bf16.mxu0 0
        %770 = vmatpush1.bf16.msra.mxu0 0
        %771 = vmatprep.subr.bf16.mxu0 0
        %772 = vmatpush1.bf16.msra.mxu0 0
        %773 = vmatprep.subr.bf16.mxu0 0
        %774 = vmatpush1.bf16.msra.mxu0 0
        %775 = vmatprep.mubr.bf16.mxu0 0
        %776 = vmatmul.mubr.bf16.gmra.mrb[0].mxu0 %v735
        %v777 = vpop.f32.mrb[0].mxu0
        %v778 = vadd.f32 0.0, %v777
        %v779 = vpop.f32.mrb[0].mxu0
        %v780 = vpop.f32.mrb[0].mxu0
        %v781 = vadd.f32 0.0, %v780
        %v782 = vpop.f32.mrb[0].mxu0
        %783 = vmatprep.mubr.bf16.mxu0 0
        %784 = vmatmul.mubr.bf16.gmra.mrb[0].mxu0 %v738
        %v785 = vpop.f32.mrb[0].mxu0
        %v786 = vadd.f32 0.0, %v785
        %v787 = vpop.f32.mrb[0].mxu0
        %v788 = vpop.f32.mrb[0].mxu0
        %v789 = vadd.f32 0.0, %v788
        %v790 = vpop.f32.mrb[0].mxu0
        %791 = vmatprep.mubr.bf16.mxu0 0
        %792 = vmatmul.mubr.bf16.gmra.mrb[0].mxu0 %v741
        %v793 = vpop.f32.mrb[0].mxu0
        %v794 = vadd.f32 0.0, %v793
        %v795 = vpop.f32.mrb[0].mxu0
        %v796 = vpop.f32.mrb[0].mxu0
        %v797 = vpop.f32.mrb[0].mxu0
        %798 = vdwg.mxu0
        %v799 = vpack.c.bf16 %v781, %v778
        %v800 = vld [vmem:[#allocation2] sm:$0xf]
        %v801 = vld [vmem:[#allocation2 + $0x4] sm:$0xf]
        %v802 = vld [vmem:[#allocation2 + $0x8] sm:$0xf]
        %v803 = vld [vmem:[#allocation2 + $0xc] sm:$0xf]
        %v804 = vld [vmem:[#allocation2 + $0x10] sm:$0xf]
        %v805 = vld [vmem:[#allocation2 + $0x14] sm:$0xf]
        %v806 = vld [vmem:[#allocation2 + $0x18] sm:$0xf]
        %v807 = vld [vmem:[#allocation2 + $0x1c] sm:$0xf]
        %v808 = vld [vmem:[#allocation2 + $0x20] sm:$0xf]
        %v809 = vld [vmem:[#allocation2 + $0x24] sm:$0xf]
        %v810 = vld [vmem:[#allocation2 + $0x28] sm:$0xf]
        %v811 = vld [vmem:[#allocation2 + $0x2c] sm:$0xf]
        %v812 = vpack.c.bf16 %v789, %v786
        %v813 = vpack.c.bf16 %v794, %v794
        %s814 = scalar_lea.vmem [#allocation2], 48
        %v815 = vld [vmem:[%s814] sm:$0xf]
        %v816 = vld [vmem:[%s814 + $0x4] sm:$0xf]
        %v817 = vld [vmem:[%s814 + $0x8] sm:$0xf]
        %v818 = vld [vmem:[%s814 + $0xc] sm:$0xf]
        %v819 = vld [vmem:[%s814 + $0x10] sm:$0xf]
        %v820 = vld [vmem:[%s814 + $0x14] sm:$0xf]
        %v821 = vld [vmem:[%s814 + $0x18] sm:$0xf]
        %v822 = vld [vmem:[%s814 + $0x1c] sm:$0xf]
        %v823 = vld [vmem:[%s814 + $0x20] sm:$0xf]
        %v824 = vld [vmem:[%s814 + $0x24] sm:$0xf]
        %v825 = vld [vmem:[%s814 + $0x28] sm:$0xf]
        %v826 = vld [vmem:[%s814 + $0x2c] sm:$0xf]
        %vm827 = vsmask.f32 7424
        %v829 = vshrl.u32 %v812, 16
        %v831 = vshll.u32 %v812, 16
        %v833 = vrot.slane %v831, 1
        %v834 = vor.u32 %v829, %v833
        %v836 = vshll.u32 %v813, 16
        %v838 = vrot.slane %v836, 1
        %v839 = vsel %vm827, %v834, %v838
        %v852 = vunpack.c.l.b16 %v815
        %v853 = vunpack.c.l.b16 %v816
        %v854 = vunpack.c.l.b16 %v817
        %v855 = vunpack.c.l.b16 %v818
        %v856 = vunpack.c.l.b16 %v819
        %v857 = vunpack.c.l.b16 %v820
        %v858 = vunpack.c.l.b16 %v821
        %v859 = vunpack.c.l.b16 %v822
        %v860 = vunpack.c.l.b16 %v823
        %v861 = vunpack.c.l.b16 %v824
        %v862 = vunpack.c.l.b16 %v825
        %v863 = vunpack.c.l.b16 %v826
        %v864 = vpack.c.b16 %v853, %v852
        %v865 = vpack.c.b16 %v855, %v854
        %v866 = vpack.c.b16 %v857, %v856
        %v867 = vpack.c.b16 %v859, %v858
        %v868 = vpack.c.b16 %v861, %v860
        %v869 = vpack.c.b16 %v863, %v862
        %vm876 = vcmask 785408
        %v878 = vsel %vm876, %v839, 0
        %880 = vmatprep.subr.bf16.mxu0 0
        %881 = vmatpush1.bf16.msra.mxu0 %v864
        %882 = vmatprep.subr.bf16.mxu0 0
        %883 = vmatpush1.bf16.msra.mxu0 %v865
        %884 = vmatprep.subr.bf16.mxu0 0
        %885 = vmatpush1.bf16.msra.mxu0 %v866
        %886 = vmatprep.subr.bf16.mxu0 0
        %887 = vmatpush1.bf16.msra.mxu0 %v867
        %888 = vmatprep.subr.bf16.mxu0 0
        %889 = vmatpush1.bf16.msra.mxu0 %v868
        %890 = vmatprep.subr.bf16.mxu0 0
        %891 = vmatpush1.bf16.msra.mxu0 %v869
        %892 = vmatprep.subr.bf16.mxu0 0
        %893 = vmatpush1.bf16.msra.mxu0 0
        %894 = vmatprep.subr.bf16.mxu0 0
        %895 = vmatpush1.bf16.msra.mxu0 0
        %896 = vmatprep.subr.bf16.mxu0 0
        %897 = vmatpush1.bf16.msra.mxu0 0
        %898 = vmatprep.subr.bf16.mxu0 0
        %899 = vmatpush1.bf16.msra.mxu0 0
        %900 = vmatprep.subr.bf16.mxu0 0
        %901 = vmatpush1.bf16.msra.mxu0 0
        %902 = vmatprep.subr.bf16.mxu0 0
        %903 = vmatpush1.bf16.msra.mxu0 0
        %904 = vmatprep.subr.bf16.mxu0 0
        %905 = vmatpush1.bf16.msra.mxu0 0
        %906 = vmatprep.subr.bf16.mxu0 0
        %907 = vmatpush1.bf16.msra.mxu0 0
        %908 = vmatprep.subr.bf16.mxu0 0
        %909 = vmatpush1.bf16.msra.mxu0 0
        %910 = vmatprep.subr.bf16.mxu0 0
        %911 = vmatpush1.bf16.msra.mxu0 0
        %912 = vmatprep.mubr.bf16.mxu0 0
        %913 = vmatmul.mubr.bf16.gmra.mrb[0].mxu0 %v878
        %v914 = vpop.f32.mrb[0].mxu0
        %v915 = vadd.f32 0.0, %v914
        %v916 = vpop.f32.mrb[0].mxu0
        %v917 = vpop.f32.mrb[0].mxu0
        %v918 = vadd.f32 0.0, %v917
        %v919 = vpop.f32.mrb[0].mxu0
        %920 = vdwg.mxu0
        %v933 = vunpack.c.l.b16 %v800
        %v934 = vunpack.c.l.b16 %v801
        %v935 = vunpack.c.l.b16 %v802
        %v936 = vunpack.c.l.b16 %v803
        %v937 = vunpack.c.l.b16 %v804
        %v938 = vunpack.c.l.b16 %v805
        %v939 = vunpack.c.l.b16 %v806
        %v940 = vunpack.c.l.b16 %v807
        %v941 = vunpack.c.l.b16 %v808
        %v942 = vunpack.c.l.b16 %v809
        %v943 = vunpack.c.l.b16 %v810
        %v944 = vunpack.c.l.b16 %v811
        %v945 = vpack.c.b16 %v934, %v933
        %v946 = vpack.c.b16 %v936, %v935
        %v947 = vpack.c.b16 %v938, %v937
        %v948 = vpack.c.b16 %v940, %v939
        %v949 = vpack.c.b16 %v942, %v941
        %v950 = vpack.c.b16 %v944, %v943
        %v958 = vsel %vm876, %v799, 0
        %960 = vmatprep.subr.bf16.mxu0 0
        %961 = vmatpush1.bf16.msra.mxu0 %v945
        %962 = vmatprep.subr.bf16.mxu0 0
        %963 = vmatpush1.bf16.msra.mxu0 %v946
        %964 = vmatprep.subr.bf16.mxu0 0
        %965 = vmatpush1.bf16.msra.mxu0 %v947
        %966 = vmatprep.subr.bf16.mxu0 0
        %967 = vmatpush1.bf16.msra.mxu0 %v948
        %968 = vmatprep.subr.bf16.mxu0 0
        %969 = vmatpush1.bf16.msra.mxu0 %v949
        %970 = vmatprep.subr.bf16.mxu0 0
        %971 = vmatpush1.bf16.msra.mxu0 %v950
        %972 = vmatprep.subr.bf16.mxu0 0
        %973 = vmatpush1.bf16.msra.mxu0 0
        %974 = vmatprep.subr.bf16.mxu0 0
        %975 = vmatpush1.bf16.msra.mxu0 0
        %976 = vmatprep.subr.bf16.mxu0 0
        %977 = vmatpush1.bf16.msra.mxu0 0
        %978 = vmatprep.subr.bf16.mxu0 0
        %979 = vmatpush1.bf16.msra.mxu0 0
        %980 = vmatprep.subr.bf16.mxu0 0
        %981 = vmatpush1.bf16.msra.mxu0 0
        %982 = vmatprep.subr.bf16.mxu0 0
        %983 = vmatpush1.bf16.msra.mxu0 0
        %984 = vmatprep.subr.bf16.mxu0 0
        %985 = vmatpush1.bf16.msra.mxu0 0
        %986 = vmatprep.subr.bf16.mxu0 0
        %987 = vmatpush1.bf16.msra.mxu0 0
        %988 = vmatprep.subr.bf16.mxu0 0
        %989 = vmatpush1.bf16.msra.mxu0 0
        %990 = vmatprep.subr.bf16.mxu0 0
        %991 = vmatpush1.bf16.msra.mxu0 0
        %992 = vmatprep.mubr.bf16.mxu0 0
        %993 = vmatmul.mubr.bf16.gmra.mrb[0].mxu0 %v958
        %v994 = vpop.f32.mrb[0].mxu0
        %v995 = vadd.f32 %v915, %v994
        %v996 = vpop.f32.mrb[0].mxu0
        %v997 = vpop.f32.mrb[0].mxu0
        %v998 = vadd.f32 %v918, %v997
        %v999 = vpop.f32.mrb[0].mxu0
        %1000 = vdwg.mxu0
        %v1001 = vpack.c.bf16 %v786, %v786
        %s1002 = scalar_lea.vmem [#allocation2], 96
        %v1003 = vld [vmem:[%s1002] sm:$0xf]
        %v1004 = vld [vmem:[%s1002 + $0x4] sm:$0xf]
        %v1005 = vld [vmem:[%s1002 + $0x8] sm:$0xf]
        %v1006 = vld [vmem:[%s1002 + $0xc] sm:$0xf]
        %v1007 = vld [vmem:[%s1002 + $0x10] sm:$0xf]
        %v1008 = vld [vmem:[%s1002 + $0x14] sm:$0xf]
        %v1009 = vld [vmem:[%s1002 + $0x18] sm:$0xf]
        %v1010 = vld [vmem:[%s1002 + $0x1c] sm:$0xf]
        %v1011 = vld [vmem:[%s1002 + $0x20] sm:$0xf]
        %v1012 = vld [vmem:[%s1002 + $0x24] sm:$0xf]
        %v1013 = vld [vmem:[%s1002 + $0x28] sm:$0xf]
        %v1014 = vld [vmem:[%s1002 + $0x2c] sm:$0xf]
        %v1015 = vshrl.u32 %v799, 16
        %v1017 = vshll.u32 %v799, 16
        %v1019 = vrot.slane %v1017, 1
        %v1020 = vor.u32 %v1015, %v1019
        %v1022 = vshll.u32 %v1001, 16
        %v1024 = vrot.slane %v1022, 1
        %v1025 = vsel %vm827, %v1020, %v1024
        %v1038 = vunpack.c.l.b16 %v1003
        %v1039 = vunpack.c.l.b16 %v1004
        %v1040 = vunpack.c.l.b16 %v1005
        %v1041 = vunpack.c.l.b16 %v1006
        %v1042 = vunpack.c.l.b16 %v1007
        %v1043 = vunpack.c.l.b16 %v1008
        %v1044 = vunpack.c.l.b16 %v1009
        %v1045 = vunpack.c.l.b16 %v1010
        %v1046 = vunpack.c.l.b16 %v1011
        %v1047 = vunpack.c.l.b16 %v1012
        %v1048 = vunpack.c.l.b16 %v1013
        %v1049 = vunpack.c.l.b16 %v1014
        %v1050 = vpack.c.b16 %v1039, %v1038
        %v1051 = vpack.c.b16 %v1041, %v1040
        %v1052 = vpack.c.b16 %v1043, %v1042
        %v1053 = vpack.c.b16 %v1045, %v1044
        %v1054 = vpack.c.b16 %v1047, %v1046
        %v1055 = vpack.c.b16 %v1049, %v1048
        %v1063 = vsel %vm876, %v1025, 0
        %1065 = vmatprep.subr.bf16.mxu0 0
        %1066 = vmatpush1.bf16.msra.mxu0 %v1050
        %1067 = vmatprep.subr.bf16.mxu0 0
        %1068 = vmatpush1.bf16.msra.mxu0 %v1051
        %1069 = vmatprep.subr.bf16.mxu0 0
        %1070 = vmatpush1.bf16.msra.mxu0 %v1052
        %1071 = vmatprep.subr.bf16.mxu0 0
        %1072 = vmatpush1.bf16.msra.mxu0 %v1053
        %1073 = vmatprep.subr.bf16.mxu0 0
        %1074 = vmatpush1.bf16.msra.mxu0 %v1054
        %1075 = vmatprep.subr.bf16.mxu0 0
        %1076 = vmatpush1.bf16.msra.mxu0 %v1055
        %1077 = vmatprep.subr.bf16.mxu0 0
        %1078 = vmatpush1.bf16.msra.mxu0 0
        %1079 = vmatprep.subr.bf16.mxu0 0
        %1080 = vmatpush1.bf16.msra.mxu0 0
        %1081 = vmatprep.subr.bf16.mxu0 0
        %1082 = vmatpush1.bf16.msra.mxu0 0
        %1083 = vmatprep.subr.bf16.mxu0 0
        %1084 = vmatpush1.bf16.msra.mxu0 0
        %1085 = vmatprep.subr.bf16.mxu0 0
        %1086 = vmatpush1.bf16.msra.mxu0 0
        %1087 = vmatprep.subr.bf16.mxu0 0
        %1088 = vmatpush1.bf16.msra.mxu0 0
        %1089 = vmatprep.subr.bf16.mxu0 0
        %1090 = vmatpush1.bf16.msra.mxu0 0
        %1091 = vmatprep.subr.bf16.mxu0 0
        %1092 = vmatpush1.bf16.msra.mxu0 0
        %1093 = vmatprep.subr.bf16.mxu0 0
        %1094 = vmatpush1.bf16.msra.mxu0 0
        %1095 = vmatprep.subr.bf16.mxu0 0
        %1096 = vmatpush1.bf16.msra.mxu0 0
        %1097 = vmatprep.mubr.bf16.mxu0 0
        %1098 = vmatmul.mubr.bf16.gmra.mrb[0].mxu0 %v1063
        %v1099 = vpop.f32.mrb[0].mxu0
        %v1100 = vadd.f32 0.0, %v1099
        %v1101 = vpop.f32.mrb[0].mxu0
        %v1102 = vpop.f32.mrb[0].mxu0
        %v1103 = vadd.f32 0.0, %v1102
        %v1104 = vpop.f32.mrb[0].mxu0
        %1105 = vdwg.mxu0
        %v1106 = vadd.f32 %v995, %v1100
        %v1107 = vadd.f32 %v998, %v1103
        %v1108 = vld [vmem:[%s3] sm:$0x1]
        %v1110 = vlaneseq
        %v1111 = vshrl.u32 %v1110, 7
        %v1112 = vsub.s32 0, %v1111
        %v1113 = vrot.slane %v1108, %v1112
        %v1115 = vadd.f32 %v1106, %v1113
        %v1116 = vadd.f32 %v1107, %v1113
        %vm1117 = vcmp.gt.f32.partialorder %v1115, 0.0
        %vm1118 = vcmp.gt.f32.partialorder %v1116, 0.0
        %v1119 = vmul.f32 %v1115, 0.1
        %v1120 = vmul.f32 %v1116, 0.1
        %v1121 = vsel %vm1117, %v1115, %v1119
        %v1122 = vsel %vm1118, %v1116, %v1120
        %v1123 = vpack.c.bf16 %v1122, %v1121
        %v1124 = vld [vmem:[%s4] sm:$0xf]
        %v1125 = vld [vmem:[%s4 + $0x4] sm:$0xf]
        %v1126 = vld [vmem:[%s4 + $0x8] sm:$0x1]
        %v1130 = vunpack.c.l.b16 %v1124
        %v1131 = vunpack.c.l.b16 %v1125
        %v1132 = vunpack.c.l.b16 %v1126
        %v1133 = vpack.c.b16 %v1131, %v1130
        %v1134 = vpack.c.b16 %v1132, %v1132
        %vm1135 = vcmask 130048
        %v1137 = vsel %vm1135, %v1133, 0
        %v1140 = vsel %vm1135, %v1134, 0
        %1142 = vmatprep.subr.bf16.mxu0 0
        %1143 = vmatpush1.bf16.msra.mxu0 %v1123
        %1144 = vmatprep.subr.bf16.mxu0 0
        %1145 = vmatpush1.bf16.msra.mxu0 0
        %1146 = vmatprep.subr.bf16.mxu0 0
        %1147 = vmatpush1.bf16.msra.mxu0 0
        %1148 = vmatprep.subr.bf16.mxu0 0
        %1149 = vmatpush1.bf16.msra.mxu0 0
        %1150 = vmatprep.subr.bf16.mxu0 0
        %1151 = vmatpush1.bf16.msra.mxu0 0
        %1152 = vmatprep.subr.bf16.mxu0 0
        %1153 = vmatpush1.bf16.msra.mxu0 0
        %1154 = vmatprep.subr.bf16.mxu0 0
        %1155 = vmatpush1.bf16.msra.mxu0 0
        %1156 = vmatprep.subr.bf16.mxu0 0
        %1157 = vmatpush1.bf16.msra.mxu0 0
        %1158 = vmatprep.subr.bf16.mxu0 0
        %1159 = vmatpush1.bf16.msra.mxu0 0
        %1160 = vmatprep.subr.bf16.mxu0 0
        %1161 = vmatpush1.bf16.msra.mxu0 0
        %1162 = vmatprep.subr.bf16.mxu0 0
        %1163 = vmatpush1.bf16.msra.mxu0 0
        %1164 = vmatprep.subr.bf16.mxu0 0
        %1165 = vmatpush1.bf16.msra.mxu0 0
        %1166 = vmatprep.subr.bf16.mxu0 0
        %1167 = vmatpush1.bf16.msra.mxu0 0
        %1168 = vmatprep.subr.bf16.mxu0 0
        %1169 = vmatpush1.bf16.msra.mxu0 0
        %1170 = vmatprep.subr.bf16.mxu0 0
        %1171 = vmatpush1.bf16.msra.mxu0 0
        %1172 = vmatprep.subr.bf16.mxu0 0
        %1173 = vmatpush1.bf16.msra.mxu0 0
        %1174 = vmatprep.mubr.bf16.mxu0 0
        %1175 = vmatmul.mubr.bf16.gmra.mrb[0].mxu0 %v1137
        %v1176 = vpop.f32.mrb[0].mxu0
        %v1177 = vadd.f32 0.0, %v1176
        %v1178 = vpop.f32.mrb[0].mxu0
        %v1179 = vpop.f32.mrb[0].mxu0
        %v1180 = vadd.f32 0.0, %v1179
        %v1181 = vpop.f32.mrb[0].mxu0
        %1182 = vmatprep.mubr.bf16.mxu0 0
        %1183 = vmatmul.mubr.bf16.gmra.mrb[0].mxu0 %v1140
        %v1184 = vpop.f32.mrb[0].mxu0
        %v1185 = vadd.f32 0.0, %v1184
        %v1186 = vpop.f32.mrb[0].mxu0
        %v1187 = vpop.f32.mrb[0].mxu0
        %v1188 = vpop.f32.mrb[0].mxu0
        %1189 = vdwg.mxu0
        %v1190 = vpack.c.bf16 %v1177, %v1177
        %v1191 = vld [vmem:[%s5] sm:$0xf]
        %v1192 = vld [vmem:[%s5 + $0x4] sm:$0xf]
        %v1193 = vld [vmem:[%s5 + $0x8] sm:$0xf]
        %v1194 = vld [vmem:[%s5 + $0xc] sm:$0xf]
        %v1195 = vld [vmem:[%s5 + $0x10] sm:$0xf]
        %v1196 = vld [vmem:[%s5 + $0x14] sm:$0xf]
        %v1197 = vld [vmem:[%s5 + $0x18] sm:$0xf]
        %v1198 = vld [vmem:[%s5 + $0x1c] sm:$0xf]
        %v1199 = vld [vmem:[%s5 + $0x20] sm:$0xf]
        %v1200 = vld [vmem:[%s5 + $0x24] sm:$0xf]
        %v1201 = vld [vmem:[%s5 + $0x28] sm:$0xf]
        %v1202 = vld [vmem:[%s5 + $0x2c] sm:$0xf]
        %v1203 = vld [vmem:[%s5 + $0x30] sm:$0xf]
        %v1204 = vld [vmem:[%s5 + $0x34] sm:$0xf]
        %v1205 = vld [vmem:[%s5 + $0x38] sm:$0xf]
        %v1206 = vld [vmem:[%s5 + $0x3c] sm:$0xf]
        %v1207 = vpack.c.bf16 %v1185, %v1180
        %s1208 = scalar_lea.vmem %s5, 64
        %v1209 = vld [vmem:[%s1208] sm:$0xf]
        %v1210 = vld [vmem:[%s1208 + $0x4] sm:$0xf]
        %v1211 = vld [vmem:[%s1208 + $0x8] sm:$0xf]
        %v1212 = vld [vmem:[%s1208 + $0xc] sm:$0xf]
        %v1213 = vld [vmem:[%s1208 + $0x10] sm:$0xf]
        %v1214 = vld [vmem:[%s1208 + $0x14] sm:$0xf]
        %v1215 = vld [vmem:[%s1208 + $0x18] sm:$0xf]
        %v1216 = vld [vmem:[%s1208 + $0x1c] sm:$0xf]
        %v1217 = vld [vmem:[%s1208 + $0x20] sm:$0xf]
        %v1218 = vld [vmem:[%s1208 + $0x24] sm:$0xf]
        %v1219 = vld [vmem:[%s1208 + $0x28] sm:$0xf]
        %v1220 = vld [vmem:[%s1208 + $0x2c] sm:$0xf]
        %v1221 = vld [vmem:[%s1208 + $0x30] sm:$0xf]
        %v1222 = vld [vmem:[%s1208 + $0x34] sm:$0xf]
        %v1223 = vld [vmem:[%s1208 + $0x38] sm:$0xf]
        %v1224 = vld [vmem:[%s1208 + $0x3c] sm:$0xf]
        %v1226 = vshrl.u32 %v1207, 16
        %v1228 = vshll.u32 %v1207, 16
        %v1230 = vrot.slane %v1228, 1
        %v1231 = vor.u32 %v1226, %v1230
        %v1249 = vunpack.c.l.b16 %v1209
        %v1250 = vunpack.c.l.b16 %v1210
        %v1251 = vunpack.c.l.b16 %v1211
        %v1252 = vunpack.c.l.b16 %v1212
        %v1253 = vunpack.c.l.b16 %v1213
        %v1254 = vunpack.c.l.b16 %v1214
        %v1255 = vunpack.c.l.b16 %v1215
        %v1256 = vunpack.c.l.b16 %v1216
        %v1257 = vunpack.c.l.b16 %v1217
        %v1258 = vunpack.c.l.b16 %v1218
        %v1259 = vunpack.c.l.b16 %v1219
        %v1260 = vunpack.c.l.b16 %v1220
        %v1261 = vunpack.c.l.b16 %v1221
        %v1262 = vunpack.c.l.b16 %v1222
        %v1263 = vunpack.c.l.b16 %v1223
        %v1264 = vunpack.c.l.b16 %v1224
        %v1265 = vpack.c.b16 %v1250, %v1249
        %v1266 = vpack.c.b16 %v1252, %v1251
        %v1267 = vpack.c.b16 %v1254, %v1253
        %v1268 = vpack.c.b16 %v1256, %v1255
        %v1269 = vpack.c.b16 %v1258, %v1257
        %v1270 = vpack.c.b16 %v1260, %v1259
        %v1271 = vpack.c.b16 %v1262, %v1261
        %v1272 = vpack.c.b16 %v1264, %v1263
        %1281 = vmatprep.subr.bf16.mxu0 0
        %1282 = vmatpush1.bf16.msra.mxu0 %v1265
        %1283 = vmatprep.subr.bf16.mxu0 0
        %1284 = vmatpush1.bf16.msra.mxu0 %v1266
        %1285 = vmatprep.subr.bf16.mxu0 0
        %1286 = vmatpush1.bf16.msra.mxu0 %v1267
        %1287 = vmatprep.subr.bf16.mxu0 0
        %1288 = vmatpush1.bf16.msra.mxu0 %v1268
        %1289 = vmatprep.subr.bf16.mxu0 0
        %1290 = vmatpush1.bf16.msra.mxu0 %v1269
        %1291 = vmatprep.subr.bf16.mxu0 0
        %1292 = vmatpush1.bf16.msra.mxu0 %v1270
        %1293 = vmatprep.subr.bf16.mxu0 0
        %1294 = vmatpush1.bf16.msra.mxu0 %v1271
        %1295 = vmatprep.subr.bf16.mxu0 0
        %1296 = vmatpush1.bf16.msra.mxu0 %v1272
        %1297 = vmatprep.subr.bf16.mxu0 0
        %1298 = vmatpush1.bf16.msra.mxu0 0
        %1299 = vmatprep.subr.bf16.mxu0 0
        %1300 = vmatpush1.bf16.msra.mxu0 0
        %1301 = vmatprep.subr.bf16.mxu0 0
        %1302 = vmatpush1.bf16.msra.mxu0 0
        %1303 = vmatprep.subr.bf16.mxu0 0
        %1304 = vmatpush1.bf16.msra.mxu0 0
        %1305 = vmatprep.subr.bf16.mxu0 0
        %1306 = vmatpush1.bf16.msra.mxu0 0
        %1307 = vmatprep.subr.bf16.mxu0 0
        %1308 = vmatpush1.bf16.msra.mxu0 0
        %1309 = vmatprep.subr.bf16.mxu0 0
        %1310 = vmatpush1.bf16.msra.mxu0 0
        %1311 = vmatprep.subr.bf16.mxu0 0
        %1312 = vmatpush1.bf16.msra.mxu0 0
        %1313 = vmatprep.mubr.bf16.mxu0 0
        %1314 = vmatmul.mubr.bf16.gmra.mrb[0].mxu0 %v1231
        %v1315 = vpop.f32.mrb[0].mxu0
        %v1316 = vadd.f32 0.0, %v1315
        %v1317 = vpop.f32.mrb[0].mxu0
        %v1318 = vpop.f32.mrb[0].mxu0
        %v1319 = vpop.f32.mrb[0].mxu0
        %1320 = vdwg.mxu0
        %v1337 = vunpack.c.l.b16 %v1191
        %v1338 = vunpack.c.l.b16 %v1192
        %v1339 = vunpack.c.l.b16 %v1193
        %v1340 = vunpack.c.l.b16 %v1194
        %v1341 = vunpack.c.l.b16 %v1195
        %v1342 = vunpack.c.l.b16 %v1196
        %v1343 = vunpack.c.l.b16 %v1197
        %v1344 = vunpack.c.l.b16 %v1198
        %v1345 = vunpack.c.l.b16 %v1199
        %v1346 = vunpack.c.l.b16 %v1200
        %v1347 = vunpack.c.l.b16 %v1201
        %v1348 = vunpack.c.l.b16 %v1202
        %v1349 = vunpack.c.l.b16 %v1203
        %v1350 = vunpack.c.l.b16 %v1204
        %v1351 = vunpack.c.l.b16 %v1205
        %v1352 = vunpack.c.l.b16 %v1206
        %v1353 = vpack.c.b16 %v1338, %v1337
        %v1354 = vpack.c.b16 %v1340, %v1339
        %v1355 = vpack.c.b16 %v1342, %v1341
        %v1356 = vpack.c.b16 %v1344, %v1343
        %v1357 = vpack.c.b16 %v1346, %v1345
        %v1358 = vpack.c.b16 %v1348, %v1347
        %v1359 = vpack.c.b16 %v1350, %v1349
        %v1360 = vpack.c.b16 %v1352, %v1351
        %1369 = vmatprep.subr.bf16.mxu0 0
        %1370 = vmatpush1.bf16.msra.mxu0 %v1353
        %1371 = vmatprep.subr.bf16.mxu0 0
        %1372 = vmatpush1.bf16.msra.mxu0 %v1354
        %1373 = vmatprep.subr.bf16.mxu0 0
        %1374 = vmatpush1.bf16.msra.mxu0 %v1355
        %1375 = vmatprep.subr.bf16.mxu0 0
        %1376 = vmatpush1.bf16.msra.mxu0 %v1356
        %1377 = vmatprep.subr.bf16.mxu0 0
        %1378 = vmatpush1.bf16.msra.mxu0 %v1357
        %1379 = vmatprep.subr.bf16.mxu0 0
        %1380 = vmatpush1.bf16.msra.mxu0 %v1358
        %1381 = vmatprep.subr.bf16.mxu0 0
        %1382 = vmatpush1.bf16.msra.mxu0 %v1359
        %1383 = vmatprep.subr.bf16.mxu0 0
        %1384 = vmatpush1.bf16.msra.mxu0 %v1360
        %1385 = vmatprep.subr.bf16.mxu0 0
        %1386 = vmatpush1.bf16.msra.mxu0 0
        %1387 = vmatprep.subr.bf16.mxu0 0
        %1388 = vmatpush1.bf16.msra.mxu0 0
        %1389 = vmatprep.subr.bf16.mxu0 0
        %1390 = vmatpush1.bf16.msra.mxu0 0
        %1391 = vmatprep.subr.bf16.mxu0 0
        %1392 = vmatpush1.bf16.msra.mxu0 0
        %1393 = vmatprep.subr.bf16.mxu0 0
        %1394 = vmatpush1.bf16.msra.mxu0 0
        %1395 = vmatprep.subr.bf16.mxu0 0
        %1396 = vmatpush1.bf16.msra.mxu0 0
        %1397 = vmatprep.subr.bf16.mxu0 0
        %1398 = vmatpush1.bf16.msra.mxu0 0
        %1399 = vmatprep.subr.bf16.mxu0 0
        %1400 = vmatpush1.bf16.msra.mxu0 0
        %1401 = vmatprep.mubr.bf16.mxu0 0
        %1402 = vmatmul.mubr.bf16.gmra.mrb[0].mxu0 %v1190
        %v1403 = vpop.f32.mrb[0].mxu0
        %v1404 = vadd.f32 %v1316, %v1403
        %v1405 = vpop.f32.mrb[0].mxu0
        %v1406 = vpop.f32.mrb[0].mxu0
        %v1407 = vpop.f32.mrb[0].mxu0
        %1408 = vdwg.mxu0
        %v1409 = vpack.c.bf16 %v1180, %v1177
        %s1410 = scalar_lea.vmem %s5, 128
        %v1411 = vld [vmem:[%s1410] sm:$0xf]
        %v1412 = vld [vmem:[%s1410 + $0x4] sm:$0xf]
        %v1413 = vld [vmem:[%s1410 + $0x8] sm:$0xf]
        %v1414 = vld [vmem:[%s1410 + $0xc] sm:$0xf]
        %v1415 = vld [vmem:[%s1410 + $0x10] sm:$0xf]
        %v1416 = vld [vmem:[%s1410 + $0x14] sm:$0xf]
        %v1417 = vld [vmem:[%s1410 + $0x18] sm:$0xf]
        %v1418 = vld [vmem:[%s1410 + $0x1c] sm:$0xf]
        %v1419 = vld [vmem:[%s1410 + $0x20] sm:$0xf]
        %v1420 = vld [vmem:[%s1410 + $0x24] sm:$0xf]
        %v1421 = vld [vmem:[%s1410 + $0x28] sm:$0xf]
        %v1422 = vld [vmem:[%s1410 + $0x2c] sm:$0xf]
        %v1423 = vld [vmem:[%s1410 + $0x30] sm:$0xf]
        %v1424 = vld [vmem:[%s1410 + $0x34] sm:$0xf]
        %v1425 = vld [vmem:[%s1410 + $0x38] sm:$0xf]
        %v1426 = vld [vmem:[%s1410 + $0x3c] sm:$0xf]
        %v1428 = vshrl.u32 %v1409, 16
        %v1430 = vshll.u32 %v1409, 16
        %v1432 = vrot.slane %v1430, 1
        %v1433 = vor.u32 %v1428, %v1432
        %v1451 = vunpack.c.l.b16 %v1411
        %v1452 = vunpack.c.l.b16 %v1412
        %v1453 = vunpack.c.l.b16 %v1413
        %v1454 = vunpack.c.l.b16 %v1414
        %v1455 = vunpack.c.l.b16 %v1415
        %v1456 = vunpack.c.l.b16 %v1416
        %v1457 = vunpack.c.l.b16 %v1417
        %v1458 = vunpack.c.l.b16 %v1418
        %v1459 = vunpack.c.l.b16 %v1419
        %v1460 = vunpack.c.l.b16 %v1420
        %v1461 = vunpack.c.l.b16 %v1421
        %v1462 = vunpack.c.l.b16 %v1422
        %v1463 = vunpack.c.l.b16 %v1423
        %v1464 = vunpack.c.l.b16 %v1424
        %v1465 = vunpack.c.l.b16 %v1425
        %v1466 = vunpack.c.l.b16 %v1426
        %v1467 = vpack.c.b16 %v1452, %v1451
        %v1468 = vpack.c.b16 %v1454, %v1453
        %v1469 = vpack.c.b16 %v1456, %v1455
        %v1470 = vpack.c.b16 %v1458, %v1457
        %v1471 = vpack.c.b16 %v1460, %v1459
        %v1472 = vpack.c.b16 %v1462, %v1461
        %v1473 = vpack.c.b16 %v1464, %v1463
        %v1474 = vpack.c.b16 %v1466, %v1465
        %1483 = vmatprep.subr.bf16.mxu0 0
        %1484 = vmatpush1.bf16.msra.mxu0 %v1467
        %1485 = vmatprep.subr.bf16.mxu0 0
        %1486 = vmatpush1.bf16.msra.mxu0 %v1468
        %1487 = vmatprep.subr.bf16.mxu0 0
        %1488 = vmatpush1.bf16.msra.mxu0 %v1469
        %1489 = vmatprep.subr.bf16.mxu0 0
        %1490 = vmatpush1.bf16.msra.mxu0 %v1470
        %1491 = vmatprep.subr.bf16.mxu0 0
        %1492 = vmatpush1.bf16.msra.mxu0 %v1471
        %1493 = vmatprep.subr.bf16.mxu0 0
        %1494 = vmatpush1.bf16.msra.mxu0 %v1472
        %1495 = vmatprep.subr.bf16.mxu0 0
        %1496 = vmatpush1.bf16.msra.mxu0 %v1473
        %1497 = vmatprep.subr.bf16.mxu0 0
        %1498 = vmatpush1.bf16.msra.mxu0 %v1474
        %1499 = vmatprep.subr.bf16.mxu0 0
        %1500 = vmatpush1.bf16.msra.mxu0 0
        %1501 = vmatprep.subr.bf16.mxu0 0
        %1502 = vmatpush1.bf16.msra.mxu0 0
        %1503 = vmatprep.subr.bf16.mxu0 0
        %1504 = vmatpush1.bf16.msra.mxu0 0
        %1505 = vmatprep.subr.bf16.mxu0 0
        %1506 = vmatpush1.bf16.msra.mxu0 0
        %1507 = vmatprep.subr.bf16.mxu0 0
        %1508 = vmatpush1.bf16.msra.mxu0 0
        %1509 = vmatprep.subr.bf16.mxu0 0
        %1510 = vmatpush1.bf16.msra.mxu0 0
        %1511 = vmatprep.subr.bf16.mxu0 0
        %1512 = vmatpush1.bf16.msra.mxu0 0
        %1513 = vmatprep.subr.bf16.mxu0 0
        %1514 = vmatpush1.bf16.msra.mxu0 0
        %1515 = vmatprep.mubr.bf16.mxu0 0
        %1516 = vmatmul.mubr.bf16.gmra.mrb[0].mxu0 %v1433
        %v1517 = vpop.f32.mrb[0].mxu0
        %v1518 = vadd.f32 0.0, %v1517
        %v1519 = vpop.f32.mrb[0].mxu0
        %v1520 = vpop.f32.mrb[0].mxu0
        %v1521 = vpop.f32.mrb[0].mxu0
        %1522 = vdwg.mxu0
        %v1523 = vadd.f32 %v1404, %v1518
        %v1524 = vld [vmem:[%s6] sm:$0x1]
        %v1526 = vlaneseq
        %v1527 = vshrl.u32 %v1526, 7
        %v1528 = vsub.s32 0, %v1527
        %v1529 = vrot.slane %v1524, %v1528
        %v1531 = vadd.f32 %v1523, %v1529
        %vm1532 = vcmp.gt.f32.partialorder %v1531, 0.0
        %v1533 = vmul.f32 %v1531, 0.1
        %v1534 = vsel %vm1532, %v1531, %v1533
        %v1535 = vpack.c.bf16 %v1534, %v1534
        %v1536 = vld [vmem:[%s7] sm:$0xf]
        %v1537 = vld [vmem:[%s7 + $0x4] sm:$0x1]
        %v1540 = vunpack.c.l.b16 %v1536
        %v1541 = vunpack.c.l.b16 %v1537
        %v1542 = vpack.c.b16 %v1541, %v1540
        %vm1543 = vcmask 64512
        %v1545 = vsel %vm1543, %v1542, 0
        %vm1547 = vcmask 1043456
        %v1549 = vsel %vm1547, %v1535, 0
        %1551 = vmatprep.subr.bf16.mxu0 0
        %1552 = vmatpush1.bf16.msra.mxu0 %v1549
        %1553 = vmatprep.subr.bf16.mxu0 0
        %1554 = vmatpush1.bf16.msra.mxu0 0
        %1555 = vmatprep.subr.bf16.mxu0 0
        %1556 = vmatpush1.bf16.msra.mxu0 0
        %1557 = vmatprep.subr.bf16.mxu0 0
        %1558 = vmatpush1.bf16.msra.mxu0 0
        %1559 = vmatprep.subr.bf16.mxu0 0
        %1560 = vmatpush1.bf16.msra.mxu0 0
        %1561 = vmatprep.subr.bf16.mxu0 0
        %1562 = vmatpush1.bf16.msra.mxu0 0
        %1563 = vmatprep.subr.bf16.mxu0 0
        %1564 = vmatpush1.bf16.msra.mxu0 0
        %1565 = vmatprep.subr.bf16.mxu0 0
        %1566 = vmatpush1.bf16.msra.mxu0 0
        %1567 = vmatprep.subr.bf16.mxu0 0
        %1568 = vmatpush1.bf16.msra.mxu0 0
        %1569 = vmatprep.subr.bf16.mxu0 0
        %1570 = vmatpush1.bf16.msra.mxu0 0
        %1571 = vmatprep.subr.bf16.mxu0 0
        %1572 = vmatpush1.bf16.msra.mxu0 0
        %1573 = vmatprep.subr.bf16.mxu0 0
        %1574 = vmatpush1.bf16.msra.mxu0 0
        %1575 = vmatprep.subr.bf16.mxu0 0
        %1576 = vmatpush1.bf16.msra.mxu0 0
        %1577 = vmatprep.subr.bf16.mxu0 0
        %1578 = vmatpush1.bf16.msra.mxu0 0
        %1579 = vmatprep.subr.bf16.mxu0 0
        %1580 = vmatpush1.bf16.msra.mxu0 0
        %1581 = vmatprep.subr.bf16.mxu0 0
        %1582 = vmatpush1.bf16.msra.mxu0 0
        %1583 = vmatprep.mubr.bf16.mxu0 0
        %1584 = vmatmul.mubr.bf16.gmra.mrb[0].mxu0 %v1545
        %v1585 = vpop.f32.mrb[0].mxu0
        %v1586 = vadd.f32 0.0, %v1585
        %v1587 = vpop.f32.mrb[0].mxu0
        %v1588 = vpop.f32.mrb[0].mxu0
        %v1589 = vadd.f32 0.0, %v1588
        %v1590 = vpop.f32.mrb[0].mxu0
        %1591 = vdwg.mxu0
        %v1592 = vpack.c.bf16 %v1586, %v1586
        %v1593 = vld [vmem:[%s8] sm:$0xf]
        %v1594 = vld [vmem:[%s8 + $0x4] sm:$0xf]
        %v1595 = vld [vmem:[%s8 + $0x8] sm:$0xf]
        %v1596 = vld [vmem:[%s8 + $0xc] sm:$0xf]
        %v1597 = vld [vmem:[%s8 + $0x10] sm:$0xf]
        %v1598 = vld [vmem:[%s8 + $0x14] sm:$0xf]
        %v1599 = vld [vmem:[%s8 + $0x18] sm:$0xf]
        %v1600 = vld [vmem:[%s8 + $0x1c] sm:$0xf]
        %v1601 = vld [vmem:[%s8 + $0x20] sm:$0xf]
        %v1602 = vld [vmem:[%s8 + $0x24] sm:$0xf]
        %v1603 = vld [vmem:[%s8 + $0x28] sm:$0xf]
        %v1604 = vld [vmem:[%s8 + $0x2c] sm:$0xf]
        %v1605 = vld [vmem:[%s8 + $0x30] sm:$0xf]
        %v1606 = vld [vmem:[%s8 + $0x34] sm:$0xf]
        %v1607 = vld [vmem:[%s8 + $0x38] sm:$0xf]
        %v1608 = vld [vmem:[%s8 + $0x3c] sm:$0xf]
        %v1609 = vpack.c.bf16 %v1589, %v1586
        %s1610 = scalar_lea.vmem %s8, 64
        %v1611 = vld [vmem:[%s1610] sm:$0xf]
        %v1612 = vld [vmem:[%s1610 + $0x4] sm:$0xf]
        %v1613 = vld [vmem:[%s1610 + $0x8] sm:$0xf]
        %v1614 = vld [vmem:[%s1610 + $0xc] sm:$0xf]
        %v1615 = vld [vmem:[%s1610 + $0x10] sm:$0xf]
        %v1616 = vld [vmem:[%s1610 + $0x14] sm:$0xf]
        %v1617 = vld [vmem:[%s1610 + $0x18] sm:$0xf]
        %v1618 = vld [vmem:[%s1610 + $0x1c] sm:$0xf]
        %v1619 = vld [vmem:[%s1610 + $0x20] sm:$0xf]
        %v1620 = vld [vmem:[%s1610 + $0x24] sm:$0xf]
        %v1621 = vld [vmem:[%s1610 + $0x28] sm:$0xf]
        %v1622 = vld [vmem:[%s1610 + $0x2c] sm:$0xf]
        %v1623 = vld [vmem:[%s1610 + $0x30] sm:$0xf]
        %v1624 = vld [vmem:[%s1610 + $0x34] sm:$0xf]
        %v1625 = vld [vmem:[%s1610 + $0x38] sm:$0xf]
        %v1626 = vld [vmem:[%s1610 + $0x3c] sm:$0xf]
        %v1628 = vshrl.u32 %v1609, 16
        %v1630 = vrot.slane %v1628, 2
        %v1631 = vshll.u32 %v1609, 16
        %v1633 = vrot.slane %v1631, 3
        %v1634 = vor.u32 %v1630, %v1633
        %v1652 = vunpack.c.l.b16 %v1611
        %v1653 = vunpack.c.l.b16 %v1612
        %v1654 = vunpack.c.l.b16 %v1613
        %v1655 = vunpack.c.l.b16 %v1614
        %v1656 = vunpack.c.l.b16 %v1615
        %v1657 = vunpack.c.l.b16 %v1616
        %v1658 = vunpack.c.l.b16 %v1617
        %v1659 = vunpack.c.l.b16 %v1618
        %v1660 = vunpack.c.l.b16 %v1619
        %v1661 = vunpack.c.l.b16 %v1620
        %v1662 = vunpack.c.l.b16 %v1621
        %v1663 = vunpack.c.l.b16 %v1622
        %v1664 = vunpack.c.l.b16 %v1623
        %v1665 = vunpack.c.l.b16 %v1624
        %v1666 = vunpack.c.l.b16 %v1625
        %v1667 = vunpack.c.l.b16 %v1626
        %v1668 = vpack.c.b16 %v1653, %v1652
        %v1669 = vpack.c.b16 %v1655, %v1654
        %v1670 = vpack.c.b16 %v1657, %v1656
        %v1671 = vpack.c.b16 %v1659, %v1658
        %v1672 = vpack.c.b16 %v1661, %v1660
        %v1673 = vpack.c.b16 %v1663, %v1662
        %v1674 = vpack.c.b16 %v1665, %v1664
        %v1675 = vpack.c.b16 %v1667, %v1666
        %1684 = vmatprep.subr.bf16.mxu0 0
        %1685 = vmatpush1.bf16.msra.mxu0 %v1668
        %1686 = vmatprep.subr.bf16.mxu0 0
        %1687 = vmatpush1.bf16.msra.mxu0 %v1669
        %1688 = vmatprep.subr.bf16.mxu0 0
        %1689 = vmatpush1.bf16.msra.mxu0 %v1670
        %1690 = vmatprep.subr.bf16.mxu0 0
        %1691 = vmatpush1.bf16.msra.mxu0 %v1671
        %1692 = vmatprep.subr.bf16.mxu0 0
        %1693 = vmatpush1.bf16.msra.mxu0 %v1672
        %1694 = vmatprep.subr.bf16.mxu0 0
        %1695 = vmatpush1.bf16.msra.mxu0 %v1673
        %1696 = vmatprep.subr.bf16.mxu0 0
        %1697 = vmatpush1.bf16.msra.mxu0 %v1674
        %1698 = vmatprep.subr.bf16.mxu0 0
        %1699 = vmatpush1.bf16.msra.mxu0 %v1675
        %1700 = vmatprep.subr.bf16.mxu0 0
        %1701 = vmatpush1.bf16.msra.mxu0 0
        %1702 = vmatprep.subr.bf16.mxu0 0
        %1703 = vmatpush1.bf16.msra.mxu0 0
        %1704 = vmatprep.subr.bf16.mxu0 0
        %1705 = vmatpush1.bf16.msra.mxu0 0
        %1706 = vmatprep.subr.bf16.mxu0 0
        %1707 = vmatpush1.bf16.msra.mxu0 0
        %1708 = vmatprep.subr.bf16.mxu0 0
        %1709 = vmatpush1.bf16.msra.mxu0 0
        %1710 = vmatprep.subr.bf16.mxu0 0
        %1711 = vmatpush1.bf16.msra.mxu0 0
        %1712 = vmatprep.subr.bf16.mxu0 0
        %1713 = vmatpush1.bf16.msra.mxu0 0
        %1714 = vmatprep.subr.bf16.mxu0 0
        %1715 = vmatpush1.bf16.msra.mxu0 0
        %1716 = vmatprep.mubr.bf16.mxu0 0
        %1717 = vmatmul.mubr.bf16.gmra.mrb[0].mxu0 %v1634
        %v1718 = vpop.f32.mrb[0].mxu0
        %v1719 = vadd.f32 0.0, %v1718
        %v1720 = vpop.f32.mrb[0].mxu0
        %v1721 = vpop.f32.mrb[0].mxu0
        %v1722 = vpop.f32.mrb[0].mxu0
        %1723 = vdwg.mxu0
        %v1740 = vunpack.c.l.b16 %v1593
        %v1741 = vunpack.c.l.b16 %v1594
        %v1742 = vunpack.c.l.b16 %v1595
        %v1743 = vunpack.c.l.b16 %v1596
        %v1744 = vunpack.c.l.b16 %v1597
        %v1745 = vunpack.c.l.b16 %v1598
        %v1746 = vunpack.c.l.b16 %v1599
        %v1747 = vunpack.c.l.b16 %v1600
        %v1748 = vunpack.c.l.b16 %v1601
        %v1749 = vunpack.c.l.b16 %v1602
        %v1750 = vunpack.c.l.b16 %v1603
        %v1751 = vunpack.c.l.b16 %v1604
        %v1752 = vunpack.c.l.b16 %v1605
        %v1753 = vunpack.c.l.b16 %v1606
        %v1754 = vunpack.c.l.b16 %v1607
        %v1755 = vunpack.c.l.b16 %v1608
        %v1756 = vpack.c.b16 %v1741, %v1740
        %v1757 = vpack.c.b16 %v1743, %v1742
        %v1758 = vpack.c.b16 %v1745, %v1744
        %v1759 = vpack.c.b16 %v1747, %v1746
        %v1760 = vpack.c.b16 %v1749, %v1748
        %v1761 = vpack.c.b16 %v1751, %v1750
        %v1762 = vpack.c.b16 %v1753, %v1752
        %v1763 = vpack.c.b16 %v1755, %v1754
        %1772 = vmatprep.subr.bf16.mxu0 0
        %1773 = vmatpush1.bf16.msra.mxu0 %v1756
        %1774 = vmatprep.subr.bf16.mxu0 0
        %1775 = vmatpush1.bf16.msra.mxu0 %v1757
        %1776 = vmatprep.subr.bf16.mxu0 0
        %1777 = vmatpush1.bf16.msra.mxu0 %v1758
        %1778 = vmatprep.subr.bf16.mxu0 0
        %1779 = vmatpush1.bf16.msra.mxu0 %v1759
        %1780 = vmatprep.subr.bf16.mxu0 0
        %1781 = vmatpush1.bf16.msra.mxu0 %v1760
        %1782 = vmatprep.subr.bf16.mxu0 0
        %1783 = vmatpush1.bf16.msra.mxu0 %v1761
        %1784 = vmatprep.subr.bf16.mxu0 0
        %1785 = vmatpush1.bf16.msra.mxu0 %v1762
        %1786 = vmatprep.subr.bf16.mxu0 0
        %1787 = vmatpush1.bf16.msra.mxu0 %v1763
        %1788 = vmatprep.subr.bf16.mxu0 0
        %1789 = vmatpush1.bf16.msra.mxu0 0
        %1790 = vmatprep.subr.bf16.mxu0 0
        %1791 = vmatpush1.bf16.msra.mxu0 0
        %1792 = vmatprep.subr.bf16.mxu0 0
        %1793 = vmatpush1.bf16.msra.mxu0 0
        %1794 = vmatprep.subr.bf16.mxu0 0
        %1795 = vmatpush1.bf16.msra.mxu0 0
        %1796 = vmatprep.subr.bf16.mxu0 0
        %1797 = vmatpush1.bf16.msra.mxu0 0
        %1798 = vmatprep.subr.bf16.mxu0 0
        %1799 = vmatpush1.bf16.msra.mxu0 0
        %1800 = vmatprep.subr.bf16.mxu0 0
        %1801 = vmatpush1.bf16.msra.mxu0 0
        %1802 = vmatprep.subr.bf16.mxu0 0
        %1803 = vmatpush1.bf16.msra.mxu0 0
        %1804 = vmatprep.mubr.bf16.mxu0 0
        %1805 = vmatmul.mubr.bf16.gmra.mrb[0].mxu0 %v1592
        %v1806 = vpop.f32.mrb[0].mxu0
        %v1807 = vadd.f32 %v1719, %v1806
        %v1808 = vpop.f32.mrb[0].mxu0
        %v1809 = vpop.f32.mrb[0].mxu0
        %v1810 = vpop.f32.mrb[0].mxu0
        %1811 = vdwg.mxu0
        %s1812 = scalar_lea.vmem %s8, 128
        %v1813 = vld [vmem:[%s1812] sm:$0xf]
        %v1814 = vld [vmem:[%s1812 + $0x4] sm:$0xf]
        %v1815 = vld [vmem:[%s1812 + $0x8] sm:$0xf]
        %v1816 = vld [vmem:[%s1812 + $0xc] sm:$0xf]
        %v1817 = vld [vmem:[%s1812 + $0x10] sm:$0xf]
        %v1818 = vld [vmem:[%s1812 + $0x14] sm:$0xf]
        %v1819 = vld [vmem:[%s1812 + $0x18] sm:$0xf]
        %v1820 = vld [vmem:[%s1812 + $0x1c] sm:$0xf]
        %v1821 = vld [vmem:[%s1812 + $0x20] sm:$0xf]
        %v1822 = vld [vmem:[%s1812 + $0x24] sm:$0xf]
        %v1823 = vld [vmem:[%s1812 + $0x28] sm:$0xf]
        %v1824 = vld [vmem:[%s1812 + $0x2c] sm:$0xf]
        %v1825 = vld [vmem:[%s1812 + $0x30] sm:$0xf]
        %v1826 = vld [vmem:[%s1812 + $0x34] sm:$0xf]
        %v1827 = vld [vmem:[%s1812 + $0x38] sm:$0xf]
        %v1828 = vld [vmem:[%s1812 + $0x3c] sm:$0xf]
        %v1830 = vshrl.u32 %v1592, 16
        %v1832 = vshll.u32 %v1592, 16
        %v1834 = vrot.slane %v1832, 1
        %v1835 = vor.u32 %v1830, %v1834
        %v1853 = vunpack.c.l.b16 %v1813
        %v1854 = vunpack.c.l.b16 %v1814
        %v1855 = vunpack.c.l.b16 %v1815
        %v1856 = vunpack.c.l.b16 %v1816
        %v1857 = vunpack.c.l.b16 %v1817
        %v1858 = vunpack.c.l.b16 %v1818
        %v1859 = vunpack.c.l.b16 %v1819
        %v1860 = vunpack.c.l.b16 %v1820
        %v1861 = vunpack.c.l.b16 %v1821
        %v1862 = vunpack.c.l.b16 %v1822
        %v1863 = vunpack.c.l.b16 %v1823
        %v1864 = vunpack.c.l.b16 %v1824
        %v1865 = vunpack.c.l.b16 %v1825
        %v1866 = vunpack.c.l.b16 %v1826
        %v1867 = vunpack.c.l.b16 %v1827
        %v1868 = vunpack.c.l.b16 %v1828
        %v1869 = vpack.c.b16 %v1854, %v1853
        %v1870 = vpack.c.b16 %v1856, %v1855
        %v1871 = vpack.c.b16 %v1858, %v1857
        %v1872 = vpack.c.b16 %v1860, %v1859
        %v1873 = vpack.c.b16 %v1862, %v1861
        %v1874 = vpack.c.b16 %v1864, %v1863
        %v1875 = vpack.c.b16 %v1866, %v1865
        %v1876 = vpack.c.b16 %v1868, %v1867
        %1885 = vmatprep.subr.bf16.mxu0 0
        %1886 = vmatpush1.bf16.msra.mxu0 %v1869
        %1887 = vmatprep.subr.bf16.mxu0 0
        %1888 = vmatpush1.bf16.msra.mxu0 %v1870
        %1889 = vmatprep.subr.bf16.mxu0 0
        %1890 = vmatpush1.bf16.msra.mxu0 %v1871
        %1891 = vmatprep.subr.bf16.mxu0 0
        %1892 = vmatpush1.bf16.msra.mxu0 %v1872
        %1893 = vmatprep.subr.bf16.mxu0 0
        %1894 = vmatpush1.bf16.msra.mxu0 %v1873
        %1895 = vmatprep.subr.bf16.mxu0 0
        %1896 = vmatpush1.bf16.msra.mxu0 %v1874
        %1897 = vmatprep.subr.bf16.mxu0 0
        %1898 = vmatpush1.bf16.msra.mxu0 %v1875
        %1899 = vmatprep.subr.bf16.mxu0 0
        %1900 = vmatpush1.bf16.msra.mxu0 %v1876
        %1901 = vmatprep.subr.bf16.mxu0 0
        %1902 = vmatpush1.bf16.msra.mxu0 0
        %1903 = vmatprep.subr.bf16.mxu0 0
        %1904 = vmatpush1.bf16.msra.mxu0 0
        %1905 = vmatprep.subr.bf16.mxu0 0
        %1906 = vmatpush1.bf16.msra.mxu0 0
        %1907 = vmatprep.subr.bf16.mxu0 0
        %1908 = vmatpush1.bf16.msra.mxu0 0
        %1909 = vmatprep.subr.bf16.mxu0 0
        %1910 = vmatpush1.bf16.msra.mxu0 0
        %1911 = vmatprep.subr.bf16.mxu0 0
        %1912 = vmatpush1.bf16.msra.mxu0 0
        %1913 = vmatprep.subr.bf16.mxu0 0
        %1914 = vmatpush1.bf16.msra.mxu0 0
        %1915 = vmatprep.subr.bf16.mxu0 0
        %1916 = vmatpush1.bf16.msra.mxu0 0
        %1917 = vmatprep.mubr.bf16.mxu0 0
        %1918 = vmatmul.mubr.bf16.gmra.mrb[0].mxu0 %v1835
        %v1919 = vpop.f32.mrb[0].mxu0
        %v1920 = vadd.f32 0.0, %v1919
        %v1921 = vpop.f32.mrb[0].mxu0
        %v1922 = vpop.f32.mrb[0].mxu0
        %v1923 = vpop.f32.mrb[0].mxu0
        %1924 = vdwg.mxu0
        %v1925 = vadd.f32 %v1807, %v1920
        %v1926 = vld [vmem:[#allocation4] sm:$0x1]
        %v1928 = vlaneseq
        %v1929 = vshrl.u32 %v1928, 7
        %v1930 = vsub.s32 0, %v1929
        %v1931 = vrot.slane %v1926, %v1930
        %v1933 = vadd.f32 %v1925, %v1931
        %vm1934 = vcmp.gt.f32.partialorder %v1933, 0.0
        %v1935 = vmul.f32 %v1933, 0.1
        %v1936 = vsel %vm1934, %v1933, %v1935
        %v1937 = vld [vmem:[#allocation6] sm:$0x1]
        %v1938 = vsel %vm1547, %v1936, 0.0
        %v1939 = vrot.slane %v1938, 4
        %v1940 = vadd.f32 %v1938, %v1939
        %v1941 = vrot.slane %v1940, 2
        %v1942 = vadd.f32 %v1940, %v1941
        %v1943 = vrot.slane %v1942, 1
        %v1944 = vadd.f32 %v1942, %v1943
        %v1945 = vrcp.pop 4.0
        %v1946 = vmul.f32 %v1944, %v1945
        %v1947 = vpack.c.bf16 %v1946, %v1946
        %v1948 = vld [vmem:[#allocation7] sm:$0xf]
        %v1949 = vld [vmem:[#allocation7 + $0x4] sm:$0xf]
        %v1950 = vld [vmem:[#allocation7 + $0x8] sm:$0xf]
        %v1951 = vld [vmem:[#allocation7 + $0xc] sm:$0xf]
        %v1952 = vld [vmem:[#allocation7 + $0x10] sm:$0xf]
        %v1953 = vld [vmem:[#allocation7 + $0x14] sm:$0xf]
        %v1954 = vld [vmem:[#allocation7 + $0x18] sm:$0xf]
        %v1955 = vld [vmem:[#allocation7 + $0x1c] sm:$0xf]
        %v1956 = vld [vmem:[#allocation7 + $0x20] sm:$0xf]
        %v1957 = vld [vmem:[#allocation7 + $0x24] sm:$0xf]
        %v1958 = vld [vmem:[#allocation7 + $0x28] sm:$0xf]
        %v1959 = vld [vmem:[#allocation7 + $0x2c] sm:$0xf]
        %v1960 = vld [vmem:[#allocation7 + $0x30] sm:$0xf]
        %v1961 = vld [vmem:[#allocation7 + $0x34] sm:$0xf]
        %v1962 = vld [vmem:[#allocation7 + $0x38] sm:$0xf]
        %v1963 = vld [vmem:[#allocation7 + $0x3c] sm:$0xf]
        %v1964 = vld [vmem:[#allocation9] sm:$0x1]
        %v1981 = vunpack.c.l.b16 %v1948
        %v1982 = vunpack.c.l.b16 %v1949
        %v1983 = vunpack.c.l.b16 %v1950
        %v1984 = vunpack.c.l.b16 %v1951
        %v1985 = vunpack.c.l.b16 %v1952
        %v1986 = vunpack.c.l.b16 %v1953
        %v1987 = vunpack.c.l.b16 %v1954
        %v1988 = vunpack.c.l.b16 %v1955
        %v1989 = vunpack.c.l.b16 %v1956
        %v1990 = vunpack.c.l.b16 %v1957
        %v1991 = vunpack.c.l.b16 %v1958
        %v1992 = vunpack.c.l.b16 %v1959
        %v1993 = vunpack.c.l.b16 %v1960
        %v1994 = vunpack.c.l.b16 %v1961
        %v1995 = vunpack.c.l.b16 %v1962
        %v1996 = vunpack.c.l.b16 %v1963
        %v1997 = vpack.c.b16 %v1982, %v1981
        %v1998 = vpack.c.b16 %v1984, %v1983
        %v1999 = vpack.c.b16 %v1986, %v1985
        %v2000 = vpack.c.b16 %v1988, %v1987
        %v2001 = vpack.c.b16 %v1990, %v1989
        %v2002 = vpack.c.b16 %v1992, %v1991
        %v2003 = vpack.c.b16 %v1994, %v1993
        %v2004 = vpack.c.b16 %v1996, %v1995
        %2013 = vmatprep.subr.bf16.mxu0 0
        %2014 = vmatpush1.bf16.msra.mxu0 %v1997
        %2015 = vmatprep.subr.bf16.mxu0 0
        %2016 = vmatpush1.bf16.msra.mxu0 %v1998
        %2017 = vmatprep.subr.bf16.mxu0 0
        %2018 = vmatpush1.bf16.msra.mxu0 %v1999
        %2019 = vmatprep.subr.bf16.mxu0 0
        %2020 = vmatpush1.bf16.msra.mxu0 %v2000
        %2021 = vmatprep.subr.bf16.mxu0 0
        %2022 = vmatpush1.bf16.msra.mxu0 %v2001
        %2023 = vmatprep.subr.bf16.mxu0 0
        %2024 = vmatpush1.bf16.msra.mxu0 %v2002
        %2025 = vmatprep.subr.bf16.mxu0 0
        %2026 = vmatpush1.bf16.msra.mxu0 %v2003
        %2027 = vmatprep.subr.bf16.mxu0 0
        %2028 = vmatpush1.bf16.msra.mxu0 %v2004
        %2029 = vmatprep.subr.bf16.mxu0 0
        %2030 = vmatpush1.bf16.msra.mxu0 0
        %2031 = vmatprep.subr.bf16.mxu0 0
        %2032 = vmatpush1.bf16.msra.mxu0 0
        %2033 = vmatprep.subr.bf16.mxu0 0
        %2034 = vmatpush1.bf16.msra.mxu0 0
        %2035 = vmatprep.subr.bf16.mxu0 0
        %2036 = vmatpush1.bf16.msra.mxu0 0
        %2037 = vmatprep.subr.bf16.mxu0 0
        %2038 = vmatpush1.bf16.msra.mxu0 0
        %2039 = vmatprep.subr.bf16.mxu0 0
        %2040 = vmatpush1.bf16.msra.mxu0 0
        %2041 = vmatprep.subr.bf16.mxu0 0
        %2042 = vmatpush1.bf16.msra.mxu0 0
        %2043 = vmatprep.subr.bf16.mxu0 0
        %2044 = vmatpush1.bf16.msra.mxu0 0
        %2045 = vmatprep.mubr.bf16.mxu0 0
        %2046 = vmatmul.mubr.bf16.gmra.mrb[0].mxu0 %v1947
        %v2047 = vpop.f32.mrb[0].mxu0
        %v2048 = vadd.f32 %v1964, %v2047
        %v2049 = vpop.f32.mrb[0].mxu0
        %v2050 = vpop.f32.mrb[0].mxu0
        %v2051 = vpop.f32.mrb[0].mxu0
        %2052 = vdwg.mxu0
        %vm2053 = vcmask 1040384
        %v2054 = vsel %vm2053, %v2048, -inf
        %2055 = vmax.xlane.f32.xlu0 %v2054
        %v2056 = vpop.xlane.xlu0 %2055
        %v2057 = vsub.f32 %v2048, %v2056
        %v2058 = vmul.f32 %v2057, 1.442695
        %v2059 = vpow.pop %v2058
        %v2060 = vsel %vm2053, %v2059, 0.0
        %2061 = vadd.xlane.f32.xlu0 %v2060
        %v2062 = vpop.xlane.xlu0 %2061
        %v2063 = vrcp.pop %v2062
        %v2064 = vmul.f32 %v2059, %v2063
        %v2065 = vmax.f32 %v709, 0.0001
        %v2066 = vmax.f32 %v710, 0.0001
        %v2067 = vmax.f32 %v711, 0.0001
        %v2068 = vmax.f32 %v712, 0.0001
        %v2069 = vmin.f32 %v2065, 1.0
        %v2070 = vmin.f32 %v2066, 1.0
        %v2071 = vmin.f32 %v2067, 1.0
        %v2072 = vmin.f32 %v2068, 1.0
        %v2073 = vlog2.pop %v2069
        %v2074 = vmul.f32 %v2073, 0.6931472
        %v2075 = vlog2.pop %v2070
        %v2076 = vmul.f32 %v2075, 0.6931472
        %v2077 = vlog2.pop %v2071
        %v2078 = vmul.f32 %v2077, 0.6931472
        %v2079 = vlog2.pop %v2072
        %v2080 = vmul.f32 %v2079, 0.6931472
        %v2081 = vmul.f32 %v2074, 0.6
        %v2082 = vmul.f32 %v2076, 0.6
        %v2083 = vmul.f32 %v2078, 0.6
        %v2084 = vmul.f32 %v2080, 0.6
        %v2085 = vmul.f32 %v2081, 1.442695
        %v2086 = vpow.pop %v2085
        %v2087 = vmul.f32 %v2082, 1.442695
        %v2088 = vpow.pop %v2087
        %v2089 = vmul.f32 %v2083, 1.442695
        %v2090 = vpow.pop %v2089
        %v2091 = vmul.f32 %v2084, 1.442695
        %v2092 = vpow.pop %v2091
        %v2093 = vsub.f32 %v709, 0.5
        %v2094 = vsub.f32 %v710, 0.5
        %v2095 = vsub.f32 %v711, 0.5
        %v2096 = vsub.f32 %v712, 0.5
        %v2097 = vmul.f32 %v2093, 1.5
        %v2098 = vmul.f32 %v2094, 1.5
        %v2099 = vmul.f32 %v2095, 1.5
        %v2100 = vmul.f32 %v2096, 1.5
        %v2101 = vadd.f32 %v2097, 0.5
        %v2102 = vadd.f32 %v2098, 0.5
        %v2103 = vadd.f32 %v2099, 0.5
        %v2104 = vadd.f32 %v2100, 0.5
        %v2105 = vmax.f32 %v2101, 0.0
        %v2106 = vmax.f32 %v2102, 0.0
        %v2107 = vmax.f32 %v2103, 0.0
        %v2108 = vmax.f32 %v2104, 0.0
        %v2109 = vmin.f32 %v2105, 1.0
        %v2110 = vmin.f32 %v2106, 1.0
        %v2111 = vmin.f32 %v2107, 1.0
        %v2112 = vmin.f32 %v2108, 1.0
        %v2114 = vlaneseq
        %v2115 = vshrl.u32 %v2114, 7
        %v2116 = vsub.s32 0, %v2115
        %v2117 = vrot.slane %v1937, %v2116
        %v2119 = vmul.f32 %v709, %v2117
        %v2120 = vmul.f32 %v710, %v2117
        %v2121 = vmul.f32 %v711, %v2117
        %v2122 = vmul.f32 %v712, %v2117
        %s2124 = vtos %v2064
        %v2125 = vstv %s2124
        %v2127 = vmul.f32 %v2125, %v709
        %v2128 = vmul.f32 %v2125, %v710
        %v2129 = vmul.f32 %v2125, %v711
        %v2130 = vmul.f32 %v2125, %v712
        %2131 = vrot.lane.b32.xlu0 %v2064, 127
        %v2132 = vpop.permute.xlu0 %2131
        %s2133 = vtos %v2132
        %v2134 = vstv %s2133
        %v2136 = vmul.f32 %v2134, %v2086
        %v2137 = vmul.f32 %v2134, %v2088
        %v2138 = vmul.f32 %v2134, %v2090
        %v2139 = vmul.f32 %v2134, %v2092
        %v2140 = vadd.f32 %v2127, %v2136
        %v2141 = vadd.f32 %v2128, %v2137
        %v2142 = vadd.f32 %v2129, %v2138
        %v2143 = vadd.f32 %v2130, %v2139
        %2144 = vrot.lane.b32.xlu0 %v2064, 126
        %v2145 = vpop.permute.xlu0 %2144
        %s2146 = vtos %v2145
        %v2147 = vstv %s2146
        %v2149 = vmul.f32 %v2147, %v2109
        %v2150 = vmul.f32 %v2147, %v2110
        %v2151 = vmul.f32 %v2147, %v2111
        %v2152 = vmul.f32 %v2147, %v2112
        %v2153 = vadd.f32 %v2140, %v2149
        %v2154 = vadd.f32 %v2141, %v2150
        %v2155 = vadd.f32 %v2142, %v2151
        %v2156 = vadd.f32 %v2143, %v2152
        %2157 = vrot.lane.b32.xlu0 %v2064, 125
        %v2158 = vpop.permute.xlu0 %2157
        %s2159 = vtos %v2158
        %v2160 = vstv %s2159
        %v2162 = vmul.f32 %v2160, %v2119
        %v2163 = vmul.f32 %v2160, %v2120
        %v2164 = vmul.f32 %v2160, %v2121
        %v2165 = vmul.f32 %v2160, %v2122
        %v2166 = vadd.f32 %v2153, %v2162
        %v2167 = vadd.f32 %v2154, %v2163
        %v2168 = vadd.f32 %v2155, %v2164
        %v2169 = vadd.f32 %v2156, %v2165
        %v2170 = vmax.f32 %v2166, 0.0
        %v2171 = vmax.f32 %v2167, 0.0
        %v2172 = vmax.f32 %v2168, 0.0
        %v2173 = vmax.f32 %v2169, 0.0
        %v2174 = vmin.f32 %v2170, 1.0
        %v2175 = vmin.f32 %v2171, 1.0
        %v2176 = vmin.f32 %v2172, 1.0
        %v2177 = vmin.f32 %v2173, 1.0
        %v2178 = vrot.slane %v1534, 4
        %v2179 = vadd.f32 %v1534, %v2178
        %v2180 = vrot.slane %v2179, 2
        %v2181 = vadd.f32 %v2179, %v2180
        %v2182 = vrot.slane %v2181, 1
        %v2183 = vadd.f32 %v2181, %v2182
        %v2184 = vrcp.pop 8.0
        %v2185 = vmul.f32 %v2183, %v2184
        %v2186 = vpack.c.bf16 %v2185, %v2185
        %v2187 = vld [vmem:[#allocation10] sm:$0xf]
        %v2188 = vld [vmem:[#allocation10 + $0x4] sm:$0xf]
        %v2189 = vld [vmem:[#allocation10 + $0x8] sm:$0xf]
        %v2190 = vld [vmem:[#allocation10 + $0xc] sm:$0xf]
        %v2191 = vld [vmem:[#allocation10 + $0x10] sm:$0xf]
        %v2192 = vld [vmem:[#allocation10 + $0x14] sm:$0xf]
        %v2193 = vld [vmem:[#allocation10 + $0x18] sm:$0xf]
        %v2194 = vld [vmem:[#allocation10 + $0x1c] sm:$0xf]
        %v2195 = vld [vmem:[#allocation10 + $0x20] sm:$0xf]
        %v2196 = vld [vmem:[#allocation10 + $0x24] sm:$0xf]
        %v2197 = vld [vmem:[#allocation10 + $0x28] sm:$0xf]
        %v2198 = vld [vmem:[#allocation10 + $0x2c] sm:$0xf]
        %v2199 = vld [vmem:[#allocation10 + $0x30] sm:$0xf]
        %v2200 = vld [vmem:[#allocation10 + $0x34] sm:$0xf]
        %v2201 = vld [vmem:[#allocation10 + $0x38] sm:$0xf]
        %v2202 = vld [vmem:[#allocation10 + $0x3c] sm:$0xf]
        %v2203 = vld [vmem:[#allocation12] sm:$0x1]
        %v2220 = vunpack.c.l.b16 %v2187
        %v2221 = vunpack.c.l.b16 %v2188
        %v2222 = vunpack.c.l.b16 %v2189
        %v2223 = vunpack.c.l.b16 %v2190
        %v2224 = vunpack.c.l.b16 %v2191
        %v2225 = vunpack.c.l.b16 %v2192
        %v2226 = vunpack.c.l.b16 %v2193
        %v2227 = vunpack.c.l.b16 %v2194
        %v2228 = vunpack.c.l.b16 %v2195
        %v2229 = vunpack.c.l.b16 %v2196
        %v2230 = vunpack.c.l.b16 %v2197
        %v2231 = vunpack.c.l.b16 %v2198
        %v2232 = vunpack.c.l.b16 %v2199
        %v2233 = vunpack.c.l.b16 %v2200
        %v2234 = vunpack.c.l.b16 %v2201
        %v2235 = vunpack.c.l.b16 %v2202
        %v2236 = vpack.c.b16 %v2221, %v2220
        %v2237 = vpack.c.b16 %v2223, %v2222
        %v2238 = vpack.c.b16 %v2225, %v2224
        %v2239 = vpack.c.b16 %v2227, %v2226
        %v2240 = vpack.c.b16 %v2229, %v2228
        %v2241 = vpack.c.b16 %v2231, %v2230
        %v2242 = vpack.c.b16 %v2233, %v2232
        %v2243 = vpack.c.b16 %v2235, %v2234
        %2252 = vmatprep.subr.bf16.mxu0 0
        %2253 = vmatpush1.bf16.msra.mxu0 %v2236
        %2254 = vmatprep.subr.bf16.mxu0 0
        %2255 = vmatpush1.bf16.msra.mxu0 %v2237
        %2256 = vmatprep.subr.bf16.mxu0 0
        %2257 = vmatpush1.bf16.msra.mxu0 %v2238
        %2258 = vmatprep.subr.bf16.mxu0 0
        %2259 = vmatpush1.bf16.msra.mxu0 %v2239
        %2260 = vmatprep.subr.bf16.mxu0 0
        %2261 = vmatpush1.bf16.msra.mxu0 %v2240
        %2262 = vmatprep.subr.bf16.mxu0 0
        %2263 = vmatpush1.bf16.msra.mxu0 %v2241
        %2264 = vmatprep.subr.bf16.mxu0 0
        %2265 = vmatpush1.bf16.msra.mxu0 %v2242
        %2266 = vmatprep.subr.bf16.mxu0 0
        %2267 = vmatpush1.bf16.msra.mxu0 %v2243
        %2268 = vmatprep.subr.bf16.mxu0 0
        %2269 = vmatpush1.bf16.msra.mxu0 0
        %2270 = vmatprep.subr.bf16.mxu0 0
        %2271 = vmatpush1.bf16.msra.mxu0 0
        %2272 = vmatprep.subr.bf16.mxu0 0
        %2273 = vmatpush1.bf16.msra.mxu0 0
        %2274 = vmatprep.subr.bf16.mxu0 0
        %2275 = vmatpush1.bf16.msra.mxu0 0
        %2276 = vmatprep.subr.bf16.mxu0 0
        %2277 = vmatpush1.bf16.msra.mxu0 0
        %2278 = vmatprep.subr.bf16.mxu0 0
        %2279 = vmatpush1.bf16.msra.mxu0 0
        %2280 = vmatprep.subr.bf16.mxu0 0
        %2281 = vmatpush1.bf16.msra.mxu0 0
        %2282 = vmatprep.subr.bf16.mxu0 0
        %2283 = vmatpush1.bf16.msra.mxu0 0
        %2284 = vmatprep.mubr.bf16.mxu0 0
        %2285 = vmatmul.mubr.bf16.gmra.mrb[0].mxu0 %v2186
        %v2286 = vpop.f32.mrb[0].mxu0
        %v2287 = vadd.f32 %v2203, %v2286
        %v2288 = vpop.f32.mrb[0].mxu0
        %v2289 = vpop.f32.mrb[0].mxu0
        %v2290 = vpop.f32.mrb[0].mxu0
        %2291 = vdwg.mxu0
        %v2292 = vsel %vm2053, %v2287, -inf
        %2293 = vmax.xlane.f32.xlu0 %v2292
        %v2294 = vpop.xlane.xlu0 %2293
        %v2295 = vsub.f32 %v2287, %v2294
        %v2296 = vmul.f32 %v2295, 1.442695
        %v2297 = vpow.pop %v2296
        %v2298 = vsel %vm2053, %v2297, 0.0
        %2299 = vadd.xlane.f32.xlu0 %v2298
        %v2300 = vpop.xlane.xlu0 %2299
        %v2301 = vrcp.pop %v2300
        %v2302 = vmul.f32 %v2297, %v2301
        %v2303 = vmax.f32 %v2174, 0.0001
        %v2304 = vmax.f32 %v2175, 0.0001
        %v2305 = vmax.f32 %v2176, 0.0001
        %v2306 = vmax.f32 %v2177, 0.0001
        %v2307 = vmin.f32 %v2303, 1.0
        %v2308 = vmin.f32 %v2304, 1.0
        %v2309 = vmin.f32 %v2305, 1.0
        %v2310 = vmin.f32 %v2306, 1.0
        %v2311 = vlog2.pop %v2307
        %v2312 = vmul.f32 %v2311, 0.6931472
        %v2313 = vlog2.pop %v2308
        %v2314 = vmul.f32 %v2313, 0.6931472
        %v2315 = vlog2.pop %v2309
        %v2316 = vmul.f32 %v2315, 0.6931472
        %v2317 = vlog2.pop %v2310
        %v2318 = vmul.f32 %v2317, 0.6931472
        %v2319 = vmul.f32 %v2312, 0.6
        %v2320 = vmul.f32 %v2314, 0.6
        %v2321 = vmul.f32 %v2316, 0.6
        %v2322 = vmul.f32 %v2318, 0.6
        %v2323 = vmul.f32 %v2319, 1.442695
        %v2324 = vpow.pop %v2323
        %v2325 = vmul.f32 %v2320, 1.442695
        %v2326 = vpow.pop %v2325
        %v2327 = vmul.f32 %v2321, 1.442695
        %v2328 = vpow.pop %v2327
        %v2329 = vmul.f32 %v2322, 1.442695
        %v2330 = vpow.pop %v2329
        %v2331 = vsub.f32 %v2174, 0.5
        %v2332 = vsub.f32 %v2175, 0.5
        %v2333 = vsub.f32 %v2176, 0.5
        %v2334 = vsub.f32 %v2177, 0.5
        %v2335 = vmul.f32 %v2331, 1.5
        %v2336 = vmul.f32 %v2332, 1.5
        %v2337 = vmul.f32 %v2333, 1.5
        %v2338 = vmul.f32 %v2334, 1.5
        %v2339 = vadd.f32 %v2335, 0.5
        %v2340 = vadd.f32 %v2336, 0.5
        %v2341 = vadd.f32 %v2337, 0.5
        %v2342 = vadd.f32 %v2338, 0.5
        %v2343 = vmax.f32 %v2339, 0.0
        %v2344 = vmax.f32 %v2340, 0.0
        %v2345 = vmax.f32 %v2341, 0.0
        %v2346 = vmax.f32 %v2342, 0.0
        %v2347 = vmin.f32 %v2343, 1.0
        %v2348 = vmin.f32 %v2344, 1.0
        %v2349 = vmin.f32 %v2345, 1.0
        %v2350 = vmin.f32 %v2346, 1.0
        %v2351 = vmul.f32 %v2174, %v2117
        %v2352 = vmul.f32 %v2175, %v2117
        %v2353 = vmul.f32 %v2176, %v2117
        %v2354 = vmul.f32 %v2177, %v2117
        %s2356 = vtos %v2302
        %v2357 = vstv %s2356
        %v2359 = vmul.f32 %v2357, %v2174
        %v2360 = vmul.f32 %v2357, %v2175
        %v2361 = vmul.f32 %v2357, %v2176
        %v2362 = vmul.f32 %v2357, %v2177
        %2363 = vrot.lane.b32.xlu0 %v2302, 127
        %v2364 = vpop.permute.xlu0 %2363
        %s2365 = vtos %v2364
        %v2366 = vstv %s2365
        %v2368 = vmul.f32 %v2366, %v2324
        %v2369 = vmul.f32 %v2366, %v2326
        %v2370 = vmul.f32 %v2366, %v2328
        %v2371 = vmul.f32 %v2366, %v2330
        %v2372 = vadd.f32 %v2359, %v2368
        %v2373 = vadd.f32 %v2360, %v2369
        %v2374 = vadd.f32 %v2361, %v2370
        %v2375 = vadd.f32 %v2362, %v2371
        %2376 = vrot.lane.b32.xlu0 %v2302, 126
        %v2377 = vpop.permute.xlu0 %2376
        %s2378 = vtos %v2377
        %v2379 = vstv %s2378
        %v2381 = vmul.f32 %v2379, %v2347
        %v2382 = vmul.f32 %v2379, %v2348
        %v2383 = vmul.f32 %v2379, %v2349
        %v2384 = vmul.f32 %v2379, %v2350
        %v2385 = vadd.f32 %v2372, %v2381
        %v2386 = vadd.f32 %v2373, %v2382
        %v2387 = vadd.f32 %v2374, %v2383
        %v2388 = vadd.f32 %v2375, %v2384
        %2389 = vrot.lane.b32.xlu0 %v2302, 125
        %v2390 = vpop.permute.xlu0 %2389
        %s2391 = vtos %v2390
        %v2392 = vstv %s2391
        %v2394 = vmul.f32 %v2392, %v2351
        %v2395 = vmul.f32 %v2392, %v2352
        %v2396 = vmul.f32 %v2392, %v2353
        %v2397 = vmul.f32 %v2392, %v2354
        %v2398 = vadd.f32 %v2385, %v2394
        %v2399 = vadd.f32 %v2386, %v2395
        %v2400 = vadd.f32 %v2387, %v2396
        %v2401 = vadd.f32 %v2388, %v2397
        %v2402 = vmax.f32 %v2398, 0.0
        %v2403 = vmax.f32 %v2399, 0.0
        %v2404 = vmax.f32 %v2400, 0.0
        %v2405 = vmax.f32 %v2401, 0.0
        %v2406 = vmin.f32 %v2402, 1.0
        %v2407 = vmin.f32 %v2403, 1.0
        %v2408 = vmin.f32 %v2404, 1.0
        %v2409 = vmin.f32 %v2405, 1.0
        %v2410 = vadd.f32 %v1121, %v1122
        %v2411 = vrot.slane %v2410, 4
        %v2412 = vadd.f32 %v2410, %v2411
        %v2413 = vrot.slane %v2412, 2
        %v2414 = vadd.f32 %v2412, %v2413
        %v2415 = vrot.slane %v2414, 1
        %v2416 = vadd.f32 %v2414, %v2415
        %v2417 = vrcp.pop 16.0
        %v2418 = vmul.f32 %v2416, %v2417
        %v2419 = vpack.c.bf16 %v2418, %v2418
        %v2420 = vld [vmem:[#allocation13] sm:$0xf]
        %v2421 = vld [vmem:[#allocation13 + $0x4] sm:$0xf]
        %v2422 = vld [vmem:[#allocation13 + $0x8] sm:$0xf]
        %v2423 = vld [vmem:[#allocation13 + $0xc] sm:$0xf]
        %v2424 = vld [vmem:[#allocation13 + $0x10] sm:$0xf]
        %v2425 = vld [vmem:[#allocation13 + $0x14] sm:$0xf]
        %v2426 = vld [vmem:[#allocation13 + $0x18] sm:$0xf]
        %v2427 = vld [vmem:[#allocation13 + $0x1c] sm:$0xf]
        %v2428 = vld [vmem:[#allocation13 + $0x20] sm:$0xf]
        %v2429 = vld [vmem:[#allocation13 + $0x24] sm:$0xf]
        %v2430 = vld [vmem:[#allocation13 + $0x28] sm:$0xf]
        %v2431 = vld [vmem:[#allocation13 + $0x2c] sm:$0xf]
        %v2432 = vld [vmem:[#allocation13 + $0x30] sm:$0xf]
        %v2433 = vld [vmem:[#allocation13 + $0x34] sm:$0xf]
        %v2434 = vld [vmem:[#allocation13 + $0x38] sm:$0xf]
        %v2435 = vld [vmem:[#allocation13 + $0x3c] sm:$0xf]
        %v2436 = vld [vmem:[#allocation15] sm:$0x1]
        %v2453 = vunpack.c.l.b16 %v2420
        %v2454 = vunpack.c.l.b16 %v2421
        %v2455 = vunpack.c.l.b16 %v2422
        %v2456 = vunpack.c.l.b16 %v2423
        %v2457 = vunpack.c.l.b16 %v2424
        %v2458 = vunpack.c.l.b16 %v2425
        %v2459 = vunpack.c.l.b16 %v2426
        %v2460 = vunpack.c.l.b16 %v2427
        %v2461 = vunpack.c.l.b16 %v2428
        %v2462 = vunpack.c.l.b16 %v2429
        %v2463 = vunpack.c.l.b16 %v2430
        %v2464 = vunpack.c.l.b16 %v2431
        %v2465 = vunpack.c.l.b16 %v2432
        %v2466 = vunpack.c.l.b16 %v2433
        %v2467 = vunpack.c.l.b16 %v2434
        %v2468 = vunpack.c.l.b16 %v2435
        %v2469 = vpack.c.b16 %v2454, %v2453
        %v2470 = vpack.c.b16 %v2456, %v2455
        %v2471 = vpack.c.b16 %v2458, %v2457
        %v2472 = vpack.c.b16 %v2460, %v2459
        %v2473 = vpack.c.b16 %v2462, %v2461
        %v2474 = vpack.c.b16 %v2464, %v2463
        %v2475 = vpack.c.b16 %v2466, %v2465
        %v2476 = vpack.c.b16 %v2468, %v2467
        %2485 = vmatprep.subr.bf16.mxu0 0
        %2486 = vmatpush1.bf16.msra.mxu0 %v2469
        %2487 = vmatprep.subr.bf16.mxu0 0
        %2488 = vmatpush1.bf16.msra.mxu0 %v2470
        %2489 = vmatprep.subr.bf16.mxu0 0
        %2490 = vmatpush1.bf16.msra.mxu0 %v2471
        %2491 = vmatprep.subr.bf16.mxu0 0
        %2492 = vmatpush1.bf16.msra.mxu0 %v2472
        %2493 = vmatprep.subr.bf16.mxu0 0
        %2494 = vmatpush1.bf16.msra.mxu0 %v2473
        %2495 = vmatprep.subr.bf16.mxu0 0
        %2496 = vmatpush1.bf16.msra.mxu0 %v2474
        %2497 = vmatprep.subr.bf16.mxu0 0
        %2498 = vmatpush1.bf16.msra.mxu0 %v2475
        %2499 = vmatprep.subr.bf16.mxu0 0
        %2500 = vmatpush1.bf16.msra.mxu0 %v2476
        %2501 = vmatprep.subr.bf16.mxu0 0
        %2502 = vmatpush1.bf16.msra.mxu0 0
        %2503 = vmatprep.subr.bf16.mxu0 0
        %2504 = vmatpush1.bf16.msra.mxu0 0
        %2505 = vmatprep.subr.bf16.mxu0 0
        %2506 = vmatpush1.bf16.msra.mxu0 0
        %2507 = vmatprep.subr.bf16.mxu0 0
        %2508 = vmatpush1.bf16.msra.mxu0 0
        %2509 = vmatprep.subr.bf16.mxu0 0
        %2510 = vmatpush1.bf16.msra.mxu0 0
        %2511 = vmatprep.subr.bf16.mxu0 0
        %2512 = vmatpush1.bf16.msra.mxu0 0
        %2513 = vmatprep.subr.bf16.mxu0 0
        %2514 = vmatpush1.bf16.msra.mxu0 0
        %2515 = vmatprep.subr.bf16.mxu0 0
        %2516 = vmatpush1.bf16.msra.mxu0 0
        %2517 = vmatprep.mubr.bf16.mxu0 0
        %2518 = vmatmul.mubr.bf16.gmra.mrb[0].mxu0 %v2419
        %v2519 = vpop.f32.mrb[0].mxu0
        %v2520 = vadd.f32 %v2436, %v2519
        %v2521 = vpop.f32.mrb[0].mxu0
        %v2522 = vpop.f32.mrb[0].mxu0
        %v2523 = vpop.f32.mrb[0].mxu0
        %2524 = vdwg.mxu0
        %v2525 = vsel %vm2053, %v2520, -inf
        %2526 = vmax.xlane.f32.xlu0 %v2525
        %v2527 = vpop.xlane.xlu0 %2526
        %v2528 = vsub.f32 %v2520, %v2527
        %v2529 = vmul.f32 %v2528, 1.442695
        %v2530 = vpow.pop %v2529
        %v2531 = vsel %vm2053, %v2530, 0.0
        %2532 = vadd.xlane.f32.xlu0 %v2531
        %v2533 = vpop.xlane.xlu0 %2532
        %v2534 = vrcp.pop %v2533
        %v2535 = vmul.f32 %v2530, %v2534
        %v2536 = vmax.f32 %v2406, 0.0001
        %v2537 = vmax.f32 %v2407, 0.0001
        %v2538 = vmax.f32 %v2408, 0.0001
        %v2539 = vmax.f32 %v2409, 0.0001
        %v2540 = vmin.f32 %v2536, 1.0
        %v2541 = vmin.f32 %v2537, 1.0
        %v2542 = vmin.f32 %v2538, 1.0
        %v2543 = vmin.f32 %v2539, 1.0
        %v2544 = vlog2.pop %v2540
        %v2545 = vmul.f32 %v2544, 0.6931472
        %v2546 = vlog2.pop %v2541
        %v2547 = vmul.f32 %v2546, 0.6931472
        %v2548 = vlog2.pop %v2542
        %v2549 = vmul.f32 %v2548, 0.6931472
        %v2550 = vlog2.pop %v2543
        %v2551 = vmul.f32 %v2550, 0.6931472
        %v2552 = vmul.f32 %v2545, 0.6
        %v2553 = vmul.f32 %v2547, 0.6
        %v2554 = vmul.f32 %v2549, 0.6
        %v2555 = vmul.f32 %v2551, 0.6
        %v2556 = vmul.f32 %v2552, 1.442695
        %v2557 = vpow.pop %v2556
        %v2558 = vmul.f32 %v2553, 1.442695
        %v2559 = vpow.pop %v2558
        %v2560 = vmul.f32 %v2554, 1.442695
        %v2561 = vpow.pop %v2560
        %v2562 = vmul.f32 %v2555, 1.442695
        %v2563 = vpow.pop %v2562
        %v2564 = vsub.f32 %v2406, 0.5
        %v2565 = vsub.f32 %v2407, 0.5
        %v2566 = vsub.f32 %v2408, 0.5
        %v2567 = vsub.f32 %v2409, 0.5
        %v2568 = vmul.f32 %v2564, 1.5
        %v2569 = vmul.f32 %v2565, 1.5
        %v2570 = vmul.f32 %v2566, 1.5
        %v2571 = vmul.f32 %v2567, 1.5
        %v2572 = vadd.f32 %v2568, 0.5
        %v2573 = vadd.f32 %v2569, 0.5
        %v2574 = vadd.f32 %v2570, 0.5
        %v2575 = vadd.f32 %v2571, 0.5
        %v2576 = vmax.f32 %v2572, 0.0
        %v2577 = vmax.f32 %v2573, 0.0
        %v2578 = vmax.f32 %v2574, 0.0
        %v2579 = vmax.f32 %v2575, 0.0
        %v2580 = vmin.f32 %v2576, 1.0
        %v2581 = vmin.f32 %v2577, 1.0
        %v2582 = vmin.f32 %v2578, 1.0
        %v2583 = vmin.f32 %v2579, 1.0
        %v2584 = vmul.f32 %v2406, %v2117
        %v2585 = vmul.f32 %v2407, %v2117
        %v2586 = vmul.f32 %v2408, %v2117
        %v2587 = vmul.f32 %v2409, %v2117
        %s2589 = vtos %v2535
        %v2590 = vstv %s2589
        %v2592 = vmul.f32 %v2590, %v2406
        %v2593 = vmul.f32 %v2590, %v2407
        %v2594 = vmul.f32 %v2590, %v2408
        %v2595 = vmul.f32 %v2590, %v2409
        %2596 = vrot.lane.b32.xlu0 %v2535, 127
        %v2597 = vpop.permute.xlu0 %2596
        %s2598 = vtos %v2597
        %v2599 = vstv %s2598
        %v2601 = vmul.f32 %v2599, %v2557
        %v2602 = vmul.f32 %v2599, %v2559
        %v2603 = vmul.f32 %v2599, %v2561
        %v2604 = vmul.f32 %v2599, %v2563
        %v2605 = vadd.f32 %v2592, %v2601
        %v2606 = vadd.f32 %v2593, %v2602
        %v2607 = vadd.f32 %v2594, %v2603
        %v2608 = vadd.f32 %v2595, %v2604
        %2609 = vrot.lane.b32.xlu0 %v2535, 126
        %v2610 = vpop.permute.xlu0 %2609
        %s2611 = vtos %v2610
        %v2612 = vstv %s2611
        %v2614 = vmul.f32 %v2612, %v2580
        %v2615 = vmul.f32 %v2612, %v2581
        %v2616 = vmul.f32 %v2612, %v2582
        %v2617 = vmul.f32 %v2612, %v2583
        %v2618 = vadd.f32 %v2605, %v2614
        %v2619 = vadd.f32 %v2606, %v2615
        %v2620 = vadd.f32 %v2607, %v2616
        %v2621 = vadd.f32 %v2608, %v2617
        %2622 = vrot.lane.b32.xlu0 %v2535, 125
        %v2623 = vpop.permute.xlu0 %2622
        %s2624 = vtos %v2623
        %v2625 = vstv %s2624
        %v2627 = vmul.f32 %v2625, %v2584
        %v2628 = vmul.f32 %v2625, %v2585
        %v2629 = vmul.f32 %v2625, %v2586
        %v2630 = vmul.f32 %v2625, %v2587
        %v2631 = vadd.f32 %v2618, %v2627
        %v2632 = vadd.f32 %v2619, %v2628
        %v2633 = vadd.f32 %v2620, %v2629
        %v2634 = vadd.f32 %v2621, %v2630
        %v2635 = vmax.f32 %v2631, 0.0
        %v2636 = vmax.f32 %v2632, 0.0
        %v2637 = vmax.f32 %v2633, 0.0
        %v2638 = vmax.f32 %v2634, 0.0
        %v2639 = vmin.f32 %v2635, 1.0
        %v2640 = vmin.f32 %v2636, 1.0
        %v2641 = vmin.f32 %v2637, 1.0
        %v2642 = vmin.f32 %v2638, 1.0
        %2643 = vst.msk [vmem:[%s703] sm:$0xff] %vm876, %v2639
        %2644 = vst.msk [vmem:[%s703 + $0x8] sm:$0xff] %vm876, %v2640
        %2645 = vst.msk [vmem:[%s703 + $0x10] sm:$0xff] %vm876, %v2641
        %2646 = vst.msk [vmem:[%s703 + $0x18] sm:$0xff] %vm876, %v2642
        %v2647 = vrot.slane %v2302, 7
        %v2649 = vrot.slane %v2535, 6
        %v2651 = vsel %vm2053, %v2064, %v2647
        %vm2652 = vcmask 1041408
        %v2653 = vsel %vm2652, %v2651, %v2649
        %vm2654 = vcmask 1042432
        %v2655 = vsel %vm2654, %v2653, 0.0
        %2656 = vst [vmem:[%s707] sm:$0xff] %v2655
        %p2657 = scmp.lt.s32.totalorder %s35, 1
        %s2658 = scalar_select %p2657, %s35, 1
        %s2659 = smul.addr %s2658, 4
        %s2660 = smul.addr %s2659, 8
        %s2661 = scalar_lea.vmem %s17, %s2660
        %p2662 = scmp.lt.s32.totalorder %s35, 1
        %s2663 = scalar_select %p2662, %s35, 1
        %s2664 = smul.addr %s2663, 8
        %s2665 = scalar_lea.vmem %s18, %s2664
        // Predicated region
        $region125: #{yolov3_multi_gdip_forward.2} parent=87 // pred_check
          %p2666 = pneg %p415
        $region126: #{yolov3_multi_gdip_forward.2} parent=87 // pred_check_branch
          %2668 = sbr.rel (%p2666) target = $region128
        $region127: #{yolov3_multi_gdip_forward.2} parent=87 // pred_region
          _
        $region128: #{yolov3_multi_gdip_forward.2} parent=87 // pred_fallthru
          _
        // Predicated region
        $region129: #{yolov3_multi_gdip_forward.2} parent=87 // pred_check
          %p2669 = pneg %p441
        $region130: #{yolov3_multi_gdip_forward.2} parent=87 // pred_check_branch
          %2671 = sbr.rel (%p2669) target = $region132
        $region131: #{yolov3_multi_gdip_forward.2} parent=87 // pred_region
          _
        $region132: #{yolov3_multi_gdip_forward.2} parent=87 // pred_fallthru
          _
      $region88: #{yolov3_multi_gdip_forward.2} parent=5 // pred_fallthru
        _
      %p2672 = scmp.le.s32.totalorder 2, %s30
      // Predicated region
      $region133: #{yolov3_multi_gdip_forward.2} parent=5 // pred_check
        %p2673 = pneg %p2672
      $region134: #{yolov3_multi_gdip_forward.2} parent=5 // pred_check_branch
        %2675 = sbr.rel (%p2673) target = $region136
      $region135: #{yolov3_multi_gdip_forward.2} parent=5 // pred_region
        %s2676 = ssub.s32 %s30, 2
        // Predicated region
        $region137: #{yolov3_multi_gdip_forward.2} parent=135 // pred_check
          %p2677 = pneg %p421
        $region138: #{yolov3_multi_gdip_forward.2} parent=135 // pred_check_branch
          %2679 = sbr.rel (%p2677) target = $region140
        $region139: #{yolov3_multi_gdip_forward.2} parent=135 // pred_region
          %p2680 = scmp.lt.s32.totalorder %s36, 1
          %s2681 = scalar_select %p2680, %s36, 1
          %s2682 = smul.addr %s2681, 4
          %s2683 = smul.addr %s2682, 8
          %s2684 = scalar_lea.vmem %s17, %s2683
        $region140: #{yolov3_multi_gdip_forward.2} parent=135 // pred_fallthru
          _
        // Predicated region
        $region141: #{yolov3_multi_gdip_forward.2} parent=135 // pred_check
          %p2685 = pneg %p447
        $region142: #{yolov3_multi_gdip_forward.2} parent=135 // pred_check_branch
          %2687 = sbr.rel (%p2685) target = $region144
        $region143: #{yolov3_multi_gdip_forward.2} parent=135 // pred_region
          %p2688 = scmp.lt.s32.totalorder %s36, 1
          %s2689 = scalar_select %p2688, %s36, 1
          %s2690 = smul.addr %s2689, 8
          %s2691 = scalar_lea.vmem %s18, %s2690
        $region144: #{yolov3_multi_gdip_forward.2} parent=135 // pred_fallthru
          _
      $region136: #{yolov3_multi_gdip_forward.2} parent=5 // pred_fallthru
        _
    $region6: #{yolov3_multi_gdip_forward.2} parent=1 // loop_footer
      %s34 = sadd.s32 1, %s30
    $region7: #{yolov3_multi_gdip_forward.2} parent=1 // loop_footer_branch
      %29 = sbr.rel target = $region3
    $region8: #{yolov3_multi_gdip_forward.2} parent=1 // loop_exit
      _
    %2692 = vsyncpa [#allocation3], 1
    %s2693 = scalar_lea.sflag [#allocation3], 1
    %2694 = vsyncpa %s2693, 1
    %2695 = vsyncpa [#allocation5], 1
    %2696 = vsyncpa [#allocation8], 1
    %2697 = vsyncpa [#allocation11], 1
    %2698 = vsyncpa [#allocation14], 1

// kernel: yolov3_multi_gdip_forward.3
$region0: #{yolov3_multi_gdip_forward.3}
  #allocation0 [shape = 'u32[]', space=smem, size = 0x4, offset = 0x4, fixed_abs, tag = 'smem constant byte address 0x4 - core index']
  #allocation1 [shape = 'u32[144,128]{1,0:T(1,128)}', space=vmem, size = 0x12000, scoped, tag = 'internal scratch']
  %s0 = inlined_call_operand.smem [shape: u32[34], index: -1, kind: input, shape index: {}]
  %s1 = sld [smem:[%s0]]
  %s2 = scalar_lea.smem %s0, 1
  %s3 = sld [smem:[%s2]]
  %s4 = scalar_lea.smem %s0, 2
  %s5 = sld [smem:[%s4]]
  %s6 = scalar_lea.smem %s0, 3
  %s7 = sld [smem:[%s6]]
  %s8 = scalar_lea.smem %s0, 4
  %s9 = sld [smem:[%s8]]
  %s10 = scalar_lea.smem %s0, 5
  %s11 = sld [smem:[%s10]]
  %s12 = scalar_lea.smem %s0, 6
  %s13 = sld [smem:[%s12]]
  %s14 = scalar_lea.smem %s0, 7
  %s15 = sld [smem:[%s14]]
  %s16 = scalar_lea.smem %s0, 8
  %s17 = sld [smem:[%s16]]
  %s18 = scalar_lea.smem %s0, 9
  %s19 = sld [smem:[%s18]]
  %s20 = scalar_lea.smem %s0, 10
  %s21 = sld [smem:[%s20]]
  %s22 = scalar_lea.smem %s0, 11
  %s23 = sld [smem:[%s22]]
  %s24 = scalar_lea.smem %s0, 12
  %s25 = sld [smem:[%s24]]
  %s26 = scalar_lea.smem %s0, 13
  %s27 = sld [smem:[%s26]]
  %s28 = scalar_lea.smem %s0, 14
  %s29 = sld [smem:[%s28]]
  %s30 = scalar_lea.smem %s0, 15
  %s31 = sld [smem:[%s30]]
  %s32 = scalar_lea.smem %s0, 16
  %s33 = sld [smem:[%s32]]
  %s34 = scalar_lea.smem %s0, 17
  %s35 = sld [smem:[%s34]]
  %s36 = scalar_lea.smem %s0, 18
  %s37 = sld [smem:[%s36]]
  %s38 = scalar_lea.smem %s0, 19
  %s39 = sld [smem:[%s38]]
  %s40 = scalar_lea.smem %s0, 20
  %s41 = sld [smem:[%s40]]
  %s42 = scalar_lea.smem %s0, 21
  %s43 = sld [smem:[%s42]]
  %s44 = scalar_lea.smem %s0, 22
  %s45 = sld [smem:[%s44]]
  %s46 = scalar_lea.smem %s0, 23
  %s47 = sld [smem:[%s46]]
  %s48 = scalar_lea.smem %s0, 24
  %s49 = sld [smem:[%s48]]
  %s50 = scalar_lea.smem %s0, 25
  %s51 = sld [smem:[%s50]]
  %s52 = scalar_lea.smem %s0, 26
  %s53 = sld [smem:[%s52]]
  %s54 = scalar_lea.smem %s0, 27
  %s55 = sld [smem:[%s54]]
  %s56 = scalar_lea.smem %s0, 28
  %s57 = sld [smem:[%s56]]
  %s58 = scalar_lea.smem %s0, 29
  %s59 = sld [smem:[%s58]]
  %s60 = scalar_lea.smem %s0, 30
  %s61 = sld [smem:[%s60]]
  %s62 = scalar_lea.smem %s0, 31
  %s63 = sld [smem:[%s62]]
  %s64 = scalar_lea.smem %s0, 32
  %s65 = sld [smem:[%s64]]
  %s66 = scalar_lea.smem %s0, 33
  %s67 = sld [smem:[%s66]]
  %68 = xla_tuple %s57, %s59, %s61, %s63, %s65, %s67
  %s69 = sld [smem:[#allocation0]]
  $region233: #{yolov3_multi_gdip_forward.3} parent=0
    _
  %s71 = ssub.s32 1, %s69
  %s72 = scalar_select 0, %s71, %s69
  $region1: #{yolov3_multi_gdip_forward.3} parent=0
    #allocation2 [shape = 'u8[1024]{0}', space=vmem, size = 0x400, scoped, tag = 'input window, operand 3, single buffered']
    #allocation3 [shape = 's32[2]{0}', space=sflag, size = 0x8, scoped, tag = 'scoped memory for yolov3_multi_gdip_forward.3']
    #allocation4 [shape = 'u8[1024]{0}', space=vmem, size = 0x400, scoped, tag = 'input window, operand 6, single buffered']
    #allocation5 [shape = 's32[1]{0}', space=sflag, size = 0x4, scoped, tag = 'scoped memory for yolov3_multi_gdip_forward.3']
    #allocation6 [shape = 'u8[1024]{0}', space=vmem, size = 0x400, scoped, tag = 'input window, operand 9, single buffered']
    #allocation7 [shape = 'u8[1024]{0}', space=vmem, size = 0x400, scoped, tag = 'input window, operand 12, single buffered']
    #allocation8 [shape = 's32[1]{0}', space=sflag, size = 0x4, scoped, tag = 'scoped memory for yolov3_multi_gdip_forward.3']
    #allocation9 [shape = 'u8[1024]{0}', space=vmem, size = 0x400, scoped, tag = 'input window, operand 15, single buffered']
    #allocation10 [shape = 'u8[147456]{0}', space=vmem, size = 0x24000, scoped, tag = 'input window, operand 17, single buffered']
    #allocation11 [shape = 's32[1]{0}', space=sflag, size = 0x4, scoped, tag = 'scoped memory for yolov3_multi_gdip_forward.3']
    #allocation12 [shape = 'u8[512]{0}', space=vmem, size = 0x400, scoped, tag = 'input window, operand 20, single buffered']
    #allocation13 [shape = 'u8[8192]{0}', space=vmem, size = 0x2000, scoped, tag = 'input window, operand 21, single buffered']
    #allocation14 [shape = 's32[1]{0}', space=sflag, size = 0x4, scoped, tag = 'scoped memory for yolov3_multi_gdip_forward.3']
    #allocation15 [shape = 'u8[512]{0}', space=vmem, size = 0x400, scoped, tag = 'input window, operand 23, single buffered']
    #allocation16 [shape = 'u8[4096]{0}', space=vmem, size = 0x1000, scoped, tag = 'input window, operand 24, single buffered']
    #allocation17 [shape = 's32[1]{0}', space=sflag, size = 0x4, scoped, tag = 'scoped memory for yolov3_multi_gdip_forward.3']
    #allocation18 [shape = 'u8[512]{0}', space=vmem, size = 0x400, scoped, tag = 'input window, operand 26, single buffered']
    #allocation19 [shape = 'u8[2048]{0}', space=vmem, size = 0x800, scoped, tag = 'input window, operand 27, single buffered']
    #allocation20 [shape = 's32[1]{0}', space=sflag, size = 0x4, scoped, tag = 'scoped memory for yolov3_multi_gdip_forward.3']
    %73 = vsyncpa [#allocation3], 0
    %74 = vsyncpa [#allocation5], 0
    %75 = vsyncpa [#allocation8], 0
    %76 = vsyncpa [#allocation11], 0
    %77 = vsyncpa [#allocation14], 0
    %78 = vsyncpa [#allocation17], 0
    %79 = vsyncpa [#allocation20], 0
    loop: start=0, step=1, limit=4
    $region2: #{yolov3_multi_gdip_forward.3} parent=1 // loop_pre_header
      _
    $region3: #{yolov3_multi_gdip_forward.3} parent=1 // loop_header
      %s81 = sphi 0, %s85
      %p82 = scmp.ge.s32.totalorder %s81, 4
      %s91 = sphi 0, %s93
      %s94 = sphi 0, %s91
      %s95 = sphi 0, %s94
      %s111 = sphi 0, %s95
      %s115 = sphi 0, %s115
      %s117 = sphi 0, %s115
      %s118 = sphi 0, %s117
      %s132 = sphi 0, %s118
      %s136 = sphi 0, %s136
      %s138 = sphi 0, %s136
      %s139 = sphi 0, %s138
      %s153 = sphi 0, %s139
      %s157 = sphi 0, %s157
      %s159 = sphi 0, %s157
      %s160 = sphi 0, %s159
      %s174 = sphi 0, %s160
      %s178 = sphi 0, %s178
      %s180 = sphi 0, %s178
      %s181 = sphi 0, %s180
      %s195 = sphi 0, %s181
      %s199 = sphi 0, %s199
      %s201 = sphi 0, %s199
      %s202 = sphi 0, %s201
      %s216 = sphi 0, %s202
      %s220 = sphi 0, %s220
      %s222 = sphi 0, %s220
      %s223 = sphi 0, %s222
      %s237 = sphi 0, %s223
      %s241 = sphi 0, %s241
      %s243 = sphi 0, %s241
      %s244 = sphi 0, %s243
      %s258 = sphi 0, %s244
      %s262 = sphi 0, %s262
      %s264 = sphi 0, %s262
      %s265 = sphi 0, %s264
      %s279 = sphi 0, %s265
      %s283 = sphi 0, %s283
      %s285 = sphi 0, %s283
      %s286 = sphi 0, %s285
      %s300 = sphi 0, %s286
      %s304 = sphi 0, %s304
      %s306 = sphi 0, %s304
      %s307 = sphi 0, %s306
      %s321 = sphi 0, %s307
      %s325 = sphi 0, %s325
      %s327 = sphi 0, %s325
      %s328 = sphi 0, %s327
      %s342 = sphi 0, %s328
      %s346 = sphi 0, %s346
      %s348 = sphi 0, %s346
      %s349 = sphi 0, %s348
      %s363 = sphi 0, %s349
      %s367 = sphi 0, %s367
      %s369 = sphi 0, %s367
      %s370 = sphi 0, %s369
      %s384 = sphi 0, %s370
      %s388 = sphi 0, %s388
      %s390 = sphi 0, %s388
      %s391 = sphi 0, %s390
      %s405 = sphi 0, %s391
      %s409 = sphi 0, %s409
      %s411 = sphi 0, %s409
      %s412 = sphi 0, %s411
      %s426 = sphi 0, %s412
      %s430 = sphi 0, %s430
      %s432 = sphi 0, %s430
      %s433 = sphi 0, %s432
      %s447 = sphi 0, %s433
      %s451 = sphi 0, %s451
      %s453 = sphi 0, %s451
      %s454 = sphi 0, %s453
      %s468 = sphi 0, %s454
      %s472 = sphi 0, %s472
      %s474 = sphi 0, %s472
      %s475 = sphi 0, %s474
      %s489 = sphi 0, %s475
      %s493 = sphi 0, %s493
      %s495 = sphi 0, %s493
      %s496 = sphi 0, %s495
      %s510 = sphi 0, %s496
      %s514 = sphi 0, %s514
      %s516 = sphi 0, %s514
      %s517 = sphi 0, %s516
      %s531 = sphi 0, %s517
      %s535 = sphi 0, %s535
      %s537 = sphi 0, %s535
      %s538 = sphi 0, %s537
      %s552 = sphi 0, %s538
      %s556 = sphi 0, %s556
      %s558 = sphi 0, %s556
      %s559 = sphi 0, %s558
      %s573 = sphi 0, %s559
      %s577 = sphi 0, %s577
      %s579 = sphi 0, %s577
      %s580 = sphi 0, %s579
      %s594 = sphi 0, %s580
      %s598 = sphi 0, %s598
      %s600 = sphi 0, %s598
      %s601 = sphi 0, %s600
      %s615 = sphi 0, %s601
      %s619 = sphi 0, %s619
      %s621 = sphi 0, %s619
      %s622 = sphi 0, %s621
      %s636 = sphi 0, %s622
      %s640 = sphi 0, %s640
      %s642 = sphi 0, %s640
      %s643 = sphi 0, %s642
      %s657 = sphi 0, %s643
      %s661 = sphi 0, %s661
      %s663 = sphi 0, %s661
      %s664 = sphi 0, %s663
      %s678 = sphi 0, %s664
      %s684 = sphi 0, %s686
      %s687 = sphi 0, %s684
      %s688 = sphi 0, %s687
      %s704 = sphi 0, %s688
      %s710 = sphi 0, %s712
      %s713 = sphi 0, %s710
      %s714 = sphi 0, %s713
      %s730 = sphi 0, %s714
      %s736 = sphi 0, %s738
      %s739 = sphi 0, %s736
      %s740 = sphi 0, %s739
      %s756 = sphi 0, %s740
      %s762 = sphi 0, %s764
      %s765 = sphi 0, %s762
      %s766 = sphi 0, %s765
      %s782 = sphi 0, %s766
      %s788 = sphi 0, %s790
      %s791 = sphi 0, %s788
      %s792 = sphi 0, %s791
      %s808 = sphi 0, %s792
      %s814 = sphi 0, %s816
      %s817 = sphi 0, %s814
      %s818 = sphi 0, %s817
      %s834 = sphi 0, %s818
    $region4: #{yolov3_multi_gdip_forward.3} parent=1 // loop_header_branch
      %84 = sbr.rel (%p82) target = $region8
    $region5: #{yolov3_multi_gdip_forward.3} parent=1 // loop_body
      %s86 = ssub.s32 %s81, 1
      %s87 = ssub.s32 %s81, 2
      %s88 = sadd.s32 %s81, 1
      %s89 = ssub.s32 %s81, %s88
      %p90 = scmp.eq.s32.totalorder %s89, 0
      %s92 = sadd.s32 %s91, 1
      %s93 = scalar_select %p90, %s91, %s92
      %p96 = pneg %p90
      %p97 = scmp.eq.s32.totalorder %s81, 1
      %p98 = por %p96, %p97
      %p99 = scmp.ne.s32.totalorder %s91, %s94
      %p100 = scmp.eq.s32.totalorder %s81, 0
      %p101 = por %p99, %p100
      %p102 = scmp.ne.s32.totalorder %s91, %s94
      %p103 = scmp.eq.s32.totalorder %s86, 1
      %p104 = por %p102, %p103
      %p105 = scmp.ne.s32.totalorder %s94, %s95
      %p106 = scmp.eq.s32.totalorder %s86, 0
      %p107 = por %p105, %p106
      %p108 = scmp.ne.s32.totalorder %s94, %s95
      %p109 = scmp.eq.s32.totalorder %s87, 1
      %p110 = por %p108, %p109
      %p112 = scmp.ne.s32.totalorder %s95, %s111
      %p113 = scmp.eq.s32.totalorder %s87, 0
      %p114 = por %p112, %p113
      %s116 = sadd.s32 %s115, 1
      %p119 = scmp.eq.s32.totalorder %s81, 1
      %p120 = scmp.ne.s32.totalorder %s115, %s117
      %p121 = scmp.eq.s32.totalorder %s81, 0
      %p122 = por %p120, %p121
      %p123 = scmp.ne.s32.totalorder %s115, %s117
      %p124 = scmp.eq.s32.totalorder %s86, 1
      %p125 = por %p123, %p124
      %p126 = scmp.ne.s32.totalorder %s117, %s118
      %p127 = scmp.eq.s32.totalorder %s86, 0
      %p128 = por %p126, %p127
      %p129 = scmp.ne.s32.totalorder %s117, %s118
      %p130 = scmp.eq.s32.totalorder %s87, 1
      %p131 = por %p129, %p130
      %p133 = scmp.ne.s32.totalorder %s118, %s132
      %p134 = scmp.eq.s32.totalorder %s87, 0
      %p135 = por %p133, %p134
      %s137 = sadd.s32 %s136, 1
      %p140 = scmp.eq.s32.totalorder %s81, 1
      %p141 = scmp.ne.s32.totalorder %s136, %s138
      %p142 = scmp.eq.s32.totalorder %s81, 0
      %p143 = por %p141, %p142
      %p144 = scmp.ne.s32.totalorder %s136, %s138
      %p145 = scmp.eq.s32.totalorder %s86, 1
      %p146 = por %p144, %p145
      %p147 = scmp.ne.s32.totalorder %s138, %s139
      %p148 = scmp.eq.s32.totalorder %s86, 0
      %p149 = por %p147, %p148
      %p150 = scmp.ne.s32.totalorder %s138, %s139
      %p151 = scmp.eq.s32.totalorder %s87, 1
      %p152 = por %p150, %p151
      %p154 = scmp.ne.s32.totalorder %s139, %s153
      %p155 = scmp.eq.s32.totalorder %s87, 0
      %p156 = por %p154, %p155
      %s158 = sadd.s32 %s157, 1
      %p161 = scmp.eq.s32.totalorder %s81, 1
      %p162 = scmp.ne.s32.totalorder %s157, %s159
      %p163 = scmp.eq.s32.totalorder %s81, 0
      %p164 = por %p162, %p163
      %p165 = scmp.ne.s32.totalorder %s157, %s159
      %p166 = scmp.eq.s32.totalorder %s86, 1
      %p167 = por %p165, %p166
      %p168 = scmp.ne.s32.totalorder %s159, %s160
      %p169 = scmp.eq.s32.totalorder %s86, 0
      %p170 = por %p168, %p169
      %p171 = scmp.ne.s32.totalorder %s159, %s160
      %p172 = scmp.eq.s32.totalorder %s87, 1
      %p173 = por %p171, %p172
      %p175 = scmp.ne.s32.totalorder %s160, %s174
      %p176 = scmp.eq.s32.totalorder %s87, 0
      %p177 = por %p175, %p176
      %s179 = sadd.s32 %s178, 1
      %p182 = scmp.eq.s32.totalorder %s81, 1
      %p183 = scmp.ne.s32.totalorder %s178, %s180
      %p184 = scmp.eq.s32.totalorder %s81, 0
      %p185 = por %p183, %p184
      %p186 = scmp.ne.s32.totalorder %s178, %s180
      %p187 = scmp.eq.s32.totalorder %s86, 1
      %p188 = por %p186, %p187
      %p189 = scmp.ne.s32.totalorder %s180, %s181
      %p190 = scmp.eq.s32.totalorder %s86, 0
      %p191 = por %p189, %p190
      %p192 = scmp.ne.s32.totalorder %s180, %s181
      %p193 = scmp.eq.s32.totalorder %s87, 1
      %p194 = por %p192, %p193
      %p196 = scmp.ne.s32.totalorder %s181, %s195
      %p197 = scmp.eq.s32.totalorder %s87, 0
      %p198 = por %p196, %p197
      %s200 = sadd.s32 %s199, 1
      %p203 = scmp.eq.s32.totalorder %s81, 1
      %p204 = scmp.ne.s32.totalorder %s199, %s201
      %p205 = scmp.eq.s32.totalorder %s81, 0
      %p206 = por %p204, %p205
      %p207 = scmp.ne.s32.totalorder %s199, %s201
      %p208 = scmp.eq.s32.totalorder %s86, 1
      %p209 = por %p207, %p208
      %p210 = scmp.ne.s32.totalorder %s201, %s202
      %p211 = scmp.eq.s32.totalorder %s86, 0
      %p212 = por %p210, %p211
      %p213 = scmp.ne.s32.totalorder %s201, %s202
      %p214 = scmp.eq.s32.totalorder %s87, 1
      %p215 = por %p213, %p214
      %p217 = scmp.ne.s32.totalorder %s202, %s216
      %p218 = scmp.eq.s32.totalorder %s87, 0
      %p219 = por %p217, %p218
      %s221 = sadd.s32 %s220, 1
      %p224 = scmp.eq.s32.totalorder %s81, 1
      %p225 = scmp.ne.s32.totalorder %s220, %s222
      %p226 = scmp.eq.s32.totalorder %s81, 0
      %p227 = por %p225, %p226
      %p228 = scmp.ne.s32.totalorder %s220, %s222
      %p229 = scmp.eq.s32.totalorder %s86, 1
      %p230 = por %p228, %p229
      %p231 = scmp.ne.s32.totalorder %s222, %s223
      %p232 = scmp.eq.s32.totalorder %s86, 0
      %p233 = por %p231, %p232
      %p234 = scmp.ne.s32.totalorder %s222, %s223
      %p235 = scmp.eq.s32.totalorder %s87, 1
      %p236 = por %p234, %p235
      %p238 = scmp.ne.s32.totalorder %s223, %s237
      %p239 = scmp.eq.s32.totalorder %s87, 0
      %p240 = por %p238, %p239
      %s242 = sadd.s32 %s241, 1
      %p245 = scmp.eq.s32.totalorder %s81, 1
      %p246 = scmp.ne.s32.totalorder %s241, %s243
      %p247 = scmp.eq.s32.totalorder %s81, 0
      %p248 = por %p246, %p247
      %p249 = scmp.ne.s32.totalorder %s241, %s243
      %p250 = scmp.eq.s32.totalorder %s86, 1
      %p251 = por %p249, %p250
      %p252 = scmp.ne.s32.totalorder %s243, %s244
      %p253 = scmp.eq.s32.totalorder %s86, 0
      %p254 = por %p252, %p253
      %p255 = scmp.ne.s32.totalorder %s243, %s244
      %p256 = scmp.eq.s32.totalorder %s87, 1
      %p257 = por %p255, %p256
      %p259 = scmp.ne.s32.totalorder %s244, %s258
      %p260 = scmp.eq.s32.totalorder %s87, 0
      %p261 = por %p259, %p260
      %s263 = sadd.s32 %s262, 1
      %p266 = scmp.eq.s32.totalorder %s81, 1
      %p267 = scmp.ne.s32.totalorder %s262, %s264
      %p268 = scmp.eq.s32.totalorder %s81, 0
      %p269 = por %p267, %p268
      %p270 = scmp.ne.s32.totalorder %s262, %s264
      %p271 = scmp.eq.s32.totalorder %s86, 1
      %p272 = por %p270, %p271
      %p273 = scmp.ne.s32.totalorder %s264, %s265
      %p274 = scmp.eq.s32.totalorder %s86, 0
      %p275 = por %p273, %p274
      %p276 = scmp.ne.s32.totalorder %s264, %s265
      %p277 = scmp.eq.s32.totalorder %s87, 1
      %p278 = por %p276, %p277
      %p280 = scmp.ne.s32.totalorder %s265, %s279
      %p281 = scmp.eq.s32.totalorder %s87, 0
      %p282 = por %p280, %p281
      %s284 = sadd.s32 %s283, 1
      %p287 = scmp.eq.s32.totalorder %s81, 1
      %p288 = scmp.ne.s32.totalorder %s283, %s285
      %p289 = scmp.eq.s32.totalorder %s81, 0
      %p290 = por %p288, %p289
      %p291 = scmp.ne.s32.totalorder %s283, %s285
      %p292 = scmp.eq.s32.totalorder %s86, 1
      %p293 = por %p291, %p292
      %p294 = scmp.ne.s32.totalorder %s285, %s286
      %p295 = scmp.eq.s32.totalorder %s86, 0
      %p296 = por %p294, %p295
      %p297 = scmp.ne.s32.totalorder %s285, %s286
      %p298 = scmp.eq.s32.totalorder %s87, 1
      %p299 = por %p297, %p298
      %p301 = scmp.ne.s32.totalorder %s286, %s300
      %p302 = scmp.eq.s32.totalorder %s87, 0
      %p303 = por %p301, %p302
      %s305 = sadd.s32 %s304, 1
      %p308 = scmp.eq.s32.totalorder %s81, 1
      %p309 = scmp.ne.s32.totalorder %s304, %s306
      %p310 = scmp.eq.s32.totalorder %s81, 0
      %p311 = por %p309, %p310
      %p312 = scmp.ne.s32.totalorder %s304, %s306
      %p313 = scmp.eq.s32.totalorder %s86, 1
      %p314 = por %p312, %p313
      %p315 = scmp.ne.s32.totalorder %s306, %s307
      %p316 = scmp.eq.s32.totalorder %s86, 0
      %p317 = por %p315, %p316
      %p318 = scmp.ne.s32.totalorder %s306, %s307
      %p319 = scmp.eq.s32.totalorder %s87, 1
      %p320 = por %p318, %p319
      %p322 = scmp.ne.s32.totalorder %s307, %s321
      %p323 = scmp.eq.s32.totalorder %s87, 0
      %p324 = por %p322, %p323
      %s326 = sadd.s32 %s325, 1
      %p329 = scmp.eq.s32.totalorder %s81, 1
      %p330 = scmp.ne.s32.totalorder %s325, %s327
      %p331 = scmp.eq.s32.totalorder %s81, 0
      %p332 = por %p330, %p331
      %p333 = scmp.ne.s32.totalorder %s325, %s327
      %p334 = scmp.eq.s32.totalorder %s86, 1
      %p335 = por %p333, %p334
      %p336 = scmp.ne.s32.totalorder %s327, %s328
      %p337 = scmp.eq.s32.totalorder %s86, 0
      %p338 = por %p336, %p337
      %p339 = scmp.ne.s32.totalorder %s327, %s328
      %p340 = scmp.eq.s32.totalorder %s87, 1
      %p341 = por %p339, %p340
      %p343 = scmp.ne.s32.totalorder %s328, %s342
      %p344 = scmp.eq.s32.totalorder %s87, 0
      %p345 = por %p343, %p344
      %s347 = sadd.s32 %s346, 1
      %p350 = scmp.eq.s32.totalorder %s81, 1
      %p351 = scmp.ne.s32.totalorder %s346, %s348
      %p352 = scmp.eq.s32.totalorder %s81, 0
      %p353 = por %p351, %p352
      %p354 = scmp.ne.s32.totalorder %s346, %s348
      %p355 = scmp.eq.s32.totalorder %s86, 1
      %p356 = por %p354, %p355
      %p357 = scmp.ne.s32.totalorder %s348, %s349
      %p358 = scmp.eq.s32.totalorder %s86, 0
      %p359 = por %p357, %p358
      %p360 = scmp.ne.s32.totalorder %s348, %s349
      %p361 = scmp.eq.s32.totalorder %s87, 1
      %p362 = por %p360, %p361
      %p364 = scmp.ne.s32.totalorder %s349, %s363
      %p365 = scmp.eq.s32.totalorder %s87, 0
      %p366 = por %p364, %p365
      %s368 = sadd.s32 %s367, 1
      %p371 = scmp.eq.s32.totalorder %s81, 1
      %p372 = scmp.ne.s32.totalorder %s367, %s369
      %p373 = scmp.eq.s32.totalorder %s81, 0
      %p374 = por %p372, %p373
      %p375 = scmp.ne.s32.totalorder %s367, %s369
      %p376 = scmp.eq.s32.totalorder %s86, 1
      %p377 = por %p375, %p376
      %p378 = scmp.ne.s32.totalorder %s369, %s370
      %p379 = scmp.eq.s32.totalorder %s86, 0
      %p380 = por %p378, %p379
      %p381 = scmp.ne.s32.totalorder %s369, %s370
      %p382 = scmp.eq.s32.totalorder %s87, 1
      %p383 = por %p381, %p382
      %p385 = scmp.ne.s32.totalorder %s370, %s384
      %p386 = scmp.eq.s32.totalorder %s87, 0
      %p387 = por %p385, %p386
      %s389 = sadd.s32 %s388, 1
      %p392 = scmp.eq.s32.totalorder %s81, 1
      %p393 = scmp.ne.s32.totalorder %s388, %s390
      %p394 = scmp.eq.s32.totalorder %s81, 0
      %p395 = por %p393, %p394
      %p396 = scmp.ne.s32.totalorder %s388, %s390
      %p397 = scmp.eq.s32.totalorder %s86, 1
      %p398 = por %p396, %p397
      %p399 = scmp.ne.s32.totalorder %s390, %s391
      %p400 = scmp.eq.s32.totalorder %s86, 0
      %p401 = por %p399, %p400
      %p402 = scmp.ne.s32.totalorder %s390, %s391
      %p403 = scmp.eq.s32.totalorder %s87, 1
      %p404 = por %p402, %p403
      %p406 = scmp.ne.s32.totalorder %s391, %s405
      %p407 = scmp.eq.s32.totalorder %s87, 0
      %p408 = por %p406, %p407
      %s410 = sadd.s32 %s409, 1
      %p413 = scmp.eq.s32.totalorder %s81, 1
      %p414 = scmp.ne.s32.totalorder %s409, %s411
      %p415 = scmp.eq.s32.totalorder %s81, 0
      %p416 = por %p414, %p415
      %p417 = scmp.ne.s32.totalorder %s409, %s411
      %p418 = scmp.eq.s32.totalorder %s86, 1
      %p419 = por %p417, %p418
      %p420 = scmp.ne.s32.totalorder %s411, %s412
      %p421 = scmp.eq.s32.totalorder %s86, 0
      %p422 = por %p420, %p421
      %p423 = scmp.ne.s32.totalorder %s411, %s412
      %p424 = scmp.eq.s32.totalorder %s87, 1
      %p425 = por %p423, %p424
      %p427 = scmp.ne.s32.totalorder %s412, %s426
      %p428 = scmp.eq.s32.totalorder %s87, 0
      %p429 = por %p427, %p428
      %s431 = sadd.s32 %s430, 1
      %p434 = scmp.eq.s32.totalorder %s81, 1
      %p435 = scmp.ne.s32.totalorder %s430, %s432
      %p436 = scmp.eq.s32.totalorder %s81, 0
      %p437 = por %p435, %p436
      %p438 = scmp.ne.s32.totalorder %s430, %s432
      %p439 = scmp.eq.s32.totalorder %s86, 1
      %p440 = por %p438, %p439
      %p441 = scmp.ne.s32.totalorder %s432, %s433
      %p442 = scmp.eq.s32.totalorder %s86, 0
      %p443 = por %p441, %p442
      %p444 = scmp.ne.s32.totalorder %s432, %s433
      %p445 = scmp.eq.s32.totalorder %s87, 1
      %p446 = por %p444, %p445
      %p448 = scmp.ne.s32.totalorder %s433, %s447
      %p449 = scmp.eq.s32.totalorder %s87, 0
      %p450 = por %p448, %p449
      %s452 = sadd.s32 %s451, 1
      %p455 = scmp.eq.s32.totalorder %s81, 1
      %p456 = scmp.ne.s32.totalorder %s451, %s453
      %p457 = scmp.eq.s32.totalorder %s81, 0
      %p458 = por %p456, %p457
      %p459 = scmp.ne.s32.totalorder %s451, %s453
      %p460 = scmp.eq.s32.totalorder %s86, 1
      %p461 = por %p459, %p460
      %p462 = scmp.ne.s32.totalorder %s453, %s454
      %p463 = scmp.eq.s32.totalorder %s86, 0
      %p464 = por %p462, %p463
      %p465 = scmp.ne.s32.totalorder %s453, %s454
      %p466 = scmp.eq.s32.totalorder %s87, 1
      %p467 = por %p465, %p466
      %p469 = scmp.ne.s32.totalorder %s454, %s468
      %p470 = scmp.eq.s32.totalorder %s87, 0
      %p471 = por %p469, %p470
      %s473 = sadd.s32 %s472, 1
      %p476 = scmp.eq.s32.totalorder %s81, 1
      %p477 = scmp.ne.s32.totalorder %s472, %s474
      %p478 = scmp.eq.s32.totalorder %s81, 0
      %p479 = por %p477, %p478
      %p480 = scmp.ne.s32.totalorder %s472, %s474
      %p481 = scmp.eq.s32.totalorder %s86, 1
      %p482 = por %p480, %p481
      %p483 = scmp.ne.s32.totalorder %s474, %s475
      %p484 = scmp.eq.s32.totalorder %s86, 0
      %p485 = por %p483, %p484
      %p486 = scmp.ne.s32.totalorder %s474, %s475
      %p487 = scmp.eq.s32.totalorder %s87, 1
      %p488 = por %p486, %p487
      %p490 = scmp.ne.s32.totalorder %s475, %s489
      %p491 = scmp.eq.s32.totalorder %s87, 0
      %p492 = por %p490, %p491
      %s494 = sadd.s32 %s493, 1
      %p497 = scmp.eq.s32.totalorder %s81, 1
      %p498 = scmp.ne.s32.totalorder %s493, %s495
      %p499 = scmp.eq.s32.totalorder %s81, 0
      %p500 = por %p498, %p499
      %p501 = scmp.ne.s32.totalorder %s493, %s495
      %p502 = scmp.eq.s32.totalorder %s86, 1
      %p503 = por %p501, %p502
      %p504 = scmp.ne.s32.totalorder %s495, %s496
      %p505 = scmp.eq.s32.totalorder %s86, 0
      %p506 = por %p504, %p505
      %p507 = scmp.ne.s32.totalorder %s495, %s496
      %p508 = scmp.eq.s32.totalorder %s87, 1
      %p509 = por %p507, %p508
      %p511 = scmp.ne.s32.totalorder %s496, %s510
      %p512 = scmp.eq.s32.totalorder %s87, 0
      %p513 = por %p511, %p512
      %s515 = sadd.s32 %s514, 1
      %p518 = scmp.eq.s32.totalorder %s81, 1
      %p519 = scmp.ne.s32.totalorder %s514, %s516
      %p520 = scmp.eq.s32.totalorder %s81, 0
      %p521 = por %p519, %p520
      %p522 = scmp.ne.s32.totalorder %s514, %s516
      %p523 = scmp.eq.s32.totalorder %s86, 1
      %p524 = por %p522, %p523
      %p525 = scmp.ne.s32.totalorder %s516, %s517
      %p526 = scmp.eq.s32.totalorder %s86, 0
      %p527 = por %p525, %p526
      %p528 = scmp.ne.s32.totalorder %s516, %s517
      %p529 = scmp.eq.s32.totalorder %s87, 1
      %p530 = por %p528, %p529
      %p532 = scmp.ne.s32.totalorder %s517, %s531
      %p533 = scmp.eq.s32.totalorder %s87, 0
      %p534 = por %p532, %p533
      %s536 = sadd.s32 %s535, 1
      %p539 = scmp.eq.s32.totalorder %s81, 1
      %p540 = scmp.ne.s32.totalorder %s535, %s537
      %p541 = scmp.eq.s32.totalorder %s81, 0
      %p542 = por %p540, %p541
      %p543 = scmp.ne.s32.totalorder %s535, %s537
      %p544 = scmp.eq.s32.totalorder %s86, 1
      %p545 = por %p543, %p544
      %p546 = scmp.ne.s32.totalorder %s537, %s538
      %p547 = scmp.eq.s32.totalorder %s86, 0
      %p548 = por %p546, %p547
      %p549 = scmp.ne.s32.totalorder %s537, %s538
      %p550 = scmp.eq.s32.totalorder %s87, 1
      %p551 = por %p549, %p550
      %p553 = scmp.ne.s32.totalorder %s538, %s552
      %p554 = scmp.eq.s32.totalorder %s87, 0
      %p555 = por %p553, %p554
      %s557 = sadd.s32 %s556, 1
      %p560 = scmp.eq.s32.totalorder %s81, 1
      %p561 = scmp.ne.s32.totalorder %s556, %s558
      %p562 = scmp.eq.s32.totalorder %s81, 0
      %p563 = por %p561, %p562
      %p564 = scmp.ne.s32.totalorder %s556, %s558
      %p565 = scmp.eq.s32.totalorder %s86, 1
      %p566 = por %p564, %p565
      %p567 = scmp.ne.s32.totalorder %s558, %s559
      %p568 = scmp.eq.s32.totalorder %s86, 0
      %p569 = por %p567, %p568
      %p570 = scmp.ne.s32.totalorder %s558, %s559
      %p571 = scmp.eq.s32.totalorder %s87, 1
      %p572 = por %p570, %p571
      %p574 = scmp.ne.s32.totalorder %s559, %s573
      %p575 = scmp.eq.s32.totalorder %s87, 0
      %p576 = por %p574, %p575
      %s578 = sadd.s32 %s577, 1
      %p581 = scmp.eq.s32.totalorder %s81, 1
      %p582 = scmp.ne.s32.totalorder %s577, %s579
      %p583 = scmp.eq.s32.totalorder %s81, 0
      %p584 = por %p582, %p583
      %p585 = scmp.ne.s32.totalorder %s577, %s579
      %p586 = scmp.eq.s32.totalorder %s86, 1
      %p587 = por %p585, %p586
      %p588 = scmp.ne.s32.totalorder %s579, %s580
      %p589 = scmp.eq.s32.totalorder %s86, 0
      %p590 = por %p588, %p589
      %p591 = scmp.ne.s32.totalorder %s579, %s580
      %p592 = scmp.eq.s32.totalorder %s87, 1
      %p593 = por %p591, %p592
      %p595 = scmp.ne.s32.totalorder %s580, %s594
      %p596 = scmp.eq.s32.totalorder %s87, 0
      %p597 = por %p595, %p596
      %s599 = sadd.s32 %s598, 1
      %p602 = scmp.eq.s32.totalorder %s81, 1
      %p603 = scmp.ne.s32.totalorder %s598, %s600
      %p604 = scmp.eq.s32.totalorder %s81, 0
      %p605 = por %p603, %p604
      %p606 = scmp.ne.s32.totalorder %s598, %s600
      %p607 = scmp.eq.s32.totalorder %s86, 1
      %p608 = por %p606, %p607
      %p609 = scmp.ne.s32.totalorder %s600, %s601
      %p610 = scmp.eq.s32.totalorder %s86, 0
      %p611 = por %p609, %p610
      %p612 = scmp.ne.s32.totalorder %s600, %s601
      %p613 = scmp.eq.s32.totalorder %s87, 1
      %p614 = por %p612, %p613
      %p616 = scmp.ne.s32.totalorder %s601, %s615
      %p617 = scmp.eq.s32.totalorder %s87, 0
      %p618 = por %p616, %p617
      %s620 = sadd.s32 %s619, 1
      %p623 = scmp.eq.s32.totalorder %s81, 1
      %p624 = scmp.ne.s32.totalorder %s619, %s621
      %p625 = scmp.eq.s32.totalorder %s81, 0
      %p626 = por %p624, %p625
      %p627 = scmp.ne.s32.totalorder %s619, %s621
      %p628 = scmp.eq.s32.totalorder %s86, 1
      %p629 = por %p627, %p628
      %p630 = scmp.ne.s32.totalorder %s621, %s622
      %p631 = scmp.eq.s32.totalorder %s86, 0
      %p632 = por %p630, %p631
      %p633 = scmp.ne.s32.totalorder %s621, %s622
      %p634 = scmp.eq.s32.totalorder %s87, 1
      %p635 = por %p633, %p634
      %p637 = scmp.ne.s32.totalorder %s622, %s636
      %p638 = scmp.eq.s32.totalorder %s87, 0
      %p639 = por %p637, %p638
      %s641 = sadd.s32 %s640, 1
      %p644 = scmp.eq.s32.totalorder %s81, 1
      %p645 = scmp.ne.s32.totalorder %s640, %s642
      %p646 = scmp.eq.s32.totalorder %s81, 0
      %p647 = por %p645, %p646
      %p648 = scmp.ne.s32.totalorder %s640, %s642
      %p649 = scmp.eq.s32.totalorder %s86, 1
      %p650 = por %p648, %p649
      %p651 = scmp.ne.s32.totalorder %s642, %s643
      %p652 = scmp.eq.s32.totalorder %s86, 0
      %p653 = por %p651, %p652
      %p654 = scmp.ne.s32.totalorder %s642, %s643
      %p655 = scmp.eq.s32.totalorder %s87, 1
      %p656 = por %p654, %p655
      %p658 = scmp.ne.s32.totalorder %s643, %s657
      %p659 = scmp.eq.s32.totalorder %s87, 0
      %p660 = por %p658, %p659
      %s662 = sadd.s32 %s661, 1
      %p665 = scmp.eq.s32.totalorder %s81, 1
      %p666 = scmp.ne.s32.totalorder %s661, %s663
      %p667 = scmp.eq.s32.totalorder %s81, 0
      %p668 = por %p666, %p667
      %p669 = scmp.ne.s32.totalorder %s661, %s663
      %p670 = scmp.eq.s32.totalorder %s86, 1
      %p671 = por %p669, %p670
      %p672 = scmp.ne.s32.totalorder %s663, %s664
      %p673 = scmp.eq.s32.totalorder %s86, 0
      %p674 = por %p672, %p673
      %p675 = scmp.ne.s32.totalorder %s663, %s664
      %p676 = scmp.eq.s32.totalorder %s87, 1
      %p677 = por %p675, %p676
      %p679 = scmp.ne.s32.totalorder %s664, %s678
      %p680 = scmp.eq.s32.totalorder %s87, 0
      %p681 = por %p679, %p680
      %s682 = ssub.s32 %s81, %s88
      %p683 = scmp.eq.s32.totalorder %s682, 0
      %s685 = sadd.s32 %s684, 1
      %s686 = scalar_select %p683, %s684, %s685
      %p689 = pneg %p683
      %p690 = scmp.eq.s32.totalorder %s81, 1
      %p691 = por %p689, %p690
      %p692 = scmp.ne.s32.totalorder %s684, %s687
      %p693 = scmp.eq.s32.totalorder %s81, 0
      %p694 = por %p692, %p693
      %p695 = scmp.ne.s32.totalorder %s684, %s687
      %p696 = scmp.eq.s32.totalorder %s86, 1
      %p697 = por %p695, %p696
      %p698 = scmp.ne.s32.totalorder %s687, %s688
      %p699 = scmp.eq.s32.totalorder %s86, 0
      %p700 = por %p698, %p699
      %p701 = scmp.ne.s32.totalorder %s687, %s688
      %p702 = scmp.eq.s32.totalorder %s87, 1
      %p703 = por %p701, %p702
      %p705 = scmp.ne.s32.totalorder %s688, %s704
      %p706 = scmp.eq.s32.totalorder %s87, 0
      %p707 = por %p705, %p706
      %s708 = ssub.s32 %s81, %s88
      %p709 = scmp.eq.s32.totalorder %s708, 0
      %s711 = sadd.s32 %s710, 1
      %s712 = scalar_select %p709, %s710, %s711
      %p715 = pneg %p709
      %p716 = scmp.eq.s32.totalorder %s81, 1
      %p717 = por %p715, %p716
      %p718 = scmp.ne.s32.totalorder %s710, %s713
      %p719 = scmp.eq.s32.totalorder %s81, 0
      %p720 = por %p718, %p719
      %p721 = scmp.ne.s32.totalorder %s710, %s713
      %p722 = scmp.eq.s32.totalorder %s86, 1
      %p723 = por %p721, %p722
      %p724 = scmp.ne.s32.totalorder %s713, %s714
      %p725 = scmp.eq.s32.totalorder %s86, 0
      %p726 = por %p724, %p725
      %p727 = scmp.ne.s32.totalorder %s713, %s714
      %p728 = scmp.eq.s32.totalorder %s87, 1
      %p729 = por %p727, %p728
      %p731 = scmp.ne.s32.totalorder %s714, %s730
      %p732 = scmp.eq.s32.totalorder %s87, 0
      %p733 = por %p731, %p732
      %s734 = ssub.s32 %s81, %s88
      %p735 = scmp.eq.s32.totalorder %s734, 0
      %s737 = sadd.s32 %s736, 1
      %s738 = scalar_select %p735, %s736, %s737
      %p741 = pneg %p735
      %p742 = scmp.eq.s32.totalorder %s81, 1
      %p743 = por %p741, %p742
      %p744 = scmp.ne.s32.totalorder %s736, %s739
      %p745 = scmp.eq.s32.totalorder %s81, 0
      %p746 = por %p744, %p745
      %p747 = scmp.ne.s32.totalorder %s736, %s739
      %p748 = scmp.eq.s32.totalorder %s86, 1
      %p749 = por %p747, %p748
      %p750 = scmp.ne.s32.totalorder %s739, %s740
      %p751 = scmp.eq.s32.totalorder %s86, 0
      %p752 = por %p750, %p751
      %p753 = scmp.ne.s32.totalorder %s739, %s740
      %p754 = scmp.eq.s32.totalorder %s87, 1
      %p755 = por %p753, %p754
      %p757 = scmp.ne.s32.totalorder %s740, %s756
      %p758 = scmp.eq.s32.totalorder %s87, 0
      %p759 = por %p757, %p758
      %s760 = ssub.s32 %s81, %s88
      %p761 = scmp.eq.s32.totalorder %s760, 0
      %s763 = sadd.s32 %s762, 1
      %s764 = scalar_select %p761, %s762, %s763
      %p767 = pneg %p761
      %p768 = scmp.eq.s32.totalorder %s81, 1
      %p769 = por %p767, %p768
      %p770 = scmp.ne.s32.totalorder %s762, %s765
      %p771 = scmp.eq.s32.totalorder %s81, 0
      %p772 = por %p770, %p771
      %p773 = scmp.ne.s32.totalorder %s762, %s765
      %p774 = scmp.eq.s32.totalorder %s86, 1
      %p775 = por %p773, %p774
      %p776 = scmp.ne.s32.totalorder %s765, %s766
      %p777 = scmp.eq.s32.totalorder %s86, 0
      %p778 = por %p776, %p777
      %p779 = scmp.ne.s32.totalorder %s765, %s766
      %p780 = scmp.eq.s32.totalorder %s87, 1
      %p781 = por %p779, %p780
      %p783 = scmp.ne.s32.totalorder %s766, %s782
      %p784 = scmp.eq.s32.totalorder %s87, 0
      %p785 = por %p783, %p784
      %s786 = ssub.s32 %s81, %s88
      %p787 = scmp.eq.s32.totalorder %s786, 0
      %s789 = sadd.s32 %s788, 1
      %s790 = scalar_select %p787, %s788, %s789
      %p793 = pneg %p787
      %p794 = scmp.eq.s32.totalorder %s81, 1
      %p795 = por %p793, %p794
      %p796 = scmp.ne.s32.totalorder %s788, %s791
      %p797 = scmp.eq.s32.totalorder %s81, 0
      %p798 = por %p796, %p797
      %p799 = scmp.ne.s32.totalorder %s788, %s791
      %p800 = scmp.eq.s32.totalorder %s86, 1
      %p801 = por %p799, %p800
      %p802 = scmp.ne.s32.totalorder %s791, %s792
      %p803 = scmp.eq.s32.totalorder %s86, 0
      %p804 = por %p802, %p803
      %p805 = scmp.ne.s32.totalorder %s791, %s792
      %p806 = scmp.eq.s32.totalorder %s87, 1
      %p807 = por %p805, %p806
      %p809 = scmp.ne.s32.totalorder %s792, %s808
      %p810 = scmp.eq.s32.totalorder %s87, 0
      %p811 = por %p809, %p810
      %s812 = ssub.s32 %s81, %s88
      %p813 = scmp.eq.s32.totalorder %s812, 0
      %s815 = sadd.s32 %s814, 1
      %s816 = scalar_select %p813, %s814, %s815
      %p819 = pneg %p813
      %p820 = scmp.eq.s32.totalorder %s81, 1
      %p821 = por %p819, %p820
      %p822 = scmp.ne.s32.totalorder %s814, %s817
      %p823 = scmp.eq.s32.totalorder %s81, 0
      %p824 = por %p822, %p823
      %p825 = scmp.ne.s32.totalorder %s814, %s817
      %p826 = scmp.eq.s32.totalorder %s86, 1
      %p827 = por %p825, %p826
      %p828 = scmp.ne.s32.totalorder %s817, %s818
      %p829 = scmp.eq.s32.totalorder %s86, 0
      %p830 = por %p828, %p829
      %p831 = scmp.ne.s32.totalorder %s817, %s818
      %p832 = scmp.eq.s32.totalorder %s87, 1
      %p833 = por %p831, %p832
      %p835 = scmp.ne.s32.totalorder %s818, %s834
      %p836 = scmp.eq.s32.totalorder %s87, 0
      %p837 = por %p835, %p836
      %p838 = scmp.le.s32.totalorder 1, %s81
      %p839 = scmp.lt.s32.totalorder %s81, 3
      %p840 = pnand %p838, %p839
      %p841 = pneg %p840
      // Predicated region
      $region9: #{yolov3_multi_gdip_forward.3} parent=5 // pred_check
        _
      $region10: #{yolov3_multi_gdip_forward.3} parent=5 // pred_check_branch
        %843 = sbr.rel (%p840) target = $region12
      $region11: #{yolov3_multi_gdip_forward.3} parent=5 // pred_region
        %s844 = ssub.s32 %s81, 1
        // Predicated region
        $region13: #{yolov3_multi_gdip_forward.3} parent=11 // pred_check
          %p845 = pneg %p128
        $region14: #{yolov3_multi_gdip_forward.3} parent=11 // pred_check_branch
          %847 = sbr.rel (%p845) target = $region16
        $region15: #{yolov3_multi_gdip_forward.3} parent=11 // pred_region
          _
        $region16: #{yolov3_multi_gdip_forward.3} parent=11 // pred_fallthru
          _
        // Predicated region
        $region17: #{yolov3_multi_gdip_forward.3} parent=11 // pred_check
          %p848 = pneg %p149
        $region18: #{yolov3_multi_gdip_forward.3} parent=11 // pred_check_branch
          %850 = sbr.rel (%p848) target = $region20
        $region19: #{yolov3_multi_gdip_forward.3} parent=11 // pred_region
          _
        $region20: #{yolov3_multi_gdip_forward.3} parent=11 // pred_fallthru
          _
        // Predicated region
        $region21: #{yolov3_multi_gdip_forward.3} parent=11 // pred_check
          %p851 = pneg %p170
        $region22: #{yolov3_multi_gdip_forward.3} parent=11 // pred_check_branch
          %853 = sbr.rel (%p851) target = $region24
        $region23: #{yolov3_multi_gdip_forward.3} parent=11 // pred_region
          %s855 = ssub.s32 32, 32
          %856 = vsyncadd [#allocation3], %s855
          %s858 = sshll.u32 [#allocation2], 4
          %s859 = int_to_ptr.vmem [resolvable:$true] %s858
          %861 = dma.hbm_to_vmem [thread:$0]  %s7, 32, %s859, [#allocation3]
        $region24: #{yolov3_multi_gdip_forward.3} parent=11 // pred_fallthru
          _
        // Predicated region
        $region25: #{yolov3_multi_gdip_forward.3} parent=11 // pred_check
          %p862 = pneg %p191
        $region26: #{yolov3_multi_gdip_forward.3} parent=11 // pred_check_branch
          %864 = sbr.rel (%p862) target = $region28
        $region27: #{yolov3_multi_gdip_forward.3} parent=11 // pred_region
          _
        $region28: #{yolov3_multi_gdip_forward.3} parent=11 // pred_fallthru
          _
        // Predicated region
        $region29: #{yolov3_multi_gdip_forward.3} parent=11 // pred_check
          %p865 = pneg %p212
        $region30: #{yolov3_multi_gdip_forward.3} parent=11 // pred_check_branch
          %867 = sbr.rel (%p865) target = $region32
        $region31: #{yolov3_multi_gdip_forward.3} parent=11 // pred_region
          _
        $region32: #{yolov3_multi_gdip_forward.3} parent=11 // pred_fallthru
          _
        // Predicated region
        $region33: #{yolov3_multi_gdip_forward.3} parent=11 // pred_check
          %p868 = pneg %p233
        $region34: #{yolov3_multi_gdip_forward.3} parent=11 // pred_check_branch
          %870 = sbr.rel (%p868) target = $region36
        $region35: #{yolov3_multi_gdip_forward.3} parent=11 // pred_region
          %s872 = ssub.s32 32, 32
          %873 = vsyncadd [#allocation5], %s872
          %s875 = sshll.u32 [#allocation4], 4
          %s876 = int_to_ptr.vmem [resolvable:$true] %s875
          %878 = dma.hbm_to_vmem [thread:$0]  %s13, 32, %s876, [#allocation5]
        $region36: #{yolov3_multi_gdip_forward.3} parent=11 // pred_fallthru
          _
        // Predicated region
        $region37: #{yolov3_multi_gdip_forward.3} parent=11 // pred_check
          %p879 = pneg %p254
        $region38: #{yolov3_multi_gdip_forward.3} parent=11 // pred_check_branch
          %881 = sbr.rel (%p879) target = $region40
        $region39: #{yolov3_multi_gdip_forward.3} parent=11 // pred_region
          _
        $region40: #{yolov3_multi_gdip_forward.3} parent=11 // pred_fallthru
          _
        // Predicated region
        $region41: #{yolov3_multi_gdip_forward.3} parent=11 // pred_check
          %p882 = pneg %p275
        $region42: #{yolov3_multi_gdip_forward.3} parent=11 // pred_check_branch
          %884 = sbr.rel (%p882) target = $region44
        $region43: #{yolov3_multi_gdip_forward.3} parent=11 // pred_region
          _
        $region44: #{yolov3_multi_gdip_forward.3} parent=11 // pred_fallthru
          _
        // Predicated region
        $region45: #{yolov3_multi_gdip_forward.3} parent=11 // pred_check
          %p885 = pneg %p296
        $region46: #{yolov3_multi_gdip_forward.3} parent=11 // pred_check_branch
          %887 = sbr.rel (%p885) target = $region48
        $region47: #{yolov3_multi_gdip_forward.3} parent=11 // pred_region
          %s889 = ssub.s32 32, 32
          %890 = vsyncadd [#allocation5], %s889
          %s892 = sshll.u32 [#allocation6], 4
          %s893 = int_to_ptr.vmem [resolvable:$true] %s892
          %895 = dma.hbm_to_vmem [thread:$0]  %s19, 32, %s893, [#allocation5]
        $region48: #{yolov3_multi_gdip_forward.3} parent=11 // pred_fallthru
          _
        // Predicated region
        $region49: #{yolov3_multi_gdip_forward.3} parent=11 // pred_check
          %p896 = pneg %p317
        $region50: #{yolov3_multi_gdip_forward.3} parent=11 // pred_check_branch
          %898 = sbr.rel (%p896) target = $region52
        $region51: #{yolov3_multi_gdip_forward.3} parent=11 // pred_region
          _
        $region52: #{yolov3_multi_gdip_forward.3} parent=11 // pred_fallthru
          _
        // Predicated region
        $region53: #{yolov3_multi_gdip_forward.3} parent=11 // pred_check
          %p899 = pneg %p338
        $region54: #{yolov3_multi_gdip_forward.3} parent=11 // pred_check_branch
          %901 = sbr.rel (%p899) target = $region56
        $region55: #{yolov3_multi_gdip_forward.3} parent=11 // pred_region
          _
        $region56: #{yolov3_multi_gdip_forward.3} parent=11 // pred_fallthru
          _
        // Predicated region
        $region57: #{yolov3_multi_gdip_forward.3} parent=11 // pred_check
          %p902 = pneg %p359
        $region58: #{yolov3_multi_gdip_forward.3} parent=11 // pred_check_branch
          %904 = sbr.rel (%p902) target = $region60
        $region59: #{yolov3_multi_gdip_forward.3} parent=11 // pred_region
          %s906 = ssub.s32 32, 32
          %907 = vsyncadd [#allocation8], %s906
          %s909 = sshll.u32 [#allocation7], 4
          %s910 = int_to_ptr.vmem [resolvable:$true] %s909
          %912 = dma.hbm_to_vmem [thread:$0]  %s25, 32, %s910, [#allocation8]
        $region60: #{yolov3_multi_gdip_forward.3} parent=11 // pred_fallthru
          _
        // Predicated region
        $region61: #{yolov3_multi_gdip_forward.3} parent=11 // pred_check
          %p913 = pneg %p380
        $region62: #{yolov3_multi_gdip_forward.3} parent=11 // pred_check_branch
          %915 = sbr.rel (%p913) target = $region64
        $region63: #{yolov3_multi_gdip_forward.3} parent=11 // pred_region
          _
        $region64: #{yolov3_multi_gdip_forward.3} parent=11 // pred_fallthru
          _
        // Predicated region
        $region65: #{yolov3_multi_gdip_forward.3} parent=11 // pred_check
          %p916 = pneg %p401
        $region66: #{yolov3_multi_gdip_forward.3} parent=11 // pred_check_branch
          %918 = sbr.rel (%p916) target = $region68
        $region67: #{yolov3_multi_gdip_forward.3} parent=11 // pred_region
          _
        $region68: #{yolov3_multi_gdip_forward.3} parent=11 // pred_fallthru
          _
        // Predicated region
        $region69: #{yolov3_multi_gdip_forward.3} parent=11 // pred_check
          %p919 = pneg %p422
        $region70: #{yolov3_multi_gdip_forward.3} parent=11 // pred_check_branch
          %921 = sbr.rel (%p919) target = $region72
        $region71: #{yolov3_multi_gdip_forward.3} parent=11 // pred_region
          %s923 = ssub.s32 32, 32
          %924 = vsyncadd [#allocation8], %s923
          %s926 = sshll.u32 [#allocation9], 4
          %s927 = int_to_ptr.vmem [resolvable:$true] %s926
          %929 = dma.hbm_to_vmem [thread:$0]  %s31, 32, %s927, [#allocation8]
        $region72: #{yolov3_multi_gdip_forward.3} parent=11 // pred_fallthru
          _
        // Predicated region
        $region73: #{yolov3_multi_gdip_forward.3} parent=11 // pred_check
          %p930 = pneg %p443
        $region74: #{yolov3_multi_gdip_forward.3} parent=11 // pred_check_branch
          %932 = sbr.rel (%p930) target = $region76
        $region75: #{yolov3_multi_gdip_forward.3} parent=11 // pred_region
          _
        $region76: #{yolov3_multi_gdip_forward.3} parent=11 // pred_fallthru
          _
        // Predicated region
        $region77: #{yolov3_multi_gdip_forward.3} parent=11 // pred_check
          %p933 = pneg %p464
        $region78: #{yolov3_multi_gdip_forward.3} parent=11 // pred_check_branch
          %935 = sbr.rel (%p933) target = $region80
        $region79: #{yolov3_multi_gdip_forward.3} parent=11 // pred_region
          %s937 = ssub.s32 4608, 4608
          %938 = vsyncadd [#allocation11], %s937
          %s939 = sshll.u32 [#allocation10], 4
          %s940 = int_to_ptr.vmem [resolvable:$true] %s939
          %945 = dma.hbm_to_vmem [thread:$0]  %s35, 4608, %s940, [#allocation11], 64, 64, 4
        $region80: #{yolov3_multi_gdip_forward.3} parent=11 // pred_fallthru
          _
        // Predicated region
        $region81: #{yolov3_multi_gdip_forward.3} parent=11 // pred_check
          %p946 = pneg %p485
        $region82: #{yolov3_multi_gdip_forward.3} parent=11 // pred_check_branch
          %948 = sbr.rel (%p946) target = $region84
        $region83: #{yolov3_multi_gdip_forward.3} parent=11 // pred_region
          _
        $region84: #{yolov3_multi_gdip_forward.3} parent=11 // pred_fallthru
          _
        // Predicated region
        $region85: #{yolov3_multi_gdip_forward.3} parent=11 // pred_check
          %p949 = pneg %p506
        $region86: #{yolov3_multi_gdip_forward.3} parent=11 // pred_check_branch
          %951 = sbr.rel (%p949) target = $region88
        $region87: #{yolov3_multi_gdip_forward.3} parent=11 // pred_region
          _
        $region88: #{yolov3_multi_gdip_forward.3} parent=11 // pred_fallthru
          _
        // Predicated region
        $region89: #{yolov3_multi_gdip_forward.3} parent=11 // pred_check
          %p952 = pneg %p527
        $region90: #{yolov3_multi_gdip_forward.3} parent=11 // pred_check_branch
          %954 = sbr.rel (%p952) target = $region92
        $region91: #{yolov3_multi_gdip_forward.3} parent=11 // pred_region
          %s956 = ssub.s32 16, 16
          %957 = vsyncadd [#allocation11], %s956
          %s959 = sshll.u32 [#allocation12], 4
          %s960 = int_to_ptr.vmem [resolvable:$true] %s959
          %962 = dma.hbm_to_vmem [thread:$0]  %s41, 16, %s960, [#allocation11]
        $region92: #{yolov3_multi_gdip_forward.3} parent=11 // pred_fallthru
          _
        // Predicated region
        $region93: #{yolov3_multi_gdip_forward.3} parent=11 // pred_check
          %p963 = pneg %p548
        $region94: #{yolov3_multi_gdip_forward.3} parent=11 // pred_check_branch
          %965 = sbr.rel (%p963) target = $region96
        $region95: #{yolov3_multi_gdip_forward.3} parent=11 // pred_region
          %s967 = ssub.s32 256, 256
          %968 = vsyncadd [#allocation14], %s967
          %s969 = sshll.u32 [#allocation13], 4
          %s970 = int_to_ptr.vmem [resolvable:$true] %s969
          %975 = dma.hbm_to_vmem [thread:$0]  %s43, 256, %s970, [#allocation14], 64, 64, 4
        $region96: #{yolov3_multi_gdip_forward.3} parent=11 // pred_fallthru
          _
        // Predicated region
        $region97: #{yolov3_multi_gdip_forward.3} parent=11 // pred_check
          %p976 = pneg %p569
        $region98: #{yolov3_multi_gdip_forward.3} parent=11 // pred_check_branch
          %978 = sbr.rel (%p976) target = $region100
        $region99: #{yolov3_multi_gdip_forward.3} parent=11 // pred_region
          _
        $region100: #{yolov3_multi_gdip_forward.3} parent=11 // pred_fallthru
          _
        // Predicated region
        $region101: #{yolov3_multi_gdip_forward.3} parent=11 // pred_check
          %p979 = pneg %p590
        $region102: #{yolov3_multi_gdip_forward.3} parent=11 // pred_check_branch
          %981 = sbr.rel (%p979) target = $region104
        $region103: #{yolov3_multi_gdip_forward.3} parent=11 // pred_region
          %s983 = ssub.s32 16, 16
          %984 = vsyncadd [#allocation14], %s983
          %s986 = sshll.u32 [#allocation15], 4
          %s987 = int_to_ptr.vmem [resolvable:$true] %s986
          %989 = dma.hbm_to_vmem [thread:$0]  %s47, 16, %s987, [#allocation14]
        $region104: #{yolov3_multi_gdip_forward.3} parent=11 // pred_fallthru
          _
        // Predicated region
        $region105: #{yolov3_multi_gdip_forward.3} parent=11 // pred_check
          %p990 = pneg %p611
        $region106: #{yolov3_multi_gdip_forward.3} parent=11 // pred_check_branch
          %992 = sbr.rel (%p990) target = $region108
        $region107: #{yolov3_multi_gdip_forward.3} parent=11 // pred_region
          %s994 = ssub.s32 128, 128
          %995 = vsyncadd [#allocation17], %s994
          %s996 = sshll.u32 [#allocation16], 4
          %s997 = int_to_ptr.vmem [resolvable:$true] %s996
          %1002 = dma.hbm_to_vmem [thread:$0]  %s49, 128, %s997, [#allocation17], 32, 32, 2
        $region108: #{yolov3_multi_gdip_forward.3} parent=11 // pred_fallthru
          _
        // Predicated region
        $region109: #{yolov3_multi_gdip_forward.3} parent=11 // pred_check
          %p1003 = pneg %p632
        $region110: #{yolov3_multi_gdip_forward.3} parent=11 // pred_check_branch
          %1005 = sbr.rel (%p1003) target = $region112
        $region111: #{yolov3_multi_gdip_forward.3} parent=11 // pred_region
          _
        $region112: #{yolov3_multi_gdip_forward.3} parent=11 // pred_fallthru
          _
        // Predicated region
        $region113: #{yolov3_multi_gdip_forward.3} parent=11 // pred_check
          %p1006 = pneg %p653
        $region114: #{yolov3_multi_gdip_forward.3} parent=11 // pred_check_branch
          %1008 = sbr.rel (%p1006) target = $region116
        $region115: #{yolov3_multi_gdip_forward.3} parent=11 // pred_region
          %s1010 = ssub.s32 16, 16
          %1011 = vsyncadd [#allocation17], %s1010
          %s1013 = sshll.u32 [#allocation18], 4
          %s1014 = int_to_ptr.vmem [resolvable:$true] %s1013
          %1016 = dma.hbm_to_vmem [thread:$0]  %s53, 16, %s1014, [#allocation17]
        $region116: #{yolov3_multi_gdip_forward.3} parent=11 // pred_fallthru
          _
        // Predicated region
        $region117: #{yolov3_multi_gdip_forward.3} parent=11 // pred_check
          %p1017 = pneg %p674
        $region118: #{yolov3_multi_gdip_forward.3} parent=11 // pred_check_branch
          %1019 = sbr.rel (%p1017) target = $region120
        $region119: #{yolov3_multi_gdip_forward.3} parent=11 // pred_region
          %s1021 = ssub.s32 64, 64
          %1022 = vsyncadd [#allocation20], %s1021
          %s1023 = sshll.u32 [#allocation19], 4
          %s1024 = int_to_ptr.vmem [resolvable:$true] %s1023
          %1029 = dma.hbm_to_vmem [thread:$0]  %s55, 64, %s1024, [#allocation20], 16, 16, 1
        $region120: #{yolov3_multi_gdip_forward.3} parent=11 // pred_fallthru
          _
      $region12: #{yolov3_multi_gdip_forward.3} parent=5 // pred_fallthru
        _
      %p1030 = scmp.lt.s32.totalorder %s81, 2
      // Predicated region
      $region121: #{yolov3_multi_gdip_forward.3} parent=5 // pred_check
        %p1031 = pneg %p1030
      $region122: #{yolov3_multi_gdip_forward.3} parent=5 // pred_check_branch
        %1033 = sbr.rel (%p1031) target = $region124
      $region123: #{yolov3_multi_gdip_forward.3} parent=5 // pred_region
        // Predicated region
        $region125: #{yolov3_multi_gdip_forward.3} parent=123 // pred_check
          %p1034 = pneg %p101
        $region126: #{yolov3_multi_gdip_forward.3} parent=123 // pred_check_branch
          %1036 = sbr.rel (%p1034) target = $region128
        $region127: #{yolov3_multi_gdip_forward.3} parent=123 // pred_region
          %p1037 = scmp.lt.s32.totalorder %s81, 1
          %s1038 = scalar_select %p1037, %s81, 1
          %s1039 = smul.addr %s1038, 4
          %s1040 = smul.addr %s1039, 8
          %s1041 = scalar_lea.vmem %s1, %s1040
        $region128: #{yolov3_multi_gdip_forward.3} parent=123 // pred_fallthru
          _
      $region124: #{yolov3_multi_gdip_forward.3} parent=5 // pred_fallthru
        _
      %p1042 = scmp.le.s32.totalorder 1, %s81
      %p1043 = scmp.lt.s32.totalorder %s81, 3
      %p1044 = pnand %p1042, %p1043
      %p1045 = pneg %p1044
      // Predicated region
      $region129: #{yolov3_multi_gdip_forward.3} parent=5 // pred_check
        _
      $region130: #{yolov3_multi_gdip_forward.3} parent=5 // pred_check_branch
        %1047 = sbr.rel (%p1044) target = $region132
      $region131: #{yolov3_multi_gdip_forward.3} parent=5 // pred_region
        %s1048 = ssub.s32 %s81, 1
        // Predicated region
        $region133: #{yolov3_multi_gdip_forward.3} parent=131 // pred_check
          %p1049 = pneg %p170
        $region134: #{yolov3_multi_gdip_forward.3} parent=131 // pred_check_branch
          %1051 = sbr.rel (%p1049) target = $region136
        $region135: #{yolov3_multi_gdip_forward.3} parent=131 // pred_region
          %1052 = dma.done [#allocation3], 32
        $region136: #{yolov3_multi_gdip_forward.3} parent=131 // pred_fallthru
          _
        // Predicated region
        $region137: #{yolov3_multi_gdip_forward.3} parent=131 // pred_check
          %p1053 = pneg %p233
        $region138: #{yolov3_multi_gdip_forward.3} parent=131 // pred_check_branch
          %1055 = sbr.rel (%p1053) target = $region140
        $region139: #{yolov3_multi_gdip_forward.3} parent=131 // pred_region
          %1056 = dma.done [#allocation5], 32
        $region140: #{yolov3_multi_gdip_forward.3} parent=131 // pred_fallthru
          _
        // Predicated region
        $region141: #{yolov3_multi_gdip_forward.3} parent=131 // pred_check
          %p1057 = pneg %p296
        $region142: #{yolov3_multi_gdip_forward.3} parent=131 // pred_check_branch
          %1059 = sbr.rel (%p1057) target = $region144
        $region143: #{yolov3_multi_gdip_forward.3} parent=131 // pred_region
          %1060 = dma.done [#allocation5], 32
        $region144: #{yolov3_multi_gdip_forward.3} parent=131 // pred_fallthru
          _
        // Predicated region
        $region145: #{yolov3_multi_gdip_forward.3} parent=131 // pred_check
          %p1061 = pneg %p359
        $region146: #{yolov3_multi_gdip_forward.3} parent=131 // pred_check_branch
          %1063 = sbr.rel (%p1061) target = $region148
        $region147: #{yolov3_multi_gdip_forward.3} parent=131 // pred_region
          %1064 = dma.done [#allocation8], 32
        $region148: #{yolov3_multi_gdip_forward.3} parent=131 // pred_fallthru
          _
        // Predicated region
        $region149: #{yolov3_multi_gdip_forward.3} parent=131 // pred_check
          %p1065 = pneg %p422
        $region150: #{yolov3_multi_gdip_forward.3} parent=131 // pred_check_branch
          %1067 = sbr.rel (%p1065) target = $region152
        $region151: #{yolov3_multi_gdip_forward.3} parent=131 // pred_region
          %1068 = dma.done [#allocation8], 32
        $region152: #{yolov3_multi_gdip_forward.3} parent=131 // pred_fallthru
          _
        // Predicated region
        $region153: #{yolov3_multi_gdip_forward.3} parent=131 // pred_check
          %p1069 = pneg %p464
        $region154: #{yolov3_multi_gdip_forward.3} parent=131 // pred_check_branch
          %1071 = sbr.rel (%p1069) target = $region156
        $region155: #{yolov3_multi_gdip_forward.3} parent=131 // pred_region
          %1072 = dma.done [#allocation11], 4608
        $region156: #{yolov3_multi_gdip_forward.3} parent=131 // pred_fallthru
          _
        // Predicated region
        $region157: #{yolov3_multi_gdip_forward.3} parent=131 // pred_check
          %p1073 = pneg %p527
        $region158: #{yolov3_multi_gdip_forward.3} parent=131 // pred_check_branch
          %1075 = sbr.rel (%p1073) target = $region160
        $region159: #{yolov3_multi_gdip_forward.3} parent=131 // pred_region
          %1076 = dma.done [#allocation11], 16
        $region160: #{yolov3_multi_gdip_forward.3} parent=131 // pred_fallthru
          _
        // Predicated region
        $region161: #{yolov3_multi_gdip_forward.3} parent=131 // pred_check
          %p1077 = pneg %p548
        $region162: #{yolov3_multi_gdip_forward.3} parent=131 // pred_check_branch
          %1079 = sbr.rel (%p1077) target = $region164
        $region163: #{yolov3_multi_gdip_forward.3} parent=131 // pred_region
          %1080 = dma.done [#allocation14], 256
        $region164: #{yolov3_multi_gdip_forward.3} parent=131 // pred_fallthru
          _
        // Predicated region
        $region165: #{yolov3_multi_gdip_forward.3} parent=131 // pred_check
          %p1081 = pneg %p590
        $region166: #{yolov3_multi_gdip_forward.3} parent=131 // pred_check_branch
          %1083 = sbr.rel (%p1081) target = $region168
        $region167: #{yolov3_multi_gdip_forward.3} parent=131 // pred_region
          %1084 = dma.done [#allocation14], 16
        $region168: #{yolov3_multi_gdip_forward.3} parent=131 // pred_fallthru
          _
        // Predicated region
        $region169: #{yolov3_multi_gdip_forward.3} parent=131 // pred_check
          %p1085 = pneg %p611
        $region170: #{yolov3_multi_gdip_forward.3} parent=131 // pred_check_branch
          %1087 = sbr.rel (%p1085) target = $region172
        $region171: #{yolov3_multi_gdip_forward.3} parent=131 // pred_region
          %1088 = dma.done [#allocation17], 128
        $region172: #{yolov3_multi_gdip_forward.3} parent=131 // pred_fallthru
          _
        // Predicated region
        $region173: #{yolov3_multi_gdip_forward.3} parent=131 // pred_check
          %p1089 = pneg %p653
        $region174: #{yolov3_multi_gdip_forward.3} parent=131 // pred_check_branch
          %1091 = sbr.rel (%p1089) target = $region176
        $region175: #{yolov3_multi_gdip_forward.3} parent=131 // pred_region
          %1092 = dma.done [#allocation17], 16
        $region176: #{yolov3_multi_gdip_forward.3} parent=131 // pred_fallthru
          _
        // Predicated region
        $region177: #{yolov3_multi_gdip_forward.3} parent=131 // pred_check
          %p1093 = pneg %p674
        $region178: #{yolov3_multi_gdip_forward.3} parent=131 // pred_check_branch
          %1095 = sbr.rel (%p1093) target = $region180
        $region179: #{yolov3_multi_gdip_forward.3} parent=131 // pred_region
          %1096 = dma.done [#allocation20], 64
        $region180: #{yolov3_multi_gdip_forward.3} parent=131 // pred_fallthru
          _
        %p1097 = scmp.lt.s32.totalorder %s86, 1
        %s1098 = scalar_select %p1097, %s86, 1
        %s1099 = smul.addr %s1098, 4
        %s1100 = smul.addr %s1099, 8
        %s1101 = scalar_lea.vmem %s1, %s1100
        %p1102 = pneg %p107
        %p1103 = pneg %p104
        %p1104 = pneg %p128
        %p1105 = pneg %p125
        %p1106 = pneg %p149
        %p1107 = pneg %p146
        %p1108 = pneg %p170
        %p1109 = pneg %p167
        %p1110 = pneg %p191
        %p1111 = pneg %p188
        %p1112 = pneg %p212
        %p1113 = pneg %p209
        %p1114 = pneg %p233
        %p1115 = pneg %p230
        %p1116 = pneg %p254
        %p1117 = pneg %p251
        %p1118 = pneg %p275
        %p1119 = pneg %p272
        %p1120 = pneg %p296
        %p1121 = pneg %p293
        %p1122 = pneg %p317
        %p1123 = pneg %p314
        %p1124 = pneg %p338
        %p1125 = pneg %p335
        %p1126 = pneg %p359
        %p1127 = pneg %p356
        %p1128 = pneg %p380
        %p1129 = pneg %p377
        %p1130 = pneg %p401
        %p1131 = pneg %p398
        %p1132 = pneg %p422
        %p1133 = pneg %p419
        %p1134 = pneg %p443
        %p1135 = pneg %p440
        %p1136 = pneg %p464
        %p1137 = pneg %p461
        %p1138 = pneg %p485
        %p1139 = pneg %p482
        %p1140 = pneg %p506
        %p1141 = pneg %p503
        %p1142 = pneg %p527
        %p1143 = pneg %p524
        %p1144 = pneg %p548
        %p1145 = pneg %p545
        %p1146 = pneg %p569
        %p1147 = pneg %p566
        %p1148 = pneg %p590
        %p1149 = pneg %p587
        %p1150 = pneg %p611
        %p1151 = pneg %p608
        %p1152 = pneg %p632
        %p1153 = pneg %p629
        %p1154 = pneg %p653
        %p1155 = pneg %p650
        %p1156 = pneg %p674
        %p1157 = pneg %p671
        %p1158 = pneg %p700
        %p1159 = pneg %p697
        %p1160 = scmp.lt.s32.totalorder %s86, 1
        %s1161 = scalar_select %p1160, %s86, 1
        %s1162 = smul.addr %s1161, 4
        %s1163 = scalar_lea.vmem %s57, %s1162
        %p1164 = pneg %p726
        %p1165 = pneg %p723
        %p1166 = scmp.lt.s32.totalorder %s86, 1
        %s1167 = scalar_select %p1166, %s86, 1
        %s1168 = smul.addr %s1167, 2
        %s1169 = scalar_lea.vmem %s59, %s1168
        %p1170 = pneg %p752
        %p1171 = pneg %p749
        %p1172 = scmp.lt.s32.totalorder %s86, 1
        %s1173 = scalar_select %p1172, %s86, 1
        %s1174 = scalar_lea.vmem %s61, %s1173
        %p1175 = pneg %p778
        %p1176 = pneg %p775
        %p1177 = scmp.lt.s32.totalorder %s86, 1
        %s1178 = scalar_select %p1177, %s86, 1
        %s1179 = smul.addr %s1178, 4
        %s1180 = scalar_lea.vmem %s63, %s1179
        %p1181 = pneg %p804
        %p1182 = pneg %p801
        %p1183 = scmp.lt.s32.totalorder %s86, 1
        %s1184 = scalar_select %p1183, %s86, 1
        %s1185 = smul.addr %s1184, 2
        %s1186 = scalar_lea.vmem %s65, %s1185
        %p1187 = pneg %p830
        %p1188 = pneg %p827
        %p1189 = scmp.lt.s32.totalorder %s86, 1
        %s1190 = scalar_select %p1189, %s86, 1
        %s1191 = scalar_lea.vmem %s67, %s1190
        %p1192 = scmp.lt.s32.totalorder %s86, 1
        %s1193 = scalar_select %p1192, %s86, 1
        %s1194 = smul.addr %s1193, 4
        %s1195 = smul.addr %s1194, 8
        %s1196 = scalar_lea.vmem %s1, %s1195
        %p1197 = scmp.lt.s32.totalorder %s86, 1
        %s1198 = scalar_select %p1197, %s86, 1
        %s1199 = smul.addr %s1198, 4
        %s1200 = scalar_lea.vmem %s57, %s1199
        %p1201 = scmp.lt.s32.totalorder %s86, 1
        %s1202 = scalar_select %p1201, %s86, 1
        %s1203 = smul.addr %s1202, 2
        %s1204 = scalar_lea.vmem %s59, %s1203
        %p1205 = scmp.lt.s32.totalorder %s86, 1
        %s1206 = scalar_select %p1205, %s86, 1
        %s1207 = scalar_lea.vmem %s61, %s1206
        %p1208 = scmp.lt.s32.totalorder %s86, 1
        %s1209 = scalar_select %p1208, %s86, 1
        %s1210 = smul.addr %s1209, 4
        %s1211 = scalar_lea.vmem %s63, %s1210
        %p1212 = scmp.lt.s32.totalorder %s86, 1
        %s1213 = scalar_select %p1212, %s86, 1
        %s1214 = smul.addr %s1213, 2
        %s1215 = scalar_lea.vmem %s65, %s1214
        %p1216 = scmp.lt.s32.totalorder %s86, 1
        %s1217 = scalar_select %p1216, %s86, 1
        %s1218 = scalar_lea.vmem %s67, %s1217
        %v1220 = vld [vmem:[%s1196] sm:$0xff]
        %v1221 = vld [vmem:[%s1196 + $0x8] sm:$0xff]
        %v1222 = vld [vmem:[%s1196 + $0x10] sm:$0xff]
        %v1223 = vld [vmem:[%s1196 + $0x18] sm:$0xff]
        %v1224 = vpack.c.bf16 %v1221, %v1220
        %v1225 = vpack.c.bf16 %v1223, %v1222
        %v1226 = vld [vmem:[%s3] sm:$0xf]
        %v1227 = vld [vmem:[%s3 + $0x4] sm:$0xf]
        %v1228 = vld [vmem:[%s3 + $0x8] sm:$0xf]
        %v1229 = vld [vmem:[%s3 + $0xc] sm:$0xf]
        %v1230 = vld [vmem:[%s3 + $0x10] sm:$0x1]
        %v1236 = vunpack.c.l.b16 %v1226
        %v1237 = vunpack.c.l.b16 %v1227
        %v1238 = vunpack.c.l.b16 %v1228
        %v1239 = vunpack.c.l.b16 %v1229
        %v1240 = vunpack.c.l.b16 %v1230
        %v1241 = vpack.c.b16 %v1237, %v1236
        %v1242 = vpack.c.b16 %v1239, %v1238
        %v1243 = vpack.c.b16 %v1240, %v1240
        %vm1244 = vcmask 261120
        %v1246 = vsel %vm1244, %v1241, 0
        %v1249 = vsel %vm1244, %v1242, 0
        %v1252 = vsel %vm1244, %v1243, 0
        %1254 = vmatprep.subr.bf16.mxu0 0
        %1255 = vmatpush1.bf16.msra.mxu0 %v1224
        %1256 = vmatprep.subr.bf16.mxu0 0
        %1257 = vmatpush1.bf16.msra.mxu0 %v1225
        %1258 = vmatprep.subr.bf16.mxu0 0
        %1259 = vmatpush1.bf16.msra.mxu0 0
        %1260 = vmatprep.subr.bf16.mxu0 0
        %1261 = vmatpush1.bf16.msra.mxu0 0
        %1262 = vmatprep.subr.bf16.mxu0 0
        %1263 = vmatpush1.bf16.msra.mxu0 0
        %1264 = vmatprep.subr.bf16.mxu0 0
        %1265 = vmatpush1.bf16.msra.mxu0 0
        %1266 = vmatprep.subr.bf16.mxu0 0
        %1267 = vmatpush1.bf16.msra.mxu0 0
        %1268 = vmatprep.subr.bf16.mxu0 0
        %1269 = vmatpush1.bf16.msra.mxu0 0
        %1270 = vmatprep.subr.bf16.mxu0 0
        %1271 = vmatpush1.bf16.msra.mxu0 0
        %1272 = vmatprep.subr.bf16.mxu0 0
        %1273 = vmatpush1.bf16.msra.mxu0 0
        %1274 = vmatprep.subr.bf16.mxu0 0
        %1275 = vmatpush1.bf16.msra.mxu0 0
        %1276 = vmatprep.subr.bf16.mxu0 0
        %1277 = vmatpush1.bf16.msra.mxu0 0
        %1278 = vmatprep.subr.bf16.mxu0 0
        %1279 = vmatpush1.bf16.msra.mxu0 0
        %1280 = vmatprep.subr.bf16.mxu0 0
        %1281 = vmatpush1.bf16.msra.mxu0 0
        %1282 = vmatprep.subr.bf16.mxu0 0
        %1283 = vmatpush1.bf16.msra.mxu0 0
        %1284 = vmatprep.subr.bf16.mxu0 0
        %1285 = vmatpush1.bf16.msra.mxu0 0
        %1286 = vmatprep.mubr.bf16.mxu0 0
        %1287 = vmatmul.mubr.bf16.gmra.mrb[0].mxu0 %v1246
        %v1288 = vpop.f32.mrb[0].mxu0
        %v1289 = vadd.f32 0.0, %v1288
        %v1290 = vpop.f32.mrb[0].mxu0
        %v1291 = vpop.f32.mrb[0].mxu0
        %v1292 = vadd.f32 0.0, %v1291
        %v1293 = vpop.f32.mrb[0].mxu0
        %1294 = vmatprep.mubr.bf16.mxu0 0
        %1295 = vmatmul.mubr.bf16.gmra.mrb[0].mxu0 %v1249
        %v1296 = vpop.f32.mrb[0].mxu0
        %v1297 = vadd.f32 0.0, %v1296
        %v1298 = vpop.f32.mrb[0].mxu0
        %v1299 = vpop.f32.mrb[0].mxu0
        %v1300 = vadd.f32 0.0, %v1299
        %v1301 = vpop.f32.mrb[0].mxu0
        %1302 = vmatprep.mubr.bf16.mxu0 0
        %1303 = vmatmul.mubr.bf16.gmra.mrb[0].mxu0 %v1252
        %v1304 = vpop.f32.mrb[0].mxu0
        %v1305 = vadd.f32 0.0, %v1304
        %v1306 = vpop.f32.mrb[0].mxu0
        %v1307 = vpop.f32.mrb[0].mxu0
        %v1308 = vpop.f32.mrb[0].mxu0
        %1309 = vdwg.mxu0
        %v1310 = vpack.c.bf16 %v1292, %v1289
        %v1311 = vpack.c.bf16 %v1300, %v1297
        %v1312 = vld [vmem:[%s5] sm:$0xff]
        %v1313 = vld [vmem:[%s5 + $0x8] sm:$0xff]
        %v1314 = vld [vmem:[%s5 + $0x10] sm:$0xff]
        %v1315 = vld [vmem:[%s5 + $0x18] sm:$0xff]
        %v1316 = vld [vmem:[%s5 + $0x20] sm:$0xff]
        %v1317 = vld [vmem:[%s5 + $0x28] sm:$0xff]
        %v1318 = vld [vmem:[%s5 + $0x30] sm:$0xff]
        %v1319 = vld [vmem:[%s5 + $0x38] sm:$0xff]
        %v1320 = vld [vmem:[%s5 + $0x40] sm:$0xff]
        %v1321 = vld [vmem:[%s5 + $0x48] sm:$0xff]
        %v1322 = vld [vmem:[%s5 + $0x50] sm:$0xff]
        %v1323 = vld [vmem:[%s5 + $0x58] sm:$0xff]
        %v1324 = vpack.c.bf16 %v1305, %v1305
        %s1325 = scalar_lea.vmem %s5, 96
        %v1326 = vld [vmem:[%s1325] sm:$0xff]
        %v1327 = vld [vmem:[%s1325 + $0x8] sm:$0xff]
        %v1328 = vld [vmem:[%s1325 + $0x10] sm:$0xff]
        %v1329 = vld [vmem:[%s1325 + $0x18] sm:$0xff]
        %v1330 = vld [vmem:[%s1325 + $0x20] sm:$0xff]
        %v1331 = vld [vmem:[%s1325 + $0x28] sm:$0xff]
        %v1332 = vld [vmem:[%s1325 + $0x30] sm:$0xff]
        %v1333 = vld [vmem:[%s1325 + $0x38] sm:$0xff]
        %v1334 = vld [vmem:[%s1325 + $0x40] sm:$0xff]
        %v1335 = vld [vmem:[%s1325 + $0x48] sm:$0xff]
        %v1336 = vld [vmem:[%s1325 + $0x50] sm:$0xff]
        %v1337 = vld [vmem:[%s1325 + $0x58] sm:$0xff]
        %vm1338 = vsmask.f32 7424
        %v1340 = vshrl.u32 %v1310, 16
        %v1342 = vshll.u32 %v1310, 16
        %v1344 = vrot.slane %v1342, 1
        %v1345 = vor.u32 %v1340, %v1344
        %v1347 = vshll.u32 %v1311, 16
        %v1349 = vrot.slane %v1347, 1
        %v1350 = vsel %vm1338, %v1345, %v1349
        %v1351 = vshrl.u32 %v1311, 16
        %v1353 = vor.u32 %v1351, %v1349
        %v1355 = vshll.u32 %v1324, 16
        %v1357 = vrot.slane %v1355, 1
        %v1358 = vsel %vm1338, %v1353, %v1357
        %v1371 = vunpack.c.l.b16 %v1326
        %v1372 = vunpack.c.h.b16 %v1326
        %v1373 = vunpack.c.l.b16 %v1327
        %v1374 = vunpack.c.h.b16 %v1327
        %v1375 = vunpack.c.l.b16 %v1328
        %v1376 = vunpack.c.h.b16 %v1328
        %v1377 = vunpack.c.l.b16 %v1329
        %v1378 = vunpack.c.h.b16 %v1329
        %v1379 = vunpack.c.l.b16 %v1330
        %v1380 = vunpack.c.h.b16 %v1330
        %v1381 = vunpack.c.l.b16 %v1331
        %v1382 = vunpack.c.h.b16 %v1331
        %v1383 = vunpack.c.l.b16 %v1332
        %v1384 = vunpack.c.h.b16 %v1332
        %v1385 = vunpack.c.l.b16 %v1333
        %v1386 = vunpack.c.h.b16 %v1333
        %v1387 = vunpack.c.l.b16 %v1334
        %v1388 = vunpack.c.h.b16 %v1334
        %v1389 = vunpack.c.l.b16 %v1335
        %v1390 = vunpack.c.h.b16 %v1335
        %v1391 = vunpack.c.l.b16 %v1336
        %v1392 = vunpack.c.h.b16 %v1336
        %v1393 = vunpack.c.l.b16 %v1337
        %v1394 = vunpack.c.h.b16 %v1337
        %v1395 = vpack.c.b16 %v1373, %v1371
        %v1396 = vpack.c.b16 %v1374, %v1372
        %v1397 = vpack.c.b16 %v1377, %v1375
        %v1398 = vpack.c.b16 %v1378, %v1376
        %v1399 = vpack.c.b16 %v1381, %v1379
        %v1400 = vpack.c.b16 %v1382, %v1380
        %v1401 = vpack.c.b16 %v1385, %v1383
        %v1402 = vpack.c.b16 %v1386, %v1384
        %v1403 = vpack.c.b16 %v1389, %v1387
        %v1404 = vpack.c.b16 %v1390, %v1388
        %v1405 = vpack.c.b16 %v1393, %v1391
        %v1406 = vpack.c.b16 %v1394, %v1392
        %vm1419 = vcmask 785408
        %v1421 = vsel %vm1419, %v1350, 0
        %v1424 = vsel %vm1419, %v1358, 0
        %1426 = vmatprep.subr.bf16.mxu0 %v1396
        %1427 = vmatpush1.bf16.msra.mxu0 %v1395
        %1428 = vmatprep.subr.bf16.mxu0 %v1398
        %1429 = vmatpush1.bf16.msra.mxu0 %v1397
        %1430 = vmatprep.subr.bf16.mxu0 %v1400
        %1431 = vmatpush1.bf16.msra.mxu0 %v1399
        %1432 = vmatprep.subr.bf16.mxu0 %v1402
        %1433 = vmatpush1.bf16.msra.mxu0 %v1401
        %1434 = vmatprep.subr.bf16.mxu0 %v1404
        %1435 = vmatpush1.bf16.msra.mxu0 %v1403
        %1436 = vmatprep.subr.bf16.mxu0 %v1406
        %1437 = vmatpush1.bf16.msra.mxu0 %v1405
        %1438 = vmatprep.subr.bf16.mxu0 0
        %1439 = vmatpush1.bf16.msra.mxu0 0
        %1440 = vmatprep.subr.bf16.mxu0 0
        %1441 = vmatpush1.bf16.msra.mxu0 0
        %1442 = vmatprep.subr.bf16.mxu0 0
        %1443 = vmatpush1.bf16.msra.mxu0 0
        %1444 = vmatprep.subr.bf16.mxu0 0
        %1445 = vmatpush1.bf16.msra.mxu0 0
        %1446 = vmatprep.subr.bf16.mxu0 0
        %1447 = vmatpush1.bf16.msra.mxu0 0
        %1448 = vmatprep.subr.bf16.mxu0 0
        %1449 = vmatpush1.bf16.msra.mxu0 0
        %1450 = vmatprep.subr.bf16.mxu0 0
        %1451 = vmatpush1.bf16.msra.mxu0 0
        %1452 = vmatprep.subr.bf16.mxu0 0
        %1453 = vmatpush1.bf16.msra.mxu0 0
        %1454 = vmatprep.subr.bf16.mxu0 0
        %1455 = vmatpush1.bf16.msra.mxu0 0
        %1456 = vmatprep.subr.bf16.mxu0 0
        %1457 = vmatpush1.bf16.msra.mxu0 0
        %1458 = vmatprep.mubr.bf16.mxu0 0
        %1459 = vmatmul.mubr.bf16.gmra.mrb[0].mxu0 %v1421
        %v1460 = vpop.f32.mrb[0].mxu0
        %v1461 = vadd.f32 0.0, %v1460
        %v1462 = vpop.f32.mrb[0].mxu0
        %v1463 = vadd.f32 0.0, %v1462
        %v1464 = vpop.f32.mrb[0].mxu0
        %v1465 = vadd.f32 0.0, %v1464
        %v1466 = vpop.f32.mrb[0].mxu0
        %v1467 = vadd.f32 0.0, %v1466
        %1468 = vmatprep.mubr.bf16.mxu0 0
        %1469 = vmatmul.mubr.bf16.gmra.mrb[0].mxu0 %v1424
        %v1470 = vpop.f32.mrb[0].mxu0
        %v1471 = vadd.f32 0.0, %v1470
        %v1472 = vpop.f32.mrb[0].mxu0
        %v1473 = vadd.f32 0.0, %v1472
        %v1474 = vpop.f32.mrb[0].mxu0
        %v1475 = vadd.f32 0.0, %v1474
        %v1476 = vpop.f32.mrb[0].mxu0
        %v1477 = vadd.f32 0.0, %v1476
        %1478 = vdwg.mxu0
        %v1491 = vunpack.c.l.b16 %v1312
        %v1492 = vunpack.c.h.b16 %v1312
        %v1493 = vunpack.c.l.b16 %v1313
        %v1494 = vunpack.c.h.b16 %v1313
        %v1495 = vunpack.c.l.b16 %v1314
        %v1496 = vunpack.c.h.b16 %v1314
        %v1497 = vunpack.c.l.b16 %v1315
        %v1498 = vunpack.c.h.b16 %v1315
        %v1499 = vunpack.c.l.b16 %v1316
        %v1500 = vunpack.c.h.b16 %v1316
        %v1501 = vunpack.c.l.b16 %v1317
        %v1502 = vunpack.c.h.b16 %v1317
        %v1503 = vunpack.c.l.b16 %v1318
        %v1504 = vunpack.c.h.b16 %v1318
        %v1505 = vunpack.c.l.b16 %v1319
        %v1506 = vunpack.c.h.b16 %v1319
        %v1507 = vunpack.c.l.b16 %v1320
        %v1508 = vunpack.c.h.b16 %v1320
        %v1509 = vunpack.c.l.b16 %v1321
        %v1510 = vunpack.c.h.b16 %v1321
        %v1511 = vunpack.c.l.b16 %v1322
        %v1512 = vunpack.c.h.b16 %v1322
        %v1513 = vunpack.c.l.b16 %v1323
        %v1514 = vunpack.c.h.b16 %v1323
        %v1515 = vpack.c.b16 %v1493, %v1491
        %v1516 = vpack.c.b16 %v1494, %v1492
        %v1517 = vpack.c.b16 %v1497, %v1495
        %v1518 = vpack.c.b16 %v1498, %v1496
        %v1519 = vpack.c.b16 %v1501, %v1499
        %v1520 = vpack.c.b16 %v1502, %v1500
        %v1521 = vpack.c.b16 %v1505, %v1503
        %v1522 = vpack.c.b16 %v1506, %v1504
        %v1523 = vpack.c.b16 %v1509, %v1507
        %v1524 = vpack.c.b16 %v1510, %v1508
        %v1525 = vpack.c.b16 %v1513, %v1511
        %v1526 = vpack.c.b16 %v1514, %v1512
        %v1539 = vsel %vm1419, %v1310, 0
        %v1541 = vsel %vm1419, %v1311, 0
        %1543 = vmatprep.subr.bf16.mxu0 %v1516
        %1544 = vmatpush1.bf16.msra.mxu0 %v1515
        %1545 = vmatprep.subr.bf16.mxu0 %v1518
        %1546 = vmatpush1.bf16.msra.mxu0 %v1517
        %1547 = vmatprep.subr.bf16.mxu0 %v1520
        %1548 = vmatpush1.bf16.msra.mxu0 %v1519
        %1549 = vmatprep.subr.bf16.mxu0 %v1522
        %1550 = vmatpush1.bf16.msra.mxu0 %v1521
        %1551 = vmatprep.subr.bf16.mxu0 %v1524
        %1552 = vmatpush1.bf16.msra.mxu0 %v1523
        %1553 = vmatprep.subr.bf16.mxu0 %v1526
        %1554 = vmatpush1.bf16.msra.mxu0 %v1525
        %1555 = vmatprep.subr.bf16.mxu0 0
        %1556 = vmatpush1.bf16.msra.mxu0 0
        %1557 = vmatprep.subr.bf16.mxu0 0
        %1558 = vmatpush1.bf16.msra.mxu0 0
        %1559 = vmatprep.subr.bf16.mxu0 0
        %1560 = vmatpush1.bf16.msra.mxu0 0
        %1561 = vmatprep.subr.bf16.mxu0 0
        %1562 = vmatpush1.bf16.msra.mxu0 0
        %1563 = vmatprep.subr.bf16.mxu0 0
        %1564 = vmatpush1.bf16.msra.mxu0 0
        %1565 = vmatprep.subr.bf16.mxu0 0
        %1566 = vmatpush1.bf16.msra.mxu0 0
        %1567 = vmatprep.subr.bf16.mxu0 0
        %1568 = vmatpush1.bf16.msra.mxu0 0
        %1569 = vmatprep.subr.bf16.mxu0 0
        %1570 = vmatpush1.bf16.msra.mxu0 0
        %1571 = vmatprep.subr.bf16.mxu0 0
        %1572 = vmatpush1.bf16.msra.mxu0 0
        %1573 = vmatprep.subr.bf16.mxu0 0
        %1574 = vmatpush1.bf16.msra.mxu0 0
        %1575 = vmatprep.mubr.bf16.mxu0 0
        %1576 = vmatmul.mubr.bf16.gmra.mrb[0].mxu0 %v1539
        %v1577 = vpop.f32.mrb[0].mxu0
        %v1578 = vadd.f32 %v1461, %v1577
        %v1579 = vpop.f32.mrb[0].mxu0
        %v1580 = vadd.f32 %v1463, %v1579
        %v1581 = vpop.f32.mrb[0].mxu0
        %v1582 = vadd.f32 %v1465, %v1581
        %v1583 = vpop.f32.mrb[0].mxu0
        %v1584 = vadd.f32 %v1467, %v1583
        %1585 = vmatprep.mubr.bf16.mxu0 0
        %1586 = vmatmul.mubr.bf16.gmra.mrb[0].mxu0 %v1541
        %v1587 = vpop.f32.mrb[0].mxu0
        %v1588 = vadd.f32 %v1471, %v1587
        %v1589 = vpop.f32.mrb[0].mxu0
        %v1590 = vadd.f32 %v1473, %v1589
        %v1591 = vpop.f32.mrb[0].mxu0
        %v1592 = vadd.f32 %v1475, %v1591
        %v1593 = vpop.f32.mrb[0].mxu0
        %v1594 = vadd.f32 %v1477, %v1593
        %1595 = vdwg.mxu0
        %s1596 = scalar_lea.vmem %s5, 192
        %v1597 = vld [vmem:[%s1596] sm:$0xff]
        %v1598 = vld [vmem:[%s1596 + $0x8] sm:$0xff]
        %v1599 = vld [vmem:[%s1596 + $0x10] sm:$0xff]
        %v1600 = vld [vmem:[%s1596 + $0x18] sm:$0xff]
        %v1601 = vld [vmem:[%s1596 + $0x20] sm:$0xff]
        %v1602 = vld [vmem:[%s1596 + $0x28] sm:$0xff]
        %v1603 = vld [vmem:[%s1596 + $0x30] sm:$0xff]
        %v1604 = vld [vmem:[%s1596 + $0x38] sm:$0xff]
        %v1605 = vld [vmem:[%s1596 + $0x40] sm:$0xff]
        %v1606 = vld [vmem:[%s1596 + $0x48] sm:$0xff]
        %v1607 = vld [vmem:[%s1596 + $0x50] sm:$0xff]
        %v1608 = vld [vmem:[%s1596 + $0x58] sm:$0xff]
        %vm1612 = vcmask 1046528
        %v1613 = vrot.slane %v1310, 1
        %v1614 = vrot.slane %v1311, 1
        %v1615 = vsel %vm1612, %v1613, %v1614
        %v1616 = vrot.slane %v1324, 1
        %v1617 = vsel %vm1612, %v1614, %v1616
        %v1630 = vunpack.c.l.b16 %v1597
        %v1631 = vunpack.c.h.b16 %v1597
        %v1632 = vunpack.c.l.b16 %v1598
        %v1633 = vunpack.c.h.b16 %v1598
        %v1634 = vunpack.c.l.b16 %v1599
        %v1635 = vunpack.c.h.b16 %v1599
        %v1636 = vunpack.c.l.b16 %v1600
        %v1637 = vunpack.c.h.b16 %v1600
        %v1638 = vunpack.c.l.b16 %v1601
        %v1639 = vunpack.c.h.b16 %v1601
        %v1640 = vunpack.c.l.b16 %v1602
        %v1641 = vunpack.c.h.b16 %v1602
        %v1642 = vunpack.c.l.b16 %v1603
        %v1643 = vunpack.c.h.b16 %v1603
        %v1644 = vunpack.c.l.b16 %v1604
        %v1645 = vunpack.c.h.b16 %v1604
        %v1646 = vunpack.c.l.b16 %v1605
        %v1647 = vunpack.c.h.b16 %v1605
        %v1648 = vunpack.c.l.b16 %v1606
        %v1649 = vunpack.c.h.b16 %v1606
        %v1650 = vunpack.c.l.b16 %v1607
        %v1651 = vunpack.c.h.b16 %v1607
        %v1652 = vunpack.c.l.b16 %v1608
        %v1653 = vunpack.c.h.b16 %v1608
        %v1654 = vpack.c.b16 %v1632, %v1630
        %v1655 = vpack.c.b16 %v1633, %v1631
        %v1656 = vpack.c.b16 %v1636, %v1634
        %v1657 = vpack.c.b16 %v1637, %v1635
        %v1658 = vpack.c.b16 %v1640, %v1638
        %v1659 = vpack.c.b16 %v1641, %v1639
        %v1660 = vpack.c.b16 %v1644, %v1642
        %v1661 = vpack.c.b16 %v1645, %v1643
        %v1662 = vpack.c.b16 %v1648, %v1646
        %v1663 = vpack.c.b16 %v1649, %v1647
        %v1664 = vpack.c.b16 %v1652, %v1650
        %v1665 = vpack.c.b16 %v1653, %v1651
        %v1679 = vsel %vm1419, %v1615, 0
        %v1682 = vsel %vm1419, %v1617, 0
        %1684 = vmatprep.subr.bf16.mxu0 %v1655
        %1685 = vmatpush1.bf16.msra.mxu0 %v1654
        %1686 = vmatprep.subr.bf16.mxu0 %v1657
        %1687 = vmatpush1.bf16.msra.mxu0 %v1656
        %1688 = vmatprep.subr.bf16.mxu0 %v1659
        %1689 = vmatpush1.bf16.msra.mxu0 %v1658
        %1690 = vmatprep.subr.bf16.mxu0 %v1661
        %1691 = vmatpush1.bf16.msra.mxu0 %v1660
        %1692 = vmatprep.subr.bf16.mxu0 %v1663
        %1693 = vmatpush1.bf16.msra.mxu0 %v1662
        %1694 = vmatprep.subr.bf16.mxu0 %v1665
        %1695 = vmatpush1.bf16.msra.mxu0 %v1664
        %1696 = vmatprep.subr.bf16.mxu0 0
        %1697 = vmatpush1.bf16.msra.mxu0 0
        %1698 = vmatprep.subr.bf16.mxu0 0
        %1699 = vmatpush1.bf16.msra.mxu0 0
        %1700 = vmatprep.subr.bf16.mxu0 0
        %1701 = vmatpush1.bf16.msra.mxu0 0
        %1702 = vmatprep.subr.bf16.mxu0 0
        %1703 = vmatpush1.bf16.msra.mxu0 0
        %1704 = vmatprep.subr.bf16.mxu0 0
        %1705 = vmatpush1.bf16.msra.mxu0 0
        %1706 = vmatprep.subr.bf16.mxu0 0
        %1707 = vmatpush1.bf16.msra.mxu0 0
        %1708 = vmatprep.subr.bf16.mxu0 0
        %1709 = vmatpush1.bf16.msra.mxu0 0
        %1710 = vmatprep.subr.bf16.mxu0 0
        %1711 = vmatpush1.bf16.msra.mxu0 0
        %1712 = vmatprep.subr.bf16.mxu0 0
        %1713 = vmatpush1.bf16.msra.mxu0 0
        %1714 = vmatprep.subr.bf16.mxu0 0
        %1715 = vmatpush1.bf16.msra.mxu0 0
        %1716 = vmatprep.mubr.bf16.mxu0 0
        %1717 = vmatmul.mubr.bf16.gmra.mrb[0].mxu0 %v1679
        %v1718 = vpop.f32.mrb[0].mxu0
        %v1719 = vadd.f32 0.0, %v1718
        %v1720 = vpop.f32.mrb[0].mxu0
        %v1721 = vadd.f32 0.0, %v1720
        %v1722 = vpop.f32.mrb[0].mxu0
        %v1723 = vadd.f32 0.0, %v1722
        %v1724 = vpop.f32.mrb[0].mxu0
        %v1725 = vadd.f32 0.0, %v1724
        %1726 = vmatprep.mubr.bf16.mxu0 0
        %1727 = vmatmul.mubr.bf16.gmra.mrb[0].mxu0 %v1682
        %v1728 = vpop.f32.mrb[0].mxu0
        %v1729 = vadd.f32 0.0, %v1728
        %v1730 = vpop.f32.mrb[0].mxu0
        %v1731 = vadd.f32 0.0, %v1730
        %v1732 = vpop.f32.mrb[0].mxu0
        %v1733 = vadd.f32 0.0, %v1732
        %v1734 = vpop.f32.mrb[0].mxu0
        %v1735 = vadd.f32 0.0, %v1734
        %1736 = vdwg.mxu0
        %v1737 = vadd.f32 %v1578, %v1719
        %v1738 = vadd.f32 %v1580, %v1721
        %v1739 = vadd.f32 %v1582, %v1723
        %v1740 = vadd.f32 %v1584, %v1725
        %v1741 = vadd.f32 %v1588, %v1729
        %v1742 = vadd.f32 %v1590, %v1731
        %v1743 = vadd.f32 %v1592, %v1733
        %v1744 = vadd.f32 %v1594, %v1735
        %v1745 = vld [vmem:[#allocation2] sm:$0x3]
        %v1747 = vlaneseq
        %v1748 = vshrl.u32 %v1747, 7
        %v1749 = vsub.s32 0, %v1748
        %v1750 = vrot.slane %v1745, %v1749
        %v1751 = vlaneseq
        %v1752 = vshrl.u32 %v1751, 7
        %v1753 = vsub.s32 1, %v1752
        %v1754 = vrot.slane %v1745, %v1753
        %v1757 = vadd.f32 %v1737, %v1750
        %v1758 = vadd.f32 %v1738, %v1754
        %v1759 = vadd.f32 %v1739, %v1750
        %v1760 = vadd.f32 %v1740, %v1754
        %v1761 = vadd.f32 %v1741, %v1750
        %v1762 = vadd.f32 %v1742, %v1754
        %v1763 = vadd.f32 %v1743, %v1750
        %v1764 = vadd.f32 %v1744, %v1754
        %vm1765 = vcmp.gt.f32.partialorder %v1757, 0.0
        %vm1766 = vcmp.gt.f32.partialorder %v1758, 0.0
        %vm1767 = vcmp.gt.f32.partialorder %v1759, 0.0
        %vm1768 = vcmp.gt.f32.partialorder %v1760, 0.0
        %vm1769 = vcmp.gt.f32.partialorder %v1761, 0.0
        %vm1770 = vcmp.gt.f32.partialorder %v1762, 0.0
        %vm1771 = vcmp.gt.f32.partialorder %v1763, 0.0
        %vm1772 = vcmp.gt.f32.partialorder %v1764, 0.0
        %v1773 = vmul.f32 %v1757, 0.1
        %v1774 = vmul.f32 %v1758, 0.1
        %v1775 = vmul.f32 %v1759, 0.1
        %v1776 = vmul.f32 %v1760, 0.1
        %v1777 = vmul.f32 %v1761, 0.1
        %v1778 = vmul.f32 %v1762, 0.1
        %v1779 = vmul.f32 %v1763, 0.1
        %v1780 = vmul.f32 %v1764, 0.1
        %v1781 = vsel %vm1765, %v1757, %v1773
        %v1782 = vsel %vm1766, %v1758, %v1774
        %v1783 = vsel %vm1767, %v1759, %v1775
        %v1784 = vsel %vm1768, %v1760, %v1776
        %v1785 = vsel %vm1769, %v1761, %v1777
        %v1786 = vsel %vm1770, %v1762, %v1778
        %v1787 = vsel %vm1771, %v1763, %v1779
        %v1788 = vsel %vm1772, %v1764, %v1780
        %v1789 = vpack.c.bf16 %v1783, %v1781
        %v1790 = vpack.c.bf16 %v1784, %v1782
        %v1791 = vpack.c.bf16 %v1787, %v1785
        %v1792 = vpack.c.bf16 %v1788, %v1786
        %v1793 = vld [vmem:[%s9] sm:$0xf]
        %v1794 = vld [vmem:[%s9 + $0x4] sm:$0xf]
        %v1795 = vld [vmem:[%s9 + $0x8] sm:$0xf]
        %v1796 = vld [vmem:[%s9 + $0xc] sm:$0xf]
        %v1797 = vld [vmem:[%s9 + $0x10] sm:$0x1]
        %v1803 = vunpack.c.l.b16 %v1793
        %v1804 = vunpack.c.l.b16 %v1794
        %v1805 = vunpack.c.l.b16 %v1795
        %v1806 = vunpack.c.l.b16 %v1796
        %v1807 = vunpack.c.l.b16 %v1797
        %v1808 = vpack.c.b16 %v1804, %v1803
        %v1809 = vpack.c.b16 %v1806, %v1805
        %v1810 = vpack.c.b16 %v1807, %v1807
        %v1812 = vsel %vm1244, %v1808, 0
        %v1815 = vsel %vm1244, %v1809, 0
        %v1818 = vsel %vm1244, %v1810, 0
        %1820 = vmatprep.subr.bf16.mxu0 %v1790
        %1821 = vmatpush1.bf16.msra.mxu0 %v1789
        %1822 = vmatprep.subr.bf16.mxu0 %v1792
        %1823 = vmatpush1.bf16.msra.mxu0 %v1791
        %1824 = vmatprep.subr.bf16.mxu0 0
        %1825 = vmatpush1.bf16.msra.mxu0 0
        %1826 = vmatprep.subr.bf16.mxu0 0
        %1827 = vmatpush1.bf16.msra.mxu0 0
        %1828 = vmatprep.subr.bf16.mxu0 0
        %1829 = vmatpush1.bf16.msra.mxu0 0
        %1830 = vmatprep.subr.bf16.mxu0 0
        %1831 = vmatpush1.bf16.msra.mxu0 0
        %1832 = vmatprep.subr.bf16.mxu0 0
        %1833 = vmatpush1.bf16.msra.mxu0 0
        %1834 = vmatprep.subr.bf16.mxu0 0
        %1835 = vmatpush1.bf16.msra.mxu0 0
        %1836 = vmatprep.subr.bf16.mxu0 0
        %1837 = vmatpush1.bf16.msra.mxu0 0
        %1838 = vmatprep.subr.bf16.mxu0 0
        %1839 = vmatpush1.bf16.msra.mxu0 0
        %1840 = vmatprep.subr.bf16.mxu0 0
        %1841 = vmatpush1.bf16.msra.mxu0 0
        %1842 = vmatprep.subr.bf16.mxu0 0
        %1843 = vmatpush1.bf16.msra.mxu0 0
        %1844 = vmatprep.subr.bf16.mxu0 0
        %1845 = vmatpush1.bf16.msra.mxu0 0
        %1846 = vmatprep.subr.bf16.mxu0 0
        %1847 = vmatpush1.bf16.msra.mxu0 0
        %1848 = vmatprep.subr.bf16.mxu0 0
        %1849 = vmatpush1.bf16.msra.mxu0 0
        %1850 = vmatprep.subr.bf16.mxu0 0
        %1851 = vmatpush1.bf16.msra.mxu0 0
        %1852 = vmatprep.mubr.bf16.mxu0 0
        %1853 = vmatmul.mubr.bf16.gmra.mrb[0].mxu0 %v1812
        %v1854 = vpop.f32.mrb[0].mxu0
        %v1855 = vadd.f32 0.0, %v1854
        %v1856 = vpop.f32.mrb[0].mxu0
        %v1857 = vadd.f32 0.0, %v1856
        %v1858 = vpop.f32.mrb[0].mxu0
        %v1859 = vadd.f32 0.0, %v1858
        %v1860 = vpop.f32.mrb[0].mxu0
        %v1861 = vadd.f32 0.0, %v1860
        %1862 = vmatprep.mubr.bf16.mxu0 0
        %1863 = vmatmul.mubr.bf16.gmra.mrb[0].mxu0 %v1815
        %v1864 = vpop.f32.mrb[0].mxu0
        %v1865 = vadd.f32 0.0, %v1864
        %v1866 = vpop.f32.mrb[0].mxu0
        %v1867 = vadd.f32 0.0, %v1866
        %v1868 = vpop.f32.mrb[0].mxu0
        %v1869 = vadd.f32 0.0, %v1868
        %v1870 = vpop.f32.mrb[0].mxu0
        %v1871 = vadd.f32 0.0, %v1870
        %1872 = vmatprep.mubr.bf16.mxu0 0
        %1873 = vmatmul.mubr.bf16.gmra.mrb[0].mxu0 %v1818
        %v1874 = vpop.f32.mrb[0].mxu0
        %v1875 = vadd.f32 0.0, %v1874
        %v1876 = vpop.f32.mrb[0].mxu0
        %v1877 = vadd.f32 0.0, %v1876
        %v1878 = vpop.f32.mrb[0].mxu0
        %v1879 = vpop.f32.mrb[0].mxu0
        %1880 = vdwg.mxu0
        %v1881 = vpack.c.bf16 %v1859, %v1855
        %v1882 = vpack.c.bf16 %v1861, %v1857
        %v1883 = vld [vmem:[%s11] sm:$0xff]
        %v1884 = vld [vmem:[%s11 + $0x8] sm:$0xff]
        %v1885 = vld [vmem:[%s11 + $0x10] sm:$0xff]
        %v1886 = vld [vmem:[%s11 + $0x18] sm:$0xff]
        %v1887 = vld [vmem:[%s11 + $0x20] sm:$0xff]
        %v1888 = vld [vmem:[%s11 + $0x28] sm:$0xff]
        %v1889 = vld [vmem:[%s11 + $0x30] sm:$0xff]
        %v1890 = vld [vmem:[%s11 + $0x38] sm:$0xff]
        %v1891 = vld [vmem:[%s11 + $0x40] sm:$0xff]
        %v1892 = vld [vmem:[%s11 + $0x48] sm:$0xff]
        %v1893 = vld [vmem:[%s11 + $0x50] sm:$0xff]
        %v1894 = vld [vmem:[%s11 + $0x58] sm:$0xff]
        %v1895 = vld [vmem:[%s11 + $0x60] sm:$0xff]
        %v1896 = vld [vmem:[%s11 + $0x68] sm:$0xff]
        %v1897 = vld [vmem:[%s11 + $0x70] sm:$0xff]
        %v1898 = vld [vmem:[%s11 + $0x78] sm:$0xff]
        %v1899 = vld [vmem:[%s11 + $0x80] sm:$0xff]
        %v1900 = vld [vmem:[%s11 + $0x88] sm:$0xff]
        %v1901 = vld [vmem:[%s11 + $0x90] sm:$0xff]
        %v1902 = vld [vmem:[%s11 + $0x98] sm:$0xff]
        %v1903 = vld [vmem:[%s11 + $0xa0] sm:$0xff]
        %v1904 = vld [vmem:[%s11 + $0xa8] sm:$0xff]
        %v1905 = vld [vmem:[%s11 + $0xb0] sm:$0xff]
        %v1906 = vld [vmem:[%s11 + $0xb8] sm:$0xff]
        %v1907 = vld [vmem:[%s11 + $0xc0] sm:$0xff]
        %v1908 = vld [vmem:[%s11 + $0xc8] sm:$0xff]
        %v1909 = vld [vmem:[%s11 + $0xd0] sm:$0xff]
        %v1910 = vld [vmem:[%s11 + $0xd8] sm:$0xff]
        %v1911 = vld [vmem:[%s11 + $0xe0] sm:$0xff]
        %v1912 = vld [vmem:[%s11 + $0xe8] sm:$0xff]
        %v1913 = vld [vmem:[%s11 + $0xf0] sm:$0xff]
        %v1914 = vld [vmem:[%s11 + $0xf8] sm:$0xff]
        %v1915 = vpack.c.bf16 %v1869, %v1865
        %v1916 = vpack.c.bf16 %v1871, %v1867
        %v1917 = vpack.c.bf16 %v1875, %v1875
        %v1918 = vpack.c.bf16 %v1877, %v1877
        %s1919 = scalar_lea.vmem %s11, 256
        %v1920 = vld [vmem:[%s1919] sm:$0xff]
        %v1921 = vld [vmem:[%s1919 + $0x8] sm:$0xff]
        %v1922 = vld [vmem:[%s1919 + $0x10] sm:$0xff]
        %v1923 = vld [vmem:[%s1919 + $0x18] sm:$0xff]
        %v1924 = vld [vmem:[%s1919 + $0x20] sm:$0xff]
        %v1925 = vld [vmem:[%s1919 + $0x28] sm:$0xff]
        %v1926 = vld [vmem:[%s1919 + $0x30] sm:$0xff]
        %v1927 = vld [vmem:[%s1919 + $0x38] sm:$0xff]
        %v1928 = vld [vmem:[%s1919 + $0x40] sm:$0xff]
        %v1929 = vld [vmem:[%s1919 + $0x48] sm:$0xff]
        %v1930 = vld [vmem:[%s1919 + $0x50] sm:$0xff]
        %v1931 = vld [vmem:[%s1919 + $0x58] sm:$0xff]
        %v1932 = vld [vmem:[%s1919 + $0x60] sm:$0xff]
        %v1933 = vld [vmem:[%s1919 + $0x68] sm:$0xff]
        %v1934 = vld [vmem:[%s1919 + $0x70] sm:$0xff]
        %v1935 = vld [vmem:[%s1919 + $0x78] sm:$0xff]
        %v1936 = vld [vmem:[%s1919 + $0x80] sm:$0xff]
        %v1937 = vld [vmem:[%s1919 + $0x88] sm:$0xff]
        %v1938 = vld [vmem:[%s1919 + $0x90] sm:$0xff]
        %v1939 = vld [vmem:[%s1919 + $0x98] sm:$0xff]
        %v1940 = vld [vmem:[%s1919 + $0xa0] sm:$0xff]
        %v1941 = vld [vmem:[%s1919 + $0xa8] sm:$0xff]
        %v1942 = vld [vmem:[%s1919 + $0xb0] sm:$0xff]
        %v1943 = vld [vmem:[%s1919 + $0xb8] sm:$0xff]
        %v1944 = vld [vmem:[%s1919 + $0xc0] sm:$0xff]
        %v1945 = vld [vmem:[%s1919 + $0xc8] sm:$0xff]
        %v1946 = vld [vmem:[%s1919 + $0xd0] sm:$0xff]
        %v1947 = vld [vmem:[%s1919 + $0xd8] sm:$0xff]
        %v1948 = vld [vmem:[%s1919 + $0xe0] sm:$0xff]
        %v1949 = vld [vmem:[%s1919 + $0xe8] sm:$0xff]
        %v1950 = vld [vmem:[%s1919 + $0xf0] sm:$0xff]
        %v1951 = vld [vmem:[%s1919 + $0xf8] sm:$0xff]
        %v1953 = vshrl.u32 %v1915, 16
        %v1955 = vshll.u32 %v1915, 16
        %v1957 = vrot.slane %v1955, 1
        %v1958 = vor.u32 %v1953, %v1957
        %v1960 = vshll.u32 %v1917, 16
        %v1962 = vrot.slane %v1960, 1
        %v1963 = vsel %vm1338, %v1958, %v1962
        %v1965 = vshrl.u32 %v1916, 16
        %v1967 = vshll.u32 %v1916, 16
        %v1969 = vrot.slane %v1967, 1
        %v1970 = vor.u32 %v1965, %v1969
        %v1972 = vshll.u32 %v1918, 16
        %v1974 = vrot.slane %v1972, 1
        %v1975 = vsel %vm1338, %v1970, %v1974
        %v2010 = vunpack.c.l.b16 %v1920
        %v2011 = vunpack.c.h.b16 %v1920
        %v2012 = vunpack.c.l.b16 %v1921
        %v2013 = vunpack.c.h.b16 %v1921
        %v2014 = vunpack.c.l.b16 %v1922
        %v2015 = vunpack.c.h.b16 %v1922
        %v2016 = vunpack.c.l.b16 %v1923
        %v2017 = vunpack.c.h.b16 %v1923
        %v2018 = vunpack.c.l.b16 %v1924
        %v2019 = vunpack.c.h.b16 %v1924
        %v2020 = vunpack.c.l.b16 %v1925
        %v2021 = vunpack.c.h.b16 %v1925
        %v2022 = vunpack.c.l.b16 %v1926
        %v2023 = vunpack.c.h.b16 %v1926
        %v2024 = vunpack.c.l.b16 %v1927
        %v2025 = vunpack.c.h.b16 %v1927
        %v2026 = vunpack.c.l.b16 %v1928
        %v2027 = vunpack.c.h.b16 %v1928
        %v2028 = vunpack.c.l.b16 %v1929
        %v2029 = vunpack.c.h.b16 %v1929
        %v2030 = vunpack.c.l.b16 %v1930
        %v2031 = vunpack.c.h.b16 %v1930
        %v2032 = vunpack.c.l.b16 %v1931
        %v2033 = vunpack.c.h.b16 %v1931
        %v2034 = vunpack.c.l.b16 %v1932
        %v2035 = vunpack.c.h.b16 %v1932
        %v2036 = vunpack.c.l.b16 %v1933
        %v2037 = vunpack.c.h.b16 %v1933
        %v2038 = vunpack.c.l.b16 %v1934
        %v2039 = vunpack.c.h.b16 %v1934
        %v2040 = vunpack.c.l.b16 %v1935
        %v2041 = vunpack.c.h.b16 %v1935
        %v2042 = vunpack.c.l.b16 %v1936
        %v2043 = vunpack.c.h.b16 %v1936
        %v2044 = vunpack.c.l.b16 %v1937
        %v2045 = vunpack.c.h.b16 %v1937
        %v2046 = vunpack.c.l.b16 %v1938
        %v2047 = vunpack.c.h.b16 %v1938
        %v2048 = vunpack.c.l.b16 %v1939
        %v2049 = vunpack.c.h.b16 %v1939
        %v2050 = vunpack.c.l.b16 %v1940
        %v2051 = vunpack.c.h.b16 %v1940
        %v2052 = vunpack.c.l.b16 %v1941
        %v2053 = vunpack.c.h.b16 %v1941
        %v2054 = vunpack.c.l.b16 %v1942
        %v2055 = vunpack.c.h.b16 %v1942
        %v2056 = vunpack.c.l.b16 %v1943
        %v2057 = vunpack.c.h.b16 %v1943
        %v2058 = vunpack.c.l.b16 %v1944
        %v2059 = vunpack.c.h.b16 %v1944
        %v2060 = vunpack.c.l.b16 %v1945
        %v2061 = vunpack.c.h.b16 %v1945
        %v2062 = vunpack.c.l.b16 %v1946
        %v2063 = vunpack.c.h.b16 %v1946
        %v2064 = vunpack.c.l.b16 %v1947
        %v2065 = vunpack.c.h.b16 %v1947
        %v2066 = vunpack.c.l.b16 %v1948
        %v2067 = vunpack.c.h.b16 %v1948
        %v2068 = vunpack.c.l.b16 %v1949
        %v2069 = vunpack.c.h.b16 %v1949
        %v2070 = vunpack.c.l.b16 %v1950
        %v2071 = vunpack.c.h.b16 %v1950
        %v2072 = vunpack.c.l.b16 %v1951
        %v2073 = vunpack.c.h.b16 %v1951
        %v2074 = vpack.c.b16 %v2012, %v2010
        %v2075 = vpack.c.b16 %v2013, %v2011
        %v2076 = vpack.c.b16 %v2016, %v2014
        %v2077 = vpack.c.b16 %v2017, %v2015
        %v2078 = vpack.c.b16 %v2020, %v2018
        %v2079 = vpack.c.b16 %v2021, %v2019
        %v2080 = vpack.c.b16 %v2024, %v2022
        %v2081 = vpack.c.b16 %v2025, %v2023
        %v2082 = vpack.c.b16 %v2028, %v2026
        %v2083 = vpack.c.b16 %v2029, %v2027
        %v2084 = vpack.c.b16 %v2032, %v2030
        %v2085 = vpack.c.b16 %v2033, %v2031
        %v2086 = vpack.c.b16 %v2036, %v2034
        %v2087 = vpack.c.b16 %v2037, %v2035
        %v2088 = vpack.c.b16 %v2040, %v2038
        %v2089 = vpack.c.b16 %v2041, %v2039
        %v2090 = vpack.c.b16 %v2044, %v2042
        %v2091 = vpack.c.b16 %v2045, %v2043
        %v2092 = vpack.c.b16 %v2048, %v2046
        %v2093 = vpack.c.b16 %v2049, %v2047
        %v2094 = vpack.c.b16 %v2052, %v2050
        %v2095 = vpack.c.b16 %v2053, %v2051
        %v2096 = vpack.c.b16 %v2056, %v2054
        %v2097 = vpack.c.b16 %v2057, %v2055
        %v2098 = vpack.c.b16 %v2060, %v2058
        %v2099 = vpack.c.b16 %v2061, %v2059
        %v2100 = vpack.c.b16 %v2064, %v2062
        %v2101 = vpack.c.b16 %v2065, %v2063
        %v2102 = vpack.c.b16 %v2068, %v2066
        %v2103 = vpack.c.b16 %v2069, %v2067
        %v2104 = vpack.c.b16 %v2072, %v2070
        %v2105 = vpack.c.b16 %v2073, %v2071
        %2138 = vmatprep.subr.bf16.mxu0 %v2075
        %2139 = vmatpush1.bf16.msra.mxu0 %v2074
        %2140 = vmatprep.subr.bf16.mxu0 %v2077
        %2141 = vmatpush1.bf16.msra.mxu0 %v2076
        %2142 = vmatprep.subr.bf16.mxu0 %v2079
        %2143 = vmatpush1.bf16.msra.mxu0 %v2078
        %2144 = vmatprep.subr.bf16.mxu0 %v2081
        %2145 = vmatpush1.bf16.msra.mxu0 %v2080
        %2146 = vmatprep.subr.bf16.mxu0 %v2083
        %2147 = vmatpush1.bf16.msra.mxu0 %v2082
        %2148 = vmatprep.subr.bf16.mxu0 %v2085
        %2149 = vmatpush1.bf16.msra.mxu0 %v2084
        %2150 = vmatprep.subr.bf16.mxu0 %v2087
        %2151 = vmatpush1.bf16.msra.mxu0 %v2086
        %2152 = vmatprep.subr.bf16.mxu0 %v2089
        %2153 = vmatpush1.bf16.msra.mxu0 %v2088
        %2154 = vmatprep.subr.bf16.mxu0 %v2091
        %2155 = vmatpush1.bf16.msra.mxu0 %v2090
        %2156 = vmatprep.subr.bf16.mxu0 %v2093
        %2157 = vmatpush1.bf16.msra.mxu0 %v2092
        %2158 = vmatprep.subr.bf16.mxu0 %v2095
        %2159 = vmatpush1.bf16.msra.mxu0 %v2094
        %2160 = vmatprep.subr.bf16.mxu0 %v2097
        %2161 = vmatpush1.bf16.msra.mxu0 %v2096
        %2162 = vmatprep.subr.bf16.mxu0 %v2099
        %2163 = vmatpush1.bf16.msra.mxu0 %v2098
        %2164 = vmatprep.subr.bf16.mxu0 %v2101
        %2165 = vmatpush1.bf16.msra.mxu0 %v2100
        %2166 = vmatprep.subr.bf16.mxu0 %v2103
        %2167 = vmatpush1.bf16.msra.mxu0 %v2102
        %2168 = vmatprep.subr.bf16.mxu0 %v2105
        %2169 = vmatpush1.bf16.msra.mxu0 %v2104
        %2170 = vmatprep.mubr.bf16.mxu0 %v1975
        %2171 = vmatmul.mubr.bf16.gmra.mrb[0].mxu0 %v1963
        %v2172 = vpop.f32.mrb[0].mxu0
        %v2173 = vadd.f32 0.0, %v2172
        %v2174 = vpop.f32.mrb[0].mxu0
        %v2175 = vadd.f32 0.0, %v2174
        %v2176 = vpop.f32.mrb[0].mxu0
        %v2177 = vadd.f32 0.0, %v2176
        %v2178 = vpop.f32.mrb[0].mxu0
        %v2179 = vadd.f32 0.0, %v2178
        %2180 = vdwg.mxu0
        %v2213 = vunpack.c.l.b16 %v1883
        %v2214 = vunpack.c.h.b16 %v1883
        %v2215 = vunpack.c.l.b16 %v1884
        %v2216 = vunpack.c.h.b16 %v1884
        %v2217 = vunpack.c.l.b16 %v1885
        %v2218 = vunpack.c.h.b16 %v1885
        %v2219 = vunpack.c.l.b16 %v1886
        %v2220 = vunpack.c.h.b16 %v1886
        %v2221 = vunpack.c.l.b16 %v1887
        %v2222 = vunpack.c.h.b16 %v1887
        %v2223 = vunpack.c.l.b16 %v1888
        %v2224 = vunpack.c.h.b16 %v1888
        %v2225 = vunpack.c.l.b16 %v1889
        %v2226 = vunpack.c.h.b16 %v1889
        %v2227 = vunpack.c.l.b16 %v1890
        %v2228 = vunpack.c.h.b16 %v1890
        %v2229 = vunpack.c.l.b16 %v1891
        %v2230 = vunpack.c.h.b16 %v1891
        %v2231 = vunpack.c.l.b16 %v1892
        %v2232 = vunpack.c.h.b16 %v1892
        %v2233 = vunpack.c.l.b16 %v1893
        %v2234 = vunpack.c.h.b16 %v1893
        %v2235 = vunpack.c.l.b16 %v1894
        %v2236 = vunpack.c.h.b16 %v1894
        %v2237 = vunpack.c.l.b16 %v1895
        %v2238 = vunpack.c.h.b16 %v1895
        %v2239 = vunpack.c.l.b16 %v1896
        %v2240 = vunpack.c.h.b16 %v1896
        %v2241 = vunpack.c.l.b16 %v1897
        %v2242 = vunpack.c.h.b16 %v1897
        %v2243 = vunpack.c.l.b16 %v1898
        %v2244 = vunpack.c.h.b16 %v1898
        %v2245 = vunpack.c.l.b16 %v1899
        %v2246 = vunpack.c.h.b16 %v1899
        %v2247 = vunpack.c.l.b16 %v1900
        %v2248 = vunpack.c.h.b16 %v1900
        %v2249 = vunpack.c.l.b16 %v1901
        %v2250 = vunpack.c.h.b16 %v1901
        %v2251 = vunpack.c.l.b16 %v1902
        %v2252 = vunpack.c.h.b16 %v1902
        %v2253 = vunpack.c.l.b16 %v1903
        %v2254 = vunpack.c.h.b16 %v1903
        %v2255 = vunpack.c.l.b16 %v1904
        %v2256 = vunpack.c.h.b16 %v1904
        %v2257 = vunpack.c.l.b16 %v1905
        %v2258 = vunpack.c.h.b16 %v1905
        %v2259 = vunpack.c.l.b16 %v1906
        %v2260 = vunpack.c.h.b16 %v1906
        %v2261 = vunpack.c.l.b16 %v1907
        %v2262 = vunpack.c.h.b16 %v1907
        %v2263 = vunpack.c.l.b16 %v1908
        %v2264 = vunpack.c.h.b16 %v1908
        %v2265 = vunpack.c.l.b16 %v1909
        %v2266 = vunpack.c.h.b16 %v1909
        %v2267 = vunpack.c.l.b16 %v1910
        %v2268 = vunpack.c.h.b16 %v1910
        %v2269 = vunpack.c.l.b16 %v1911
        %v2270 = vunpack.c.h.b16 %v1911
        %v2271 = vunpack.c.l.b16 %v1912
        %v2272 = vunpack.c.h.b16 %v1912
        %v2273 = vunpack.c.l.b16 %v1913
        %v2274 = vunpack.c.h.b16 %v1913
        %v2275 = vunpack.c.l.b16 %v1914
        %v2276 = vunpack.c.h.b16 %v1914
        %v2277 = vpack.c.b16 %v2215, %v2213
        %v2278 = vpack.c.b16 %v2216, %v2214
        %v2279 = vpack.c.b16 %v2219, %v2217
        %v2280 = vpack.c.b16 %v2220, %v2218
        %v2281 = vpack.c.b16 %v2223, %v2221
        %v2282 = vpack.c.b16 %v2224, %v2222
        %v2283 = vpack.c.b16 %v2227, %v2225
        %v2284 = vpack.c.b16 %v2228, %v2226
        %v2285 = vpack.c.b16 %v2231, %v2229
        %v2286 = vpack.c.b16 %v2232, %v2230
        %v2287 = vpack.c.b16 %v2235, %v2233
        %v2288 = vpack.c.b16 %v2236, %v2234
        %v2289 = vpack.c.b16 %v2239, %v2237
        %v2290 = vpack.c.b16 %v2240, %v2238
        %v2291 = vpack.c.b16 %v2243, %v2241
        %v2292 = vpack.c.b16 %v2244, %v2242
        %v2293 = vpack.c.b16 %v2247, %v2245
        %v2294 = vpack.c.b16 %v2248, %v2246
        %v2295 = vpack.c.b16 %v2251, %v2249
        %v2296 = vpack.c.b16 %v2252, %v2250
        %v2297 = vpack.c.b16 %v2255, %v2253
        %v2298 = vpack.c.b16 %v2256, %v2254
        %v2299 = vpack.c.b16 %v2259, %v2257
        %v2300 = vpack.c.b16 %v2260, %v2258
        %v2301 = vpack.c.b16 %v2263, %v2261
        %v2302 = vpack.c.b16 %v2264, %v2262
        %v2303 = vpack.c.b16 %v2267, %v2265
        %v2304 = vpack.c.b16 %v2268, %v2266
        %v2305 = vpack.c.b16 %v2271, %v2269
        %v2306 = vpack.c.b16 %v2272, %v2270
        %v2307 = vpack.c.b16 %v2275, %v2273
        %v2308 = vpack.c.b16 %v2276, %v2274
        %2341 = vmatprep.subr.bf16.mxu0 %v2278
        %2342 = vmatpush1.bf16.msra.mxu0 %v2277
        %2343 = vmatprep.subr.bf16.mxu0 %v2280
        %2344 = vmatpush1.bf16.msra.mxu0 %v2279
        %2345 = vmatprep.subr.bf16.mxu0 %v2282
        %2346 = vmatpush1.bf16.msra.mxu0 %v2281
        %2347 = vmatprep.subr.bf16.mxu0 %v2284
        %2348 = vmatpush1.bf16.msra.mxu0 %v2283
        %2349 = vmatprep.subr.bf16.mxu0 %v2286
        %2350 = vmatpush1.bf16.msra.mxu0 %v2285
        %2351 = vmatprep.subr.bf16.mxu0 %v2288
        %2352 = vmatpush1.bf16.msra.mxu0 %v2287
        %2353 = vmatprep.subr.bf16.mxu0 %v2290
        %2354 = vmatpush1.bf16.msra.mxu0 %v2289
        %2355 = vmatprep.subr.bf16.mxu0 %v2292
        %2356 = vmatpush1.bf16.msra.mxu0 %v2291
        %2357 = vmatprep.subr.bf16.mxu0 %v2294
        %2358 = vmatpush1.bf16.msra.mxu0 %v2293
        %2359 = vmatprep.subr.bf16.mxu0 %v2296
        %2360 = vmatpush1.bf16.msra.mxu0 %v2295
        %2361 = vmatprep.subr.bf16.mxu0 %v2298
        %2362 = vmatpush1.bf16.msra.mxu0 %v2297
        %2363 = vmatprep.subr.bf16.mxu0 %v2300
        %2364 = vmatpush1.bf16.msra.mxu0 %v2299
        %2365 = vmatprep.subr.bf16.mxu0 %v2302
        %2366 = vmatpush1.bf16.msra.mxu0 %v2301
        %2367 = vmatprep.subr.bf16.mxu0 %v2304
        %2368 = vmatpush1.bf16.msra.mxu0 %v2303
        %2369 = vmatprep.subr.bf16.mxu0 %v2306
        %2370 = vmatpush1.bf16.msra.mxu0 %v2305
        %2371 = vmatprep.subr.bf16.mxu0 %v2308
        %2372 = vmatpush1.bf16.msra.mxu0 %v2307
        %2373 = vmatprep.mubr.bf16.mxu0 %v1882
        %2374 = vmatmul.mubr.bf16.gmra.mrb[0].mxu0 %v1881
        %v2375 = vpop.f32.mrb[0].mxu0
        %v2376 = vadd.f32 %v2173, %v2375
        %v2377 = vpop.f32.mrb[0].mxu0
        %v2378 = vadd.f32 %v2175, %v2377
        %v2379 = vpop.f32.mrb[0].mxu0
        %v2380 = vadd.f32 %v2177, %v2379
        %v2381 = vpop.f32.mrb[0].mxu0
        %v2382 = vadd.f32 %v2179, %v2381
        %2383 = vdwg.mxu0
        %v2384 = vpack.c.bf16 %v1865, %v1865
        %v2385 = vpack.c.bf16 %v1867, %v1867
        %s2386 = scalar_lea.vmem %s11, 512
        %v2387 = vld [vmem:[%s2386] sm:$0xff]
        %v2388 = vld [vmem:[%s2386 + $0x8] sm:$0xff]
        %v2389 = vld [vmem:[%s2386 + $0x10] sm:$0xff]
        %v2390 = vld [vmem:[%s2386 + $0x18] sm:$0xff]
        %v2391 = vld [vmem:[%s2386 + $0x20] sm:$0xff]
        %v2392 = vld [vmem:[%s2386 + $0x28] sm:$0xff]
        %v2393 = vld [vmem:[%s2386 + $0x30] sm:$0xff]
        %v2394 = vld [vmem:[%s2386 + $0x38] sm:$0xff]
        %v2395 = vld [vmem:[%s2386 + $0x40] sm:$0xff]
        %v2396 = vld [vmem:[%s2386 + $0x48] sm:$0xff]
        %v2397 = vld [vmem:[%s2386 + $0x50] sm:$0xff]
        %v2398 = vld [vmem:[%s2386 + $0x58] sm:$0xff]
        %v2399 = vld [vmem:[%s2386 + $0x60] sm:$0xff]
        %v2400 = vld [vmem:[%s2386 + $0x68] sm:$0xff]
        %v2401 = vld [vmem:[%s2386 + $0x70] sm:$0xff]
        %v2402 = vld [vmem:[%s2386 + $0x78] sm:$0xff]
        %v2403 = vld [vmem:[%s2386 + $0x80] sm:$0xff]
        %v2404 = vld [vmem:[%s2386 + $0x88] sm:$0xff]
        %v2405 = vld [vmem:[%s2386 + $0x90] sm:$0xff]
        %v2406 = vld [vmem:[%s2386 + $0x98] sm:$0xff]
        %v2407 = vld [vmem:[%s2386 + $0xa0] sm:$0xff]
        %v2408 = vld [vmem:[%s2386 + $0xa8] sm:$0xff]
        %v2409 = vld [vmem:[%s2386 + $0xb0] sm:$0xff]
        %v2410 = vld [vmem:[%s2386 + $0xb8] sm:$0xff]
        %v2411 = vld [vmem:[%s2386 + $0xc0] sm:$0xff]
        %v2412 = vld [vmem:[%s2386 + $0xc8] sm:$0xff]
        %v2413 = vld [vmem:[%s2386 + $0xd0] sm:$0xff]
        %v2414 = vld [vmem:[%s2386 + $0xd8] sm:$0xff]
        %v2415 = vld [vmem:[%s2386 + $0xe0] sm:$0xff]
        %v2416 = vld [vmem:[%s2386 + $0xe8] sm:$0xff]
        %v2417 = vld [vmem:[%s2386 + $0xf0] sm:$0xff]
        %v2418 = vld [vmem:[%s2386 + $0xf8] sm:$0xff]
        %v2420 = vshrl.u32 %v1881, 16
        %v2422 = vshll.u32 %v1881, 16
        %v2424 = vrot.slane %v2422, 1
        %v2425 = vor.u32 %v2420, %v2424
        %v2427 = vshll.u32 %v2384, 16
        %v2429 = vrot.slane %v2427, 1
        %v2430 = vsel %vm1338, %v2425, %v2429
        %v2432 = vshrl.u32 %v1882, 16
        %v2434 = vshll.u32 %v1882, 16
        %v2436 = vrot.slane %v2434, 1
        %v2437 = vor.u32 %v2432, %v2436
        %v2439 = vshll.u32 %v2385, 16
        %v2441 = vrot.slane %v2439, 1
        %v2442 = vsel %vm1338, %v2437, %v2441
        %v2477 = vunpack.c.l.b16 %v2387
        %v2478 = vunpack.c.h.b16 %v2387
        %v2479 = vunpack.c.l.b16 %v2388
        %v2480 = vunpack.c.h.b16 %v2388
        %v2481 = vunpack.c.l.b16 %v2389
        %v2482 = vunpack.c.h.b16 %v2389
        %v2483 = vunpack.c.l.b16 %v2390
        %v2484 = vunpack.c.h.b16 %v2390
        %v2485 = vunpack.c.l.b16 %v2391
        %v2486 = vunpack.c.h.b16 %v2391
        %v2487 = vunpack.c.l.b16 %v2392
        %v2488 = vunpack.c.h.b16 %v2392
        %v2489 = vunpack.c.l.b16 %v2393
        %v2490 = vunpack.c.h.b16 %v2393
        %v2491 = vunpack.c.l.b16 %v2394
        %v2492 = vunpack.c.h.b16 %v2394
        %v2493 = vunpack.c.l.b16 %v2395
        %v2494 = vunpack.c.h.b16 %v2395
        %v2495 = vunpack.c.l.b16 %v2396
        %v2496 = vunpack.c.h.b16 %v2396
        %v2497 = vunpack.c.l.b16 %v2397
        %v2498 = vunpack.c.h.b16 %v2397
        %v2499 = vunpack.c.l.b16 %v2398
        %v2500 = vunpack.c.h.b16 %v2398
        %v2501 = vunpack.c.l.b16 %v2399
        %v2502 = vunpack.c.h.b16 %v2399
        %v2503 = vunpack.c.l.b16 %v2400
        %v2504 = vunpack.c.h.b16 %v2400
        %v2505 = vunpack.c.l.b16 %v2401
        %v2506 = vunpack.c.h.b16 %v2401
        %v2507 = vunpack.c.l.b16 %v2402
        %v2508 = vunpack.c.h.b16 %v2402
        %v2509 = vunpack.c.l.b16 %v2403
        %v2510 = vunpack.c.h.b16 %v2403
        %v2511 = vunpack.c.l.b16 %v2404
        %v2512 = vunpack.c.h.b16 %v2404
        %v2513 = vunpack.c.l.b16 %v2405
        %v2514 = vunpack.c.h.b16 %v2405
        %v2515 = vunpack.c.l.b16 %v2406
        %v2516 = vunpack.c.h.b16 %v2406
        %v2517 = vunpack.c.l.b16 %v2407
        %v2518 = vunpack.c.h.b16 %v2407
        %v2519 = vunpack.c.l.b16 %v2408
        %v2520 = vunpack.c.h.b16 %v2408
        %v2521 = vunpack.c.l.b16 %v2409
        %v2522 = vunpack.c.h.b16 %v2409
        %v2523 = vunpack.c.l.b16 %v2410
        %v2524 = vunpack.c.h.b16 %v2410
        %v2525 = vunpack.c.l.b16 %v2411
        %v2526 = vunpack.c.h.b16 %v2411
        %v2527 = vunpack.c.l.b16 %v2412
        %v2528 = vunpack.c.h.b16 %v2412
        %v2529 = vunpack.c.l.b16 %v2413
        %v2530 = vunpack.c.h.b16 %v2413
        %v2531 = vunpack.c.l.b16 %v2414
        %v2532 = vunpack.c.h.b16 %v2414
        %v2533 = vunpack.c.l.b16 %v2415
        %v2534 = vunpack.c.h.b16 %v2415
        %v2535 = vunpack.c.l.b16 %v2416
        %v2536 = vunpack.c.h.b16 %v2416
        %v2537 = vunpack.c.l.b16 %v2417
        %v2538 = vunpack.c.h.b16 %v2417
        %v2539 = vunpack.c.l.b16 %v2418
        %v2540 = vunpack.c.h.b16 %v2418
        %v2541 = vpack.c.b16 %v2479, %v2477
        %v2542 = vpack.c.b16 %v2480, %v2478
        %v2543 = vpack.c.b16 %v2483, %v2481
        %v2544 = vpack.c.b16 %v2484, %v2482
        %v2545 = vpack.c.b16 %v2487, %v2485
        %v2546 = vpack.c.b16 %v2488, %v2486
        %v2547 = vpack.c.b16 %v2491, %v2489
        %v2548 = vpack.c.b16 %v2492, %v2490
        %v2549 = vpack.c.b16 %v2495, %v2493
        %v2550 = vpack.c.b16 %v2496, %v2494
        %v2551 = vpack.c.b16 %v2499, %v2497
        %v2552 = vpack.c.b16 %v2500, %v2498
        %v2553 = vpack.c.b16 %v2503, %v2501
        %v2554 = vpack.c.b16 %v2504, %v2502
        %v2555 = vpack.c.b16 %v2507, %v2505
        %v2556 = vpack.c.b16 %v2508, %v2506
        %v2557 = vpack.c.b16 %v2511, %v2509
        %v2558 = vpack.c.b16 %v2512, %v2510
        %v2559 = vpack.c.b16 %v2515, %v2513
        %v2560 = vpack.c.b16 %v2516, %v2514
        %v2561 = vpack.c.b16 %v2519, %v2517
        %v2562 = vpack.c.b16 %v2520, %v2518
        %v2563 = vpack.c.b16 %v2523, %v2521
        %v2564 = vpack.c.b16 %v2524, %v2522
        %v2565 = vpack.c.b16 %v2527, %v2525
        %v2566 = vpack.c.b16 %v2528, %v2526
        %v2567 = vpack.c.b16 %v2531, %v2529
        %v2568 = vpack.c.b16 %v2532, %v2530
        %v2569 = vpack.c.b16 %v2535, %v2533
        %v2570 = vpack.c.b16 %v2536, %v2534
        %v2571 = vpack.c.b16 %v2539, %v2537
        %v2572 = vpack.c.b16 %v2540, %v2538
        %2605 = vmatprep.subr.bf16.mxu0 %v2542
        %2606 = vmatpush1.bf16.msra.mxu0 %v2541
        %2607 = vmatprep.subr.bf16.mxu0 %v2544
        %2608 = vmatpush1.bf16.msra.mxu0 %v2543
        %2609 = vmatprep.subr.bf16.mxu0 %v2546
        %2610 = vmatpush1.bf16.msra.mxu0 %v2545
        %2611 = vmatprep.subr.bf16.mxu0 %v2548
        %2612 = vmatpush1.bf16.msra.mxu0 %v2547
        %2613 = vmatprep.subr.bf16.mxu0 %v2550
        %2614 = vmatpush1.bf16.msra.mxu0 %v2549
        %2615 = vmatprep.subr.bf16.mxu0 %v2552
        %2616 = vmatpush1.bf16.msra.mxu0 %v2551
        %2617 = vmatprep.subr.bf16.mxu0 %v2554
        %2618 = vmatpush1.bf16.msra.mxu0 %v2553
        %2619 = vmatprep.subr.bf16.mxu0 %v2556
        %2620 = vmatpush1.bf16.msra.mxu0 %v2555
        %2621 = vmatprep.subr.bf16.mxu0 %v2558
        %2622 = vmatpush1.bf16.msra.mxu0 %v2557
        %2623 = vmatprep.subr.bf16.mxu0 %v2560
        %2624 = vmatpush1.bf16.msra.mxu0 %v2559
        %2625 = vmatprep.subr.bf16.mxu0 %v2562
        %2626 = vmatpush1.bf16.msra.mxu0 %v2561
        %2627 = vmatprep.subr.bf16.mxu0 %v2564
        %2628 = vmatpush1.bf16.msra.mxu0 %v2563
        %2629 = vmatprep.subr.bf16.mxu0 %v2566
        %2630 = vmatpush1.bf16.msra.mxu0 %v2565
        %2631 = vmatprep.subr.bf16.mxu0 %v2568
        %2632 = vmatpush1.bf16.msra.mxu0 %v2567
        %2633 = vmatprep.subr.bf16.mxu0 %v2570
        %2634 = vmatpush1.bf16.msra.mxu0 %v2569
        %2635 = vmatprep.subr.bf16.mxu0 %v2572
        %2636 = vmatpush1.bf16.msra.mxu0 %v2571
        %2637 = vmatprep.mubr.bf16.mxu0 %v2442
        %2638 = vmatmul.mubr.bf16.gmra.mrb[0].mxu0 %v2430
        %v2639 = vpop.f32.mrb[0].mxu0
        %v2640 = vadd.f32 0.0, %v2639
        %v2641 = vpop.f32.mrb[0].mxu0
        %v2642 = vadd.f32 0.0, %v2641
        %v2643 = vpop.f32.mrb[0].mxu0
        %v2644 = vadd.f32 0.0, %v2643
        %v2645 = vpop.f32.mrb[0].mxu0
        %v2646 = vadd.f32 0.0, %v2645
        %2647 = vdwg.mxu0
        %v2648 = vadd.f32 %v2376, %v2640
        %v2649 = vadd.f32 %v2378, %v2642
        %v2650 = vadd.f32 %v2380, %v2644
        %v2651 = vadd.f32 %v2382, %v2646
        %v2652 = vld [vmem:[#allocation4] sm:$0x3]
        %v2654 = vlaneseq
        %v2655 = vshrl.u32 %v2654, 7
        %v2656 = vsub.s32 0, %v2655
        %v2657 = vrot.slane %v2652, %v2656
        %v2658 = vlaneseq
        %v2659 = vshrl.u32 %v2658, 7
        %v2660 = vsub.s32 1, %v2659
        %v2661 = vrot.slane %v2652, %v2660
        %v2664 = vadd.f32 %v2648, %v2657
        %v2665 = vadd.f32 %v2649, %v2661
        %v2666 = vadd.f32 %v2650, %v2657
        %v2667 = vadd.f32 %v2651, %v2661
        %vm2668 = vcmp.gt.f32.partialorder %v2664, 0.0
        %vm2669 = vcmp.gt.f32.partialorder %v2665, 0.0
        %vm2670 = vcmp.gt.f32.partialorder %v2666, 0.0
        %vm2671 = vcmp.gt.f32.partialorder %v2667, 0.0
        %v2672 = vmul.f32 %v2664, 0.1
        %v2673 = vmul.f32 %v2665, 0.1
        %v2674 = vmul.f32 %v2666, 0.1
        %v2675 = vmul.f32 %v2667, 0.1
        %v2676 = vsel %vm2668, %v2664, %v2672
        %v2677 = vsel %vm2669, %v2665, %v2673
        %v2678 = vsel %vm2670, %v2666, %v2674
        %v2679 = vsel %vm2671, %v2667, %v2675
        %v2680 = vpack.c.bf16 %v2678, %v2676
        %v2681 = vpack.c.bf16 %v2679, %v2677
        %v2682 = vld [vmem:[%s15] sm:$0xf]
        %v2683 = vld [vmem:[%s15 + $0x4] sm:$0xf]
        %v2684 = vld [vmem:[%s15 + $0x8] sm:$0x1]
        %v2688 = vunpack.c.l.b16 %v2682
        %v2689 = vunpack.c.l.b16 %v2683
        %v2690 = vunpack.c.l.b16 %v2684
        %v2691 = vpack.c.b16 %v2689, %v2688
        %v2692 = vpack.c.b16 %v2690, %v2690
        %vm2693 = vcmask 130048
        %v2695 = vsel %vm2693, %v2691, 0
        %v2698 = vsel %vm2693, %v2692, 0
        %2700 = vmatprep.subr.bf16.mxu0 %v2681
        %2701 = vmatpush1.bf16.msra.mxu0 %v2680
        %2702 = vmatprep.subr.bf16.mxu0 0
        %2703 = vmatpush1.bf16.msra.mxu0 0
        %2704 = vmatprep.subr.bf16.mxu0 0
        %2705 = vmatpush1.bf16.msra.mxu0 0
        %2706 = vmatprep.subr.bf16.mxu0 0
        %2707 = vmatpush1.bf16.msra.mxu0 0
        %2708 = vmatprep.subr.bf16.mxu0 0
        %2709 = vmatpush1.bf16.msra.mxu0 0
        %2710 = vmatprep.subr.bf16.mxu0 0
        %2711 = vmatpush1.bf16.msra.mxu0 0
        %2712 = vmatprep.subr.bf16.mxu0 0
        %2713 = vmatpush1.bf16.msra.mxu0 0
        %2714 = vmatprep.subr.bf16.mxu0 0
        %2715 = vmatpush1.bf16.msra.mxu0 0
        %2716 = vmatprep.subr.bf16.mxu0 0
        %2717 = vmatpush1.bf16.msra.mxu0 0
        %2718 = vmatprep.subr.bf16.mxu0 0
        %2719 = vmatpush1.bf16.msra.mxu0 0
        %2720 = vmatprep.subr.bf16.mxu0 0
        %2721 = vmatpush1.bf16.msra.mxu0 0
        %2722 = vmatprep.subr.bf16.mxu0 0
        %2723 = vmatpush1.bf16.msra.mxu0 0
        %2724 = vmatprep.subr.bf16.mxu0 0
        %2725 = vmatpush1.bf16.msra.mxu0 0
        %2726 = vmatprep.subr.bf16.mxu0 0
        %2727 = vmatpush1.bf16.msra.mxu0 0
        %2728 = vmatprep.subr.bf16.mxu0 0
        %2729 = vmatpush1.bf16.msra.mxu0 0
        %2730 = vmatprep.subr.bf16.mxu0 0
        %2731 = vmatpush1.bf16.msra.mxu0 0
        %2732 = vmatprep.mubr.bf16.mxu0 0
        %2733 = vmatmul.mubr.bf16.gmra.mrb[0].mxu0 %v2695
        %v2734 = vpop.f32.mrb[0].mxu0
        %v2735 = vadd.f32 0.0, %v2734
        %v2736 = vpop.f32.mrb[0].mxu0
        %v2737 = vadd.f32 0.0, %v2736
        %v2738 = vpop.f32.mrb[0].mxu0
        %v2739 = vadd.f32 0.0, %v2738
        %v2740 = vpop.f32.mrb[0].mxu0
        %v2741 = vadd.f32 0.0, %v2740
        %2742 = vmatprep.mubr.bf16.mxu0 0
        %2743 = vmatmul.mubr.bf16.gmra.mrb[0].mxu0 %v2698
        %v2744 = vpop.f32.mrb[0].mxu0
        %v2745 = vadd.f32 0.0, %v2744
        %v2746 = vpop.f32.mrb[0].mxu0
        %v2747 = vadd.f32 0.0, %v2746
        %v2748 = vpop.f32.mrb[0].mxu0
        %v2749 = vpop.f32.mrb[0].mxu0
        %2750 = vdwg.mxu0
        %v2751 = vpack.c.bf16 %v2735, %v2735
        %v2752 = vpack.c.bf16 %v2737, %v2737
        %v2753 = vld [vmem:[%s17] sm:$0xff]
        %v2754 = vld [vmem:[%s17 + $0x8] sm:$0xff]
        %v2755 = vld [vmem:[%s17 + $0x10] sm:$0xff]
        %v2756 = vld [vmem:[%s17 + $0x18] sm:$0xff]
        %v2757 = vld [vmem:[%s17 + $0x20] sm:$0xff]
        %v2758 = vld [vmem:[%s17 + $0x28] sm:$0xff]
        %v2759 = vld [vmem:[%s17 + $0x30] sm:$0xff]
        %v2760 = vld [vmem:[%s17 + $0x38] sm:$0xff]
        %v2761 = vld [vmem:[%s17 + $0x40] sm:$0xff]
        %v2762 = vld [vmem:[%s17 + $0x48] sm:$0xff]
        %v2763 = vld [vmem:[%s17 + $0x50] sm:$0xff]
        %v2764 = vld [vmem:[%s17 + $0x58] sm:$0xff]
        %v2765 = vld [vmem:[%s17 + $0x60] sm:$0xff]
        %v2766 = vld [vmem:[%s17 + $0x68] sm:$0xff]
        %v2767 = vld [vmem:[%s17 + $0x70] sm:$0xff]
        %v2768 = vld [vmem:[%s17 + $0x78] sm:$0xff]
        %v2769 = vld [vmem:[%s17 + $0x80] sm:$0xff]
        %v2770 = vld [vmem:[%s17 + $0x88] sm:$0xff]
        %v2771 = vld [vmem:[%s17 + $0x90] sm:$0xff]
        %v2772 = vld [vmem:[%s17 + $0x98] sm:$0xff]
        %v2773 = vld [vmem:[%s17 + $0xa0] sm:$0xff]
        %v2774 = vld [vmem:[%s17 + $0xa8] sm:$0xff]
        %v2775 = vld [vmem:[%s17 + $0xb0] sm:$0xff]
        %v2776 = vld [vmem:[%s17 + $0xb8] sm:$0xff]
        %v2777 = vld [vmem:[%s17 + $0xc0] sm:$0xff]
        %v2778 = vld [vmem:[%s17 + $0xc8] sm:$0xff]
        %v2779 = vld [vmem:[%s17 + $0xd0] sm:$0xff]
        %v2780 = vld [vmem:[%s17 + $0xd8] sm:$0xff]
        %v2781 = vld [vmem:[%s17 + $0xe0] sm:$0xff]
        %v2782 = vld [vmem:[%s17 + $0xe8] sm:$0xff]
        %v2783 = vld [vmem:[%s17 + $0xf0] sm:$0xff]
        %v2784 = vld [vmem:[%s17 + $0xf8] sm:$0xff]
        %v2785 = vpack.c.bf16 %v2745, %v2739
        %v2786 = vpack.c.bf16 %v2747, %v2741
        %s2787 = scalar_lea.vmem %s17, 256
        %v2788 = vld [vmem:[%s2787] sm:$0xff]
        %v2789 = vld [vmem:[%s2787 + $0x8] sm:$0xff]
        %v2790 = vld [vmem:[%s2787 + $0x10] sm:$0xff]
        %v2791 = vld [vmem:[%s2787 + $0x18] sm:$0xff]
        %v2792 = vld [vmem:[%s2787 + $0x20] sm:$0xff]
        %v2793 = vld [vmem:[%s2787 + $0x28] sm:$0xff]
        %v2794 = vld [vmem:[%s2787 + $0x30] sm:$0xff]
        %v2795 = vld [vmem:[%s2787 + $0x38] sm:$0xff]
        %v2796 = vld [vmem:[%s2787 + $0x40] sm:$0xff]
        %v2797 = vld [vmem:[%s2787 + $0x48] sm:$0xff]
        %v2798 = vld [vmem:[%s2787 + $0x50] sm:$0xff]
        %v2799 = vld [vmem:[%s2787 + $0x58] sm:$0xff]
        %v2800 = vld [vmem:[%s2787 + $0x60] sm:$0xff]
        %v2801 = vld [vmem:[%s2787 + $0x68] sm:$0xff]
        %v2802 = vld [vmem:[%s2787 + $0x70] sm:$0xff]
        %v2803 = vld [vmem:[%s2787 + $0x78] sm:$0xff]
        %v2804 = vld [vmem:[%s2787 + $0x80] sm:$0xff]
        %v2805 = vld [vmem:[%s2787 + $0x88] sm:$0xff]
        %v2806 = vld [vmem:[%s2787 + $0x90] sm:$0xff]
        %v2807 = vld [vmem:[%s2787 + $0x98] sm:$0xff]
        %v2808 = vld [vmem:[%s2787 + $0xa0] sm:$0xff]
        %v2809 = vld [vmem:[%s2787 + $0xa8] sm:$0xff]
        %v2810 = vld [vmem:[%s2787 + $0xb0] sm:$0xff]
        %v2811 = vld [vmem:[%s2787 + $0xb8] sm:$0xff]
        %v2812 = vld [vmem:[%s2787 + $0xc0] sm:$0xff]
        %v2813 = vld [vmem:[%s2787 + $0xc8] sm:$0xff]
        %v2814 = vld [vmem:[%s2787 + $0xd0] sm:$0xff]
        %v2815 = vld [vmem:[%s2787 + $0xd8] sm:$0xff]
        %v2816 = vld [vmem:[%s2787 + $0xe0] sm:$0xff]
        %v2817 = vld [vmem:[%s2787 + $0xe8] sm:$0xff]
        %v2818 = vld [vmem:[%s2787 + $0xf0] sm:$0xff]
        %v2819 = vld [vmem:[%s2787 + $0xf8] sm:$0xff]
        %v2821 = vshrl.u32 %v2785, 16
        %v2823 = vshll.u32 %v2785, 16
        %v2825 = vrot.slane %v2823, 1
        %v2826 = vor.u32 %v2821, %v2825
        %v2828 = vshrl.u32 %v2786, 16
        %v2830 = vshll.u32 %v2786, 16
        %v2832 = vrot.slane %v2830, 1
        %v2833 = vor.u32 %v2828, %v2832
        %v2868 = vunpack.c.l.b16 %v2788
        %v2869 = vunpack.c.h.b16 %v2788
        %v2870 = vunpack.c.l.b16 %v2789
        %v2871 = vunpack.c.h.b16 %v2789
        %v2872 = vunpack.c.l.b16 %v2790
        %v2873 = vunpack.c.h.b16 %v2790
        %v2874 = vunpack.c.l.b16 %v2791
        %v2875 = vunpack.c.h.b16 %v2791
        %v2876 = vunpack.c.l.b16 %v2792
        %v2877 = vunpack.c.h.b16 %v2792
        %v2878 = vunpack.c.l.b16 %v2793
        %v2879 = vunpack.c.h.b16 %v2793
        %v2880 = vunpack.c.l.b16 %v2794
        %v2881 = vunpack.c.h.b16 %v2794
        %v2882 = vunpack.c.l.b16 %v2795
        %v2883 = vunpack.c.h.b16 %v2795
        %v2884 = vunpack.c.l.b16 %v2796
        %v2885 = vunpack.c.h.b16 %v2796
        %v2886 = vunpack.c.l.b16 %v2797
        %v2887 = vunpack.c.h.b16 %v2797
        %v2888 = vunpack.c.l.b16 %v2798
        %v2889 = vunpack.c.h.b16 %v2798
        %v2890 = vunpack.c.l.b16 %v2799
        %v2891 = vunpack.c.h.b16 %v2799
        %v2892 = vunpack.c.l.b16 %v2800
        %v2893 = vunpack.c.h.b16 %v2800
        %v2894 = vunpack.c.l.b16 %v2801
        %v2895 = vunpack.c.h.b16 %v2801
        %v2896 = vunpack.c.l.b16 %v2802
        %v2897 = vunpack.c.h.b16 %v2802
        %v2898 = vunpack.c.l.b16 %v2803
        %v2899 = vunpack.c.h.b16 %v2803
        %v2900 = vunpack.c.l.b16 %v2804
        %v2901 = vunpack.c.h.b16 %v2804
        %v2902 = vunpack.c.l.b16 %v2805
        %v2903 = vunpack.c.h.b16 %v2805
        %v2904 = vunpack.c.l.b16 %v2806
        %v2905 = vunpack.c.h.b16 %v2806
        %v2906 = vunpack.c.l.b16 %v2807
        %v2907 = vunpack.c.h.b16 %v2807
        %v2908 = vunpack.c.l.b16 %v2808
        %v2909 = vunpack.c.h.b16 %v2808
        %v2910 = vunpack.c.l.b16 %v2809
        %v2911 = vunpack.c.h.b16 %v2809
        %v2912 = vunpack.c.l.b16 %v2810
        %v2913 = vunpack.c.h.b16 %v2810
        %v2914 = vunpack.c.l.b16 %v2811
        %v2915 = vunpack.c.h.b16 %v2811
        %v2916 = vunpack.c.l.b16 %v2812
        %v2917 = vunpack.c.h.b16 %v2812
        %v2918 = vunpack.c.l.b16 %v2813
        %v2919 = vunpack.c.h.b16 %v2813
        %v2920 = vunpack.c.l.b16 %v2814
        %v2921 = vunpack.c.h.b16 %v2814
        %v2922 = vunpack.c.l.b16 %v2815
        %v2923 = vunpack.c.h.b16 %v2815
        %v2924 = vunpack.c.l.b16 %v2816
        %v2925 = vunpack.c.h.b16 %v2816
        %v2926 = vunpack.c.l.b16 %v2817
        %v2927 = vunpack.c.h.b16 %v2817
        %v2928 = vunpack.c.l.b16 %v2818
        %v2929 = vunpack.c.h.b16 %v2818
        %v2930 = vunpack.c.l.b16 %v2819
        %v2931 = vunpack.c.h.b16 %v2819
        %v2932 = vpack.c.b16 %v2870, %v2868
        %v2933 = vpack.c.b16 %v2871, %v2869
        %v2934 = vpack.c.b16 %v2874, %v2872
        %v2935 = vpack.c.b16 %v2875, %v2873
        %v2936 = vpack.c.b16 %v2878, %v2876
        %v2937 = vpack.c.b16 %v2879, %v2877
        %v2938 = vpack.c.b16 %v2882, %v2880
        %v2939 = vpack.c.b16 %v2883, %v2881
        %v2940 = vpack.c.b16 %v2886, %v2884
        %v2941 = vpack.c.b16 %v2887, %v2885
        %v2942 = vpack.c.b16 %v2890, %v2888
        %v2943 = vpack.c.b16 %v2891, %v2889
        %v2944 = vpack.c.b16 %v2894, %v2892
        %v2945 = vpack.c.b16 %v2895, %v2893
        %v2946 = vpack.c.b16 %v2898, %v2896
        %v2947 = vpack.c.b16 %v2899, %v2897
        %v2948 = vpack.c.b16 %v2902, %v2900
        %v2949 = vpack.c.b16 %v2903, %v2901
        %v2950 = vpack.c.b16 %v2906, %v2904
        %v2951 = vpack.c.b16 %v2907, %v2905
        %v2952 = vpack.c.b16 %v2910, %v2908
        %v2953 = vpack.c.b16 %v2911, %v2909
        %v2954 = vpack.c.b16 %v2914, %v2912
        %v2955 = vpack.c.b16 %v2915, %v2913
        %v2956 = vpack.c.b16 %v2918, %v2916
        %v2957 = vpack.c.b16 %v2919, %v2917
        %v2958 = vpack.c.b16 %v2922, %v2920
        %v2959 = vpack.c.b16 %v2923, %v2921
        %v2960 = vpack.c.b16 %v2926, %v2924
        %v2961 = vpack.c.b16 %v2927, %v2925
        %v2962 = vpack.c.b16 %v2930, %v2928
        %v2963 = vpack.c.b16 %v2931, %v2929
        %2996 = vmatprep.subr.bf16.mxu0 %v2933
        %2997 = vmatpush1.bf16.msra.mxu0 %v2932
        %2998 = vmatprep.subr.bf16.mxu0 %v2935
        %2999 = vmatpush1.bf16.msra.mxu0 %v2934
        %3000 = vmatprep.subr.bf16.mxu0 %v2937
        %3001 = vmatpush1.bf16.msra.mxu0 %v2936
        %3002 = vmatprep.subr.bf16.mxu0 %v2939
        %3003 = vmatpush1.bf16.msra.mxu0 %v2938
        %3004 = vmatprep.subr.bf16.mxu0 %v2941
        %3005 = vmatpush1.bf16.msra.mxu0 %v2940
        %3006 = vmatprep.subr.bf16.mxu0 %v2943
        %3007 = vmatpush1.bf16.msra.mxu0 %v2942
        %3008 = vmatprep.subr.bf16.mxu0 %v2945
        %3009 = vmatpush1.bf16.msra.mxu0 %v2944
        %3010 = vmatprep.subr.bf16.mxu0 %v2947
        %3011 = vmatpush1.bf16.msra.mxu0 %v2946
        %3012 = vmatprep.subr.bf16.mxu0 %v2949
        %3013 = vmatpush1.bf16.msra.mxu0 %v2948
        %3014 = vmatprep.subr.bf16.mxu0 %v2951
        %3015 = vmatpush1.bf16.msra.mxu0 %v2950
        %3016 = vmatprep.subr.bf16.mxu0 %v2953
        %3017 = vmatpush1.bf16.msra.mxu0 %v2952
        %3018 = vmatprep.subr.bf16.mxu0 %v2955
        %3019 = vmatpush1.bf16.msra.mxu0 %v2954
        %3020 = vmatprep.subr.bf16.mxu0 %v2957
        %3021 = vmatpush1.bf16.msra.mxu0 %v2956
        %3022 = vmatprep.subr.bf16.mxu0 %v2959
        %3023 = vmatpush1.bf16.msra.mxu0 %v2958
        %3024 = vmatprep.subr.bf16.mxu0 %v2961
        %3025 = vmatpush1.bf16.msra.mxu0 %v2960
        %3026 = vmatprep.subr.bf16.mxu0 %v2963
        %3027 = vmatpush1.bf16.msra.mxu0 %v2962
        %3028 = vmatprep.mubr.bf16.mxu0 %v2833
        %3029 = vmatmul.mubr.bf16.gmra.mrb[0].mxu0 %v2826
        %v3030 = vpop.f32.mrb[0].mxu0
        %v3031 = vadd.f32 0.0, %v3030
        %v3032 = vpop.f32.mrb[0].mxu0
        %v3033 = vadd.f32 0.0, %v3032
        %v3034 = vpop.f32.mrb[0].mxu0
        %v3035 = vpop.f32.mrb[0].mxu0
        %3036 = vdwg.mxu0
        %v3069 = vunpack.c.l.b16 %v2753
        %v3070 = vunpack.c.h.b16 %v2753
        %v3071 = vunpack.c.l.b16 %v2754
        %v3072 = vunpack.c.h.b16 %v2754
        %v3073 = vunpack.c.l.b16 %v2755
        %v3074 = vunpack.c.h.b16 %v2755
        %v3075 = vunpack.c.l.b16 %v2756
        %v3076 = vunpack.c.h.b16 %v2756
        %v3077 = vunpack.c.l.b16 %v2757
        %v3078 = vunpack.c.h.b16 %v2757
        %v3079 = vunpack.c.l.b16 %v2758
        %v3080 = vunpack.c.h.b16 %v2758
        %v3081 = vunpack.c.l.b16 %v2759
        %v3082 = vunpack.c.h.b16 %v2759
        %v3083 = vunpack.c.l.b16 %v2760
        %v3084 = vunpack.c.h.b16 %v2760
        %v3085 = vunpack.c.l.b16 %v2761
        %v3086 = vunpack.c.h.b16 %v2761
        %v3087 = vunpack.c.l.b16 %v2762
        %v3088 = vunpack.c.h.b16 %v2762
        %v3089 = vunpack.c.l.b16 %v2763
        %v3090 = vunpack.c.h.b16 %v2763
        %v3091 = vunpack.c.l.b16 %v2764
        %v3092 = vunpack.c.h.b16 %v2764
        %v3093 = vunpack.c.l.b16 %v2765
        %v3094 = vunpack.c.h.b16 %v2765
        %v3095 = vunpack.c.l.b16 %v2766
        %v3096 = vunpack.c.h.b16 %v2766
        %v3097 = vunpack.c.l.b16 %v2767
        %v3098 = vunpack.c.h.b16 %v2767
        %v3099 = vunpack.c.l.b16 %v2768
        %v3100 = vunpack.c.h.b16 %v2768
        %v3101 = vunpack.c.l.b16 %v2769
        %v3102 = vunpack.c.h.b16 %v2769
        %v3103 = vunpack.c.l.b16 %v2770
        %v3104 = vunpack.c.h.b16 %v2770
        %v3105 = vunpack.c.l.b16 %v2771
        %v3106 = vunpack.c.h.b16 %v2771
        %v3107 = vunpack.c.l.b16 %v2772
        %v3108 = vunpack.c.h.b16 %v2772
        %v3109 = vunpack.c.l.b16 %v2773
        %v3110 = vunpack.c.h.b16 %v2773
        %v3111 = vunpack.c.l.b16 %v2774
        %v3112 = vunpack.c.h.b16 %v2774
        %v3113 = vunpack.c.l.b16 %v2775
        %v3114 = vunpack.c.h.b16 %v2775
        %v3115 = vunpack.c.l.b16 %v2776
        %v3116 = vunpack.c.h.b16 %v2776
        %v3117 = vunpack.c.l.b16 %v2777
        %v3118 = vunpack.c.h.b16 %v2777
        %v3119 = vunpack.c.l.b16 %v2778
        %v3120 = vunpack.c.h.b16 %v2778
        %v3121 = vunpack.c.l.b16 %v2779
        %v3122 = vunpack.c.h.b16 %v2779
        %v3123 = vunpack.c.l.b16 %v2780
        %v3124 = vunpack.c.h.b16 %v2780
        %v3125 = vunpack.c.l.b16 %v2781
        %v3126 = vunpack.c.h.b16 %v2781
        %v3127 = vunpack.c.l.b16 %v2782
        %v3128 = vunpack.c.h.b16 %v2782
        %v3129 = vunpack.c.l.b16 %v2783
        %v3130 = vunpack.c.h.b16 %v2783
        %v3131 = vunpack.c.l.b16 %v2784
        %v3132 = vunpack.c.h.b16 %v2784
        %v3133 = vpack.c.b16 %v3071, %v3069
        %v3134 = vpack.c.b16 %v3072, %v3070
        %v3135 = vpack.c.b16 %v3075, %v3073
        %v3136 = vpack.c.b16 %v3076, %v3074
        %v3137 = vpack.c.b16 %v3079, %v3077
        %v3138 = vpack.c.b16 %v3080, %v3078
        %v3139 = vpack.c.b16 %v3083, %v3081
        %v3140 = vpack.c.b16 %v3084, %v3082
        %v3141 = vpack.c.b16 %v3087, %v3085
        %v3142 = vpack.c.b16 %v3088, %v3086
        %v3143 = vpack.c.b16 %v3091, %v3089
        %v3144 = vpack.c.b16 %v3092, %v3090
        %v3145 = vpack.c.b16 %v3095, %v3093
        %v3146 = vpack.c.b16 %v3096, %v3094
        %v3147 = vpack.c.b16 %v3099, %v3097
        %v3148 = vpack.c.b16 %v3100, %v3098
        %v3149 = vpack.c.b16 %v3103, %v3101
        %v3150 = vpack.c.b16 %v3104, %v3102
        %v3151 = vpack.c.b16 %v3107, %v3105
        %v3152 = vpack.c.b16 %v3108, %v3106
        %v3153 = vpack.c.b16 %v3111, %v3109
        %v3154 = vpack.c.b16 %v3112, %v3110
        %v3155 = vpack.c.b16 %v3115, %v3113
        %v3156 = vpack.c.b16 %v3116, %v3114
        %v3157 = vpack.c.b16 %v3119, %v3117
        %v3158 = vpack.c.b16 %v3120, %v3118
        %v3159 = vpack.c.b16 %v3123, %v3121
        %v3160 = vpack.c.b16 %v3124, %v3122
        %v3161 = vpack.c.b16 %v3127, %v3125
        %v3162 = vpack.c.b16 %v3128, %v3126
        %v3163 = vpack.c.b16 %v3131, %v3129
        %v3164 = vpack.c.b16 %v3132, %v3130
        %3197 = vmatprep.subr.bf16.mxu0 %v3134
        %3198 = vmatpush1.bf16.msra.mxu0 %v3133
        %3199 = vmatprep.subr.bf16.mxu0 %v3136
        %3200 = vmatpush1.bf16.msra.mxu0 %v3135
        %3201 = vmatprep.subr.bf16.mxu0 %v3138
        %3202 = vmatpush1.bf16.msra.mxu0 %v3137
        %3203 = vmatprep.subr.bf16.mxu0 %v3140
        %3204 = vmatpush1.bf16.msra.mxu0 %v3139
        %3205 = vmatprep.subr.bf16.mxu0 %v3142
        %3206 = vmatpush1.bf16.msra.mxu0 %v3141
        %3207 = vmatprep.subr.bf16.mxu0 %v3144
        %3208 = vmatpush1.bf16.msra.mxu0 %v3143
        %3209 = vmatprep.subr.bf16.mxu0 %v3146
        %3210 = vmatpush1.bf16.msra.mxu0 %v3145
        %3211 = vmatprep.subr.bf16.mxu0 %v3148
        %3212 = vmatpush1.bf16.msra.mxu0 %v3147
        %3213 = vmatprep.subr.bf16.mxu0 %v3150
        %3214 = vmatpush1.bf16.msra.mxu0 %v3149
        %3215 = vmatprep.subr.bf16.mxu0 %v3152
        %3216 = vmatpush1.bf16.msra.mxu0 %v3151
        %3217 = vmatprep.subr.bf16.mxu0 %v3154
        %3218 = vmatpush1.bf16.msra.mxu0 %v3153
        %3219 = vmatprep.subr.bf16.mxu0 %v3156
        %3220 = vmatpush1.bf16.msra.mxu0 %v3155
        %3221 = vmatprep.subr.bf16.mxu0 %v3158
        %3222 = vmatpush1.bf16.msra.mxu0 %v3157
        %3223 = vmatprep.subr.bf16.mxu0 %v3160
        %3224 = vmatpush1.bf16.msra.mxu0 %v3159
        %3225 = vmatprep.subr.bf16.mxu0 %v3162
        %3226 = vmatpush1.bf16.msra.mxu0 %v3161
        %3227 = vmatprep.subr.bf16.mxu0 %v3164
        %3228 = vmatpush1.bf16.msra.mxu0 %v3163
        %3229 = vmatprep.mubr.bf16.mxu0 %v2752
        %3230 = vmatmul.mubr.bf16.gmra.mrb[0].mxu0 %v2751
        %v3231 = vpop.f32.mrb[0].mxu0
        %v3232 = vadd.f32 %v3031, %v3231
        %v3233 = vpop.f32.mrb[0].mxu0
        %v3234 = vadd.f32 %v3033, %v3233
        %v3235 = vpop.f32.mrb[0].mxu0
        %v3236 = vpop.f32.mrb[0].mxu0
        %3237 = vdwg.mxu0
        %v3238 = vpack.c.bf16 %v2739, %v2735
        %v3239 = vpack.c.bf16 %v2741, %v2737
        %s3240 = scalar_lea.vmem %s17, 512
        %v3241 = vld [vmem:[%s3240] sm:$0xff]
        %v3242 = vld [vmem:[%s3240 + $0x8] sm:$0xff]
        %v3243 = vld [vmem:[%s3240 + $0x10] sm:$0xff]
        %v3244 = vld [vmem:[%s3240 + $0x18] sm:$0xff]
        %v3245 = vld [vmem:[%s3240 + $0x20] sm:$0xff]
        %v3246 = vld [vmem:[%s3240 + $0x28] sm:$0xff]
        %v3247 = vld [vmem:[%s3240 + $0x30] sm:$0xff]
        %v3248 = vld [vmem:[%s3240 + $0x38] sm:$0xff]
        %v3249 = vld [vmem:[%s3240 + $0x40] sm:$0xff]
        %v3250 = vld [vmem:[%s3240 + $0x48] sm:$0xff]
        %v3251 = vld [vmem:[%s3240 + $0x50] sm:$0xff]
        %v3252 = vld [vmem:[%s3240 + $0x58] sm:$0xff]
        %v3253 = vld [vmem:[%s3240 + $0x60] sm:$0xff]
        %v3254 = vld [vmem:[%s3240 + $0x68] sm:$0xff]
        %v3255 = vld [vmem:[%s3240 + $0x70] sm:$0xff]
        %v3256 = vld [vmem:[%s3240 + $0x78] sm:$0xff]
        %v3257 = vld [vmem:[%s3240 + $0x80] sm:$0xff]
        %v3258 = vld [vmem:[%s3240 + $0x88] sm:$0xff]
        %v3259 = vld [vmem:[%s3240 + $0x90] sm:$0xff]
        %v3260 = vld [vmem:[%s3240 + $0x98] sm:$0xff]
        %v3261 = vld [vmem:[%s3240 + $0xa0] sm:$0xff]
        %v3262 = vld [vmem:[%s3240 + $0xa8] sm:$0xff]
        %v3263 = vld [vmem:[%s3240 + $0xb0] sm:$0xff]
        %v3264 = vld [vmem:[%s3240 + $0xb8] sm:$0xff]
        %v3265 = vld [vmem:[%s3240 + $0xc0] sm:$0xff]
        %v3266 = vld [vmem:[%s3240 + $0xc8] sm:$0xff]
        %v3267 = vld [vmem:[%s3240 + $0xd0] sm:$0xff]
        %v3268 = vld [vmem:[%s3240 + $0xd8] sm:$0xff]
        %v3269 = vld [vmem:[%s3240 + $0xe0] sm:$0xff]
        %v3270 = vld [vmem:[%s3240 + $0xe8] sm:$0xff]
        %v3271 = vld [vmem:[%s3240 + $0xf0] sm:$0xff]
        %v3272 = vld [vmem:[%s3240 + $0xf8] sm:$0xff]
        %v3274 = vshrl.u32 %v3238, 16
        %v3276 = vshll.u32 %v3238, 16
        %v3278 = vrot.slane %v3276, 1
        %v3279 = vor.u32 %v3274, %v3278
        %v3281 = vshrl.u32 %v3239, 16
        %v3283 = vshll.u32 %v3239, 16
        %v3285 = vrot.slane %v3283, 1
        %v3286 = vor.u32 %v3281, %v3285
        %v3321 = vunpack.c.l.b16 %v3241
        %v3322 = vunpack.c.h.b16 %v3241
        %v3323 = vunpack.c.l.b16 %v3242
        %v3324 = vunpack.c.h.b16 %v3242
        %v3325 = vunpack.c.l.b16 %v3243
        %v3326 = vunpack.c.h.b16 %v3243
        %v3327 = vunpack.c.l.b16 %v3244
        %v3328 = vunpack.c.h.b16 %v3244
        %v3329 = vunpack.c.l.b16 %v3245
        %v3330 = vunpack.c.h.b16 %v3245
        %v3331 = vunpack.c.l.b16 %v3246
        %v3332 = vunpack.c.h.b16 %v3246
        %v3333 = vunpack.c.l.b16 %v3247
        %v3334 = vunpack.c.h.b16 %v3247
        %v3335 = vunpack.c.l.b16 %v3248
        %v3336 = vunpack.c.h.b16 %v3248
        %v3337 = vunpack.c.l.b16 %v3249
        %v3338 = vunpack.c.h.b16 %v3249
        %v3339 = vunpack.c.l.b16 %v3250
        %v3340 = vunpack.c.h.b16 %v3250
        %v3341 = vunpack.c.l.b16 %v3251
        %v3342 = vunpack.c.h.b16 %v3251
        %v3343 = vunpack.c.l.b16 %v3252
        %v3344 = vunpack.c.h.b16 %v3252
        %v3345 = vunpack.c.l.b16 %v3253
        %v3346 = vunpack.c.h.b16 %v3253
        %v3347 = vunpack.c.l.b16 %v3254
        %v3348 = vunpack.c.h.b16 %v3254
        %v3349 = vunpack.c.l.b16 %v3255
        %v3350 = vunpack.c.h.b16 %v3255
        %v3351 = vunpack.c.l.b16 %v3256
        %v3352 = vunpack.c.h.b16 %v3256
        %v3353 = vunpack.c.l.b16 %v3257
        %v3354 = vunpack.c.h.b16 %v3257
        %v3355 = vunpack.c.l.b16 %v3258
        %v3356 = vunpack.c.h.b16 %v3258
        %v3357 = vunpack.c.l.b16 %v3259
        %v3358 = vunpack.c.h.b16 %v3259
        %v3359 = vunpack.c.l.b16 %v3260
        %v3360 = vunpack.c.h.b16 %v3260
        %v3361 = vunpack.c.l.b16 %v3261
        %v3362 = vunpack.c.h.b16 %v3261
        %v3363 = vunpack.c.l.b16 %v3262
        %v3364 = vunpack.c.h.b16 %v3262
        %v3365 = vunpack.c.l.b16 %v3263
        %v3366 = vunpack.c.h.b16 %v3263
        %v3367 = vunpack.c.l.b16 %v3264
        %v3368 = vunpack.c.h.b16 %v3264
        %v3369 = vunpack.c.l.b16 %v3265
        %v3370 = vunpack.c.h.b16 %v3265
        %v3371 = vunpack.c.l.b16 %v3266
        %v3372 = vunpack.c.h.b16 %v3266
        %v3373 = vunpack.c.l.b16 %v3267
        %v3374 = vunpack.c.h.b16 %v3267
        %v3375 = vunpack.c.l.b16 %v3268
        %v3376 = vunpack.c.h.b16 %v3268
        %v3377 = vunpack.c.l.b16 %v3269
        %v3378 = vunpack.c.h.b16 %v3269
        %v3379 = vunpack.c.l.b16 %v3270
        %v3380 = vunpack.c.h.b16 %v3270
        %v3381 = vunpack.c.l.b16 %v3271
        %v3382 = vunpack.c.h.b16 %v3271
        %v3383 = vunpack.c.l.b16 %v3272
        %v3384 = vunpack.c.h.b16 %v3272
        %v3385 = vpack.c.b16 %v3323, %v3321
        %v3386 = vpack.c.b16 %v3324, %v3322
        %v3387 = vpack.c.b16 %v3327, %v3325
        %v3388 = vpack.c.b16 %v3328, %v3326
        %v3389 = vpack.c.b16 %v3331, %v3329
        %v3390 = vpack.c.b16 %v3332, %v3330
        %v3391 = vpack.c.b16 %v3335, %v3333
        %v3392 = vpack.c.b16 %v3336, %v3334
        %v3393 = vpack.c.b16 %v3339, %v3337
        %v3394 = vpack.c.b16 %v3340, %v3338
        %v3395 = vpack.c.b16 %v3343, %v3341
        %v3396 = vpack.c.b16 %v3344, %v3342
        %v3397 = vpack.c.b16 %v3347, %v3345
        %v3398 = vpack.c.b16 %v3348, %v3346
        %v3399 = vpack.c.b16 %v3351, %v3349
        %v3400 = vpack.c.b16 %v3352, %v3350
        %v3401 = vpack.c.b16 %v3355, %v3353
        %v3402 = vpack.c.b16 %v3356, %v3354
        %v3403 = vpack.c.b16 %v3359, %v3357
        %v3404 = vpack.c.b16 %v3360, %v3358
        %v3405 = vpack.c.b16 %v3363, %v3361
        %v3406 = vpack.c.b16 %v3364, %v3362
        %v3407 = vpack.c.b16 %v3367, %v3365
        %v3408 = vpack.c.b16 %v3368, %v3366
        %v3409 = vpack.c.b16 %v3371, %v3369
        %v3410 = vpack.c.b16 %v3372, %v3370
        %v3411 = vpack.c.b16 %v3375, %v3373
        %v3412 = vpack.c.b16 %v3376, %v3374
        %v3413 = vpack.c.b16 %v3379, %v3377
        %v3414 = vpack.c.b16 %v3380, %v3378
        %v3415 = vpack.c.b16 %v3383, %v3381
        %v3416 = vpack.c.b16 %v3384, %v3382
        %3449 = vmatprep.subr.bf16.mxu0 %v3386
        %3450 = vmatpush1.bf16.msra.mxu0 %v3385
        %3451 = vmatprep.subr.bf16.mxu0 %v3388
        %3452 = vmatpush1.bf16.msra.mxu0 %v3387
        %3453 = vmatprep.subr.bf16.mxu0 %v3390
        %3454 = vmatpush1.bf16.msra.mxu0 %v3389
        %3455 = vmatprep.subr.bf16.mxu0 %v3392
        %3456 = vmatpush1.bf16.msra.mxu0 %v3391
        %3457 = vmatprep.subr.bf16.mxu0 %v3394
        %3458 = vmatpush1.bf16.msra.mxu0 %v3393
        %3459 = vmatprep.subr.bf16.mxu0 %v3396
        %3460 = vmatpush1.bf16.msra.mxu0 %v3395
        %3461 = vmatprep.subr.bf16.mxu0 %v3398
        %3462 = vmatpush1.bf16.msra.mxu0 %v3397
        %3463 = vmatprep.subr.bf16.mxu0 %v3400
        %3464 = vmatpush1.bf16.msra.mxu0 %v3399
        %3465 = vmatprep.subr.bf16.mxu0 %v3402
        %3466 = vmatpush1.bf16.msra.mxu0 %v3401
        %3467 = vmatprep.subr.bf16.mxu0 %v3404
        %3468 = vmatpush1.bf16.msra.mxu0 %v3403
        %3469 = vmatprep.subr.bf16.mxu0 %v3406
        %3470 = vmatpush1.bf16.msra.mxu0 %v3405
        %3471 = vmatprep.subr.bf16.mxu0 %v3408
        %3472 = vmatpush1.bf16.msra.mxu0 %v3407
        %3473 = vmatprep.subr.bf16.mxu0 %v3410
        %3474 = vmatpush1.bf16.msra.mxu0 %v3409
        %3475 = vmatprep.subr.bf16.mxu0 %v3412
        %3476 = vmatpush1.bf16.msra.mxu0 %v3411
        %3477 = vmatprep.subr.bf16.mxu0 %v3414
        %3478 = vmatpush1.bf16.msra.mxu0 %v3413
        %3479 = vmatprep.subr.bf16.mxu0 %v3416
        %3480 = vmatpush1.bf16.msra.mxu0 %v3415
        %3481 = vmatprep.mubr.bf16.mxu0 %v3286
        %3482 = vmatmul.mubr.bf16.gmra.mrb[0].mxu0 %v3279
        %v3483 = vpop.f32.mrb[0].mxu0
        %v3484 = vadd.f32 0.0, %v3483
        %v3485 = vpop.f32.mrb[0].mxu0
        %v3486 = vadd.f32 0.0, %v3485
        %v3487 = vpop.f32.mrb[0].mxu0
        %v3488 = vpop.f32.mrb[0].mxu0
        %3489 = vdwg.mxu0
        %v3490 = vadd.f32 %v3232, %v3484
        %v3491 = vadd.f32 %v3234, %v3486
        %v3492 = vld [vmem:[#allocation6] sm:$0x3]
        %v3494 = vlaneseq
        %v3495 = vshrl.u32 %v3494, 7
        %v3496 = vsub.s32 0, %v3495
        %v3497 = vrot.slane %v3492, %v3496
        %v3498 = vlaneseq
        %v3499 = vshrl.u32 %v3498, 7
        %v3500 = vsub.s32 1, %v3499
        %v3501 = vrot.slane %v3492, %v3500
        %v3504 = vadd.f32 %v3490, %v3497
        %v3505 = vadd.f32 %v3491, %v3501
        %vm3506 = vcmp.gt.f32.partialorder %v3504, 0.0
        %vm3507 = vcmp.gt.f32.partialorder %v3505, 0.0
        %v3508 = vmul.f32 %v3504, 0.1
        %v3509 = vmul.f32 %v3505, 0.1
        %v3510 = vsel %vm3506, %v3504, %v3508
        %v3511 = vsel %vm3507, %v3505, %v3509
        %v3512 = vpack.c.bf16 %v3510, %v3510
        %v3513 = vpack.c.bf16 %v3511, %v3511
        %v3514 = vld [vmem:[%s21] sm:$0xf]
        %v3515 = vld [vmem:[%s21 + $0x4] sm:$0x1]
        %v3518 = vunpack.c.l.b16 %v3514
        %v3519 = vunpack.c.l.b16 %v3515
        %v3520 = vpack.c.b16 %v3519, %v3518
        %vm3521 = vcmask 64512
        %v3523 = vsel %vm3521, %v3520, 0
        %vm3525 = vcmask 1043456
        %v3527 = vsel %vm3525, %v3512, 0
        %v3530 = vsel %vm3525, %v3513, 0
        %3532 = vmatprep.subr.bf16.mxu0 %v3530
        %3533 = vmatpush1.bf16.msra.mxu0 %v3527
        %3534 = vmatprep.subr.bf16.mxu0 0
        %3535 = vmatpush1.bf16.msra.mxu0 0
        %3536 = vmatprep.subr.bf16.mxu0 0
        %3537 = vmatpush1.bf16.msra.mxu0 0
        %3538 = vmatprep.subr.bf16.mxu0 0
        %3539 = vmatpush1.bf16.msra.mxu0 0
        %3540 = vmatprep.subr.bf16.mxu0 0
        %3541 = vmatpush1.bf16.msra.mxu0 0
        %3542 = vmatprep.subr.bf16.mxu0 0
        %3543 = vmatpush1.bf16.msra.mxu0 0
        %3544 = vmatprep.subr.bf16.mxu0 0
        %3545 = vmatpush1.bf16.msra.mxu0 0
        %3546 = vmatprep.subr.bf16.mxu0 0
        %3547 = vmatpush1.bf16.msra.mxu0 0
        %3548 = vmatprep.subr.bf16.mxu0 0
        %3549 = vmatpush1.bf16.msra.mxu0 0
        %3550 = vmatprep.subr.bf16.mxu0 0
        %3551 = vmatpush1.bf16.msra.mxu0 0
        %3552 = vmatprep.subr.bf16.mxu0 0
        %3553 = vmatpush1.bf16.msra.mxu0 0
        %3554 = vmatprep.subr.bf16.mxu0 0
        %3555 = vmatpush1.bf16.msra.mxu0 0
        %3556 = vmatprep.subr.bf16.mxu0 0
        %3557 = vmatpush1.bf16.msra.mxu0 0
        %3558 = vmatprep.subr.bf16.mxu0 0
        %3559 = vmatpush1.bf16.msra.mxu0 0
        %3560 = vmatprep.subr.bf16.mxu0 0
        %3561 = vmatpush1.bf16.msra.mxu0 0
        %3562 = vmatprep.subr.bf16.mxu0 0
        %3563 = vmatpush1.bf16.msra.mxu0 0
        %3564 = vmatprep.mubr.bf16.mxu0 0
        %3565 = vmatmul.mubr.bf16.gmra.mrb[0].mxu0 %v3523
        %v3566 = vpop.f32.mrb[0].mxu0
        %v3567 = vadd.f32 0.0, %v3566
        %v3568 = vpop.f32.mrb[0].mxu0
        %v3569 = vadd.f32 0.0, %v3568
        %v3570 = vpop.f32.mrb[0].mxu0
        %v3571 = vadd.f32 0.0, %v3570
        %v3572 = vpop.f32.mrb[0].mxu0
        %v3573 = vadd.f32 0.0, %v3572
        %3574 = vdwg.mxu0
        %v3575 = vpack.c.bf16 %v3567, %v3567
        %v3576 = vpack.c.bf16 %v3569, %v3569
        %v3577 = vld [vmem:[%s23] sm:$0xff]
        %v3578 = vld [vmem:[%s23 + $0x8] sm:$0xff]
        %v3579 = vld [vmem:[%s23 + $0x10] sm:$0xff]
        %v3580 = vld [vmem:[%s23 + $0x18] sm:$0xff]
        %v3581 = vld [vmem:[%s23 + $0x20] sm:$0xff]
        %v3582 = vld [vmem:[%s23 + $0x28] sm:$0xff]
        %v3583 = vld [vmem:[%s23 + $0x30] sm:$0xff]
        %v3584 = vld [vmem:[%s23 + $0x38] sm:$0xff]
        %v3585 = vld [vmem:[%s23 + $0x40] sm:$0xff]
        %v3586 = vld [vmem:[%s23 + $0x48] sm:$0xff]
        %v3587 = vld [vmem:[%s23 + $0x50] sm:$0xff]
        %v3588 = vld [vmem:[%s23 + $0x58] sm:$0xff]
        %v3589 = vld [vmem:[%s23 + $0x60] sm:$0xff]
        %v3590 = vld [vmem:[%s23 + $0x68] sm:$0xff]
        %v3591 = vld [vmem:[%s23 + $0x70] sm:$0xff]
        %v3592 = vld [vmem:[%s23 + $0x78] sm:$0xff]
        %v3593 = vld [vmem:[%s23 + $0x80] sm:$0xff]
        %v3594 = vld [vmem:[%s23 + $0x88] sm:$0xff]
        %v3595 = vld [vmem:[%s23 + $0x90] sm:$0xff]
        %v3596 = vld [vmem:[%s23 + $0x98] sm:$0xff]
        %v3597 = vld [vmem:[%s23 + $0xa0] sm:$0xff]
        %v3598 = vld [vmem:[%s23 + $0xa8] sm:$0xff]
        %v3599 = vld [vmem:[%s23 + $0xb0] sm:$0xff]
        %v3600 = vld [vmem:[%s23 + $0xb8] sm:$0xff]
        %v3601 = vld [vmem:[%s23 + $0xc0] sm:$0xff]
        %v3602 = vld [vmem:[%s23 + $0xc8] sm:$0xff]
        %v3603 = vld [vmem:[%s23 + $0xd0] sm:$0xff]
        %v3604 = vld [vmem:[%s23 + $0xd8] sm:$0xff]
        %v3605 = vld [vmem:[%s23 + $0xe0] sm:$0xff]
        %v3606 = vld [vmem:[%s23 + $0xe8] sm:$0xff]
        %v3607 = vld [vmem:[%s23 + $0xf0] sm:$0xff]
        %v3608 = vld [vmem:[%s23 + $0xf8] sm:$0xff]
        %v3609 = vpack.c.bf16 %v3571, %v3567
        %v3610 = vpack.c.bf16 %v3573, %v3569
        %s3611 = scalar_lea.vmem %s23, 256
        %v3612 = vld [vmem:[%s3611] sm:$0xff]
        %v3613 = vld [vmem:[%s3611 + $0x8] sm:$0xff]
        %v3614 = vld [vmem:[%s3611 + $0x10] sm:$0xff]
        %v3615 = vld [vmem:[%s3611 + $0x18] sm:$0xff]
        %v3616 = vld [vmem:[%s3611 + $0x20] sm:$0xff]
        %v3617 = vld [vmem:[%s3611 + $0x28] sm:$0xff]
        %v3618 = vld [vmem:[%s3611 + $0x30] sm:$0xff]
        %v3619 = vld [vmem:[%s3611 + $0x38] sm:$0xff]
        %v3620 = vld [vmem:[%s3611 + $0x40] sm:$0xff]
        %v3621 = vld [vmem:[%s3611 + $0x48] sm:$0xff]
        %v3622 = vld [vmem:[%s3611 + $0x50] sm:$0xff]
        %v3623 = vld [vmem:[%s3611 + $0x58] sm:$0xff]
        %v3624 = vld [vmem:[%s3611 + $0x60] sm:$0xff]
        %v3625 = vld [vmem:[%s3611 + $0x68] sm:$0xff]
        %v3626 = vld [vmem:[%s3611 + $0x70] sm:$0xff]
        %v3627 = vld [vmem:[%s3611 + $0x78] sm:$0xff]
        %v3628 = vld [vmem:[%s3611 + $0x80] sm:$0xff]
        %v3629 = vld [vmem:[%s3611 + $0x88] sm:$0xff]
        %v3630 = vld [vmem:[%s3611 + $0x90] sm:$0xff]
        %v3631 = vld [vmem:[%s3611 + $0x98] sm:$0xff]
        %v3632 = vld [vmem:[%s3611 + $0xa0] sm:$0xff]
        %v3633 = vld [vmem:[%s3611 + $0xa8] sm:$0xff]
        %v3634 = vld [vmem:[%s3611 + $0xb0] sm:$0xff]
        %v3635 = vld [vmem:[%s3611 + $0xb8] sm:$0xff]
        %v3636 = vld [vmem:[%s3611 + $0xc0] sm:$0xff]
        %v3637 = vld [vmem:[%s3611 + $0xc8] sm:$0xff]
        %v3638 = vld [vmem:[%s3611 + $0xd0] sm:$0xff]
        %v3639 = vld [vmem:[%s3611 + $0xd8] sm:$0xff]
        %v3640 = vld [vmem:[%s3611 + $0xe0] sm:$0xff]
        %v3641 = vld [vmem:[%s3611 + $0xe8] sm:$0xff]
        %v3642 = vld [vmem:[%s3611 + $0xf0] sm:$0xff]
        %v3643 = vld [vmem:[%s3611 + $0xf8] sm:$0xff]
        %v3645 = vshrl.u32 %v3609, 16
        %v3647 = vrot.slane %v3645, 2
        %v3648 = vshll.u32 %v3609, 16
        %v3650 = vrot.slane %v3648, 3
        %v3651 = vor.u32 %v3647, %v3650
        %v3653 = vshrl.u32 %v3610, 16
        %v3655 = vrot.slane %v3653, 2
        %v3656 = vshll.u32 %v3610, 16
        %v3658 = vrot.slane %v3656, 3
        %v3659 = vor.u32 %v3655, %v3658
        %v3694 = vunpack.c.l.b16 %v3612
        %v3695 = vunpack.c.h.b16 %v3612
        %v3696 = vunpack.c.l.b16 %v3613
        %v3697 = vunpack.c.h.b16 %v3613
        %v3698 = vunpack.c.l.b16 %v3614
        %v3699 = vunpack.c.h.b16 %v3614
        %v3700 = vunpack.c.l.b16 %v3615
        %v3701 = vunpack.c.h.b16 %v3615
        %v3702 = vunpack.c.l.b16 %v3616
        %v3703 = vunpack.c.h.b16 %v3616
        %v3704 = vunpack.c.l.b16 %v3617
        %v3705 = vunpack.c.h.b16 %v3617
        %v3706 = vunpack.c.l.b16 %v3618
        %v3707 = vunpack.c.h.b16 %v3618
        %v3708 = vunpack.c.l.b16 %v3619
        %v3709 = vunpack.c.h.b16 %v3619
        %v3710 = vunpack.c.l.b16 %v3620
        %v3711 = vunpack.c.h.b16 %v3620
        %v3712 = vunpack.c.l.b16 %v3621
        %v3713 = vunpack.c.h.b16 %v3621
        %v3714 = vunpack.c.l.b16 %v3622
        %v3715 = vunpack.c.h.b16 %v3622
        %v3716 = vunpack.c.l.b16 %v3623
        %v3717 = vunpack.c.h.b16 %v3623
        %v3718 = vunpack.c.l.b16 %v3624
        %v3719 = vunpack.c.h.b16 %v3624
        %v3720 = vunpack.c.l.b16 %v3625
        %v3721 = vunpack.c.h.b16 %v3625
        %v3722 = vunpack.c.l.b16 %v3626
        %v3723 = vunpack.c.h.b16 %v3626
        %v3724 = vunpack.c.l.b16 %v3627
        %v3725 = vunpack.c.h.b16 %v3627
        %v3726 = vunpack.c.l.b16 %v3628
        %v3727 = vunpack.c.h.b16 %v3628
        %v3728 = vunpack.c.l.b16 %v3629
        %v3729 = vunpack.c.h.b16 %v3629
        %v3730 = vunpack.c.l.b16 %v3630
        %v3731 = vunpack.c.h.b16 %v3630
        %v3732 = vunpack.c.l.b16 %v3631
        %v3733 = vunpack.c.h.b16 %v3631
        %v3734 = vunpack.c.l.b16 %v3632
        %v3735 = vunpack.c.h.b16 %v3632
        %v3736 = vunpack.c.l.b16 %v3633
        %v3737 = vunpack.c.h.b16 %v3633
        %v3738 = vunpack.c.l.b16 %v3634
        %v3739 = vunpack.c.h.b16 %v3634
        %v3740 = vunpack.c.l.b16 %v3635
        %v3741 = vunpack.c.h.b16 %v3635
        %v3742 = vunpack.c.l.b16 %v3636
        %v3743 = vunpack.c.h.b16 %v3636
        %v3744 = vunpack.c.l.b16 %v3637
        %v3745 = vunpack.c.h.b16 %v3637
        %v3746 = vunpack.c.l.b16 %v3638
        %v3747 = vunpack.c.h.b16 %v3638
        %v3748 = vunpack.c.l.b16 %v3639
        %v3749 = vunpack.c.h.b16 %v3639
        %v3750 = vunpack.c.l.b16 %v3640
        %v3751 = vunpack.c.h.b16 %v3640
        %v3752 = vunpack.c.l.b16 %v3641
        %v3753 = vunpack.c.h.b16 %v3641
        %v3754 = vunpack.c.l.b16 %v3642
        %v3755 = vunpack.c.h.b16 %v3642
        %v3756 = vunpack.c.l.b16 %v3643
        %v3757 = vunpack.c.h.b16 %v3643
        %v3758 = vpack.c.b16 %v3696, %v3694
        %v3759 = vpack.c.b16 %v3697, %v3695
        %v3760 = vpack.c.b16 %v3700, %v3698
        %v3761 = vpack.c.b16 %v3701, %v3699
        %v3762 = vpack.c.b16 %v3704, %v3702
        %v3763 = vpack.c.b16 %v3705, %v3703
        %v3764 = vpack.c.b16 %v3708, %v3706
        %v3765 = vpack.c.b16 %v3709, %v3707
        %v3766 = vpack.c.b16 %v3712, %v3710
        %v3767 = vpack.c.b16 %v3713, %v3711
        %v3768 = vpack.c.b16 %v3716, %v3714
        %v3769 = vpack.c.b16 %v3717, %v3715
        %v3770 = vpack.c.b16 %v3720, %v3718
        %v3771 = vpack.c.b16 %v3721, %v3719
        %v3772 = vpack.c.b16 %v3724, %v3722
        %v3773 = vpack.c.b16 %v3725, %v3723
        %v3774 = vpack.c.b16 %v3728, %v3726
        %v3775 = vpack.c.b16 %v3729, %v3727
        %v3776 = vpack.c.b16 %v3732, %v3730
        %v3777 = vpack.c.b16 %v3733, %v3731
        %v3778 = vpack.c.b16 %v3736, %v3734
        %v3779 = vpack.c.b16 %v3737, %v3735
        %v3780 = vpack.c.b16 %v3740, %v3738
        %v3781 = vpack.c.b16 %v3741, %v3739
        %v3782 = vpack.c.b16 %v3744, %v3742
        %v3783 = vpack.c.b16 %v3745, %v3743
        %v3784 = vpack.c.b16 %v3748, %v3746
        %v3785 = vpack.c.b16 %v3749, %v3747
        %v3786 = vpack.c.b16 %v3752, %v3750
        %v3787 = vpack.c.b16 %v3753, %v3751
        %v3788 = vpack.c.b16 %v3756, %v3754
        %v3789 = vpack.c.b16 %v3757, %v3755
        %3822 = vmatprep.subr.bf16.mxu0 %v3759
        %3823 = vmatpush1.bf16.msra.mxu0 %v3758
        %3824 = vmatprep.subr.bf16.mxu0 %v3761
        %3825 = vmatpush1.bf16.msra.mxu0 %v3760
        %3826 = vmatprep.subr.bf16.mxu0 %v3763
        %3827 = vmatpush1.bf16.msra.mxu0 %v3762
        %3828 = vmatprep.subr.bf16.mxu0 %v3765
        %3829 = vmatpush1.bf16.msra.mxu0 %v3764
        %3830 = vmatprep.subr.bf16.mxu0 %v3767
        %3831 = vmatpush1.bf16.msra.mxu0 %v3766
        %3832 = vmatprep.subr.bf16.mxu0 %v3769
        %3833 = vmatpush1.bf16.msra.mxu0 %v3768
        %3834 = vmatprep.subr.bf16.mxu0 %v3771
        %3835 = vmatpush1.bf16.msra.mxu0 %v3770
        %3836 = vmatprep.subr.bf16.mxu0 %v3773
        %3837 = vmatpush1.bf16.msra.mxu0 %v3772
        %3838 = vmatprep.subr.bf16.mxu0 %v3775
        %3839 = vmatpush1.bf16.msra.mxu0 %v3774
        %3840 = vmatprep.subr.bf16.mxu0 %v3777
        %3841 = vmatpush1.bf16.msra.mxu0 %v3776
        %3842 = vmatprep.subr.bf16.mxu0 %v3779
        %3843 = vmatpush1.bf16.msra.mxu0 %v3778
        %3844 = vmatprep.subr.bf16.mxu0 %v3781
        %3845 = vmatpush1.bf16.msra.mxu0 %v3780
        %3846 = vmatprep.subr.bf16.mxu0 %v3783
        %3847 = vmatpush1.bf16.msra.mxu0 %v3782
        %3848 = vmatprep.subr.bf16.mxu0 %v3785
        %3849 = vmatpush1.bf16.msra.mxu0 %v3784
        %3850 = vmatprep.subr.bf16.mxu0 %v3787
        %3851 = vmatpush1.bf16.msra.mxu0 %v3786
        %3852 = vmatprep.subr.bf16.mxu0 %v3789
        %3853 = vmatpush1.bf16.msra.mxu0 %v3788
        %3854 = vmatprep.mubr.bf16.mxu0 %v3659
        %3855 = vmatmul.mubr.bf16.gmra.mrb[0].mxu0 %v3651
        %v3856 = vpop.f32.mrb[0].mxu0
        %v3857 = vadd.f32 0.0, %v3856
        %v3858 = vpop.f32.mrb[0].mxu0
        %v3859 = vadd.f32 0.0, %v3858
        %v3860 = vpop.f32.mrb[0].mxu0
        %v3861 = vpop.f32.mrb[0].mxu0
        %3862 = vdwg.mxu0
        %v3895 = vunpack.c.l.b16 %v3577
        %v3896 = vunpack.c.h.b16 %v3577
        %v3897 = vunpack.c.l.b16 %v3578
        %v3898 = vunpack.c.h.b16 %v3578
        %v3899 = vunpack.c.l.b16 %v3579
        %v3900 = vunpack.c.h.b16 %v3579
        %v3901 = vunpack.c.l.b16 %v3580
        %v3902 = vunpack.c.h.b16 %v3580
        %v3903 = vunpack.c.l.b16 %v3581
        %v3904 = vunpack.c.h.b16 %v3581
        %v3905 = vunpack.c.l.b16 %v3582
        %v3906 = vunpack.c.h.b16 %v3582
        %v3907 = vunpack.c.l.b16 %v3583
        %v3908 = vunpack.c.h.b16 %v3583
        %v3909 = vunpack.c.l.b16 %v3584
        %v3910 = vunpack.c.h.b16 %v3584
        %v3911 = vunpack.c.l.b16 %v3585
        %v3912 = vunpack.c.h.b16 %v3585
        %v3913 = vunpack.c.l.b16 %v3586
        %v3914 = vunpack.c.h.b16 %v3586
        %v3915 = vunpack.c.l.b16 %v3587
        %v3916 = vunpack.c.h.b16 %v3587
        %v3917 = vunpack.c.l.b16 %v3588
        %v3918 = vunpack.c.h.b16 %v3588
        %v3919 = vunpack.c.l.b16 %v3589
        %v3920 = vunpack.c.h.b16 %v3589
        %v3921 = vunpack.c.l.b16 %v3590
        %v3922 = vunpack.c.h.b16 %v3590
        %v3923 = vunpack.c.l.b16 %v3591
        %v3924 = vunpack.c.h.b16 %v3591
        %v3925 = vunpack.c.l.b16 %v3592
        %v3926 = vunpack.c.h.b16 %v3592
        %v3927 = vunpack.c.l.b16 %v3593
        %v3928 = vunpack.c.h.b16 %v3593
        %v3929 = vunpack.c.l.b16 %v3594
        %v3930 = vunpack.c.h.b16 %v3594
        %v3931 = vunpack.c.l.b16 %v3595
        %v3932 = vunpack.c.h.b16 %v3595
        %v3933 = vunpack.c.l.b16 %v3596
        %v3934 = vunpack.c.h.b16 %v3596
        %v3935 = vunpack.c.l.b16 %v3597
        %v3936 = vunpack.c.h.b16 %v3597
        %v3937 = vunpack.c.l.b16 %v3598
        %v3938 = vunpack.c.h.b16 %v3598
        %v3939 = vunpack.c.l.b16 %v3599
        %v3940 = vunpack.c.h.b16 %v3599
        %v3941 = vunpack.c.l.b16 %v3600
        %v3942 = vunpack.c.h.b16 %v3600
        %v3943 = vunpack.c.l.b16 %v3601
        %v3944 = vunpack.c.h.b16 %v3601
        %v3945 = vunpack.c.l.b16 %v3602
        %v3946 = vunpack.c.h.b16 %v3602
        %v3947 = vunpack.c.l.b16 %v3603
        %v3948 = vunpack.c.h.b16 %v3603
        %v3949 = vunpack.c.l.b16 %v3604
        %v3950 = vunpack.c.h.b16 %v3604
        %v3951 = vunpack.c.l.b16 %v3605
        %v3952 = vunpack.c.h.b16 %v3605
        %v3953 = vunpack.c.l.b16 %v3606
        %v3954 = vunpack.c.h.b16 %v3606
        %v3955 = vunpack.c.l.b16 %v3607
        %v3956 = vunpack.c.h.b16 %v3607
        %v3957 = vunpack.c.l.b16 %v3608
        %v3958 = vunpack.c.h.b16 %v3608
        %v3959 = vpack.c.b16 %v3897, %v3895
        %v3960 = vpack.c.b16 %v3898, %v3896
        %v3961 = vpack.c.b16 %v3901, %v3899
        %v3962 = vpack.c.b16 %v3902, %v3900
        %v3963 = vpack.c.b16 %v3905, %v3903
        %v3964 = vpack.c.b16 %v3906, %v3904
        %v3965 = vpack.c.b16 %v3909, %v3907
        %v3966 = vpack.c.b16 %v3910, %v3908
        %v3967 = vpack.c.b16 %v3913, %v3911
        %v3968 = vpack.c.b16 %v3914, %v3912
        %v3969 = vpack.c.b16 %v3917, %v3915
        %v3970 = vpack.c.b16 %v3918, %v3916
        %v3971 = vpack.c.b16 %v3921, %v3919
        %v3972 = vpack.c.b16 %v3922, %v3920
        %v3973 = vpack.c.b16 %v3925, %v3923
        %v3974 = vpack.c.b16 %v3926, %v3924
        %v3975 = vpack.c.b16 %v3929, %v3927
        %v3976 = vpack.c.b16 %v3930, %v3928
        %v3977 = vpack.c.b16 %v3933, %v3931
        %v3978 = vpack.c.b16 %v3934, %v3932
        %v3979 = vpack.c.b16 %v3937, %v3935
        %v3980 = vpack.c.b16 %v3938, %v3936
        %v3981 = vpack.c.b16 %v3941, %v3939
        %v3982 = vpack.c.b16 %v3942, %v3940
        %v3983 = vpack.c.b16 %v3945, %v3943
        %v3984 = vpack.c.b16 %v3946, %v3944
        %v3985 = vpack.c.b16 %v3949, %v3947
        %v3986 = vpack.c.b16 %v3950, %v3948
        %v3987 = vpack.c.b16 %v3953, %v3951
        %v3988 = vpack.c.b16 %v3954, %v3952
        %v3989 = vpack.c.b16 %v3957, %v3955
        %v3990 = vpack.c.b16 %v3958, %v3956
        %4023 = vmatprep.subr.bf16.mxu0 %v3960
        %4024 = vmatpush1.bf16.msra.mxu0 %v3959
        %4025 = vmatprep.subr.bf16.mxu0 %v3962
        %4026 = vmatpush1.bf16.msra.mxu0 %v3961
        %4027 = vmatprep.subr.bf16.mxu0 %v3964
        %4028 = vmatpush1.bf16.msra.mxu0 %v3963
        %4029 = vmatprep.subr.bf16.mxu0 %v3966
        %4030 = vmatpush1.bf16.msra.mxu0 %v3965
        %4031 = vmatprep.subr.bf16.mxu0 %v3968
        %4032 = vmatpush1.bf16.msra.mxu0 %v3967
        %4033 = vmatprep.subr.bf16.mxu0 %v3970
        %4034 = vmatpush1.bf16.msra.mxu0 %v3969
        %4035 = vmatprep.subr.bf16.mxu0 %v3972
        %4036 = vmatpush1.bf16.msra.mxu0 %v3971
        %4037 = vmatprep.subr.bf16.mxu0 %v3974
        %4038 = vmatpush1.bf16.msra.mxu0 %v3973
        %4039 = vmatprep.subr.bf16.mxu0 %v3976
        %4040 = vmatpush1.bf16.msra.mxu0 %v3975
        %4041 = vmatprep.subr.bf16.mxu0 %v3978
        %4042 = vmatpush1.bf16.msra.mxu0 %v3977
        %4043 = vmatprep.subr.bf16.mxu0 %v3980
        %4044 = vmatpush1.bf16.msra.mxu0 %v3979
        %4045 = vmatprep.subr.bf16.mxu0 %v3982
        %4046 = vmatpush1.bf16.msra.mxu0 %v3981
        %4047 = vmatprep.subr.bf16.mxu0 %v3984
        %4048 = vmatpush1.bf16.msra.mxu0 %v3983
        %4049 = vmatprep.subr.bf16.mxu0 %v3986
        %4050 = vmatpush1.bf16.msra.mxu0 %v3985
        %4051 = vmatprep.subr.bf16.mxu0 %v3988
        %4052 = vmatpush1.bf16.msra.mxu0 %v3987
        %4053 = vmatprep.subr.bf16.mxu0 %v3990
        %4054 = vmatpush1.bf16.msra.mxu0 %v3989
        %4055 = vmatprep.mubr.bf16.mxu0 %v3576
        %4056 = vmatmul.mubr.bf16.gmra.mrb[0].mxu0 %v3575
        %v4057 = vpop.f32.mrb[0].mxu0
        %v4058 = vadd.f32 %v3857, %v4057
        %v4059 = vpop.f32.mrb[0].mxu0
        %v4060 = vadd.f32 %v3859, %v4059
        %v4061 = vpop.f32.mrb[0].mxu0
        %v4062 = vpop.f32.mrb[0].mxu0
        %4063 = vdwg.mxu0
        %s4064 = scalar_lea.vmem %s23, 512
        %v4065 = vld [vmem:[%s4064] sm:$0xff]
        %v4066 = vld [vmem:[%s4064 + $0x8] sm:$0xff]
        %v4067 = vld [vmem:[%s4064 + $0x10] sm:$0xff]
        %v4068 = vld [vmem:[%s4064 + $0x18] sm:$0xff]
        %v4069 = vld [vmem:[%s4064 + $0x20] sm:$0xff]
        %v4070 = vld [vmem:[%s4064 + $0x28] sm:$0xff]
        %v4071 = vld [vmem:[%s4064 + $0x30] sm:$0xff]
        %v4072 = vld [vmem:[%s4064 + $0x38] sm:$0xff]
        %v4073 = vld [vmem:[%s4064 + $0x40] sm:$0xff]
        %v4074 = vld [vmem:[%s4064 + $0x48] sm:$0xff]
        %v4075 = vld [vmem:[%s4064 + $0x50] sm:$0xff]
        %v4076 = vld [vmem:[%s4064 + $0x58] sm:$0xff]
        %v4077 = vld [vmem:[%s4064 + $0x60] sm:$0xff]
        %v4078 = vld [vmem:[%s4064 + $0x68] sm:$0xff]
        %v4079 = vld [vmem:[%s4064 + $0x70] sm:$0xff]
        %v4080 = vld [vmem:[%s4064 + $0x78] sm:$0xff]
        %v4081 = vld [vmem:[%s4064 + $0x80] sm:$0xff]
        %v4082 = vld [vmem:[%s4064 + $0x88] sm:$0xff]
        %v4083 = vld [vmem:[%s4064 + $0x90] sm:$0xff]
        %v4084 = vld [vmem:[%s4064 + $0x98] sm:$0xff]
        %v4085 = vld [vmem:[%s4064 + $0xa0] sm:$0xff]
        %v4086 = vld [vmem:[%s4064 + $0xa8] sm:$0xff]
        %v4087 = vld [vmem:[%s4064 + $0xb0] sm:$0xff]
        %v4088 = vld [vmem:[%s4064 + $0xb8] sm:$0xff]
        %v4089 = vld [vmem:[%s4064 + $0xc0] sm:$0xff]
        %v4090 = vld [vmem:[%s4064 + $0xc8] sm:$0xff]
        %v4091 = vld [vmem:[%s4064 + $0xd0] sm:$0xff]
        %v4092 = vld [vmem:[%s4064 + $0xd8] sm:$0xff]
        %v4093 = vld [vmem:[%s4064 + $0xe0] sm:$0xff]
        %v4094 = vld [vmem:[%s4064 + $0xe8] sm:$0xff]
        %v4095 = vld [vmem:[%s4064 + $0xf0] sm:$0xff]
        %v4096 = vld [vmem:[%s4064 + $0xf8] sm:$0xff]
        %v4098 = vshrl.u32 %v3575, 16
        %v4100 = vshll.u32 %v3575, 16
        %v4102 = vrot.slane %v4100, 1
        %v4103 = vor.u32 %v4098, %v4102
        %v4105 = vshrl.u32 %v3576, 16
        %v4107 = vshll.u32 %v3576, 16
        %v4109 = vrot.slane %v4107, 1
        %v4110 = vor.u32 %v4105, %v4109
        %v4145 = vunpack.c.l.b16 %v4065
        %v4146 = vunpack.c.h.b16 %v4065
        %v4147 = vunpack.c.l.b16 %v4066
        %v4148 = vunpack.c.h.b16 %v4066
        %v4149 = vunpack.c.l.b16 %v4067
        %v4150 = vunpack.c.h.b16 %v4067
        %v4151 = vunpack.c.l.b16 %v4068
        %v4152 = vunpack.c.h.b16 %v4068
        %v4153 = vunpack.c.l.b16 %v4069
        %v4154 = vunpack.c.h.b16 %v4069
        %v4155 = vunpack.c.l.b16 %v4070
        %v4156 = vunpack.c.h.b16 %v4070
        %v4157 = vunpack.c.l.b16 %v4071
        %v4158 = vunpack.c.h.b16 %v4071
        %v4159 = vunpack.c.l.b16 %v4072
        %v4160 = vunpack.c.h.b16 %v4072
        %v4161 = vunpack.c.l.b16 %v4073
        %v4162 = vunpack.c.h.b16 %v4073
        %v4163 = vunpack.c.l.b16 %v4074
        %v4164 = vunpack.c.h.b16 %v4074
        %v4165 = vunpack.c.l.b16 %v4075
        %v4166 = vunpack.c.h.b16 %v4075
        %v4167 = vunpack.c.l.b16 %v4076
        %v4168 = vunpack.c.h.b16 %v4076
        %v4169 = vunpack.c.l.b16 %v4077
        %v4170 = vunpack.c.h.b16 %v4077
        %v4171 = vunpack.c.l.b16 %v4078
        %v4172 = vunpack.c.h.b16 %v4078
        %v4173 = vunpack.c.l.b16 %v4079
        %v4174 = vunpack.c.h.b16 %v4079
        %v4175 = vunpack.c.l.b16 %v4080
        %v4176 = vunpack.c.h.b16 %v4080
        %v4177 = vunpack.c.l.b16 %v4081
        %v4178 = vunpack.c.h.b16 %v4081
        %v4179 = vunpack.c.l.b16 %v4082
        %v4180 = vunpack.c.h.b16 %v4082
        %v4181 = vunpack.c.l.b16 %v4083
        %v4182 = vunpack.c.h.b16 %v4083
        %v4183 = vunpack.c.l.b16 %v4084
        %v4184 = vunpack.c.h.b16 %v4084
        %v4185 = vunpack.c.l.b16 %v4085
        %v4186 = vunpack.c.h.b16 %v4085
        %v4187 = vunpack.c.l.b16 %v4086
        %v4188 = vunpack.c.h.b16 %v4086
        %v4189 = vunpack.c.l.b16 %v4087
        %v4190 = vunpack.c.h.b16 %v4087
        %v4191 = vunpack.c.l.b16 %v4088
        %v4192 = vunpack.c.h.b16 %v4088
        %v4193 = vunpack.c.l.b16 %v4089
        %v4194 = vunpack.c.h.b16 %v4089
        %v4195 = vunpack.c.l.b16 %v4090
        %v4196 = vunpack.c.h.b16 %v4090
        %v4197 = vunpack.c.l.b16 %v4091
        %v4198 = vunpack.c.h.b16 %v4091
        %v4199 = vunpack.c.l.b16 %v4092
        %v4200 = vunpack.c.h.b16 %v4092
        %v4201 = vunpack.c.l.b16 %v4093
        %v4202 = vunpack.c.h.b16 %v4093
        %v4203 = vunpack.c.l.b16 %v4094
        %v4204 = vunpack.c.h.b16 %v4094
        %v4205 = vunpack.c.l.b16 %v4095
        %v4206 = vunpack.c.h.b16 %v4095
        %v4207 = vunpack.c.l.b16 %v4096
        %v4208 = vunpack.c.h.b16 %v4096
        %v4209 = vpack.c.b16 %v4147, %v4145
        %v4210 = vpack.c.b16 %v4148, %v4146
        %v4211 = vpack.c.b16 %v4151, %v4149
        %v4212 = vpack.c.b16 %v4152, %v4150
        %v4213 = vpack.c.b16 %v4155, %v4153
        %v4214 = vpack.c.b16 %v4156, %v4154
        %v4215 = vpack.c.b16 %v4159, %v4157
        %v4216 = vpack.c.b16 %v4160, %v4158
        %v4217 = vpack.c.b16 %v4163, %v4161
        %v4218 = vpack.c.b16 %v4164, %v4162
        %v4219 = vpack.c.b16 %v4167, %v4165
        %v4220 = vpack.c.b16 %v4168, %v4166
        %v4221 = vpack.c.b16 %v4171, %v4169
        %v4222 = vpack.c.b16 %v4172, %v4170
        %v4223 = vpack.c.b16 %v4175, %v4173
        %v4224 = vpack.c.b16 %v4176, %v4174
        %v4225 = vpack.c.b16 %v4179, %v4177
        %v4226 = vpack.c.b16 %v4180, %v4178
        %v4227 = vpack.c.b16 %v4183, %v4181
        %v4228 = vpack.c.b16 %v4184, %v4182
        %v4229 = vpack.c.b16 %v4187, %v4185
        %v4230 = vpack.c.b16 %v4188, %v4186
        %v4231 = vpack.c.b16 %v4191, %v4189
        %v4232 = vpack.c.b16 %v4192, %v4190
        %v4233 = vpack.c.b16 %v4195, %v4193
        %v4234 = vpack.c.b16 %v4196, %v4194
        %v4235 = vpack.c.b16 %v4199, %v4197
        %v4236 = vpack.c.b16 %v4200, %v4198
        %v4237 = vpack.c.b16 %v4203, %v4201
        %v4238 = vpack.c.b16 %v4204, %v4202
        %v4239 = vpack.c.b16 %v4207, %v4205
        %v4240 = vpack.c.b16 %v4208, %v4206
        %4273 = vmatprep.subr.bf16.mxu0 %v4210
        %4274 = vmatpush1.bf16.msra.mxu0 %v4209
        %4275 = vmatprep.subr.bf16.mxu0 %v4212
        %4276 = vmatpush1.bf16.msra.mxu0 %v4211
        %4277 = vmatprep.subr.bf16.mxu0 %v4214
        %4278 = vmatpush1.bf16.msra.mxu0 %v4213
        %4279 = vmatprep.subr.bf16.mxu0 %v4216
        %4280 = vmatpush1.bf16.msra.mxu0 %v4215
        %4281 = vmatprep.subr.bf16.mxu0 %v4218
        %4282 = vmatpush1.bf16.msra.mxu0 %v4217
        %4283 = vmatprep.subr.bf16.mxu0 %v4220
        %4284 = vmatpush1.bf16.msra.mxu0 %v4219
        %4285 = vmatprep.subr.bf16.mxu0 %v4222
        %4286 = vmatpush1.bf16.msra.mxu0 %v4221
        %4287 = vmatprep.subr.bf16.mxu0 %v4224
        %4288 = vmatpush1.bf16.msra.mxu0 %v4223
        %4289 = vmatprep.subr.bf16.mxu0 %v4226
        %4290 = vmatpush1.bf16.msra.mxu0 %v4225
        %4291 = vmatprep.subr.bf16.mxu0 %v4228
        %4292 = vmatpush1.bf16.msra.mxu0 %v4227
        %4293 = vmatprep.subr.bf16.mxu0 %v4230
        %4294 = vmatpush1.bf16.msra.mxu0 %v4229
        %4295 = vmatprep.subr.bf16.mxu0 %v4232
        %4296 = vmatpush1.bf16.msra.mxu0 %v4231
        %4297 = vmatprep.subr.bf16.mxu0 %v4234
        %4298 = vmatpush1.bf16.msra.mxu0 %v4233
        %4299 = vmatprep.subr.bf16.mxu0 %v4236
        %4300 = vmatpush1.bf16.msra.mxu0 %v4235
        %4301 = vmatprep.subr.bf16.mxu0 %v4238
        %4302 = vmatpush1.bf16.msra.mxu0 %v4237
        %4303 = vmatprep.subr.bf16.mxu0 %v4240
        %4304 = vmatpush1.bf16.msra.mxu0 %v4239
        %4305 = vmatprep.mubr.bf16.mxu0 %v4110
        %4306 = vmatmul.mubr.bf16.gmra.mrb[0].mxu0 %v4103
        %v4307 = vpop.f32.mrb[0].mxu0
        %v4308 = vadd.f32 0.0, %v4307
        %v4309 = vpop.f32.mrb[0].mxu0
        %v4310 = vadd.f32 0.0, %v4309
        %v4311 = vpop.f32.mrb[0].mxu0
        %v4312 = vpop.f32.mrb[0].mxu0
        %4313 = vdwg.mxu0
        %v4314 = vadd.f32 %v4058, %v4308
        %v4315 = vadd.f32 %v4060, %v4310
        %v4316 = vld [vmem:[#allocation7] sm:$0x3]
        %v4318 = vlaneseq
        %v4319 = vshrl.u32 %v4318, 7
        %v4320 = vsub.s32 0, %v4319
        %v4321 = vrot.slane %v4316, %v4320
        %v4322 = vlaneseq
        %v4323 = vshrl.u32 %v4322, 7
        %v4324 = vsub.s32 1, %v4323
        %v4325 = vrot.slane %v4316, %v4324
        %v4328 = vadd.f32 %v4314, %v4321
        %v4329 = vadd.f32 %v4315, %v4325
        %vm4330 = vcmp.gt.f32.partialorder %v4328, 0.0
        %vm4331 = vcmp.gt.f32.partialorder %v4329, 0.0
        %v4332 = vmul.f32 %v4328, 0.1
        %v4333 = vmul.f32 %v4329, 0.1
        %v4334 = vsel %vm4330, %v4328, %v4332
        %v4335 = vsel %vm4331, %v4329, %v4333
        %v4336 = vpack.c.bf16 %v4334, %v4334
        %v4337 = vpack.c.bf16 %v4335, %v4335
        %v4338 = vld [vmem:[%s27] sm:$0x7]
        %vm4339 = vcmask 31744
        %v4341 = vsel %vm4339, %v4338, 0
        %vm4343 = vcmask 1041408
        %v4345 = vsel %vm4343, %v4336, 0
        %v4348 = vsel %vm4343, %v4337, 0
        %4350 = vmatprep.subr.bf16.mxu0 %v4348
        %4351 = vmatpush1.bf16.msra.mxu0 %v4345
        %4352 = vmatprep.subr.bf16.mxu0 0
        %4353 = vmatpush1.bf16.msra.mxu0 0
        %4354 = vmatprep.subr.bf16.mxu0 0
        %4355 = vmatpush1.bf16.msra.mxu0 0
        %4356 = vmatprep.subr.bf16.mxu0 0
        %4357 = vmatpush1.bf16.msra.mxu0 0
        %4358 = vmatprep.subr.bf16.mxu0 0
        %4359 = vmatpush1.bf16.msra.mxu0 0
        %4360 = vmatprep.subr.bf16.mxu0 0
        %4361 = vmatpush1.bf16.msra.mxu0 0
        %4362 = vmatprep.subr.bf16.mxu0 0
        %4363 = vmatpush1.bf16.msra.mxu0 0
        %4364 = vmatprep.subr.bf16.mxu0 0
        %4365 = vmatpush1.bf16.msra.mxu0 0
        %4366 = vmatprep.subr.bf16.mxu0 0
        %4367 = vmatpush1.bf16.msra.mxu0 0
        %4368 = vmatprep.subr.bf16.mxu0 0
        %4369 = vmatpush1.bf16.msra.mxu0 0
        %4370 = vmatprep.subr.bf16.mxu0 0
        %4371 = vmatpush1.bf16.msra.mxu0 0
        %4372 = vmatprep.subr.bf16.mxu0 0
        %4373 = vmatpush1.bf16.msra.mxu0 0
        %4374 = vmatprep.subr.bf16.mxu0 0
        %4375 = vmatpush1.bf16.msra.mxu0 0
        %4376 = vmatprep.subr.bf16.mxu0 0
        %4377 = vmatpush1.bf16.msra.mxu0 0
        %4378 = vmatprep.subr.bf16.mxu0 0
        %4379 = vmatpush1.bf16.msra.mxu0 0
        %4380 = vmatprep.subr.bf16.mxu0 0
        %4381 = vmatpush1.bf16.msra.mxu0 0
        %4382 = vmatprep.mubr.bf16.mxu0 0
        %4383 = vmatmul.mubr.bf16.gmra.mrb[0].mxu0 %v4341
        %v4384 = vpop.f32.mrb[0].mxu0
        %v4385 = vadd.f32 0.0, %v4384
        %v4386 = vpop.f32.mrb[0].mxu0
        %v4387 = vadd.f32 0.0, %v4386
        %v4388 = vpop.f32.mrb[0].mxu0
        %v4389 = vpop.f32.mrb[0].mxu0
        %4390 = vdwg.mxu0
        %v4391 = vpack.c.bf16 %v4385, %v4385
        %v4392 = vpack.c.bf16 %v4387, %v4387
        %v4393 = vld [vmem:[%s29] sm:$0xff]
        %v4394 = vld [vmem:[%s29 + $0x8] sm:$0xff]
        %v4395 = vld [vmem:[%s29 + $0x10] sm:$0xff]
        %v4396 = vld [vmem:[%s29 + $0x18] sm:$0xff]
        %v4397 = vld [vmem:[%s29 + $0x20] sm:$0xff]
        %v4398 = vld [vmem:[%s29 + $0x28] sm:$0xff]
        %v4399 = vld [vmem:[%s29 + $0x30] sm:$0xff]
        %v4400 = vld [vmem:[%s29 + $0x38] sm:$0xff]
        %v4401 = vld [vmem:[%s29 + $0x40] sm:$0xff]
        %v4402 = vld [vmem:[%s29 + $0x48] sm:$0xff]
        %v4403 = vld [vmem:[%s29 + $0x50] sm:$0xff]
        %v4404 = vld [vmem:[%s29 + $0x58] sm:$0xff]
        %v4405 = vld [vmem:[%s29 + $0x60] sm:$0xff]
        %v4406 = vld [vmem:[%s29 + $0x68] sm:$0xff]
        %v4407 = vld [vmem:[%s29 + $0x70] sm:$0xff]
        %v4408 = vld [vmem:[%s29 + $0x78] sm:$0xff]
        %v4409 = vld [vmem:[%s29 + $0x80] sm:$0xff]
        %v4410 = vld [vmem:[%s29 + $0x88] sm:$0xff]
        %v4411 = vld [vmem:[%s29 + $0x90] sm:$0xff]
        %v4412 = vld [vmem:[%s29 + $0x98] sm:$0xff]
        %v4413 = vld [vmem:[%s29 + $0xa0] sm:$0xff]
        %v4414 = vld [vmem:[%s29 + $0xa8] sm:$0xff]
        %v4415 = vld [vmem:[%s29 + $0xb0] sm:$0xff]
        %v4416 = vld [vmem:[%s29 + $0xb8] sm:$0xff]
        %v4417 = vld [vmem:[%s29 + $0xc0] sm:$0xff]
        %v4418 = vld [vmem:[%s29 + $0xc8] sm:$0xff]
        %v4419 = vld [vmem:[%s29 + $0xd0] sm:$0xff]
        %v4420 = vld [vmem:[%s29 + $0xd8] sm:$0xff]
        %v4421 = vld [vmem:[%s29 + $0xe0] sm:$0xff]
        %v4422 = vld [vmem:[%s29 + $0xe8] sm:$0xff]
        %v4423 = vld [vmem:[%s29 + $0xf0] sm:$0xff]
        %v4424 = vld [vmem:[%s29 + $0xf8] sm:$0xff]
        %s4425 = scalar_lea.vmem %s29, 256
        %v4426 = vld [vmem:[%s4425] sm:$0xff]
        %v4427 = vld [vmem:[%s4425 + $0x8] sm:$0xff]
        %v4428 = vld [vmem:[%s4425 + $0x10] sm:$0xff]
        %v4429 = vld [vmem:[%s4425 + $0x18] sm:$0xff]
        %v4430 = vld [vmem:[%s4425 + $0x20] sm:$0xff]
        %v4431 = vld [vmem:[%s4425 + $0x28] sm:$0xff]
        %v4432 = vld [vmem:[%s4425 + $0x30] sm:$0xff]
        %v4433 = vld [vmem:[%s4425 + $0x38] sm:$0xff]
        %v4434 = vld [vmem:[%s4425 + $0x40] sm:$0xff]
        %v4435 = vld [vmem:[%s4425 + $0x48] sm:$0xff]
        %v4436 = vld [vmem:[%s4425 + $0x50] sm:$0xff]
        %v4437 = vld [vmem:[%s4425 + $0x58] sm:$0xff]
        %v4438 = vld [vmem:[%s4425 + $0x60] sm:$0xff]
        %v4439 = vld [vmem:[%s4425 + $0x68] sm:$0xff]
        %v4440 = vld [vmem:[%s4425 + $0x70] sm:$0xff]
        %v4441 = vld [vmem:[%s4425 + $0x78] sm:$0xff]
        %v4442 = vld [vmem:[%s4425 + $0x80] sm:$0xff]
        %v4443 = vld [vmem:[%s4425 + $0x88] sm:$0xff]
        %v4444 = vld [vmem:[%s4425 + $0x90] sm:$0xff]
        %v4445 = vld [vmem:[%s4425 + $0x98] sm:$0xff]
        %v4446 = vld [vmem:[%s4425 + $0xa0] sm:$0xff]
        %v4447 = vld [vmem:[%s4425 + $0xa8] sm:$0xff]
        %v4448 = vld [vmem:[%s4425 + $0xb0] sm:$0xff]
        %v4449 = vld [vmem:[%s4425 + $0xb8] sm:$0xff]
        %v4450 = vld [vmem:[%s4425 + $0xc0] sm:$0xff]
        %v4451 = vld [vmem:[%s4425 + $0xc8] sm:$0xff]
        %v4452 = vld [vmem:[%s4425 + $0xd0] sm:$0xff]
        %v4453 = vld [vmem:[%s4425 + $0xd8] sm:$0xff]
        %v4454 = vld [vmem:[%s4425 + $0xe0] sm:$0xff]
        %v4455 = vld [vmem:[%s4425 + $0xe8] sm:$0xff]
        %v4456 = vld [vmem:[%s4425 + $0xf0] sm:$0xff]
        %v4457 = vld [vmem:[%s4425 + $0xf8] sm:$0xff]
        %v4459 = vshrl.u32 %v4391, 16
        %v4461 = vrot.slane %v4459, 1
        %v4462 = vshll.u32 %v4391, 16
        %v4464 = vrot.slane %v4462, 2
        %v4465 = vor.u32 %v4461, %v4464
        %v4467 = vshrl.u32 %v4392, 16
        %v4469 = vrot.slane %v4467, 1
        %v4470 = vshll.u32 %v4392, 16
        %v4472 = vrot.slane %v4470, 2
        %v4473 = vor.u32 %v4469, %v4472
        %v4508 = vunpack.c.l.b16 %v4426
        %v4509 = vunpack.c.h.b16 %v4426
        %v4510 = vunpack.c.l.b16 %v4427
        %v4511 = vunpack.c.h.b16 %v4427
        %v4512 = vunpack.c.l.b16 %v4428
        %v4513 = vunpack.c.h.b16 %v4428
        %v4514 = vunpack.c.l.b16 %v4429
        %v4515 = vunpack.c.h.b16 %v4429
        %v4516 = vunpack.c.l.b16 %v4430
        %v4517 = vunpack.c.h.b16 %v4430
        %v4518 = vunpack.c.l.b16 %v4431
        %v4519 = vunpack.c.h.b16 %v4431
        %v4520 = vunpack.c.l.b16 %v4432
        %v4521 = vunpack.c.h.b16 %v4432
        %v4522 = vunpack.c.l.b16 %v4433
        %v4523 = vunpack.c.h.b16 %v4433
        %v4524 = vunpack.c.l.b16 %v4434
        %v4525 = vunpack.c.h.b16 %v4434
        %v4526 = vunpack.c.l.b16 %v4435
        %v4527 = vunpack.c.h.b16 %v4435
        %v4528 = vunpack.c.l.b16 %v4436
        %v4529 = vunpack.c.h.b16 %v4436
        %v4530 = vunpack.c.l.b16 %v4437
        %v4531 = vunpack.c.h.b16 %v4437
        %v4532 = vunpack.c.l.b16 %v4438
        %v4533 = vunpack.c.h.b16 %v4438
        %v4534 = vunpack.c.l.b16 %v4439
        %v4535 = vunpack.c.h.b16 %v4439
        %v4536 = vunpack.c.l.b16 %v4440
        %v4537 = vunpack.c.h.b16 %v4440
        %v4538 = vunpack.c.l.b16 %v4441
        %v4539 = vunpack.c.h.b16 %v4441
        %v4540 = vunpack.c.l.b16 %v4442
        %v4541 = vunpack.c.h.b16 %v4442
        %v4542 = vunpack.c.l.b16 %v4443
        %v4543 = vunpack.c.h.b16 %v4443
        %v4544 = vunpack.c.l.b16 %v4444
        %v4545 = vunpack.c.h.b16 %v4444
        %v4546 = vunpack.c.l.b16 %v4445
        %v4547 = vunpack.c.h.b16 %v4445
        %v4548 = vunpack.c.l.b16 %v4446
        %v4549 = vunpack.c.h.b16 %v4446
        %v4550 = vunpack.c.l.b16 %v4447
        %v4551 = vunpack.c.h.b16 %v4447
        %v4552 = vunpack.c.l.b16 %v4448
        %v4553 = vunpack.c.h.b16 %v4448
        %v4554 = vunpack.c.l.b16 %v4449
        %v4555 = vunpack.c.h.b16 %v4449
        %v4556 = vunpack.c.l.b16 %v4450
        %v4557 = vunpack.c.h.b16 %v4450
        %v4558 = vunpack.c.l.b16 %v4451
        %v4559 = vunpack.c.h.b16 %v4451
        %v4560 = vunpack.c.l.b16 %v4452
        %v4561 = vunpack.c.h.b16 %v4452
        %v4562 = vunpack.c.l.b16 %v4453
        %v4563 = vunpack.c.h.b16 %v4453
        %v4564 = vunpack.c.l.b16 %v4454
        %v4565 = vunpack.c.h.b16 %v4454
        %v4566 = vunpack.c.l.b16 %v4455
        %v4567 = vunpack.c.h.b16 %v4455
        %v4568 = vunpack.c.l.b16 %v4456
        %v4569 = vunpack.c.h.b16 %v4456
        %v4570 = vunpack.c.l.b16 %v4457
        %v4571 = vunpack.c.h.b16 %v4457
        %v4572 = vpack.c.b16 %v4510, %v4508
        %v4573 = vpack.c.b16 %v4511, %v4509
        %v4574 = vpack.c.b16 %v4514, %v4512
        %v4575 = vpack.c.b16 %v4515, %v4513
        %v4576 = vpack.c.b16 %v4518, %v4516
        %v4577 = vpack.c.b16 %v4519, %v4517
        %v4578 = vpack.c.b16 %v4522, %v4520
        %v4579 = vpack.c.b16 %v4523, %v4521
        %v4580 = vpack.c.b16 %v4526, %v4524
        %v4581 = vpack.c.b16 %v4527, %v4525
        %v4582 = vpack.c.b16 %v4530, %v4528
        %v4583 = vpack.c.b16 %v4531, %v4529
        %v4584 = vpack.c.b16 %v4534, %v4532
        %v4585 = vpack.c.b16 %v4535, %v4533
        %v4586 = vpack.c.b16 %v4538, %v4536
        %v4587 = vpack.c.b16 %v4539, %v4537
        %v4588 = vpack.c.b16 %v4542, %v4540
        %v4589 = vpack.c.b16 %v4543, %v4541
        %v4590 = vpack.c.b16 %v4546, %v4544
        %v4591 = vpack.c.b16 %v4547, %v4545
        %v4592 = vpack.c.b16 %v4550, %v4548
        %v4593 = vpack.c.b16 %v4551, %v4549
        %v4594 = vpack.c.b16 %v4554, %v4552
        %v4595 = vpack.c.b16 %v4555, %v4553
        %v4596 = vpack.c.b16 %v4558, %v4556
        %v4597 = vpack.c.b16 %v4559, %v4557
        %v4598 = vpack.c.b16 %v4562, %v4560
        %v4599 = vpack.c.b16 %v4563, %v4561
        %v4600 = vpack.c.b16 %v4566, %v4564
        %v4601 = vpack.c.b16 %v4567, %v4565
        %v4602 = vpack.c.b16 %v4570, %v4568
        %v4603 = vpack.c.b16 %v4571, %v4569
        %4636 = vmatprep.subr.bf16.mxu0 %v4573
        %4637 = vmatpush1.bf16.msra.mxu0 %v4572
        %4638 = vmatprep.subr.bf16.mxu0 %v4575
        %4639 = vmatpush1.bf16.msra.mxu0 %v4574
        %4640 = vmatprep.subr.bf16.mxu0 %v4577
        %4641 = vmatpush1.bf16.msra.mxu0 %v4576
        %4642 = vmatprep.subr.bf16.mxu0 %v4579
        %4643 = vmatpush1.bf16.msra.mxu0 %v4578
        %4644 = vmatprep.subr.bf16.mxu0 %v4581
        %4645 = vmatpush1.bf16.msra.mxu0 %v4580
        %4646 = vmatprep.subr.bf16.mxu0 %v4583
        %4647 = vmatpush1.bf16.msra.mxu0 %v4582
        %4648 = vmatprep.subr.bf16.mxu0 %v4585
        %4649 = vmatpush1.bf16.msra.mxu0 %v4584
        %4650 = vmatprep.subr.bf16.mxu0 %v4587
        %4651 = vmatpush1.bf16.msra.mxu0 %v4586
        %4652 = vmatprep.subr.bf16.mxu0 %v4589
        %4653 = vmatpush1.bf16.msra.mxu0 %v4588
        %4654 = vmatprep.subr.bf16.mxu0 %v4591
        %4655 = vmatpush1.bf16.msra.mxu0 %v4590
        %4656 = vmatprep.subr.bf16.mxu0 %v4593
        %4657 = vmatpush1.bf16.msra.mxu0 %v4592
        %4658 = vmatprep.subr.bf16.mxu0 %v4595
        %4659 = vmatpush1.bf16.msra.mxu0 %v4594
        %4660 = vmatprep.subr.bf16.mxu0 %v4597
        %4661 = vmatpush1.bf16.msra.mxu0 %v4596
        %4662 = vmatprep.subr.bf16.mxu0 %v4599
        %4663 = vmatpush1.bf16.msra.mxu0 %v4598
        %4664 = vmatprep.subr.bf16.mxu0 %v4601
        %4665 = vmatpush1.bf16.msra.mxu0 %v4600
        %4666 = vmatprep.subr.bf16.mxu0 %v4603
        %4667 = vmatpush1.bf16.msra.mxu0 %v4602
        %4668 = vmatprep.mubr.bf16.mxu0 %v4473
        %4669 = vmatmul.mubr.bf16.gmra.mrb[0].mxu0 %v4465
        %v4670 = vpop.f32.mrb[0].mxu0
        %v4671 = vadd.f32 0.0, %v4670
        %v4672 = vpop.f32.mrb[0].mxu0
        %v4673 = vadd.f32 0.0, %v4672
        %v4674 = vpop.f32.mrb[0].mxu0
        %v4675 = vpop.f32.mrb[0].mxu0
        %4676 = vdwg.mxu0
        %v4709 = vunpack.c.l.b16 %v4393
        %v4710 = vunpack.c.h.b16 %v4393
        %v4711 = vunpack.c.l.b16 %v4394
        %v4712 = vunpack.c.h.b16 %v4394
        %v4713 = vunpack.c.l.b16 %v4395
        %v4714 = vunpack.c.h.b16 %v4395
        %v4715 = vunpack.c.l.b16 %v4396
        %v4716 = vunpack.c.h.b16 %v4396
        %v4717 = vunpack.c.l.b16 %v4397
        %v4718 = vunpack.c.h.b16 %v4397
        %v4719 = vunpack.c.l.b16 %v4398
        %v4720 = vunpack.c.h.b16 %v4398
        %v4721 = vunpack.c.l.b16 %v4399
        %v4722 = vunpack.c.h.b16 %v4399
        %v4723 = vunpack.c.l.b16 %v4400
        %v4724 = vunpack.c.h.b16 %v4400
        %v4725 = vunpack.c.l.b16 %v4401
        %v4726 = vunpack.c.h.b16 %v4401
        %v4727 = vunpack.c.l.b16 %v4402
        %v4728 = vunpack.c.h.b16 %v4402
        %v4729 = vunpack.c.l.b16 %v4403
        %v4730 = vunpack.c.h.b16 %v4403
        %v4731 = vunpack.c.l.b16 %v4404
        %v4732 = vunpack.c.h.b16 %v4404
        %v4733 = vunpack.c.l.b16 %v4405
        %v4734 = vunpack.c.h.b16 %v4405
        %v4735 = vunpack.c.l.b16 %v4406
        %v4736 = vunpack.c.h.b16 %v4406
        %v4737 = vunpack.c.l.b16 %v4407
        %v4738 = vunpack.c.h.b16 %v4407
        %v4739 = vunpack.c.l.b16 %v4408
        %v4740 = vunpack.c.h.b16 %v4408
        %v4741 = vunpack.c.l.b16 %v4409
        %v4742 = vunpack.c.h.b16 %v4409
        %v4743 = vunpack.c.l.b16 %v4410
        %v4744 = vunpack.c.h.b16 %v4410
        %v4745 = vunpack.c.l.b16 %v4411
        %v4746 = vunpack.c.h.b16 %v4411
        %v4747 = vunpack.c.l.b16 %v4412
        %v4748 = vunpack.c.h.b16 %v4412
        %v4749 = vunpack.c.l.b16 %v4413
        %v4750 = vunpack.c.h.b16 %v4413
        %v4751 = vunpack.c.l.b16 %v4414
        %v4752 = vunpack.c.h.b16 %v4414
        %v4753 = vunpack.c.l.b16 %v4415
        %v4754 = vunpack.c.h.b16 %v4415
        %v4755 = vunpack.c.l.b16 %v4416
        %v4756 = vunpack.c.h.b16 %v4416
        %v4757 = vunpack.c.l.b16 %v4417
        %v4758 = vunpack.c.h.b16 %v4417
        %v4759 = vunpack.c.l.b16 %v4418
        %v4760 = vunpack.c.h.b16 %v4418
        %v4761 = vunpack.c.l.b16 %v4419
        %v4762 = vunpack.c.h.b16 %v4419
        %v4763 = vunpack.c.l.b16 %v4420
        %v4764 = vunpack.c.h.b16 %v4420
        %v4765 = vunpack.c.l.b16 %v4421
        %v4766 = vunpack.c.h.b16 %v4421
        %v4767 = vunpack.c.l.b16 %v4422
        %v4768 = vunpack.c.h.b16 %v4422
        %v4769 = vunpack.c.l.b16 %v4423
        %v4770 = vunpack.c.h.b16 %v4423
        %v4771 = vunpack.c.l.b16 %v4424
        %v4772 = vunpack.c.h.b16 %v4424
        %v4773 = vpack.c.b16 %v4711, %v4709
        %v4774 = vpack.c.b16 %v4712, %v4710
        %v4775 = vpack.c.b16 %v4715, %v4713
        %v4776 = vpack.c.b16 %v4716, %v4714
        %v4777 = vpack.c.b16 %v4719, %v4717
        %v4778 = vpack.c.b16 %v4720, %v4718
        %v4779 = vpack.c.b16 %v4723, %v4721
        %v4780 = vpack.c.b16 %v4724, %v4722
        %v4781 = vpack.c.b16 %v4727, %v4725
        %v4782 = vpack.c.b16 %v4728, %v4726
        %v4783 = vpack.c.b16 %v4731, %v4729
        %v4784 = vpack.c.b16 %v4732, %v4730
        %v4785 = vpack.c.b16 %v4735, %v4733
        %v4786 = vpack.c.b16 %v4736, %v4734
        %v4787 = vpack.c.b16 %v4739, %v4737
        %v4788 = vpack.c.b16 %v4740, %v4738
        %v4789 = vpack.c.b16 %v4743, %v4741
        %v4790 = vpack.c.b16 %v4744, %v4742
        %v4791 = vpack.c.b16 %v4747, %v4745
        %v4792 = vpack.c.b16 %v4748, %v4746
        %v4793 = vpack.c.b16 %v4751, %v4749
        %v4794 = vpack.c.b16 %v4752, %v4750
        %v4795 = vpack.c.b16 %v4755, %v4753
        %v4796 = vpack.c.b16 %v4756, %v4754
        %v4797 = vpack.c.b16 %v4759, %v4757
        %v4798 = vpack.c.b16 %v4760, %v4758
        %v4799 = vpack.c.b16 %v4763, %v4761
        %v4800 = vpack.c.b16 %v4764, %v4762
        %v4801 = vpack.c.b16 %v4767, %v4765
        %v4802 = vpack.c.b16 %v4768, %v4766
        %v4803 = vpack.c.b16 %v4771, %v4769
        %v4804 = vpack.c.b16 %v4772, %v4770
        %4837 = vmatprep.subr.bf16.mxu0 %v4774
        %4838 = vmatpush1.bf16.msra.mxu0 %v4773
        %4839 = vmatprep.subr.bf16.mxu0 %v4776
        %4840 = vmatpush1.bf16.msra.mxu0 %v4775
        %4841 = vmatprep.subr.bf16.mxu0 %v4778
        %4842 = vmatpush1.bf16.msra.mxu0 %v4777
        %4843 = vmatprep.subr.bf16.mxu0 %v4780
        %4844 = vmatpush1.bf16.msra.mxu0 %v4779
        %4845 = vmatprep.subr.bf16.mxu0 %v4782
        %4846 = vmatpush1.bf16.msra.mxu0 %v4781
        %4847 = vmatprep.subr.bf16.mxu0 %v4784
        %4848 = vmatpush1.bf16.msra.mxu0 %v4783
        %4849 = vmatprep.subr.bf16.mxu0 %v4786
        %4850 = vmatpush1.bf16.msra.mxu0 %v4785
        %4851 = vmatprep.subr.bf16.mxu0 %v4788
        %4852 = vmatpush1.bf16.msra.mxu0 %v4787
        %4853 = vmatprep.subr.bf16.mxu0 %v4790
        %4854 = vmatpush1.bf16.msra.mxu0 %v4789
        %4855 = vmatprep.subr.bf16.mxu0 %v4792
        %4856 = vmatpush1.bf16.msra.mxu0 %v4791
        %4857 = vmatprep.subr.bf16.mxu0 %v4794
        %4858 = vmatpush1.bf16.msra.mxu0 %v4793
        %4859 = vmatprep.subr.bf16.mxu0 %v4796
        %4860 = vmatpush1.bf16.msra.mxu0 %v4795
        %4861 = vmatprep.subr.bf16.mxu0 %v4798
        %4862 = vmatpush1.bf16.msra.mxu0 %v4797
        %4863 = vmatprep.subr.bf16.mxu0 %v4800
        %4864 = vmatpush1.bf16.msra.mxu0 %v4799
        %4865 = vmatprep.subr.bf16.mxu0 %v4802
        %4866 = vmatpush1.bf16.msra.mxu0 %v4801
        %4867 = vmatprep.subr.bf16.mxu0 %v4804
        %4868 = vmatpush1.bf16.msra.mxu0 %v4803
        %4869 = vmatprep.mubr.bf16.mxu0 %v4392
        %4870 = vmatmul.mubr.bf16.gmra.mrb[0].mxu0 %v4391
        %v4871 = vpop.f32.mrb[0].mxu0
        %v4872 = vadd.f32 %v4671, %v4871
        %v4873 = vpop.f32.mrb[0].mxu0
        %v4874 = vadd.f32 %v4673, %v4873
        %v4875 = vpop.f32.mrb[0].mxu0
        %v4876 = vpop.f32.mrb[0].mxu0
        %4877 = vdwg.mxu0
        %s4878 = scalar_lea.vmem %s29, 512
        %v4879 = vld [vmem:[%s4878] sm:$0xff]
        %v4880 = vld [vmem:[%s4878 + $0x8] sm:$0xff]
        %v4881 = vld [vmem:[%s4878 + $0x10] sm:$0xff]
        %v4882 = vld [vmem:[%s4878 + $0x18] sm:$0xff]
        %v4883 = vld [vmem:[%s4878 + $0x20] sm:$0xff]
        %v4884 = vld [vmem:[%s4878 + $0x28] sm:$0xff]
        %v4885 = vld [vmem:[%s4878 + $0x30] sm:$0xff]
        %v4886 = vld [vmem:[%s4878 + $0x38] sm:$0xff]
        %v4887 = vld [vmem:[%s4878 + $0x40] sm:$0xff]
        %v4888 = vld [vmem:[%s4878 + $0x48] sm:$0xff]
        %v4889 = vld [vmem:[%s4878 + $0x50] sm:$0xff]
        %v4890 = vld [vmem:[%s4878 + $0x58] sm:$0xff]
        %v4891 = vld [vmem:[%s4878 + $0x60] sm:$0xff]
        %v4892 = vld [vmem:[%s4878 + $0x68] sm:$0xff]
        %v4893 = vld [vmem:[%s4878 + $0x70] sm:$0xff]
        %v4894 = vld [vmem:[%s4878 + $0x78] sm:$0xff]
        %v4895 = vld [vmem:[%s4878 + $0x80] sm:$0xff]
        %v4896 = vld [vmem:[%s4878 + $0x88] sm:$0xff]
        %v4897 = vld [vmem:[%s4878 + $0x90] sm:$0xff]
        %v4898 = vld [vmem:[%s4878 + $0x98] sm:$0xff]
        %v4899 = vld [vmem:[%s4878 + $0xa0] sm:$0xff]
        %v4900 = vld [vmem:[%s4878 + $0xa8] sm:$0xff]
        %v4901 = vld [vmem:[%s4878 + $0xb0] sm:$0xff]
        %v4902 = vld [vmem:[%s4878 + $0xb8] sm:$0xff]
        %v4903 = vld [vmem:[%s4878 + $0xc0] sm:$0xff]
        %v4904 = vld [vmem:[%s4878 + $0xc8] sm:$0xff]
        %v4905 = vld [vmem:[%s4878 + $0xd0] sm:$0xff]
        %v4906 = vld [vmem:[%s4878 + $0xd8] sm:$0xff]
        %v4907 = vld [vmem:[%s4878 + $0xe0] sm:$0xff]
        %v4908 = vld [vmem:[%s4878 + $0xe8] sm:$0xff]
        %v4909 = vld [vmem:[%s4878 + $0xf0] sm:$0xff]
        %v4910 = vld [vmem:[%s4878 + $0xf8] sm:$0xff]
        %v4911 = vrot.slane %v4462, 1
        %v4912 = vor.u32 %v4459, %v4911
        %v4913 = vrot.slane %v4470, 1
        %v4914 = vor.u32 %v4467, %v4913
        %v4949 = vunpack.c.l.b16 %v4879
        %v4950 = vunpack.c.h.b16 %v4879
        %v4951 = vunpack.c.l.b16 %v4880
        %v4952 = vunpack.c.h.b16 %v4880
        %v4953 = vunpack.c.l.b16 %v4881
        %v4954 = vunpack.c.h.b16 %v4881
        %v4955 = vunpack.c.l.b16 %v4882
        %v4956 = vunpack.c.h.b16 %v4882
        %v4957 = vunpack.c.l.b16 %v4883
        %v4958 = vunpack.c.h.b16 %v4883
        %v4959 = vunpack.c.l.b16 %v4884
        %v4960 = vunpack.c.h.b16 %v4884
        %v4961 = vunpack.c.l.b16 %v4885
        %v4962 = vunpack.c.h.b16 %v4885
        %v4963 = vunpack.c.l.b16 %v4886
        %v4964 = vunpack.c.h.b16 %v4886
        %v4965 = vunpack.c.l.b16 %v4887
        %v4966 = vunpack.c.h.b16 %v4887
        %v4967 = vunpack.c.l.b16 %v4888
        %v4968 = vunpack.c.h.b16 %v4888
        %v4969 = vunpack.c.l.b16 %v4889
        %v4970 = vunpack.c.h.b16 %v4889
        %v4971 = vunpack.c.l.b16 %v4890
        %v4972 = vunpack.c.h.b16 %v4890
        %v4973 = vunpack.c.l.b16 %v4891
        %v4974 = vunpack.c.h.b16 %v4891
        %v4975 = vunpack.c.l.b16 %v4892
        %v4976 = vunpack.c.h.b16 %v4892
        %v4977 = vunpack.c.l.b16 %v4893
        %v4978 = vunpack.c.h.b16 %v4893
        %v4979 = vunpack.c.l.b16 %v4894
        %v4980 = vunpack.c.h.b16 %v4894
        %v4981 = vunpack.c.l.b16 %v4895
        %v4982 = vunpack.c.h.b16 %v4895
        %v4983 = vunpack.c.l.b16 %v4896
        %v4984 = vunpack.c.h.b16 %v4896
        %v4985 = vunpack.c.l.b16 %v4897
        %v4986 = vunpack.c.h.b16 %v4897
        %v4987 = vunpack.c.l.b16 %v4898
        %v4988 = vunpack.c.h.b16 %v4898
        %v4989 = vunpack.c.l.b16 %v4899
        %v4990 = vunpack.c.h.b16 %v4899
        %v4991 = vunpack.c.l.b16 %v4900
        %v4992 = vunpack.c.h.b16 %v4900
        %v4993 = vunpack.c.l.b16 %v4901
        %v4994 = vunpack.c.h.b16 %v4901
        %v4995 = vunpack.c.l.b16 %v4902
        %v4996 = vunpack.c.h.b16 %v4902
        %v4997 = vunpack.c.l.b16 %v4903
        %v4998 = vunpack.c.h.b16 %v4903
        %v4999 = vunpack.c.l.b16 %v4904
        %v5000 = vunpack.c.h.b16 %v4904
        %v5001 = vunpack.c.l.b16 %v4905
        %v5002 = vunpack.c.h.b16 %v4905
        %v5003 = vunpack.c.l.b16 %v4906
        %v5004 = vunpack.c.h.b16 %v4906
        %v5005 = vunpack.c.l.b16 %v4907
        %v5006 = vunpack.c.h.b16 %v4907
        %v5007 = vunpack.c.l.b16 %v4908
        %v5008 = vunpack.c.h.b16 %v4908
        %v5009 = vunpack.c.l.b16 %v4909
        %v5010 = vunpack.c.h.b16 %v4909
        %v5011 = vunpack.c.l.b16 %v4910
        %v5012 = vunpack.c.h.b16 %v4910
        %v5013 = vpack.c.b16 %v4951, %v4949
        %v5014 = vpack.c.b16 %v4952, %v4950
        %v5015 = vpack.c.b16 %v4955, %v4953
        %v5016 = vpack.c.b16 %v4956, %v4954
        %v5017 = vpack.c.b16 %v4959, %v4957
        %v5018 = vpack.c.b16 %v4960, %v4958
        %v5019 = vpack.c.b16 %v4963, %v4961
        %v5020 = vpack.c.b16 %v4964, %v4962
        %v5021 = vpack.c.b16 %v4967, %v4965
        %v5022 = vpack.c.b16 %v4968, %v4966
        %v5023 = vpack.c.b16 %v4971, %v4969
        %v5024 = vpack.c.b16 %v4972, %v4970
        %v5025 = vpack.c.b16 %v4975, %v4973
        %v5026 = vpack.c.b16 %v4976, %v4974
        %v5027 = vpack.c.b16 %v4979, %v4977
        %v5028 = vpack.c.b16 %v4980, %v4978
        %v5029 = vpack.c.b16 %v4983, %v4981
        %v5030 = vpack.c.b16 %v4984, %v4982
        %v5031 = vpack.c.b16 %v4987, %v4985
        %v5032 = vpack.c.b16 %v4988, %v4986
        %v5033 = vpack.c.b16 %v4991, %v4989
        %v5034 = vpack.c.b16 %v4992, %v4990
        %v5035 = vpack.c.b16 %v4995, %v4993
        %v5036 = vpack.c.b16 %v4996, %v4994
        %v5037 = vpack.c.b16 %v4999, %v4997
        %v5038 = vpack.c.b16 %v5000, %v4998
        %v5039 = vpack.c.b16 %v5003, %v5001
        %v5040 = vpack.c.b16 %v5004, %v5002
        %v5041 = vpack.c.b16 %v5007, %v5005
        %v5042 = vpack.c.b16 %v5008, %v5006
        %v5043 = vpack.c.b16 %v5011, %v5009
        %v5044 = vpack.c.b16 %v5012, %v5010
        %5077 = vmatprep.subr.bf16.mxu0 %v5014
        %5078 = vmatpush1.bf16.msra.mxu0 %v5013
        %5079 = vmatprep.subr.bf16.mxu0 %v5016
        %5080 = vmatpush1.bf16.msra.mxu0 %v5015
        %5081 = vmatprep.subr.bf16.mxu0 %v5018
        %5082 = vmatpush1.bf16.msra.mxu0 %v5017
        %5083 = vmatprep.subr.bf16.mxu0 %v5020
        %5084 = vmatpush1.bf16.msra.mxu0 %v5019
        %5085 = vmatprep.subr.bf16.mxu0 %v5022
        %5086 = vmatpush1.bf16.msra.mxu0 %v5021
        %5087 = vmatprep.subr.bf16.mxu0 %v5024
        %5088 = vmatpush1.bf16.msra.mxu0 %v5023
        %5089 = vmatprep.subr.bf16.mxu0 %v5026
        %5090 = vmatpush1.bf16.msra.mxu0 %v5025
        %5091 = vmatprep.subr.bf16.mxu0 %v5028
        %5092 = vmatpush1.bf16.msra.mxu0 %v5027
        %5093 = vmatprep.subr.bf16.mxu0 %v5030
        %5094 = vmatpush1.bf16.msra.mxu0 %v5029
        %5095 = vmatprep.subr.bf16.mxu0 %v5032
        %5096 = vmatpush1.bf16.msra.mxu0 %v5031
        %5097 = vmatprep.subr.bf16.mxu0 %v5034
        %5098 = vmatpush1.bf16.msra.mxu0 %v5033
        %5099 = vmatprep.subr.bf16.mxu0 %v5036
        %5100 = vmatpush1.bf16.msra.mxu0 %v5035
        %5101 = vmatprep.subr.bf16.mxu0 %v5038
        %5102 = vmatpush1.bf16.msra.mxu0 %v5037
        %5103 = vmatprep.subr.bf16.mxu0 %v5040
        %5104 = vmatpush1.bf16.msra.mxu0 %v5039
        %5105 = vmatprep.subr.bf16.mxu0 %v5042
        %5106 = vmatpush1.bf16.msra.mxu0 %v5041
        %5107 = vmatprep.subr.bf16.mxu0 %v5044
        %5108 = vmatpush1.bf16.msra.mxu0 %v5043
        %5109 = vmatprep.mubr.bf16.mxu0 %v4914
        %5110 = vmatmul.mubr.bf16.gmra.mrb[0].mxu0 %v4912
        %v5111 = vpop.f32.mrb[0].mxu0
        %v5112 = vadd.f32 0.0, %v5111
        %v5113 = vpop.f32.mrb[0].mxu0
        %v5114 = vadd.f32 0.0, %v5113
        %v5115 = vpop.f32.mrb[0].mxu0
        %v5116 = vpop.f32.mrb[0].mxu0
        %5117 = vdwg.mxu0
        %v5118 = vadd.f32 %v4872, %v5112
        %v5119 = vadd.f32 %v4874, %v5114
        %v5120 = vld [vmem:[#allocation9] sm:$0x3]
        %v5122 = vlaneseq
        %v5123 = vshrl.u32 %v5122, 7
        %v5124 = vsub.s32 0, %v5123
        %v5125 = vrot.slane %v5120, %v5124
        %v5126 = vlaneseq
        %v5127 = vshrl.u32 %v5126, 7
        %v5128 = vsub.s32 1, %v5127
        %v5129 = vrot.slane %v5120, %v5128
        %v5132 = vadd.f32 %v5118, %v5125
        %v5133 = vadd.f32 %v5119, %v5129
        %vm5134 = vcmp.gt.f32.partialorder %v5132, 0.0
        %vm5135 = vcmp.gt.f32.partialorder %v5133, 0.0
        %v5136 = vmul.f32 %v5132, 0.1
        %v5137 = vmul.f32 %v5133, 0.1
        %v5138 = vsel %vm5134, %v5132, %v5136
        %v5139 = vsel %vm5135, %v5133, %v5137
        %v5140 = vpack.c.bf16 %v5138, %v5138
        %v5141 = vpack.c.bf16 %v5139, %v5139
        %v5142 = vld [vmem:[%s33] sm:$0x3]
        %vm5143 = vcmask 15360
        %v5145 = vsel %vm5143, %v5142, 0
        %vm5147 = vcmask 1040384
        %v5149 = vsel %vm5147, %v5140, 0
        %v5152 = vsel %vm5147, %v5141, 0
        %5154 = vmatprep.subr.bf16.mxu0 %v5152
        %5155 = vmatpush1.bf16.msra.mxu0 %v5149
        %5156 = vmatprep.subr.bf16.mxu0 0
        %5157 = vmatpush1.bf16.msra.mxu0 0
        %5158 = vmatprep.subr.bf16.mxu0 0
        %5159 = vmatpush1.bf16.msra.mxu0 0
        %5160 = vmatprep.subr.bf16.mxu0 0
        %5161 = vmatpush1.bf16.msra.mxu0 0
        %5162 = vmatprep.subr.bf16.mxu0 0
        %5163 = vmatpush1.bf16.msra.mxu0 0
        %5164 = vmatprep.subr.bf16.mxu0 0
        %5165 = vmatpush1.bf16.msra.mxu0 0
        %5166 = vmatprep.subr.bf16.mxu0 0
        %5167 = vmatpush1.bf16.msra.mxu0 0
        %5168 = vmatprep.subr.bf16.mxu0 0
        %5169 = vmatpush1.bf16.msra.mxu0 0
        %5170 = vmatprep.subr.bf16.mxu0 0
        %5171 = vmatpush1.bf16.msra.mxu0 0
        %5172 = vmatprep.subr.bf16.mxu0 0
        %5173 = vmatpush1.bf16.msra.mxu0 0
        %5174 = vmatprep.subr.bf16.mxu0 0
        %5175 = vmatpush1.bf16.msra.mxu0 0
        %5176 = vmatprep.subr.bf16.mxu0 0
        %5177 = vmatpush1.bf16.msra.mxu0 0
        %5178 = vmatprep.subr.bf16.mxu0 0
        %5179 = vmatpush1.bf16.msra.mxu0 0
        %5180 = vmatprep.subr.bf16.mxu0 0
        %5181 = vmatpush1.bf16.msra.mxu0 0
        %5182 = vmatprep.subr.bf16.mxu0 0
        %5183 = vmatpush1.bf16.msra.mxu0 0
        %5184 = vmatprep.subr.bf16.mxu0 0
        %5185 = vmatpush1.bf16.msra.mxu0 0
        %5186 = vmatprep.mubr.bf16.mxu0 0
        %5187 = vmatmul.mubr.bf16.gmra.mrb[0].mxu0 %v5145
        %v5188 = vpop.f32.mrb[0].mxu0
        %v5189 = vadd.f32 0.0, %v5188
        %v5190 = vpop.f32.mrb[0].mxu0
        %v5191 = vadd.f32 0.0, %v5190
        %v5192 = vpop.f32.mrb[0].mxu0
        %v5193 = vpop.f32.mrb[0].mxu0
        %5194 = vdwg.mxu0
        %v5195 = vpack.c.bf16 %v5189, %v5189
        %v5196 = vpack.c.bf16 %v5191, %v5191
        %v5197 = vld [vmem:[#allocation10] sm:$0xf]
        %v5198 = vld [vmem:[#allocation10 + $0x4] sm:$0xf]
        %v5199 = vld [vmem:[#allocation10 + $0x8] sm:$0xf]
        %v5200 = vld [vmem:[#allocation10 + $0xc] sm:$0xf]
        %v5201 = vld [vmem:[#allocation10 + $0x10] sm:$0xf]
        %v5202 = vld [vmem:[#allocation10 + $0x14] sm:$0xf]
        %v5203 = vld [vmem:[#allocation10 + $0x18] sm:$0xf]
        %v5204 = vld [vmem:[#allocation10 + $0x1c] sm:$0xf]
        %v5205 = vld [vmem:[#allocation10 + $0x20] sm:$0xf]
        %v5206 = vld [vmem:[#allocation10 + $0x24] sm:$0xf]
        %v5207 = vld [vmem:[#allocation10 + $0x28] sm:$0xf]
        %v5208 = vld [vmem:[#allocation10 + $0x2c] sm:$0xf]
        %v5209 = vld [vmem:[#allocation10 + $0x30] sm:$0xf]
        %v5210 = vld [vmem:[#allocation10 + $0x34] sm:$0xf]
        %v5211 = vld [vmem:[#allocation10 + $0x38] sm:$0xf]
        %v5212 = vld [vmem:[#allocation10 + $0x3c] sm:$0xf]
        %v5213 = vld [vmem:[#allocation10 + $0x40] sm:$0xf]
        %v5214 = vld [vmem:[#allocation10 + $0x44] sm:$0xf]
        %v5215 = vld [vmem:[#allocation10 + $0x48] sm:$0xf]
        %v5216 = vld [vmem:[#allocation10 + $0x4c] sm:$0xf]
        %v5217 = vld [vmem:[#allocation10 + $0x50] sm:$0xf]
        %v5218 = vld [vmem:[#allocation10 + $0x54] sm:$0xf]
        %v5219 = vld [vmem:[#allocation10 + $0x58] sm:$0xf]
        %v5220 = vld [vmem:[#allocation10 + $0x5c] sm:$0xf]
        %s5221 = scalar_lea.vmem [#allocation10], 96
        %v5222 = vld [vmem:[%s5221] sm:$0xf]
        %v5223 = vld [vmem:[%s5221 + $0x4] sm:$0xf]
        %v5224 = vld [vmem:[%s5221 + $0x8] sm:$0xf]
        %v5225 = vld [vmem:[%s5221 + $0xc] sm:$0xf]
        %v5226 = vld [vmem:[%s5221 + $0x10] sm:$0xf]
        %v5227 = vld [vmem:[%s5221 + $0x14] sm:$0xf]
        %v5228 = vld [vmem:[%s5221 + $0x18] sm:$0xf]
        %v5229 = vld [vmem:[%s5221 + $0x1c] sm:$0xf]
        %v5230 = vld [vmem:[%s5221 + $0x20] sm:$0xf]
        %v5231 = vld [vmem:[%s5221 + $0x24] sm:$0xf]
        %v5232 = vld [vmem:[%s5221 + $0x28] sm:$0xf]
        %v5233 = vld [vmem:[%s5221 + $0x2c] sm:$0xf]
        %v5234 = vld [vmem:[%s5221 + $0x30] sm:$0xf]
        %v5235 = vld [vmem:[%s5221 + $0x34] sm:$0xf]
        %v5236 = vld [vmem:[%s5221 + $0x38] sm:$0xf]
        %v5237 = vld [vmem:[%s5221 + $0x3c] sm:$0xf]
        %v5238 = vld [vmem:[%s5221 + $0x40] sm:$0xf]
        %v5239 = vld [vmem:[%s5221 + $0x44] sm:$0xf]
        %v5240 = vld [vmem:[%s5221 + $0x48] sm:$0xf]
        %v5241 = vld [vmem:[%s5221 + $0x4c] sm:$0xf]
        %v5242 = vld [vmem:[%s5221 + $0x50] sm:$0xf]
        %v5243 = vld [vmem:[%s5221 + $0x54] sm:$0xf]
        %v5244 = vld [vmem:[%s5221 + $0x58] sm:$0xf]
        %v5245 = vld [vmem:[%s5221 + $0x5c] sm:$0xf]
        %v5248 = vrot.slane %v5195, 1
        %v5249 = vrot.slane %v5196, 1
        %v5275 = vunpack.c.l.b16 %v5222
        %v5276 = vunpack.c.l.b16 %v5223
        %v5277 = vunpack.c.l.b16 %v5224
        %v5278 = vunpack.c.l.b16 %v5225
        %v5279 = vunpack.c.l.b16 %v5226
        %v5280 = vunpack.c.l.b16 %v5227
        %v5281 = vunpack.c.l.b16 %v5228
        %v5282 = vunpack.c.l.b16 %v5229
        %v5283 = vunpack.c.l.b16 %v5230
        %v5284 = vunpack.c.l.b16 %v5231
        %v5285 = vunpack.c.l.b16 %v5232
        %v5286 = vunpack.c.l.b16 %v5233
        %v5287 = vunpack.c.l.b16 %v5234
        %v5288 = vunpack.c.l.b16 %v5235
        %v5289 = vunpack.c.l.b16 %v5236
        %v5290 = vunpack.c.l.b16 %v5237
        %v5291 = vunpack.c.l.b16 %v5238
        %v5292 = vunpack.c.l.b16 %v5239
        %v5293 = vunpack.c.l.b16 %v5240
        %v5294 = vunpack.c.l.b16 %v5241
        %v5295 = vunpack.c.l.b16 %v5242
        %v5296 = vunpack.c.l.b16 %v5243
        %v5297 = vunpack.c.l.b16 %v5244
        %v5298 = vunpack.c.l.b16 %v5245
        %v5299 = vpack.c.b16 %v5276, %v5275
        %v5300 = vpack.c.b16 %v5278, %v5277
        %v5301 = vpack.c.b16 %v5280, %v5279
        %v5302 = vpack.c.b16 %v5282, %v5281
        %v5303 = vpack.c.b16 %v5284, %v5283
        %v5304 = vpack.c.b16 %v5286, %v5285
        %v5305 = vpack.c.b16 %v5288, %v5287
        %v5306 = vpack.c.b16 %v5290, %v5289
        %v5307 = vpack.c.b16 %v5292, %v5291
        %v5308 = vpack.c.b16 %v5294, %v5293
        %v5309 = vpack.c.b16 %v5296, %v5295
        %v5310 = vpack.c.b16 %v5298, %v5297
        %vm5323 = vcmask 523264
        %v5325 = vsel %vm5323, %v5249, 0
        %5327 = vmatprep.subr.bf16.mxu0 0
        %5328 = vmatpush1.bf16.msra.mxu0 %v5299
        %5329 = vmatprep.subr.bf16.mxu0 0
        %5330 = vmatpush1.bf16.msra.mxu0 %v5300
        %5331 = vmatprep.subr.bf16.mxu0 0
        %5332 = vmatpush1.bf16.msra.mxu0 %v5301
        %5333 = vmatprep.subr.bf16.mxu0 0
        %5334 = vmatpush1.bf16.msra.mxu0 %v5302
        %5335 = vmatprep.subr.bf16.mxu0 0
        %5336 = vmatpush1.bf16.msra.mxu0 %v5303
        %5337 = vmatprep.subr.bf16.mxu0 0
        %5338 = vmatpush1.bf16.msra.mxu0 %v5304
        %5339 = vmatprep.subr.bf16.mxu0 0
        %5340 = vmatpush1.bf16.msra.mxu0 %v5305
        %5341 = vmatprep.subr.bf16.mxu0 0
        %5342 = vmatpush1.bf16.msra.mxu0 %v5306
        %5343 = vmatprep.subr.bf16.mxu0 0
        %5344 = vmatpush1.bf16.msra.mxu0 %v5307
        %5345 = vmatprep.subr.bf16.mxu0 0
        %5346 = vmatpush1.bf16.msra.mxu0 %v5308
        %5347 = vmatprep.subr.bf16.mxu0 0
        %5348 = vmatpush1.bf16.msra.mxu0 %v5309
        %5349 = vmatprep.subr.bf16.mxu0 0
        %5350 = vmatpush1.bf16.msra.mxu0 %v5310
        %5351 = vmatprep.subr.bf16.mxu0 0
        %5352 = vmatpush1.bf16.msra.mxu0 0
        %5353 = vmatprep.subr.bf16.mxu0 0
        %5354 = vmatpush1.bf16.msra.mxu0 0
        %5355 = vmatprep.subr.bf16.mxu0 0
        %5356 = vmatpush1.bf16.msra.mxu0 0
        %5357 = vmatprep.subr.bf16.mxu0 0
        %5358 = vmatpush1.bf16.msra.mxu0 0
        %5359 = vmatprep.mubr.bf16.mxu0 %v5325
        %5360 = vmatmul.mubr.bf16.gmra.mrb[0].mxu0 %v5248
        %v5361 = vpop.f32.mrb[0].mxu0
        %v5362 = vadd.f32 0.0, %v5361
        %v5363 = vpop.f32.mrb[0].mxu0
        %v5364 = vpop.f32.mrb[0].mxu0
        %v5365 = vpop.f32.mrb[0].mxu0
        %5366 = vdwg.mxu0
        %v5391 = vunpack.c.l.b16 %v5197
        %v5392 = vunpack.c.l.b16 %v5198
        %v5393 = vunpack.c.l.b16 %v5199
        %v5394 = vunpack.c.l.b16 %v5200
        %v5395 = vunpack.c.l.b16 %v5201
        %v5396 = vunpack.c.l.b16 %v5202
        %v5397 = vunpack.c.l.b16 %v5203
        %v5398 = vunpack.c.l.b16 %v5204
        %v5399 = vunpack.c.l.b16 %v5205
        %v5400 = vunpack.c.l.b16 %v5206
        %v5401 = vunpack.c.l.b16 %v5207
        %v5402 = vunpack.c.l.b16 %v5208
        %v5403 = vunpack.c.l.b16 %v5209
        %v5404 = vunpack.c.l.b16 %v5210
        %v5405 = vunpack.c.l.b16 %v5211
        %v5406 = vunpack.c.l.b16 %v5212
        %v5407 = vunpack.c.l.b16 %v5213
        %v5408 = vunpack.c.l.b16 %v5214
        %v5409 = vunpack.c.l.b16 %v5215
        %v5410 = vunpack.c.l.b16 %v5216
        %v5411 = vunpack.c.l.b16 %v5217
        %v5412 = vunpack.c.l.b16 %v5218
        %v5413 = vunpack.c.l.b16 %v5219
        %v5414 = vunpack.c.l.b16 %v5220
        %v5415 = vpack.c.b16 %v5392, %v5391
        %v5416 = vpack.c.b16 %v5394, %v5393
        %v5417 = vpack.c.b16 %v5396, %v5395
        %v5418 = vpack.c.b16 %v5398, %v5397
        %v5419 = vpack.c.b16 %v5400, %v5399
        %v5420 = vpack.c.b16 %v5402, %v5401
        %v5421 = vpack.c.b16 %v5404, %v5403
        %v5422 = vpack.c.b16 %v5406, %v5405
        %v5423 = vpack.c.b16 %v5408, %v5407
        %v5424 = vpack.c.b16 %v5410, %v5409
        %v5425 = vpack.c.b16 %v5412, %v5411
        %v5426 = vpack.c.b16 %v5414, %v5413
        %v5440 = vsel %vm5323, %v5196, 0
        %5442 = vmatprep.subr.bf16.mxu0 0
        %5443 = vmatpush1.bf16.msra.mxu0 %v5415
        %5444 = vmatprep.subr.bf16.mxu0 0
        %5445 = vmatpush1.bf16.msra.mxu0 %v5416
        %5446 = vmatprep.subr.bf16.mxu0 0
        %5447 = vmatpush1.bf16.msra.mxu0 %v5417
        %5448 = vmatprep.subr.bf16.mxu0 0
        %5449 = vmatpush1.bf16.msra.mxu0 %v5418
        %5450 = vmatprep.subr.bf16.mxu0 0
        %5451 = vmatpush1.bf16.msra.mxu0 %v5419
        %5452 = vmatprep.subr.bf16.mxu0 0
        %5453 = vmatpush1.bf16.msra.mxu0 %v5420
        %5454 = vmatprep.subr.bf16.mxu0 0
        %5455 = vmatpush1.bf16.msra.mxu0 %v5421
        %5456 = vmatprep.subr.bf16.mxu0 0
        %5457 = vmatpush1.bf16.msra.mxu0 %v5422
        %5458 = vmatprep.subr.bf16.mxu0 0
        %5459 = vmatpush1.bf16.msra.mxu0 %v5423
        %5460 = vmatprep.subr.bf16.mxu0 0
        %5461 = vmatpush1.bf16.msra.mxu0 %v5424
        %5462 = vmatprep.subr.bf16.mxu0 0
        %5463 = vmatpush1.bf16.msra.mxu0 %v5425
        %5464 = vmatprep.subr.bf16.mxu0 0
        %5465 = vmatpush1.bf16.msra.mxu0 %v5426
        %5466 = vmatprep.subr.bf16.mxu0 0
        %5467 = vmatpush1.bf16.msra.mxu0 0
        %5468 = vmatprep.subr.bf16.mxu0 0
        %5469 = vmatpush1.bf16.msra.mxu0 0
        %5470 = vmatprep.subr.bf16.mxu0 0
        %5471 = vmatpush1.bf16.msra.mxu0 0
        %5472 = vmatprep.subr.bf16.mxu0 0
        %5473 = vmatpush1.bf16.msra.mxu0 0
        %5474 = vmatprep.mubr.bf16.mxu0 %v5440
        %5475 = vmatmul.mubr.bf16.gmra.mrb[0].mxu0 %v5195
        %v5476 = vpop.f32.mrb[0].mxu0
        %v5477 = vadd.f32 %v5362, %v5476
        %v5478 = vpop.f32.mrb[0].mxu0
        %v5479 = vpop.f32.mrb[0].mxu0
        %v5480 = vpop.f32.mrb[0].mxu0
        %5481 = vdwg.mxu0
        %s5482 = scalar_lea.vmem [#allocation10], 192
        %v5483 = vld [vmem:[%s5482] sm:$0xf]
        %v5484 = vld [vmem:[%s5482 + $0x4] sm:$0xf]
        %v5485 = vld [vmem:[%s5482 + $0x8] sm:$0xf]
        %v5486 = vld [vmem:[%s5482 + $0xc] sm:$0xf]
        %v5487 = vld [vmem:[%s5482 + $0x10] sm:$0xf]
        %v5488 = vld [vmem:[%s5482 + $0x14] sm:$0xf]
        %v5489 = vld [vmem:[%s5482 + $0x18] sm:$0xf]
        %v5490 = vld [vmem:[%s5482 + $0x1c] sm:$0xf]
        %v5491 = vld [vmem:[%s5482 + $0x20] sm:$0xf]
        %v5492 = vld [vmem:[%s5482 + $0x24] sm:$0xf]
        %v5493 = vld [vmem:[%s5482 + $0x28] sm:$0xf]
        %v5494 = vld [vmem:[%s5482 + $0x2c] sm:$0xf]
        %v5495 = vld [vmem:[%s5482 + $0x30] sm:$0xf]
        %v5496 = vld [vmem:[%s5482 + $0x34] sm:$0xf]
        %v5497 = vld [vmem:[%s5482 + $0x38] sm:$0xf]
        %v5498 = vld [vmem:[%s5482 + $0x3c] sm:$0xf]
        %v5499 = vld [vmem:[%s5482 + $0x40] sm:$0xf]
        %v5500 = vld [vmem:[%s5482 + $0x44] sm:$0xf]
        %v5501 = vld [vmem:[%s5482 + $0x48] sm:$0xf]
        %v5502 = vld [vmem:[%s5482 + $0x4c] sm:$0xf]
        %v5503 = vld [vmem:[%s5482 + $0x50] sm:$0xf]
        %v5504 = vld [vmem:[%s5482 + $0x54] sm:$0xf]
        %v5505 = vld [vmem:[%s5482 + $0x58] sm:$0xf]
        %v5506 = vld [vmem:[%s5482 + $0x5c] sm:$0xf]
        %v5508 = vshrl.u32 %v5195, 16
        %v5510 = vshrl.u32 %v5196, 16
        %v5537 = vunpack.c.l.b16 %v5483
        %v5538 = vunpack.c.l.b16 %v5484
        %v5539 = vunpack.c.l.b16 %v5485
        %v5540 = vunpack.c.l.b16 %v5486
        %v5541 = vunpack.c.l.b16 %v5487
        %v5542 = vunpack.c.l.b16 %v5488
        %v5543 = vunpack.c.l.b16 %v5489
        %v5544 = vunpack.c.l.b16 %v5490
        %v5545 = vunpack.c.l.b16 %v5491
        %v5546 = vunpack.c.l.b16 %v5492
        %v5547 = vunpack.c.l.b16 %v5493
        %v5548 = vunpack.c.l.b16 %v5494
        %v5549 = vunpack.c.l.b16 %v5495
        %v5550 = vunpack.c.l.b16 %v5496
        %v5551 = vunpack.c.l.b16 %v5497
        %v5552 = vunpack.c.l.b16 %v5498
        %v5553 = vunpack.c.l.b16 %v5499
        %v5554 = vunpack.c.l.b16 %v5500
        %v5555 = vunpack.c.l.b16 %v5501
        %v5556 = vunpack.c.l.b16 %v5502
        %v5557 = vunpack.c.l.b16 %v5503
        %v5558 = vunpack.c.l.b16 %v5504
        %v5559 = vunpack.c.l.b16 %v5505
        %v5560 = vunpack.c.l.b16 %v5506
        %v5561 = vpack.c.b16 %v5538, %v5537
        %v5562 = vpack.c.b16 %v5540, %v5539
        %v5563 = vpack.c.b16 %v5542, %v5541
        %v5564 = vpack.c.b16 %v5544, %v5543
        %v5565 = vpack.c.b16 %v5546, %v5545
        %v5566 = vpack.c.b16 %v5548, %v5547
        %v5567 = vpack.c.b16 %v5550, %v5549
        %v5568 = vpack.c.b16 %v5552, %v5551
        %v5569 = vpack.c.b16 %v5554, %v5553
        %v5570 = vpack.c.b16 %v5556, %v5555
        %v5571 = vpack.c.b16 %v5558, %v5557
        %v5572 = vpack.c.b16 %v5560, %v5559
        %v5586 = vsel %vm5323, %v5510, 0
        %5588 = vmatprep.subr.bf16.mxu0 0
        %5589 = vmatpush1.bf16.msra.mxu0 %v5561
        %5590 = vmatprep.subr.bf16.mxu0 0
        %5591 = vmatpush1.bf16.msra.mxu0 %v5562
        %5592 = vmatprep.subr.bf16.mxu0 0
        %5593 = vmatpush1.bf16.msra.mxu0 %v5563
        %5594 = vmatprep.subr.bf16.mxu0 0
        %5595 = vmatpush1.bf16.msra.mxu0 %v5564
        %5596 = vmatprep.subr.bf16.mxu0 0
        %5597 = vmatpush1.bf16.msra.mxu0 %v5565
        %5598 = vmatprep.subr.bf16.mxu0 0
        %5599 = vmatpush1.bf16.msra.mxu0 %v5566
        %5600 = vmatprep.subr.bf16.mxu0 0
        %5601 = vmatpush1.bf16.msra.mxu0 %v5567
        %5602 = vmatprep.subr.bf16.mxu0 0
        %5603 = vmatpush1.bf16.msra.mxu0 %v5568
        %5604 = vmatprep.subr.bf16.mxu0 0
        %5605 = vmatpush1.bf16.msra.mxu0 %v5569
        %5606 = vmatprep.subr.bf16.mxu0 0
        %5607 = vmatpush1.bf16.msra.mxu0 %v5570
        %5608 = vmatprep.subr.bf16.mxu0 0
        %5609 = vmatpush1.bf16.msra.mxu0 %v5571
        %5610 = vmatprep.subr.bf16.mxu0 0
        %5611 = vmatpush1.bf16.msra.mxu0 %v5572
        %5612 = vmatprep.subr.bf16.mxu0 0
        %5613 = vmatpush1.bf16.msra.mxu0 0
        %5614 = vmatprep.subr.bf16.mxu0 0
        %5615 = vmatpush1.bf16.msra.mxu0 0
        %5616 = vmatprep.subr.bf16.mxu0 0
        %5617 = vmatpush1.bf16.msra.mxu0 0
        %5618 = vmatprep.subr.bf16.mxu0 0
        %5619 = vmatpush1.bf16.msra.mxu0 0
        %5620 = vmatprep.mubr.bf16.mxu0 %v5586
        %5621 = vmatmul.mubr.bf16.gmra.mrb[0].mxu0 %v5508
        %v5622 = vpop.f32.mrb[0].mxu0
        %v5623 = vadd.f32 0.0, %v5622
        %v5624 = vpop.f32.mrb[0].mxu0
        %v5625 = vpop.f32.mrb[0].mxu0
        %v5626 = vpop.f32.mrb[0].mxu0
        %5627 = vdwg.mxu0
        %v5628 = vadd.f32 %v5477, %v5623
        %v5629 = vld [vmem:[%s37] sm:$0x1]
        %v5630 = vadd.f32 %v5628, %v5629
        %vm5631 = vcmp.gt.f32.partialorder %v5630, 0.0
        %v5632 = vmul.f32 %v5630, 0.1
        %v5633 = vsel %vm5631, %v5630, %v5632
        %v5634 = vld [vmem:[%s39] sm:$0xf]
        %v5635 = vld [vmem:[%s39 + $0x4] sm:$0xf]
        %v5636 = vld [vmem:[%s39 + $0x8] sm:$0xf]
        %v5637 = vld [vmem:[%s39 + $0xc] sm:$0xf]
        %v5638 = vld [vmem:[%s39 + $0x10] sm:$0xf]
        %v5639 = vld [vmem:[%s39 + $0x14] sm:$0xf]
        %v5640 = vld [vmem:[%s39 + $0x18] sm:$0xf]
        %v5641 = vld [vmem:[%s39 + $0x1c] sm:$0xf]
        %v5642 = vld [vmem:[%s39 + $0x20] sm:$0xf]
        %v5643 = vld [vmem:[%s39 + $0x24] sm:$0xf]
        %v5644 = vld [vmem:[%s39 + $0x28] sm:$0xf]
        %v5645 = vld [vmem:[%s39 + $0x2c] sm:$0xf]
        %v5646 = vld [vmem:[%s39 + $0x30] sm:$0xf]
        %v5647 = vld [vmem:[%s39 + $0x34] sm:$0xf]
        %v5648 = vld [vmem:[%s39 + $0x38] sm:$0xf]
        %v5649 = vld [vmem:[%s39 + $0x3c] sm:$0xf]
        %v5650 = vld [vmem:[%s39 + $0x40] sm:$0xf]
        %v5651 = vld [vmem:[%s39 + $0x44] sm:$0xf]
        %v5652 = vld [vmem:[%s39 + $0x48] sm:$0xf]
        %v5653 = vld [vmem:[%s39 + $0x4c] sm:$0xf]
        %v5654 = vld [vmem:[%s39 + $0x50] sm:$0xf]
        %v5655 = vld [vmem:[%s39 + $0x54] sm:$0xf]
        %v5656 = vld [vmem:[%s39 + $0x58] sm:$0xf]
        %v5657 = vld [vmem:[%s39 + $0x5c] sm:$0xf]
        %v5658 = vld [vmem:[%s39 + $0x60] sm:$0xf]
        %v5659 = vld [vmem:[%s39 + $0x64] sm:$0xf]
        %v5660 = vld [vmem:[%s39 + $0x68] sm:$0xf]
        %v5661 = vld [vmem:[%s39 + $0x6c] sm:$0xf]
        %v5662 = vld [vmem:[%s39 + $0x70] sm:$0xf]
        %v5663 = vld [vmem:[%s39 + $0x74] sm:$0xf]
        %v5664 = vld [vmem:[%s39 + $0x78] sm:$0xf]
        %v5665 = vld [vmem:[%s39 + $0x7c] sm:$0xf]
        %v5666 = vld [vmem:[#allocation12] sm:$0x1]
        %v5668 = vlaneseq
        %v5669 = vshrl.u32 %v5668, 7
        %v5670 = vsub.s32 0, %v5669
        %v5671 = vrot.slane %v5666, %v5670
        %v5705 = vunpack.c.l.b16 %v5634
        %v5706 = vunpack.c.l.b16 %v5635
        %v5707 = vunpack.c.l.b16 %v5636
        %v5708 = vunpack.c.l.b16 %v5637
        %v5709 = vunpack.c.l.b16 %v5638
        %v5710 = vunpack.c.l.b16 %v5639
        %v5711 = vunpack.c.l.b16 %v5640
        %v5712 = vunpack.c.l.b16 %v5641
        %v5713 = vunpack.c.l.b16 %v5642
        %v5714 = vunpack.c.l.b16 %v5643
        %v5715 = vunpack.c.l.b16 %v5644
        %v5716 = vunpack.c.l.b16 %v5645
        %v5717 = vunpack.c.l.b16 %v5646
        %v5718 = vunpack.c.l.b16 %v5647
        %v5719 = vunpack.c.l.b16 %v5648
        %v5720 = vunpack.c.l.b16 %v5649
        %v5721 = vunpack.c.l.b16 %v5650
        %v5722 = vunpack.c.l.b16 %v5651
        %v5723 = vunpack.c.l.b16 %v5652
        %v5724 = vunpack.c.l.b16 %v5653
        %v5725 = vunpack.c.l.b16 %v5654
        %v5726 = vunpack.c.l.b16 %v5655
        %v5727 = vunpack.c.l.b16 %v5656
        %v5728 = vunpack.c.l.b16 %v5657
        %v5729 = vunpack.c.l.b16 %v5658
        %v5730 = vunpack.c.l.b16 %v5659
        %v5731 = vunpack.c.l.b16 %v5660
        %v5732 = vunpack.c.l.b16 %v5661
        %v5733 = vunpack.c.l.b16 %v5662
        %v5734 = vunpack.c.l.b16 %v5663
        %v5735 = vunpack.c.l.b16 %v5664
        %v5736 = vunpack.c.l.b16 %v5665
        %v5737 = vpack.c.b16 %v5706, %v5705
        %v5738 = vpack.c.b16 %v5708, %v5707
        %v5739 = vpack.c.b16 %v5710, %v5709
        %v5740 = vpack.c.b16 %v5712, %v5711
        %v5741 = vpack.c.b16 %v5714, %v5713
        %v5742 = vpack.c.b16 %v5716, %v5715
        %v5743 = vpack.c.b16 %v5718, %v5717
        %v5744 = vpack.c.b16 %v5720, %v5719
        %v5745 = vpack.c.b16 %v5722, %v5721
        %v5746 = vpack.c.b16 %v5724, %v5723
        %v5747 = vpack.c.b16 %v5726, %v5725
        %v5748 = vpack.c.b16 %v5728, %v5727
        %v5749 = vpack.c.b16 %v5730, %v5729
        %v5750 = vpack.c.b16 %v5732, %v5731
        %v5751 = vpack.c.b16 %v5734, %v5733
        %v5752 = vpack.c.b16 %v5736, %v5735
        %5769 = vmatprep.subr.bf16.mxu0 0
        %5770 = vmatpush1.bf16.msra.mxu0 %v5737
        %5771 = vmatprep.subr.bf16.mxu0 0
        %5772 = vmatpush1.bf16.msra.mxu0 %v5738
        %5773 = vmatprep.subr.bf16.mxu0 0
        %5774 = vmatpush1.bf16.msra.mxu0 %v5739
        %5775 = vmatprep.subr.bf16.mxu0 0
        %5776 = vmatpush1.bf16.msra.mxu0 %v5740
        %5777 = vmatprep.subr.bf16.mxu0 0
        %5778 = vmatpush1.bf16.msra.mxu0 %v5741
        %5779 = vmatprep.subr.bf16.mxu0 0
        %5780 = vmatpush1.bf16.msra.mxu0 %v5742
        %5781 = vmatprep.subr.bf16.mxu0 0
        %5782 = vmatpush1.bf16.msra.mxu0 %v5743
        %5783 = vmatprep.subr.bf16.mxu0 0
        %5784 = vmatpush1.bf16.msra.mxu0 %v5744
        %5785 = vmatprep.subr.bf16.mxu0 0
        %5786 = vmatpush1.bf16.msra.mxu0 %v5745
        %5787 = vmatprep.subr.bf16.mxu0 0
        %5788 = vmatpush1.bf16.msra.mxu0 %v5746
        %5789 = vmatprep.subr.bf16.mxu0 0
        %5790 = vmatpush1.bf16.msra.mxu0 %v5747
        %5791 = vmatprep.subr.bf16.mxu0 0
        %5792 = vmatpush1.bf16.msra.mxu0 %v5748
        %5793 = vmatprep.subr.bf16.mxu0 0
        %5794 = vmatpush1.bf16.msra.mxu0 %v5749
        %5795 = vmatprep.subr.bf16.mxu0 0
        %5796 = vmatpush1.bf16.msra.mxu0 %v5750
        %5797 = vmatprep.subr.bf16.mxu0 0
        %5798 = vmatpush1.bf16.msra.mxu0 %v5751
        %5799 = vmatprep.subr.bf16.mxu0 0
        %5800 = vmatpush1.bf16.msra.mxu0 %v5752
        %5801 = vmatprep.mubr.bf16.mxu0 %v4337
        %5802 = vmatmul.mubr.bf16.gmra.mrb[0].mxu0 %v4336
        %v5803 = vpop.f32.mrb[0].mxu0
        %v5804 = vadd.f32 %v5671, %v5803
        %v5805 = vpop.f32.mrb[0].mxu0
        %v5806 = vpop.f32.mrb[0].mxu0
        %v5807 = vpop.f32.mrb[0].mxu0
        %5808 = vdwg.mxu0
        %vm5809 = vcmask 781312
        %5810 = vst.msk [vmem:[%s1200] sm:$0xf] %vm5809, %v5804
        %v5811 = vld [vmem:[#allocation13] sm:$0xf]
        %s5812 = scalar_lea.vmem [#allocation13], 4
        %v5813 = vld [vmem:[%s5812] sm:$0xf]
        %s5814 = scalar_lea.vmem [#allocation13], 8
        %v5815 = vld [vmem:[%s5814] sm:$0xf]
        %s5816 = scalar_lea.vmem [#allocation13], 12
        %v5817 = vld [vmem:[%s5816] sm:$0xf]
        %v5818 = vxor.u32 %v5804, 2147483648
        %v5819 = vmul.f32 %v5818, 1.442695
        %v5820 = vpow.pop %v5819
        %v5821 = vadd.f32 %v5820, 1.0
        %v5822 = vrcp.pop %v5821
        %v5823 = vmul.f32 1.0, %v5822
        %v5824 = vadd.f32 %v5823, %v5811
        %v5825 = vmul.f32 %v5824, %v5813
        %vm5826 = vcmp.gt.f32.partialorder %v5817, 0.0
        %v5827 = vsel %vm5826, %v5804, 0.0
        %v5828 = vmul.f32 %v5827, 1.442695
        %v5829 = vpow.pop %v5828
        %v5830 = vmul.f32 %v5829, %v5813
        %vm5831 = vcmp.gt.f32.partialorder %v5815, 0.0
        %v5832 = vsel %vm5826, %v5830, %v5823
        %v5833 = vsel %vm5831, %v5825, %v5832
        %5834 = vst.msk [vmem:[%s1211] sm:$0xf] %vm5809, %v5833
        %v5835 = vld [vmem:[%s45] sm:$0xf]
        %v5836 = vld [vmem:[%s45 + $0x4] sm:$0xf]
        %v5837 = vld [vmem:[%s45 + $0x8] sm:$0xf]
        %v5838 = vld [vmem:[%s45 + $0xc] sm:$0xf]
        %v5839 = vld [vmem:[%s45 + $0x10] sm:$0xf]
        %v5840 = vld [vmem:[%s45 + $0x14] sm:$0xf]
        %v5841 = vld [vmem:[%s45 + $0x18] sm:$0xf]
        %v5842 = vld [vmem:[%s45 + $0x1c] sm:$0xf]
        %v5843 = vld [vmem:[%s45 + $0x20] sm:$0xf]
        %v5844 = vld [vmem:[%s45 + $0x24] sm:$0xf]
        %v5845 = vld [vmem:[%s45 + $0x28] sm:$0xf]
        %v5846 = vld [vmem:[%s45 + $0x2c] sm:$0xf]
        %v5847 = vld [vmem:[%s45 + $0x30] sm:$0xf]
        %v5848 = vld [vmem:[%s45 + $0x34] sm:$0xf]
        %v5849 = vld [vmem:[%s45 + $0x38] sm:$0xf]
        %v5850 = vld [vmem:[%s45 + $0x3c] sm:$0xf]
        %v5851 = vld [vmem:[%s45 + $0x40] sm:$0xf]
        %v5852 = vld [vmem:[%s45 + $0x44] sm:$0xf]
        %v5853 = vld [vmem:[%s45 + $0x48] sm:$0xf]
        %v5854 = vld [vmem:[%s45 + $0x4c] sm:$0xf]
        %v5855 = vld [vmem:[%s45 + $0x50] sm:$0xf]
        %v5856 = vld [vmem:[%s45 + $0x54] sm:$0xf]
        %v5857 = vld [vmem:[%s45 + $0x58] sm:$0xf]
        %v5858 = vld [vmem:[%s45 + $0x5c] sm:$0xf]
        %v5859 = vld [vmem:[#allocation15] sm:$0x1]
        %v5861 = vlaneseq
        %v5862 = vshrl.u32 %v5861, 7
        %v5863 = vsub.s32 0, %v5862
        %v5864 = vrot.slane %v5859, %v5863
        %v5890 = vunpack.c.l.b16 %v5835
        %v5891 = vunpack.c.l.b16 %v5836
        %v5892 = vunpack.c.l.b16 %v5837
        %v5893 = vunpack.c.l.b16 %v5838
        %v5894 = vunpack.c.l.b16 %v5839
        %v5895 = vunpack.c.l.b16 %v5840
        %v5896 = vunpack.c.l.b16 %v5841
        %v5897 = vunpack.c.l.b16 %v5842
        %v5898 = vunpack.c.l.b16 %v5843
        %v5899 = vunpack.c.l.b16 %v5844
        %v5900 = vunpack.c.l.b16 %v5845
        %v5901 = vunpack.c.l.b16 %v5846
        %v5902 = vunpack.c.l.b16 %v5847
        %v5903 = vunpack.c.l.b16 %v5848
        %v5904 = vunpack.c.l.b16 %v5849
        %v5905 = vunpack.c.l.b16 %v5850
        %v5906 = vunpack.c.l.b16 %v5851
        %v5907 = vunpack.c.l.b16 %v5852
        %v5908 = vunpack.c.l.b16 %v5853
        %v5909 = vunpack.c.l.b16 %v5854
        %v5910 = vunpack.c.l.b16 %v5855
        %v5911 = vunpack.c.l.b16 %v5856
        %v5912 = vunpack.c.l.b16 %v5857
        %v5913 = vunpack.c.l.b16 %v5858
        %v5914 = vpack.c.b16 %v5891, %v5890
        %v5915 = vpack.c.b16 %v5893, %v5892
        %v5916 = vpack.c.b16 %v5895, %v5894
        %v5917 = vpack.c.b16 %v5897, %v5896
        %v5918 = vpack.c.b16 %v5899, %v5898
        %v5919 = vpack.c.b16 %v5901, %v5900
        %v5920 = vpack.c.b16 %v5903, %v5902
        %v5921 = vpack.c.b16 %v5905, %v5904
        %v5922 = vpack.c.b16 %v5907, %v5906
        %v5923 = vpack.c.b16 %v5909, %v5908
        %v5924 = vpack.c.b16 %v5911, %v5910
        %v5925 = vpack.c.b16 %v5913, %v5912
        %v5938 = vsel %vm5323, %v5141, 0
        %5940 = vmatprep.subr.bf16.mxu0 0
        %5941 = vmatpush1.bf16.msra.mxu0 %v5914
        %5942 = vmatprep.subr.bf16.mxu0 0
        %5943 = vmatpush1.bf16.msra.mxu0 %v5915
        %5944 = vmatprep.subr.bf16.mxu0 0
        %5945 = vmatpush1.bf16.msra.mxu0 %v5916
        %5946 = vmatprep.subr.bf16.mxu0 0
        %5947 = vmatpush1.bf16.msra.mxu0 %v5917
        %5948 = vmatprep.subr.bf16.mxu0 0
        %5949 = vmatpush1.bf16.msra.mxu0 %v5918
        %5950 = vmatprep.subr.bf16.mxu0 0
        %5951 = vmatpush1.bf16.msra.mxu0 %v5919
        %5952 = vmatprep.subr.bf16.mxu0 0
        %5953 = vmatpush1.bf16.msra.mxu0 %v5920
        %5954 = vmatprep.subr.bf16.mxu0 0
        %5955 = vmatpush1.bf16.msra.mxu0 %v5921
        %5956 = vmatprep.subr.bf16.mxu0 0
        %5957 = vmatpush1.bf16.msra.mxu0 %v5922
        %5958 = vmatprep.subr.bf16.mxu0 0
        %5959 = vmatpush1.bf16.msra.mxu0 %v5923
        %5960 = vmatprep.subr.bf16.mxu0 0
        %5961 = vmatpush1.bf16.msra.mxu0 %v5924
        %5962 = vmatprep.subr.bf16.mxu0 0
        %5963 = vmatpush1.bf16.msra.mxu0 %v5925
        %5964 = vmatprep.subr.bf16.mxu0 0
        %5965 = vmatpush1.bf16.msra.mxu0 0
        %5966 = vmatprep.subr.bf16.mxu0 0
        %5967 = vmatpush1.bf16.msra.mxu0 0
        %5968 = vmatprep.subr.bf16.mxu0 0
        %5969 = vmatpush1.bf16.msra.mxu0 0
        %5970 = vmatprep.subr.bf16.mxu0 0
        %5971 = vmatpush1.bf16.msra.mxu0 0
        %5972 = vmatprep.mubr.bf16.mxu0 %v5938
        %5973 = vmatmul.mubr.bf16.gmra.mrb[0].mxu0 %v5140
        %v5974 = vpop.f32.mrb[0].mxu0
        %v5975 = vadd.f32 %v5864, %v5974
        %v5976 = vpop.f32.mrb[0].mxu0
        %v5977 = vpop.f32.mrb[0].mxu0
        %v5978 = vpop.f32.mrb[0].mxu0
        %5979 = vdwg.mxu0
        %vm5980 = vcmask 386048
        %5981 = vst.msk [vmem:[%s1204] sm:$0x3] %vm5980, %v5975
        %v5982 = vld [vmem:[#allocation16] sm:$0x3]
        %s5983 = scalar_lea.vmem [#allocation16], 2
        %v5984 = vld [vmem:[%s5983] sm:$0x3]
        %s5985 = scalar_lea.vmem [#allocation16], 4
        %v5986 = vld [vmem:[%s5985] sm:$0x3]
        %s5987 = scalar_lea.vmem [#allocation16], 6
        %v5988 = vld [vmem:[%s5987] sm:$0x3]
        %v5989 = vxor.u32 %v5975, 2147483648
        %v5990 = vmul.f32 %v5989, 1.442695
        %v5991 = vpow.pop %v5990
        %v5992 = vadd.f32 %v5991, 1.0
        %v5993 = vrcp.pop %v5992
        %v5994 = vmul.f32 1.0, %v5993
        %v5995 = vadd.f32 %v5994, %v5982
        %v5996 = vmul.f32 %v5995, %v5984
        %vm5997 = vcmp.gt.f32.partialorder %v5988, 0.0
        %v5998 = vsel %vm5997, %v5975, 0.0
        %v5999 = vmul.f32 %v5998, 1.442695
        %v6000 = vpow.pop %v5999
        %v6001 = vmul.f32 %v6000, %v5984
        %vm6002 = vcmp.gt.f32.partialorder %v5986, 0.0
        %v6003 = vsel %vm5997, %v6001, %v5994
        %v6004 = vsel %vm6002, %v5996, %v6003
        %6005 = vst.msk [vmem:[%s1215] sm:$0x3] %vm5980, %v6004
        %v6006 = vpack.c.bf16 %v5633, %v5633
        %v6007 = vld [vmem:[%s51] sm:$0xf]
        %v6008 = vld [vmem:[%s51 + $0x4] sm:$0xf]
        %v6009 = vld [vmem:[%s51 + $0x8] sm:$0xf]
        %v6010 = vld [vmem:[%s51 + $0xc] sm:$0xf]
        %v6011 = vld [vmem:[%s51 + $0x10] sm:$0xf]
        %v6012 = vld [vmem:[%s51 + $0x14] sm:$0xf]
        %v6013 = vld [vmem:[%s51 + $0x18] sm:$0xf]
        %v6014 = vld [vmem:[%s51 + $0x1c] sm:$0xf]
        %v6015 = vld [vmem:[%s51 + $0x20] sm:$0xf]
        %v6016 = vld [vmem:[%s51 + $0x24] sm:$0xf]
        %v6017 = vld [vmem:[%s51 + $0x28] sm:$0xf]
        %v6018 = vld [vmem:[%s51 + $0x2c] sm:$0xf]
        %v6019 = vld [vmem:[%s51 + $0x30] sm:$0xf]
        %v6020 = vld [vmem:[%s51 + $0x34] sm:$0xf]
        %v6021 = vld [vmem:[%s51 + $0x38] sm:$0xf]
        %v6022 = vld [vmem:[%s51 + $0x3c] sm:$0xf]
        %v6023 = vld [vmem:[#allocation18] sm:$0x1]
        %v6040 = vunpack.c.l.b16 %v6007
        %v6041 = vunpack.c.l.b16 %v6008
        %v6042 = vunpack.c.l.b16 %v6009
        %v6043 = vunpack.c.l.b16 %v6010
        %v6044 = vunpack.c.l.b16 %v6011
        %v6045 = vunpack.c.l.b16 %v6012
        %v6046 = vunpack.c.l.b16 %v6013
        %v6047 = vunpack.c.l.b16 %v6014
        %v6048 = vunpack.c.l.b16 %v6015
        %v6049 = vunpack.c.l.b16 %v6016
        %v6050 = vunpack.c.l.b16 %v6017
        %v6051 = vunpack.c.l.b16 %v6018
        %v6052 = vunpack.c.l.b16 %v6019
        %v6053 = vunpack.c.l.b16 %v6020
        %v6054 = vunpack.c.l.b16 %v6021
        %v6055 = vunpack.c.l.b16 %v6022
        %v6056 = vpack.c.b16 %v6041, %v6040
        %v6057 = vpack.c.b16 %v6043, %v6042
        %v6058 = vpack.c.b16 %v6045, %v6044
        %v6059 = vpack.c.b16 %v6047, %v6046
        %v6060 = vpack.c.b16 %v6049, %v6048
        %v6061 = vpack.c.b16 %v6051, %v6050
        %v6062 = vpack.c.b16 %v6053, %v6052
        %v6063 = vpack.c.b16 %v6055, %v6054
        %6072 = vmatprep.subr.bf16.mxu0 0
        %6073 = vmatpush1.bf16.msra.mxu0 %v6056
        %6074 = vmatprep.subr.bf16.mxu0 0
        %6075 = vmatpush1.bf16.msra.mxu0 %v6057
        %6076 = vmatprep.subr.bf16.mxu0 0
        %6077 = vmatpush1.bf16.msra.mxu0 %v6058
        %6078 = vmatprep.subr.bf16.mxu0 0
        %6079 = vmatpush1.bf16.msra.mxu0 %v6059
        %6080 = vmatprep.subr.bf16.mxu0 0
        %6081 = vmatpush1.bf16.msra.mxu0 %v6060
        %6082 = vmatprep.subr.bf16.mxu0 0
        %6083 = vmatpush1.bf16.msra.mxu0 %v6061
        %6084 = vmatprep.subr.bf16.mxu0 0
        %6085 = vmatpush1.bf16.msra.mxu0 %v6062
        %6086 = vmatprep.subr.bf16.mxu0 0
        %6087 = vmatpush1.bf16.msra.mxu0 %v6063
        %6088 = vmatprep.subr.bf16.mxu0 0
        %6089 = vmatpush1.bf16.msra.mxu0 0
        %6090 = vmatprep.subr.bf16.mxu0 0
        %6091 = vmatpush1.bf16.msra.mxu0 0
        %6092 = vmatprep.subr.bf16.mxu0 0
        %6093 = vmatpush1.bf16.msra.mxu0 0
        %6094 = vmatprep.subr.bf16.mxu0 0
        %6095 = vmatpush1.bf16.msra.mxu0 0
        %6096 = vmatprep.subr.bf16.mxu0 0
        %6097 = vmatpush1.bf16.msra.mxu0 0
        %6098 = vmatprep.subr.bf16.mxu0 0
        %6099 = vmatpush1.bf16.msra.mxu0 0
        %6100 = vmatprep.subr.bf16.mxu0 0
        %6101 = vmatpush1.bf16.msra.mxu0 0
        %6102 = vmatprep.subr.bf16.mxu0 0
        %6103 = vmatpush1.bf16.msra.mxu0 0
        %6104 = vmatprep.mubr.bf16.mxu0 0
        %6105 = vmatmul.mubr.bf16.gmra.mrb[0].mxu0 %v6006
        %v6106 = vpop.f32.mrb[0].mxu0
        %v6107 = vadd.f32 %v6023, %v6106
        %v6108 = vpop.f32.mrb[0].mxu0
        %v6109 = vpop.f32.mrb[0].mxu0
        %v6110 = vpop.f32.mrb[0].mxu0
        %6111 = vdwg.mxu0
        %vm6112 = vcmask 188416
        %6113 = vst.msk [vmem:[%s1207] sm:$0x1] %vm6112, %v6107
        %v6114 = vld [vmem:[#allocation19] sm:$0x1]
        %s6115 = scalar_lea.vmem [#allocation19], 1
        %v6116 = vld [vmem:[%s6115] sm:$0x1]
        %s6117 = scalar_lea.vmem [#allocation19], 2
        %v6118 = vld [vmem:[%s6117] sm:$0x1]
        %s6119 = scalar_lea.vmem [#allocation19], 3
        %v6120 = vld [vmem:[%s6119] sm:$0x1]
        %v6121 = vxor.u32 %v6107, 2147483648
        %v6122 = vmul.f32 %v6121, 1.442695
        %v6123 = vpow.pop %v6122
        %v6124 = vadd.f32 %v6123, 1.0
        %v6125 = vrcp.pop %v6124
        %v6126 = vmul.f32 1.0, %v6125
        %v6127 = vadd.f32 %v6126, %v6114
        %v6128 = vmul.f32 %v6127, %v6116
        %vm6129 = vcmp.gt.f32.partialorder %v6120, 0.0
        %v6130 = vsel %vm6129, %v6107, 0.0
        %v6131 = vmul.f32 %v6130, 1.442695
        %v6132 = vpow.pop %v6131
        %v6133 = vmul.f32 %v6132, %v6116
        %vm6134 = vcmp.gt.f32.partialorder %v6118, 0.0
        %v6135 = vsel %vm6129, %v6133, %v6126
        %v6136 = vsel %vm6134, %v6128, %v6135
        %6137 = vst.msk [vmem:[%s1218] sm:$0x1] %vm6112, %v6136
        %p6138 = scmp.lt.s32.totalorder %s86, 1
        %s6139 = scalar_select %p6138, %s86, 1
        %s6140 = smul.addr %s6139, 4
        %s6141 = scalar_lea.vmem %s57, %s6140
        %p6142 = scmp.lt.s32.totalorder %s86, 1
        %s6143 = scalar_select %p6142, %s86, 1
        %s6144 = smul.addr %s6143, 2
        %s6145 = scalar_lea.vmem %s59, %s6144
        %p6146 = scmp.lt.s32.totalorder %s86, 1
        %s6147 = scalar_select %p6146, %s86, 1
        %s6148 = scalar_lea.vmem %s61, %s6147
        %p6149 = scmp.lt.s32.totalorder %s86, 1
        %s6150 = scalar_select %p6149, %s86, 1
        %s6151 = smul.addr %s6150, 4
        %s6152 = scalar_lea.vmem %s63, %s6151
        %p6153 = scmp.lt.s32.totalorder %s86, 1
        %s6154 = scalar_select %p6153, %s86, 1
        %s6155 = smul.addr %s6154, 2
        %s6156 = scalar_lea.vmem %s65, %s6155
        %p6157 = scmp.lt.s32.totalorder %s86, 1
        %s6158 = scalar_select %p6157, %s86, 1
        %s6159 = scalar_lea.vmem %s67, %s6158
        // Predicated region
        $region181: #{yolov3_multi_gdip_forward.3} parent=131 // pred_check
          %p6160 = pneg %p697
        $region182: #{yolov3_multi_gdip_forward.3} parent=131 // pred_check_branch
          %6162 = sbr.rel (%p6160) target = $region184
        $region183: #{yolov3_multi_gdip_forward.3} parent=131 // pred_region
          _
        $region184: #{yolov3_multi_gdip_forward.3} parent=131 // pred_fallthru
          _
        // Predicated region
        $region185: #{yolov3_multi_gdip_forward.3} parent=131 // pred_check
          %p6163 = pneg %p723
        $region186: #{yolov3_multi_gdip_forward.3} parent=131 // pred_check_branch
          %6165 = sbr.rel (%p6163) target = $region188
        $region187: #{yolov3_multi_gdip_forward.3} parent=131 // pred_region
          _
        $region188: #{yolov3_multi_gdip_forward.3} parent=131 // pred_fallthru
          _
        // Predicated region
        $region189: #{yolov3_multi_gdip_forward.3} parent=131 // pred_check
          %p6166 = pneg %p749
        $region190: #{yolov3_multi_gdip_forward.3} parent=131 // pred_check_branch
          %6168 = sbr.rel (%p6166) target = $region192
        $region191: #{yolov3_multi_gdip_forward.3} parent=131 // pred_region
          _
        $region192: #{yolov3_multi_gdip_forward.3} parent=131 // pred_fallthru
          _
        // Predicated region
        $region193: #{yolov3_multi_gdip_forward.3} parent=131 // pred_check
          %p6169 = pneg %p775
        $region194: #{yolov3_multi_gdip_forward.3} parent=131 // pred_check_branch
          %6171 = sbr.rel (%p6169) target = $region196
        $region195: #{yolov3_multi_gdip_forward.3} parent=131 // pred_region
          _
        $region196: #{yolov3_multi_gdip_forward.3} parent=131 // pred_fallthru
          _
        // Predicated region
        $region197: #{yolov3_multi_gdip_forward.3} parent=131 // pred_check
          %p6172 = pneg %p801
        $region198: #{yolov3_multi_gdip_forward.3} parent=131 // pred_check_branch
          %6174 = sbr.rel (%p6172) target = $region200
        $region199: #{yolov3_multi_gdip_forward.3} parent=131 // pred_region
          _
        $region200: #{yolov3_multi_gdip_forward.3} parent=131 // pred_fallthru
          _
        // Predicated region
        $region201: #{yolov3_multi_gdip_forward.3} parent=131 // pred_check
          %p6175 = pneg %p827
        $region202: #{yolov3_multi_gdip_forward.3} parent=131 // pred_check_branch
          %6177 = sbr.rel (%p6175) target = $region204
        $region203: #{yolov3_multi_gdip_forward.3} parent=131 // pred_region
          _
        $region204: #{yolov3_multi_gdip_forward.3} parent=131 // pred_fallthru
          _
      $region132: #{yolov3_multi_gdip_forward.3} parent=5 // pred_fallthru
        _
      %p6178 = scmp.le.s32.totalorder 2, %s81
      // Predicated region
      $region205: #{yolov3_multi_gdip_forward.3} parent=5 // pred_check
        %p6179 = pneg %p6178
      $region206: #{yolov3_multi_gdip_forward.3} parent=5 // pred_check_branch
        %6181 = sbr.rel (%p6179) target = $region208
      $region207: #{yolov3_multi_gdip_forward.3} parent=5 // pred_region
        %s6182 = ssub.s32 %s81, 2
        // Predicated region
        $region209: #{yolov3_multi_gdip_forward.3} parent=207 // pred_check
          %p6183 = pneg %p703
        $region210: #{yolov3_multi_gdip_forward.3} parent=207 // pred_check_branch
          %6185 = sbr.rel (%p6183) target = $region212
        $region211: #{yolov3_multi_gdip_forward.3} parent=207 // pred_region
          %p6186 = scmp.lt.s32.totalorder %s87, 1
          %s6187 = scalar_select %p6186, %s87, 1
          %s6188 = smul.addr %s6187, 4
          %s6189 = scalar_lea.vmem %s57, %s6188
        $region212: #{yolov3_multi_gdip_forward.3} parent=207 // pred_fallthru
          _
        // Predicated region
        $region213: #{yolov3_multi_gdip_forward.3} parent=207 // pred_check
          %p6190 = pneg %p729
        $region214: #{yolov3_multi_gdip_forward.3} parent=207 // pred_check_branch
          %6192 = sbr.rel (%p6190) target = $region216
        $region215: #{yolov3_multi_gdip_forward.3} parent=207 // pred_region
          %p6193 = scmp.lt.s32.totalorder %s87, 1
          %s6194 = scalar_select %p6193, %s87, 1
          %s6195 = smul.addr %s6194, 2
          %s6196 = scalar_lea.vmem %s59, %s6195
        $region216: #{yolov3_multi_gdip_forward.3} parent=207 // pred_fallthru
          _
        // Predicated region
        $region217: #{yolov3_multi_gdip_forward.3} parent=207 // pred_check
          %p6197 = pneg %p755
        $region218: #{yolov3_multi_gdip_forward.3} parent=207 // pred_check_branch
          %6199 = sbr.rel (%p6197) target = $region220
        $region219: #{yolov3_multi_gdip_forward.3} parent=207 // pred_region
          %p6200 = scmp.lt.s32.totalorder %s87, 1
          %s6201 = scalar_select %p6200, %s87, 1
          %s6202 = scalar_lea.vmem %s61, %s6201
        $region220: #{yolov3_multi_gdip_forward.3} parent=207 // pred_fallthru
          _
        // Predicated region
        $region221: #{yolov3_multi_gdip_forward.3} parent=207 // pred_check
          %p6203 = pneg %p781
        $region222: #{yolov3_multi_gdip_forward.3} parent=207 // pred_check_branch
          %6205 = sbr.rel (%p6203) target = $region224
        $region223: #{yolov3_multi_gdip_forward.3} parent=207 // pred_region
          %p6206 = scmp.lt.s32.totalorder %s87, 1
          %s6207 = scalar_select %p6206, %s87, 1
          %s6208 = smul.addr %s6207, 4
          %s6209 = scalar_lea.vmem %s63, %s6208
        $region224: #{yolov3_multi_gdip_forward.3} parent=207 // pred_fallthru
          _
        // Predicated region
        $region225: #{yolov3_multi_gdip_forward.3} parent=207 // pred_check
          %p6210 = pneg %p807
        $region226: #{yolov3_multi_gdip_forward.3} parent=207 // pred_check_branch
          %6212 = sbr.rel (%p6210) target = $region228
        $region227: #{yolov3_multi_gdip_forward.3} parent=207 // pred_region
          %p6213 = scmp.lt.s32.totalorder %s87, 1
          %s6214 = scalar_select %p6213, %s87, 1
          %s6215 = smul.addr %s6214, 2
          %s6216 = scalar_lea.vmem %s65, %s6215
        $region228: #{yolov3_multi_gdip_forward.3} parent=207 // pred_fallthru
          _
        // Predicated region
        $region229: #{yolov3_multi_gdip_forward.3} parent=207 // pred_check
          %p6217 = pneg %p833
        $region230: #{yolov3_multi_gdip_forward.3} parent=207 // pred_check_branch
          %6219 = sbr.rel (%p6217) target = $region232
        $region231: #{yolov3_multi_gdip_forward.3} parent=207 // pred_region
          %p6220 = scmp.lt.s32.totalorder %s87, 1
          %s6221 = scalar_select %p6220, %s87, 1
          %s6222 = scalar_lea.vmem %s67, %s6221
        $region232: #{yolov3_multi_gdip_forward.3} parent=207 // pred_fallthru
          _
      $region208: #{yolov3_multi_gdip_forward.3} parent=5 // pred_fallthru
        _
    $region6: #{yolov3_multi_gdip_forward.3} parent=1 // loop_footer
      %s85 = sadd.s32 1, %s81
    $region7: #{yolov3_multi_gdip_forward.3} parent=1 // loop_footer_branch
      %80 = sbr.rel target = $region3
    $region8: #{yolov3_multi_gdip_forward.3} parent=1 // loop_exit
      _
    %6223 = vsyncpa [#allocation3], 1
    %s6224 = scalar_lea.sflag [#allocation3], 1
    %6225 = vsyncpa %s6224, 1
    %6226 = vsyncpa [#allocation5], 1
    %6227 = vsyncpa [#allocation8], 1
    %6228 = vsyncpa [#allocation11], 1
    %6229 = vsyncpa [#allocation14], 1
    %6230 = vsyncpa [#allocation17], 1
    %6231 = vsyncpa [#allocation20], 1

</llo_original>
